<compile_context>
chip_gen: v7x
topology: tpu7x:2x2x1
jax: 0.10.0
libtpu: 0.0.40
codegen_flags: <defaults>
</compile_context>

<pallas_src>
import functools

import jax
import jax.numpy as jnp
from jax.experimental import pallas as pl
from jax.experimental.pallas import tpu as pltpu

EPS = 1e-10
DTYPE = jnp.bfloat16          # compute dtype for MXU operands
_NEG = -1e30                  # "minus infinity" that stays finite under exp()
VMEM_LIMIT = 32 * 1024 * 1024


def _round_up(x, m):
    return (x + m - 1) // m * m


def _pick_tile(m, cap):
    """Row tile: multiple of 16 (bf16 sublane packing), capped, and split into
    >= 2 blocks when there are enough rows so v7x's two TensorCores both get
    work under dimension_semantics=("parallel",)."""
    tm = _round_up(max(m, 1), 16)
    if m > 16:
        tm = min(tm, _round_up((m + 1) // 2, 16))
    return max(16, min(tm, cap))


def _w_spec(shape):
    nd = len(shape)
    return pl.BlockSpec(shape, lambda i, _nd=nd: (0,) * _nd)


def _compiler_params():
    return pltpu.CompilerParams(dimension_semantics=("parallel",),
                                vmem_limit_bytes=VMEM_LIMIT)


# ---------------------------------------------------------------------------
# Kernel A: fused neighbor aggregation with per-neighbor MLP
#   rows m, neighbors t:
#     x_t   = (ReLU(e1_t @ Gw1a + e2_t @ Gw1b + Gb1)) @ Gw2 + Gb2
#     logit = <ReLU(x_t @ Aw1a + m_t * (center @ Aw1b) + Ab1), Aw2_row> + Ab2
#     w_t   = masked softmax over t   (online / single pass)
#     out   = ReLU((sum_t w_t * x_t) @ AggW + AggB)
# ---------------------------------------------------------------------------
def _neighbor_agg_kernel(e1_ref, e2_ref, center_ref, mask_ref,
                         g_w1a_ref, g_w1b_ref, g_b1_ref, g_w2_ref, g_b2_ref,
                         a_w1a_ref, a_w1b_ref, a_b1_ref, a_w2_ref, a_b2_ref,
                         agg_w_ref, agg_b_ref, o_ref):
    T, TM, D = e1_ref.shape
    cdt = g_w1a_ref.dtype                      # bf16 for MXU operands
    neg = jnp.float32(_NEG)

    # ---- per-neighbor MLP g(.), batched over all T*TM rows (single MXU passes)
    E1 = e1_ref[...].reshape(T * TM, D)
    E2 = e2_ref[...].reshape(T * TM, D)
    H = jnp.dot(E1, g_w1a_ref[...], preferred_element_type=jnp.float32)
    H = H + jnp.dot(E2, g_w1b_ref[...], preferred_element_type=jnp.float32)
    H = jnp.maximum(H + g_b1_ref[...], 0.0)
    X = jnp.dot(H.astype(cdt), g_w2_ref[...],
                preferred_element_type=jnp.float32) + g_b2_ref[...]   # (T*TM, D)

    # ---- attention: x-branch batched over T; center-branch hoisted
    #      (mask_t * center) @ W == mask_t * (center @ W)
    XA = jnp.dot(X.astype(cdt), a_w1a_ref[...],
                 preferred_element_type=jnp.float32)                  # (T*TM, D)
    cW = jnp.dot(center_ref[...], a_w1b_ref[...],
                 preferred_element_type=jnp.float32)                  # (TM, D)

    X3 = X.reshape(T, TM, D)
    XA3 = XA.reshape(T, TM, D)
    mask = mask_ref[...]                                              # (TM, T) f32

    # loop-invariant broadcasts hoisted out of the unrolled t-loop
    a_b1 = jnp.broadcast_to(a_b1_ref[...], (TM, D))
    a_w2 = jnp.broadcast_to(a_w2_ref[...], (TM, D))
    a_b2 = jnp.broadcast_to(a_b2_ref[...], (TM, 1))

    # ---- single-pass (online) masked softmax + weighted neighbor sum
    m_run = jnp.full((TM, 1), neg, jnp.float32)
    denom = jnp.zeros((TM, 1), jnp.float32)
    acc = jnp.zeros((TM, D), jnp.float32)
    for t in range(T):                         # T small & static; VPU-only body
        m_t = mask[:, t:t + 1]                                        # (TM, 1)
        ha = jnp.maximum(XA3[t] + m_t * cW + a_b1, 0.0)
        logit = jnp.sum(ha * a_w2, axis=-1, keepdims=True) + a_b2     # (TM, 1)
        lc = jnp.where(m_t > 0, logit, neg)
        m_new = jnp.maximum(m_run, lc)
        scale = jnp.exp(m_run - m_new)
        w = jnp.exp(lc - m_new) * m_t
        denom = denom * scale + w
        acc = acc * scale + w * X3[t]
        m_run = m_new

    acc = acc * pl.reciprocal(denom + EPS, approx=True)

    out = jnp.dot(acc.astype(cdt), agg_w_ref[...],
                  preferred_element_type=jnp.float32) + agg_b_ref[...]
    o_ref[...] = jnp.maximum(out, 0.0).astype(o_ref.dtype)


def neighbor_agg(e1, e2, center, mask, g_params, att_params, agg_params,
                 *, tile_m=512):
    """e1, e2: (T, M, D); center: (M, D); mask: (M, T) -> (M, D)."""
    T, M, D = e1.shape
    tm = _pick_tile(M, tile_m)
    Mp = _round_up(M, tm)
    if Mp != M:
        e1 = jnp.pad(e1, ((0, 0), (0, Mp - M), (0, 0)))
        e2 = jnp.pad(e2, ((0, 0), (0, Mp - M), (0, 0)))
        center = jnp.pad(center, ((0, Mp - M), (0, 0)))
        mask = jnp.pad(mask, ((0, Mp - M), (0, 0)))
    weights = tuple(g_params) + tuple(att_params) + tuple(agg_params)
    in_specs = [
        pl.BlockSpec((T, tm, D), lambda i: (0, i, 0)),
        pl.BlockSpec((T, tm, D), lambda i: (0, i, 0)),
        pl.BlockSpec((tm, D), lambda i: (i, 0)),
        pl.BlockSpec((tm, T), lambda i: (i, 0)),
    ] + [_w_spec(w.shape) for w in weights]
    out = pl.pallas_call(
        _neighbor_agg_kernel,
        grid=(Mp // tm,),
        in_specs=in_specs,
        out_specs=pl.BlockSpec((tm, D), lambda i: (i, 0)),
        out_shape=jax.ShapeDtypeStruct((Mp, D), DTYPE),
        compiler_params=_compiler_params(),
    )(e1, e2, center, mask, *weights)
    return out[:M]


# ---------------------------------------------------------------------------
# Kernel B: fused outer (social) aggregation over already-computed features f
# (no per-neighbor MLP; neighbor embedding is NOT masked inside the att MLP).
# ---------------------------------------------------------------------------
def _outer_agg_kernel(f_ref, nbr_ref, mask_ref,
                      a_w1a_ref, a_w1b_ref, a_b1_ref, a_w2_ref, a_b2_ref,
                      agg_w_ref, agg_b_ref, o_ref):
    T, TM, D = f_ref.shape
    cdt = a_w1a_ref.dtype
    neg = jnp.float32(_NEG)

    # ---- attention logits fully batched over T (two big MXU passes)
    F = f_ref[...].reshape(T * TM, D)           # bf16
    N = nbr_ref[...].reshape(T * TM, D)
    HA = jnp.dot(F, a_w1a_ref[...], preferred_element_type=jnp.float32)
    HA = HA + jnp.dot(N, a_w1b_ref[...], preferred_element_type=jnp.float32)
    HA = jnp.maximum(HA + a_b1_ref[...], 0.0)
    LOG = jnp.sum(HA * a_w2_ref[...], axis=-1, keepdims=True) + a_b2_ref[...]

    F3 = F.reshape(T, TM, D)
    L3 = LOG.reshape(T, TM, 1)
    mask = mask_ref[...]                        # (TM, T) f32

    # ---- single-pass (online) masked softmax + weighted sum
    m_run = jnp.full((TM, 1), neg, jnp.float32)
    denom = jnp.zeros((TM, 1), jnp.float32)
    acc = jnp.zeros((TM, D), jnp.float32)
    for t in range(T):
        m_t = mask[:, t:t + 1]
        lc = jnp.where(m_t > 0, L3[t], neg)
        m_new = jnp.maximum(m_run, lc)
        scale = jnp.exp(m_run - m_new)
        w = jnp.exp(lc - m_new) * m_t
        denom = denom * scale + w
        acc = acc * scale + w * F3[t].astype(jnp.float32)
        m_run = m_new

    acc = acc * pl.reciprocal(denom + EPS, approx=True)
    out = jnp.dot(acc.astype(cdt), agg_w_ref[...],
                  preferred_element_type=jnp.float32) + agg_b_ref[...]
    o_ref[...] = jnp.maximum(out, 0.0).astype(o_ref.dtype)


def outer_agg(f, nbr, mask, att_params, agg_params, *, tile_m=1024):
    """f, nbr: (T, B, D); mask: (B, T) -> (B, D)."""
    T, B, D = f.shape
    tm = _pick_tile(B, tile_m)
    Bp = _round_up(B, tm)
    if Bp != B:
        f = jnp.pad(f, ((0, 0), (0, Bp - B), (0, 0)))
        nbr = jnp.pad(nbr, ((0, 0), (0, Bp - B), (0, 0)))
        mask = jnp.pad(mask, ((0, Bp - B), (0, 0)))
    weights = tuple(att_params) + tuple(agg_params)
    in_specs = [
        pl.BlockSpec((T, tm, D), lambda i: (0, i, 0)),
        pl.BlockSpec((T, tm, D), lambda i: (0, i, 0)),
        pl.BlockSpec((tm, T), lambda i: (i, 0)),
    ] + [_w_spec(w.shape) for w in weights]
    out = pl.pallas_call(
        _outer_agg_kernel,
        grid=(Bp // tm,),
        in_specs=in_specs,
        out_specs=pl.BlockSpec((tm, D), lambda i: (i, 0)),
        out_shape=jax.ShapeDtypeStruct((Bp, D), DTYPE),
        compiler_params=_compiler_params(),
    )(f, nbr, mask, *weights)
    return out[:B]


# ---------------------------------------------------------------------------
# Kernel C: fused combine_mlp (3x Linear+ReLU) + rate_pred
# (Linear+ReLU, Linear+ReLU, Linear), with all (2D -> D) inputs split on K.
# ---------------------------------------------------------------------------
def _combine_rate_kernel(hii_ref, his_ref, zj_ref,
                         c1a_ref, c1b_ref, c1bias_ref, c2w_ref, c2b_ref,
                         c3w_ref, c3b_ref,
                         r1a_ref, r1b_ref, r1bias_ref, r2w_ref, r2b_ref,
                         r3w_ref, r3b_ref, o_ref):
    c1a = c1a_ref[...]
    cdt = c1a.dtype
    h = jnp.dot(hii_ref[...], c1a, preferred_element_type=jnp.float32)
    h = h + jnp.dot(his_ref[...], c1b_ref[...], preferred_element_type=jnp.float32)
    h = jnp.maximum(h + c1bias_ref[...], 0.0)
    h = jnp.maximum(
        jnp.dot(h.astype(cdt), c2w_ref[...], preferred_element_type=jnp.float32)
        + c2b_ref[...], 0.0)
    h_i = jnp.maximum(
        jnp.dot(h.astype(cdt), c3w_ref[...], preferred_element_type=jnp.float32)
        + c3b_ref[...], 0.0)
    g = jnp.dot(h_i.astype(cdt), r1a_ref[...], preferred_element_type=jnp.float32)
    g = g + jnp.dot(zj_ref[...], r1b_ref[...], preferred_element_type=jnp.float32)
    g = jnp.maximum(g + r1bias_ref[...], 0.0)
    g = jnp.maximum(
        jnp.dot(g.astype(cdt), r2w_ref[...], preferred_element_type=jnp.float32)
        + r2b_ref[...], 0.0)
    # final (D -> 1) layer as a lane reduction (no N=1 MXU matmul)
    r = jnp.sum(g * r3w_ref[...], axis=-1, keepdims=True) + r3b_ref[...]
    o_ref[...] = r.astype(o_ref.dtype)


def combine_rate_pred(h_iI, h_iS, z_j, combine_params, rate_params, *, tile_b=1024):
    B, D = h_iI.shape
    c1w, c1b, c2w, c2b, c3w, c3b = combine_params
    r1w, r1b, r2w, r2b, r3w, r3b = rate_params
    weights = (c1w[:D].astype(DTYPE), c1w[D:].astype(DTYPE), c1b,
               c2w.astype(DTYPE), c2b, c3w.astype(DTYPE), c3b,
               r1w[:D].astype(DTYPE), r1w[D:].astype(DTYPE), r1b,
               r2w.astype(DTYPE), r2b,
               r3w.reshape(1, D), r3b.reshape(1, 1))
    tb = _pick_tile(B, tile_b)
    Bp = _round_up(B, tb)
    if Bp != B:
        pad = ((0, Bp - B), (0, 0))
        h_iI = jnp.pad(h_iI, pad)
        h_iS = jnp.pad(h_iS, pad)
        z_j = jnp.pad(z_j, pad)
    act_spec = pl.BlockSpec((tb, D), lambda i: (i, 0))
    out = pl.pallas_call(
        _combine_rate_kernel,
        grid=(Bp // tb,),
        in_specs=[act_spec] * 3 + [_w_spec(w.shape) for w in weights],
        out_specs=pl.BlockSpec((tb, 1), lambda i: (i, 0)),
        out_shape=jax.ShapeDtypeStruct((Bp, 1), jnp.float32),
        compiler_params=_compiler_params(),
    )(h_iI, h_iS, z_j, *weights)
    return out[:B]


# ---------------------------------------------------------------------------
# Parameter construction (deterministic, synthetic, torch-like layout)
# ---------------------------------------------------------------------------
def _linear_params(key, in_dim, out_dim):
    kw, kb = jax.random.split(key)
    lim = 1.0 / jnp.sqrt(in_dim)
    w = jax.random.uniform(kw, (in_dim, out_dim), jnp.float32, -lim, lim)
    b = jax.random.uniform(kb, (1, out_dim), jnp.float32, -lim, lim)
    return (w, b)


def _mlp2_params(key, in_dim, out_dim):
    k1, k2 = jax.random.split(key)
    w1, b1 = _linear_params(k1, in_dim, in_dim // 2)
    w2, b2 = _linear_params(k2, in_dim // 2, out_dim)
    return (w1, b1, w2, b2)


def build_params(key, num_users, num_items, num_rate_levels, emb_dim):
    D = emb_dim
    keys = jax.random.split(key, 20)
    params = {}

    def emb(k, n):
        e = jax.random.normal(k, (n, D), jnp.float32)
        return e.at[0].set(0.0)  # padding_idx=0

    params["user_emb"] = emb(keys[0], num_users)
    params["item_emb"] = emb(keys[1], num_items)
    params["rate_emb"] = emb(keys[2], num_rate_levels)

    # UserFactor
    params["u_g_v"] = _mlp2_params(keys[3], 2 * D, D)
    params["u_items_att"] = _mlp2_params(keys[4], 2 * D, 1)
    params["u_aggre_items"] = _linear_params(keys[5], D, D)
    params["u_users_att"] = _mlp2_params(keys[6], 2 * D, 1)
    params["u_aggre_neighbors"] = _linear_params(keys[7], D, D)
    c1 = _linear_params(keys[8], 2 * D, D)
    c2 = _linear_params(keys[9], D, D)
    c3 = _linear_params(keys[10], D, D)
    params["combine_mlp"] = c1 + c2 + c3

    # ItemFactor
    params["i_g_u"] = _mlp2_params(keys[11], 2 * D, D)
    params["i_users_att"] = _mlp2_params(keys[12], 2 * D, 1)
    params["i_aggre_users"] = _linear_params(keys[13], D, D)

    # rate_pred
    r1 = _linear_params(keys[14], 2 * D, D)
    r2 = _linear_params(keys[15], D, D)
    r3 = _linear_params(keys[16], D, 1)
    params["rate_pred"] = r1 + r2 + r3
    return params


# ---------------------------------------------------------------------------
# Forward pass (mirrors GNN.forward semantics)
# ---------------------------------------------------------------------------
def _split_mlp2(p, D):
    w1, b1, w2, b2 = p
    return (w1[:D].astype(DTYPE), w1[D:].astype(DTYPE), b1, w2.astype(DTYPE), b2)


def _split_att(p, D):
    w1, b1, w2, b2 = p
    # second (D->1) layer kept as an f32 row vector for the lane reduction
    return (w1[:D].astype(DTYPE), w1[D:].astype(DTYPE), b1,
            w2.reshape(1, D), b2.reshape(1, 1))


def _lin(p):
    w, b = p
    return (w.astype(DTYPE), b)


@functools.partial(jax.jit, static_argnames=("emb_dim",))
def gnn_forward(params, uids, iids, u_item_pad, u_user_pad, u_user_item_pad,
                i_user_pad, emb_dim):
    D = emb_dim
    UE = params["user_emb"].astype(DTYPE)
    IE = params["item_emb"].astype(DTYPE)
    RE = params["rate_emb"].astype(DTYPE)

    g_v = _split_mlp2(params["u_g_v"], D)
    items_att = _split_att(params["u_items_att"], D)
    aggre_items = _lin(params["u_aggre_items"])
    users_att = _split_att(params["u_users_att"], D)
    aggre_nbrs = _lin(params["u_aggre_neighbors"])
    g_u = _split_mlp2(params["i_g_u"], D)
    i_users_att = _split_att(params["i_users_att"], D)
    aggre_users = _lin(params["i_aggre_users"])

    B = uids.shape[0]
    Tu = u_user_pad.shape[1]
    Ts = u_user_item_pad.shape[2]

    # ---------------- UserFactor: item aggregation ----------------
    e1 = IE[u_item_pad[:, :, 0].T]                      # (Ti, B, D)
    e2 = RE[u_item_pad[:, :, 1].T]
    mask_u = (u_item_pad[:, :, 0] > 0).astype(jnp.float32)   # (B, Ti)
    h_iI = neighbor_agg(e1, e2, UE[uids], mask_u,
                        g_v, items_att, aggre_items)    # (B, D)

    # ---------------- UserFactor: social aggregation (inner, over Ts) -------
    s_item = jnp.transpose(u_user_item_pad[:, :, :, 0], (2, 1, 0)).reshape(Ts, Tu * B)
    s_rate = jnp.transpose(u_user_item_pad[:, :, :, 1], (2, 1, 0)).reshape(Ts, Tu * B)
    e1s = IE[s_item]                                    # (Ts, Tu*B, D)
    e2s = RE[s_rate]
    nbr_emb = UE[u_user_pad.T]                          # (Tu, B, D)
    center_s = nbr_emb.reshape(Tu * B, D)
    mask_s = jnp.transpose(u_user_item_pad[:, :, :, 0] > 0,
                           (1, 0, 2)).reshape(Tu * B, Ts).astype(jnp.float32)
    h_oI = neighbor_agg(e1s, e2s, center_s, mask_s,
                        g_v, items_att, aggre_items)    # (Tu*B, D)
    h_oI = h_oI.reshape(Tu, B, D)

    # ---------------- UserFactor: social aggregation (outer, over Tu) -------
    mask_su = (u_user_pad > 0).astype(jnp.float32)      # (B, Tu)
    h_iS = outer_agg(h_oI, nbr_emb, mask_su, users_att, aggre_nbrs)  # (B, D)

    # ---------------- ItemFactor ----------------
    p_t = UE[i_user_pad[:, :, 0].T]                     # (Tj, B, D)
    i_er = RE[i_user_pad[:, :, 1].T]
    mask_i = (i_user_pad[:, :, 0] > 0).astype(jnp.float32)
    z_j = neighbor_agg(p_t, i_er, IE[iids], mask_i,
                       g_u, i_users_att, aggre_users)   # (B, D)

    # ---------------- combine_mlp + rate_pred (fused) ----------------
    r_ij = combine_rate_pred(h_iI, h_iS, z_j,
                             params["combine_mlp"], params["rate_pred"])
    return r_ij                                          # (B, 1)


# ---------------------------------------------------------------------------
# Main
# ---------------------------------------------------------------------------
if __name__ == "__main__":
    num_users, num_items, num_rate_levels = 20, 30, 6
    emb_dim = 32
    B, Ti, Tu, Ts, Tj = 2, 8, 5, 6, 7

    key = jax.random.PRNGKey(0)
    kp, k1, k2, k3, k4, k5, k6 = jax.random.split(key, 7)

    params = build_params(kp, num_users, num_items, num_rate_levels, emb_dim)

    uids = jax.random.randint(k1, (B,), 1, num_users, dtype=jnp.int32)
    iids = jax.random.randint(k2, (B,), 1, num_items, dtype=jnp.int32)
    # padded neighbor tables: id 0 means padding (mask = 0)
    u_item_pad = jnp.stack(
        [jax.random.randint(k3, (B, Ti), 0, num_items, dtype=jnp.int32),
         jax.random.randint(k3, (B, Ti), 1, num_rate_levels, dtype=jnp.int32)],
        axis=2)
    u_user_pad = jax.random.randint(k4, (B, Tu), 0, num_users, dtype=jnp.int32)
    u_user_item_pad = jnp.stack(
        [jax.random.randint(k5, (B, Tu, Ts), 0, num_items, dtype=jnp.int32),
         jax.random.randint(k5, (B, Tu, Ts), 1, num_rate_levels, dtype=jnp.int32)],
        axis=3)
    i_user_pad = jnp.stack(
        [jax.random.randint(k6, (B, Tj), 0, num_users, dtype=jnp.int32),
         jax.random.randint(k6, (B, Tj), 1, num_rate_levels, dtype=jnp.int32)],
        axis=2)

    out = gnn_forward(params, uids, iids, u_item_pad, u_user_pad,
                      u_user_item_pad, i_user_pad, emb_dim)
    out = jax.block_until_ready(out)
    assert out.shape == (B, 1), out.shape
    assert jnp.all(jnp.isfinite(out))
    print("KERNEL_OK")
</pallas_src>

<mosaic_0001>
module attributes {stable_mosaic.version = 11 : i64} {
  func.func @_neighbor_agg_kernel(%arg0: i32, %arg1: memref<6x16x32xbf16, #tpu.memory_space<vmem>>, %arg2: memref<6x16x32xbf16, #tpu.memory_space<vmem>>, %arg3: memref<16x32xbf16, #tpu.memory_space<vmem>>, %arg4: memref<16x6xf32, #tpu.memory_space<vmem>>, %arg5: memref<32x32xbf16, #tpu.memory_space<vmem>>, %arg6: memref<32x32xbf16, #tpu.memory_space<vmem>>, %arg7: memref<1x32xf32, #tpu.memory_space<vmem>>, %arg8: memref<32x32xbf16, #tpu.memory_space<vmem>>, %arg9: memref<1x32xf32, #tpu.memory_space<vmem>>, %arg10: memref<32x32xbf16, #tpu.memory_space<vmem>>, %arg11: memref<32x32xbf16, #tpu.memory_space<vmem>>, %arg12: memref<1x32xf32, #tpu.memory_space<vmem>>, %arg13: memref<1x32xf32, #tpu.memory_space<vmem>>, %arg14: memref<1x1xf32, #tpu.memory_space<vmem>>, %arg15: memref<32x32xbf16, #tpu.memory_space<vmem>>, %arg16: memref<1x32xf32, #tpu.memory_space<vmem>>, %arg17: memref<16x32xbf16, #tpu.memory_space<vmem>>) attributes {dimension_semantics = [#tpu.dimension_semantics<parallel>], iteration_bounds = array<i64: 1>, scalar_prefetch = 0 : i64, scratch_operands = 0 : i64, tpu.core_type = #tpu.core_type<tc>, window_params = [{transform_indices = @transform_0, window_bounds = array<i64: 6, 16, 32>}, {transform_indices = @transform_1, window_bounds = array<i64: 6, 16, 32>}, {transform_indices = @transform_2, window_bounds = array<i64: 16, 32>}, {transform_indices = @transform_3, window_bounds = array<i64: 16, 6>}, {pipeline_mode = #tpu.pipeline_mode<synchronous>, transform_indices = @transform_4, window_bounds = array<i64: 32, 32>}, {pipeline_mode = #tpu.pipeline_mode<synchronous>, transform_indices = @transform_5, window_bounds = array<i64: 32, 32>}, {pipeline_mode = #tpu.pipeline_mode<synchronous>, transform_indices = @transform_6, window_bounds = array<i64: 1, 32>}, {pipeline_mode = #tpu.pipeline_mode<synchronous>, transform_indices = @transform_7, window_bounds = array<i64: 32, 32>}, {pipeline_mode = #tpu.pipeline_mode<synchronous>, transform_indices = @transform_8, window_bounds = array<i64: 1, 32>}, {pipeline_mode = #tpu.pipeline_mode<synchronous>, transform_indices = @transform_9, window_bounds = array<i64: 32, 32>}, {pipeline_mode = #tpu.pipeline_mode<synchronous>, transform_indices = @transform_10, window_bounds = array<i64: 32, 32>}, {pipeline_mode = #tpu.pipeline_mode<synchronous>, transform_indices = @transform_11, window_bounds = array<i64: 1, 32>}, {pipeline_mode = #tpu.pipeline_mode<synchronous>, transform_indices = @transform_12, window_bounds = array<i64: 1, 32>}, {pipeline_mode = #tpu.pipeline_mode<synchronous>, transform_indices = @transform_13, window_bounds = array<i64: 1, 1>}, {pipeline_mode = #tpu.pipeline_mode<synchronous>, transform_indices = @transform_14, window_bounds = array<i64: 32, 32>}, {pipeline_mode = #tpu.pipeline_mode<synchronous>, transform_indices = @transform_15, window_bounds = array<i64: 1, 32>}, {transform_indices = @transform_16, window_bounds = array<i64: 16, 32>}]} {
    %c0 = arith.constant 0 : index
    %c0_0 = arith.constant 0 : index
    %c0_1 = arith.constant 0 : index
    %0 = vector.load %arg1[%c0, %c0_0, %c0_1] : memref<6x16x32xbf16, #tpu.memory_space<vmem>>, vector<6x16x32xbf16>
    %1 = vector.shape_cast %0 : vector<6x16x32xbf16> to vector<96x32xbf16>
    %c0_2 = arith.constant 0 : index
    %c0_3 = arith.constant 0 : index
    %c0_4 = arith.constant 0 : index
    %2 = vector.load %arg2[%c0_2, %c0_3, %c0_4] : memref<6x16x32xbf16, #tpu.memory_space<vmem>>, vector<6x16x32xbf16>
    %3 = vector.shape_cast %2 : vector<6x16x32xbf16> to vector<96x32xbf16>
    %c0_5 = arith.constant 0 : index
    %c0_6 = arith.constant 0 : index
    %4 = vector.load %arg5[%c0_5, %c0_6] : memref<32x32xbf16, #tpu.memory_space<vmem>>, vector<32x32xbf16>
    %cst = arith.constant dense<0.000000e+00> : vector<96x32xf32>
    %5 = tpu.matmul %1, %4, %cst {dimension_numbers = #tpu.dot_dimension_numbers<[1], [0], [0], [1], [0, 0, 1, 1], [], []>} : vector<96x32xbf16>, vector<32x32xbf16>, vector<96x32xf32> -> vector<96x32xf32>
    %c0_7 = arith.constant 0 : index
    %c0_8 = arith.constant 0 : index
    %6 = vector.load %arg6[%c0_7, %c0_8] : memref<32x32xbf16, #tpu.memory_space<vmem>>, vector<32x32xbf16>
    %cst_9 = arith.constant dense<0.000000e+00> : vector<96x32xf32>
    %7 = tpu.matmul %3, %6, %cst_9 {dimension_numbers = #tpu.dot_dimension_numbers<[1], [0], [0], [1], [0, 0, 1, 1], [], []>} : vector<96x32xbf16>, vector<32x32xbf16>, vector<96x32xf32> -> vector<96x32xf32>
    %8 = arith.addf %5, %7 : vector<96x32xf32>
    %c0_10 = arith.constant 0 : index
    %c0_11 = arith.constant 0 : index
    %9 = vector.load %arg7[%c0_10, %c0_11] : memref<1x32xf32, #tpu.memory_space<vmem>>, vector<1x32xf32>
    %10 = vector.broadcast %9 : vector<1x32xf32> to vector<96x32xf32>
    %11 = arith.addf %8, %10 : vector<96x32xf32>
    %cst_12 = arith.constant 0.000000e+00 : f32
    %12 = vector.broadcast %cst_12 : f32 to vector<96x32xf32>
    %13 = arith.maximumf %11, %12 : vector<96x32xf32>
    %14 = arith.truncf %13 : vector<96x32xf32> to vector<96x32xbf16>
    %c0_13 = arith.constant 0 : index
    %c0_14 = arith.constant 0 : index
    %15 = vector.load %arg8[%c0_13, %c0_14] : memref<32x32xbf16, #tpu.memory_space<vmem>>, vector<32x32xbf16>
    %cst_15 = arith.constant dense<0.000000e+00> : vector<96x32xf32>
    %16 = tpu.matmul %14, %15, %cst_15 {dimension_numbers = #tpu.dot_dimension_numbers<[1], [0], [0], [1], [0, 0, 1, 1], [], []>} : vector<96x32xbf16>, vector<32x32xbf16>, vector<96x32xf32> -> vector<96x32xf32>
    %c0_16 = arith.constant 0 : index
    %c0_17 = arith.constant 0 : index
    %17 = vector.load %arg9[%c0_16, %c0_17] : memref<1x32xf32, #tpu.memory_space<vmem>>, vector<1x32xf32>
    %18 = vector.broadcast %17 : vector<1x32xf32> to vector<96x32xf32>
    %19 = arith.addf %16, %18 : vector<96x32xf32>
    %20 = arith.truncf %19 : vector<96x32xf32> to vector<96x32xbf16>
    %c0_18 = arith.constant 0 : index
    %c0_19 = arith.constant 0 : index
    %21 = vector.load %arg10[%c0_18, %c0_19] : memref<32x32xbf16, #tpu.memory_space<vmem>>, vector<32x32xbf16>
    %cst_20 = arith.constant dense<0.000000e+00> : vector<96x32xf32>
    %22 = tpu.matmul %20, %21, %cst_20 {dimension_numbers = #tpu.dot_dimension_numbers<[1], [0], [0], [1], [0, 0, 1, 1], [], []>} : vector<96x32xbf16>, vector<32x32xbf16>, vector<96x32xf32> -> vector<96x32xf32>
    %c0_21 = arith.constant 0 : index
    %c0_22 = arith.constant 0 : index
    %23 = vector.load %arg3[%c0_21, %c0_22] : memref<16x32xbf16, #tpu.memory_space<vmem>>, vector<16x32xbf16>
    %c0_23 = arith.constant 0 : index
    %c0_24 = arith.constant 0 : index
    %24 = vector.load %arg11[%c0_23, %c0_24] : memref<32x32xbf16, #tpu.memory_space<vmem>>, vector<32x32xbf16>
    %cst_25 = arith.constant dense<0.000000e+00> : vector<16x32xf32>
    %25 = tpu.matmul %23, %24, %cst_25 {dimension_numbers = #tpu.dot_dimension_numbers<[1], [0], [0], [1], [0, 0, 1, 1], [], []>} : vector<16x32xbf16>, vector<32x32xbf16>, vector<16x32xf32> -> vector<16x32xf32>
    %26 = vector.shape_cast %19 : vector<96x32xf32> to vector<6x16x32xf32>
    %27 = vector.shape_cast %22 : vector<96x32xf32> to vector<6x16x32xf32>
    %c0_26 = arith.constant 0 : index
    %c0_27 = arith.constant 0 : index
    %28 = vector.load %arg4[%c0_26, %c0_27] : memref<16x6xf32, #tpu.memory_space<vmem>>, vector<16x6xf32>
    %c0_28 = arith.constant 0 : index
    %c0_29 = arith.constant 0 : index
    %29 = vector.load %arg12[%c0_28, %c0_29] : memref<1x32xf32, #tpu.memory_space<vmem>>, vector<1x32xf32>
    %30 = vector.shape_cast %29 : vector<1x32xf32> to vector<1x32xf32>
    %31 = vector.broadcast %30 : vector<1x32xf32> to vector<16x32xf32>
    %c0_30 = arith.constant 0 : index
    %c0_31 = arith.constant 0 : index
    %32 = vector.load %arg13[%c0_30, %c0_31] : memref<1x32xf32, #tpu.memory_space<vmem>>, vector<1x32xf32>
    %33 = vector.shape_cast %32 : vector<1x32xf32> to vector<1x32xf32>
    %34 = vector.broadcast %33 : vector<1x32xf32> to vector<16x32xf32>
    %c0_32 = arith.constant 0 : index
    %c0_33 = arith.constant 0 : index
    %35 = vector.load %arg14[%c0_32, %c0_33] : memref<1x1xf32, #tpu.memory_space<vmem>>, vector<1x1xf32>
    %36 = vector.shape_cast %35 : vector<1x1xf32> to vector<1x1xf32>
    %37 = vector.broadcast %36 : vector<1x1xf32> to vector<16x1xf32>
    %cst_34 = arith.constant -1.000000e+30 : f32
    %38 = vector.broadcast %cst_34 : f32 to vector<16x1xf32>
    %cst_35 = arith.constant 0.000000e+00 : f32
    %39 = vector.broadcast %cst_35 : f32 to vector<16x1xf32>
    %cst_36 = arith.constant 0.000000e+00 : f32
    %40 = vector.broadcast %cst_36 : f32 to vector<16x32xf32>
    %41 = vector.extract_strided_slice %28 {offsets = [0, 0], sizes = [16, 1], strides = [1, 1]} : vector<16x6xf32> to vector<16x1xf32>
    %42 = vector.extract_strided_slice %27 {offsets = [0, 0, 0], sizes = [1, 16, 32], strides = [1, 1, 1]} : vector<6x16x32xf32> to vector<1x16x32xf32>
    %43 = vector.shape_cast %42 : vector<1x16x32xf32> to vector<16x32xf32>
    %44 = vector.broadcast %41 : vector<16x1xf32> to vector<16x32xf32>
    %45 = arith.mulf %44, %25 : vector<16x32xf32>
    %46 = arith.addf %43, %45 : vector<16x32xf32>
    %47 = arith.addf %46, %31 : vector<16x32xf32>
    %cst_37 = arith.constant 0.000000e+00 : f32
    %48 = vector.broadcast %cst_37 : f32 to vector<16x32xf32>
    %49 = arith.maximumf %47, %48 : vector<16x32xf32>
    %50 = arith.mulf %49, %34 : vector<16x32xf32>
    %cst_38 = arith.constant dense<0.000000e+00> : vector<16xf32>
    %51 = vector.multi_reduction <add>, %50, %cst_38 [1] : vector<16x32xf32> to vector<16xf32>
    %52 = vector.shape_cast %51 : vector<16xf32> to vector<16x1xf32>
    %53 = arith.addf %52, %37 : vector<16x1xf32>
    %cst_39 = arith.constant 0.000000e+00 : f32
    %54 = vector.broadcast %cst_39 : f32 to vector<16x1xf32>
    %55 = arith.cmpf ogt, %41, %54 : vector<16x1xf32>
    %cst_40 = arith.constant -1.000000e+30 : f32
    %56 = vector.broadcast %cst_40 : f32 to vector<16x1xf32>
    %57 = arith.select %55, %53, %56 : vector<16x1xi1>, vector<16x1xf32>
    %58 = arith.maximumf %38, %57 : vector<16x1xf32>
    %59 = arith.subf %38, %58 : vector<16x1xf32>
    %60 = math.exp %59 : vector<16x1xf32>
    %61 = arith.subf %57, %58 : vector<16x1xf32>
    %62 = math.exp %61 : vector<16x1xf32>
    %63 = arith.mulf %62, %41 : vector<16x1xf32>
    %64 = arith.mulf %39, %60 : vector<16x1xf32>
    %65 = arith.addf %64, %63 : vector<16x1xf32>
    %66 = vector.broadcast %60 : vector<16x1xf32> to vector<16x32xf32>
    %67 = arith.mulf %40, %66 : vector<16x32xf32>
    %68 = vector.extract_strided_slice %26 {offsets = [0, 0, 0], sizes = [1, 16, 32], strides = [1, 1, 1]} : vector<6x16x32xf32> to vector<1x16x32xf32>
    %69 = vector.shape_cast %68 : vector<1x16x32xf32> to vector<16x32xf32>
    %70 = vector.broadcast %63 : vector<16x1xf32> to vector<16x32xf32>
    %71 = arith.mulf %70, %69 : vector<16x32xf32>
    %72 = arith.addf %67, %71 : vector<16x32xf32>
    %73 = vector.extract_strided_slice %28 {offsets = [0, 1], sizes = [16, 1], strides = [1, 1]} : vector<16x6xf32> to vector<16x1xf32>
    %74 = vector.extract_strided_slice %27 {offsets = [1, 0, 0], sizes = [1, 16, 32], strides = [1, 1, 1]} : vector<6x16x32xf32> to vector<1x16x32xf32>
    %75 = vector.shape_cast %74 : vector<1x16x32xf32> to vector<16x32xf32>
    %76 = vector.broadcast %73 : vector<16x1xf32> to vector<16x32xf32>
    %77 = arith.mulf %76, %25 : vector<16x32xf32>
    %78 = arith.addf %75, %77 : vector<16x32xf32>
    %79 = arith.addf %78, %31 : vector<16x32xf32>
    %cst_41 = arith.constant 0.000000e+00 : f32
    %80 = vector.broadcast %cst_41 : f32 to vector<16x32xf32>
    %81 = arith.maximumf %79, %80 : vector<16x32xf32>
    %82 = arith.mulf %81, %34 : vector<16x32xf32>
    %cst_42 = arith.constant dense<0.000000e+00> : vector<16xf32>
    %83 = vector.multi_reduction <add>, %82, %cst_42 [1] : vector<16x32xf32> to vector<16xf32>
    %84 = vector.shape_cast %83 : vector<16xf32> to vector<16x1xf32>
    %85 = arith.addf %84, %37 : vector<16x1xf32>
    %cst_43 = arith.constant 0.000000e+00 : f32
    %86 = vector.broadcast %cst_43 : f32 to vector<16x1xf32>
    %87 = arith.cmpf ogt, %73, %86 : vector<16x1xf32>
    %cst_44 = arith.constant -1.000000e+30 : f32
    %88 = vector.broadcast %cst_44 : f32 to vector<16x1xf32>
    %89 = arith.select %87, %85, %88 : vector<16x1xi1>, vector<16x1xf32>
    %90 = arith.maximumf %58, %89 : vector<16x1xf32>
    %91 = arith.subf %58, %90 : vector<16x1xf32>
    %92 = math.exp %91 : vector<16x1xf32>
    %93 = arith.subf %89, %90 : vector<16x1xf32>
    %94 = math.exp %93 : vector<16x1xf32>
    %95 = arith.mulf %94, %73 : vector<16x1xf32>
    %96 = arith.mulf %65, %92 : vector<16x1xf32>
    %97 = arith.addf %96, %95 : vector<16x1xf32>
    %98 = vector.broadcast %92 : vector<16x1xf32> to vector<16x32xf32>
    %99 = arith.mulf %72, %98 : vector<16x32xf32>
    %100 = vector.extract_strided_slice %26 {offsets = [1, 0, 0], sizes = [1, 16, 32], strides = [1, 1, 1]} : vector<6x16x32xf32> to vector<1x16x32xf32>
    %101 = vector.shape_cast %100 : vector<1x16x32xf32> to vector<16x32xf32>
    %102 = vector.broadcast %95 : vector<16x1xf32> to vector<16x32xf32>
    %103 = arith.mulf %102, %101 : vector<16x32xf32>
    %104 = arith.addf %99, %103 : vector<16x32xf32>
    %105 = vector.extract_strided_slice %28 {offsets = [0, 2], sizes = [16, 1], strides = [1, 1]} : vector<16x6xf32> to vector<16x1xf32>
    %106 = vector.extract_strided_slice %27 {offsets = [2, 0, 0], sizes = [1, 16, 32], strides = [1, 1, 1]} : vector<6x16x32xf32> to vector<1x16x32xf32>
    %107 = vector.shape_cast %106 : vector<1x16x32xf32> to vector<16x32xf32>
    %108 = vector.broadcast %105 : vector<16x1xf32> to vector<16x32xf32>
    %109 = arith.mulf %108, %25 : vector<16x32xf32>
    %110 = arith.addf %107, %109 : vector<16x32xf32>
    %111 = arith.addf %110, %31 : vector<16x32xf32>
    %cst_45 = arith.constant 0.000000e+00 : f32
    %112 = vector.broadcast %cst_45 : f32 to vector<16x32xf32>
    %113 = arith.maximumf %111, %112 : vector<16x32xf32>
    %114 = arith.mulf %113, %34 : vector<16x32xf32>
    %cst_46 = arith.constant dense<0.000000e+00> : vector<16xf32>
    %115 = vector.multi_reduction <add>, %114, %cst_46 [1] : vector<16x32xf32> to vector<16xf32>
    %116 = vector.shape_cast %115 : vector<16xf32> to vector<16x1xf32>
    %117 = arith.addf %116, %37 : vector<16x1xf32>
    %cst_47 = arith.constant 0.000000e+00 : f32
    %118 = vector.broadcast %cst_47 : f32 to vector<16x1xf32>
    %119 = arith.cmpf ogt, %105, %118 : vector<16x1xf32>
    %cst_48 = arith.constant -1.000000e+30 : f32
    %120 = vector.broadcast %cst_48 : f32 to vector<16x1xf32>
    %121 = arith.select %119, %117, %120 : vector<16x1xi1>, vector<16x1xf32>
    %122 = arith.maximumf %90, %121 : vector<16x1xf32>
    %123 = arith.subf %90, %122 : vector<16x1xf32>
    %124 = math.exp %123 : vector<16x1xf32>
    %125 = arith.subf %121, %122 : vector<16x1xf32>
    %126 = math.exp %125 : vector<16x1xf32>
    %127 = arith.mulf %126, %105 : vector<16x1xf32>
    %128 = arith.mulf %97, %124 : vector<16x1xf32>
    %129 = arith.addf %128, %127 : vector<16x1xf32>
    %130 = vector.broadcast %124 : vector<16x1xf32> to vector<16x32xf32>
    %131 = arith.mulf %104, %130 : vector<16x32xf32>
    %132 = vector.extract_strided_slice %26 {offsets = [2, 0, 0], sizes = [1, 16, 32], strides = [1, 1, 1]} : vector<6x16x32xf32> to vector<1x16x32xf32>
    %133 = vector.shape_cast %132 : vector<1x16x32xf32> to vector<16x32xf32>
    %134 = vector.broadcast %127 : vector<16x1xf32> to vector<16x32xf32>
    %135 = arith.mulf %134, %133 : vector<16x32xf32>
    %136 = arith.addf %131, %135 : vector<16x32xf32>
    %137 = vector.extract_strided_slice %28 {offsets = [0, 3], sizes = [16, 1], strides = [1, 1]} : vector<16x6xf32> to vector<16x1xf32>
    %138 = vector.extract_strided_slice %27 {offsets = [3, 0, 0], sizes = [1, 16, 32], strides = [1, 1, 1]} : vector<6x16x32xf32> to vector<1x16x32xf32>
    %139 = vector.shape_cast %138 : vector<1x16x32xf32> to vector<16x32xf32>
    %140 = vector.broadcast %137 : vector<16x1xf32> to vector<16x32xf32>
    %141 = arith.mulf %140, %25 : vector<16x32xf32>
    %142 = arith.addf %139, %141 : vector<16x32xf32>
    %143 = arith.addf %142, %31 : vector<16x32xf32>
    %cst_49 = arith.constant 0.000000e+00 : f32
    %144 = vector.broadcast %cst_49 : f32 to vector<16x32xf32>
    %145 = arith.maximumf %143, %144 : vector<16x32xf32>
    %146 = arith.mulf %145, %34 : vector<16x32xf32>
    %cst_50 = arith.constant dense<0.000000e+00> : vector<16xf32>
    %147 = vector.multi_reduction <add>, %146, %cst_50 [1] : vector<16x32xf32> to vector<16xf32>
    %148 = vector.shape_cast %147 : vector<16xf32> to vector<16x1xf32>
    %149 = arith.addf %148, %37 : vector<16x1xf32>
    %cst_51 = arith.constant 0.000000e+00 : f32
    %150 = vector.broadcast %cst_51 : f32 to vector<16x1xf32>
    %151 = arith.cmpf ogt, %137, %150 : vector<16x1xf32>
    %cst_52 = arith.constant -1.000000e+30 : f32
    %152 = vector.broadcast %cst_52 : f32 to vector<16x1xf32>
    %153 = arith.select %151, %149, %152 : vector<16x1xi1>, vector<16x1xf32>
    %154 = arith.maximumf %122, %153 : vector<16x1xf32>
    %155 = arith.subf %122, %154 : vector<16x1xf32>
    %156 = math.exp %155 : vector<16x1xf32>
    %157 = arith.subf %153, %154 : vector<16x1xf32>
    %158 = math.exp %157 : vector<16x1xf32>
    %159 = arith.mulf %158, %137 : vector<16x1xf32>
    %160 = arith.mulf %129, %156 : vector<16x1xf32>
    %161 = arith.addf %160, %159 : vector<16x1xf32>
    %162 = vector.broadcast %156 : vector<16x1xf32> to vector<16x32xf32>
    %163 = arith.mulf %136, %162 : vector<16x32xf32>
    %164 = vector.extract_strided_slice %26 {offsets = [3, 0, 0], sizes = [1, 16, 32], strides = [1, 1, 1]} : vector<6x16x32xf32> to vector<1x16x32xf32>
    %165 = vector.shape_cast %164 : vector<1x16x32xf32> to vector<16x32xf32>
    %166 = vector.broadcast %159 : vector<16x1xf32> to vector<16x32xf32>
    %167 = arith.mulf %166, %165 : vector<16x32xf32>
    %168 = arith.addf %163, %167 : vector<16x32xf32>
    %169 = vector.extract_strided_slice %28 {offsets = [0, 4], sizes = [16, 1], strides = [1, 1]} : vector<16x6xf32> to vector<16x1xf32>
    %170 = vector.extract_strided_slice %27 {offsets = [4, 0, 0], sizes = [1, 16, 32], strides = [1, 1, 1]} : vector<6x16x32xf32> to vector<1x16x32xf32>
    %171 = vector.shape_cast %170 : vector<1x16x32xf32> to vector<16x32xf32>
    %172 = vector.broadcast %169 : vector<16x1xf32> to vector<16x32xf32>
    %173 = arith.mulf %172, %25 : vector<16x32xf32>
    %174 = arith.addf %171, %173 : vector<16x32xf32>
    %175 = arith.addf %174, %31 : vector<16x32xf32>
    %cst_53 = arith.constant 0.000000e+00 : f32
    %176 = vector.broadcast %cst_53 : f32 to vector<16x32xf32>
    %177 = arith.maximumf %175, %176 : vector<16x32xf32>
    %178 = arith.mulf %177, %34 : vector<16x32xf32>
    %cst_54 = arith.constant dense<0.000000e+00> : vector<16xf32>
    %179 = vector.multi_reduction <add>, %178, %cst_54 [1] : vector<16x32xf32> to vector<16xf32>
    %180 = vector.shape_cast %179 : vector<16xf32> to vector<16x1xf32>
    %181 = arith.addf %180, %37 : vector<16x1xf32>
    %cst_55 = arith.constant 0.000000e+00 : f32
    %182 = vector.broadcast %cst_55 : f32 to vector<16x1xf32>
    %183 = arith.cmpf ogt, %169, %182 : vector<16x1xf32>
    %cst_56 = arith.constant -1.000000e+30 : f32
    %184 = vector.broadcast %cst_56 : f32 to vector<16x1xf32>
    %185 = arith.select %183, %181, %184 : vector<16x1xi1>, vector<16x1xf32>
    %186 = arith.maximumf %154, %185 : vector<16x1xf32>
    %187 = arith.subf %154, %186 : vector<16x1xf32>
    %188 = math.exp %187 : vector<16x1xf32>
    %189 = arith.subf %185, %186 : vector<16x1xf32>
    %190 = math.exp %189 : vector<16x1xf32>
    %191 = arith.mulf %190, %169 : vector<16x1xf32>
    %192 = arith.mulf %161, %188 : vector<16x1xf32>
    %193 = arith.addf %192, %191 : vector<16x1xf32>
    %194 = vector.broadcast %188 : vector<16x1xf32> to vector<16x32xf32>
    %195 = arith.mulf %168, %194 : vector<16x32xf32>
    %196 = vector.extract_strided_slice %26 {offsets = [4, 0, 0], sizes = [1, 16, 32], strides = [1, 1, 1]} : vector<6x16x32xf32> to vector<1x16x32xf32>
    %197 = vector.shape_cast %196 : vector<1x16x32xf32> to vector<16x32xf32>
    %198 = vector.broadcast %191 : vector<16x1xf32> to vector<16x32xf32>
    %199 = arith.mulf %198, %197 : vector<16x32xf32>
    %200 = arith.addf %195, %199 : vector<16x32xf32>
    %201 = vector.extract_strided_slice %28 {offsets = [0, 5], sizes = [16, 1], strides = [1, 1]} : vector<16x6xf32> to vector<16x1xf32>
    %202 = vector.extract_strided_slice %27 {offsets = [5, 0, 0], sizes = [1, 16, 32], strides = [1, 1, 1]} : vector<6x16x32xf32> to vector<1x16x32xf32>
    %203 = vector.shape_cast %202 : vector<1x16x32xf32> to vector<16x32xf32>
    %204 = vector.broadcast %201 : vector<16x1xf32> to vector<16x32xf32>
    %205 = arith.mulf %204, %25 : vector<16x32xf32>
    %206 = arith.addf %203, %205 : vector<16x32xf32>
    %207 = arith.addf %206, %31 : vector<16x32xf32>
    %cst_57 = arith.constant 0.000000e+00 : f32
    %208 = vector.broadcast %cst_57 : f32 to vector<16x32xf32>
    %209 = arith.maximumf %207, %208 : vector<16x32xf32>
    %210 = arith.mulf %209, %34 : vector<16x32xf32>
    %cst_58 = arith.constant dense<0.000000e+00> : vector<16xf32>
    %211 = vector.multi_reduction <add>, %210, %cst_58 [1] : vector<16x32xf32> to vector<16xf32>
    %212 = vector.shape_cast %211 : vector<16xf32> to vector<16x1xf32>
    %213 = arith.addf %212, %37 : vector<16x1xf32>
    %cst_59 = arith.constant 0.000000e+00 : f32
    %214 = vector.broadcast %cst_59 : f32 to vector<16x1xf32>
    %215 = arith.cmpf ogt, %201, %214 : vector<16x1xf32>
    %cst_60 = arith.constant -1.000000e+30 : f32
    %216 = vector.broadcast %cst_60 : f32 to vector<16x1xf32>
    %217 = arith.select %215, %213, %216 : vector<16x1xi1>, vector<16x1xf32>
    %218 = arith.maximumf %186, %217 : vector<16x1xf32>
    %219 = arith.subf %186, %218 : vector<16x1xf32>
    %220 = math.exp %219 : vector<16x1xf32>
    %221 = arith.subf %217, %218 : vector<16x1xf32>
    %222 = math.exp %221 : vector<16x1xf32>
    %223 = arith.mulf %222, %201 : vector<16x1xf32>
    %224 = arith.mulf %193, %220 : vector<16x1xf32>
    %225 = arith.addf %224, %223 : vector<16x1xf32>
    %226 = vector.broadcast %220 : vector<16x1xf32> to vector<16x32xf32>
    %227 = arith.mulf %200, %226 : vector<16x32xf32>
    %228 = vector.extract_strided_slice %26 {offsets = [5, 0, 0], sizes = [1, 16, 32], strides = [1, 1, 1]} : vector<6x16x32xf32> to vector<1x16x32xf32>
    %229 = vector.shape_cast %228 : vector<1x16x32xf32> to vector<16x32xf32>
    %230 = vector.broadcast %223 : vector<16x1xf32> to vector<16x32xf32>
    %231 = arith.mulf %230, %229 : vector<16x32xf32>
    %232 = arith.addf %227, %231 : vector<16x32xf32>
    %cst_61 = arith.constant 1.000000e-10 : f32
    %233 = vector.broadcast %cst_61 : f32 to vector<16x1xf32>
    %234 = arith.addf %225, %233 : vector<16x1xf32>
    %235 = tpu.reciprocal %234 {approx = true} : vector<16x1xf32> -> vector<16x1xf32>
    %236 = vector.broadcast %235 : vector<16x1xf32> to vector<16x32xf32>
    %237 = arith.mulf %232, %236 : vector<16x32xf32>
    %238 = arith.truncf %237 : vector<16x32xf32> to vector<16x32xbf16>
    %c0_62 = arith.constant 0 : index
    %c0_63 = arith.constant 0 : index
    %239 = vector.load %arg15[%c0_62, %c0_63] : memref<32x32xbf16, #tpu.memory_space<vmem>>, vector<32x32xbf16>
    %cst_64 = arith.constant dense<0.000000e+00> : vector<16x32xf32>
    %240 = tpu.matmul %238, %239, %cst_64 {dimension_numbers = #tpu.dot_dimension_numbers<[1], [0], [0], [1], [0, 0, 1, 1], [], []>} : vector<16x32xbf16>, vector<32x32xbf16>, vector<16x32xf32> -> vector<16x32xf32>
    %c0_65 = arith.constant 0 : index
    %c0_66 = arith.constant 0 : index
    %241 = vector.load %arg16[%c0_65, %c0_66] : memref<1x32xf32, #tpu.memory_space<vmem>>, vector<1x32xf32>
    %242 = vector.broadcast %241 : vector<1x32xf32> to vector<16x32xf32>
    %243 = arith.addf %240, %242 : vector<16x32xf32>
    %cst_67 = arith.constant 0.000000e+00 : f32
    %244 = vector.broadcast %cst_67 : f32 to vector<16x32xf32>
    %245 = arith.maximumf %243, %244 : vector<16x32xf32>
    %246 = arith.truncf %245 : vector<16x32xf32> to vector<16x32xbf16>
    %c0_68 = arith.constant 0 : index
    %c0_69 = arith.constant 0 : index
    %247 = vector.load %arg17[%c0_68, %c0_69] : memref<16x32xbf16, #tpu.memory_space<vmem>>, vector<16x32xbf16>
    tpu.vector_store %arg17[%c0_68, %c0_69], %246 {strides = array<i32>} : memref<16x32xbf16, #tpu.memory_space<vmem>>, vector<16x32xbf16>,
    return
  }
  func.func @transform_0(%arg0: i32) -> (i32, i32, i32) {
    %c0_i32 = arith.constant 0 : i32
    %c0_i32_0 = arith.constant 0 : i32
    %c0_i32_1 = arith.constant 0 : i32
    return %c0_i32, %arg0, %c0_i32_0 : i32, i32, i32
  }
  func.func @transform_1(%arg0: i32) -> (i32, i32, i32) {
    %c0_i32 = arith.constant 0 : i32
    %c0_i32_0 = arith.constant 0 : i32
    %c0_i32_1 = arith.constant 0 : i32
    return %c0_i32, %arg0, %c0_i32_0 : i32, i32, i32
  }
  func.func @transform_2(%arg0: i32) -> (i32, i32) {
    %c0_i32 = arith.constant 0 : i32
    %c0_i32_0 = arith.constant 0 : i32
    return %arg0, %c0_i32 : i32, i32
  }
  func.func @transform_3(%arg0: i32) -> (i32, i32) {
    %c0_i32 = arith.constant 0 : i32
    %c0_i32_0 = arith.constant 0 : i32
    return %arg0, %c0_i32 : i32, i32
  }
  func.func @transform_4(%arg0: i32) -> (i32, i32) {
    %c0_i32 = arith.constant 0 : i32
    %c0_i32_0 = arith.constant 0 : i32
    %c0_i32_1 = arith.constant 0 : i32
    return %c0_i32, %c0_i32_0 : i32, i32
  }
  func.func @transform_5(%arg0: i32) -> (i32, i32) {
    %c0_i32 = arith.constant 0 : i32
    %c0_i32_0 = arith.constant 0 : i32
    %c0_i32_1 = arith.constant 0 : i32
    return %c0_i32, %c0_i32_0 : i32, i32
  }
  func.func @transform_6(%arg0: i32) -> (i32, i32) {
    %c0_i32 = arith.constant 0 : i32
    %c0_i32_0 = arith.constant 0 : i32
    %c0_i32_1 = arith.constant 0 : i32
    return %c0_i32, %c0_i32_0 : i32, i32
  }
  func.func @transform_7(%arg0: i32) -> (i32, i32) {
    %c0_i32 = arith.constant 0 : i32
    %c0_i32_0 = arith.constant 0 : i32
    %c0_i32_1 = arith.constant 0 : i32
    return %c0_i32, %c0_i32_0 : i32, i32
  }
  func.func @transform_8(%arg0: i32) -> (i32, i32) {
    %c0_i32 = arith.constant 0 : i32
    %c0_i32_0 = arith.constant 0 : i32
    %c0_i32_1 = arith.constant 0 : i32
    return %c0_i32, %c0_i32_0 : i32, i32
  }
  func.func @transform_9(%arg0: i32) -> (i32, i32) {
    %c0_i32 = arith.constant 0 : i32
    %c0_i32_0 = arith.constant 0 : i32
    %c0_i32_1 = arith.constant 0 : i32
    return %c0_i32, %c0_i32_0 : i32, i32
  }
  func.func @transform_10(%arg0: i32) -> (i32, i32) {
    %c0_i32 = arith.constant 0 : i32
    %c0_i32_0 = arith.constant 0 : i32
    %c0_i32_1 = arith.constant 0 : i32
    return %c0_i32, %c0_i32_0 : i32, i32
  }
  func.func @transform_11(%arg0: i32) -> (i32, i32) {
    %c0_i32 = arith.constant 0 : i32
    %c0_i32_0 = arith.constant 0 : i32
    %c0_i32_1 = arith.constant 0 : i32
    return %c0_i32, %c0_i32_0 : i32, i32
  }
  func.func @transform_12(%arg0: i32) -> (i32, i32) {
    %c0_i32 = arith.constant 0 : i32
    %c0_i32_0 = arith.constant 0 : i32
    %c0_i32_1 = arith.constant 0 : i32
    return %c0_i32, %c0_i32_0 : i32, i32
  }
  func.func @transform_13(%arg0: i32) -> (i32, i32) {
    %c0_i32 = arith.constant 0 : i32
    %c0_i32_0 = arith.constant 0 : i32
    %c0_i32_1 = arith.constant 0 : i32
    return %c0_i32, %c0_i32_0 : i32, i32
  }
  func.func @transform_14(%arg0: i32) -> (i32, i32) {
    %c0_i32 = arith.constant 0 : i32
    %c0_i32_0 = arith.constant 0 : i32
    %c0_i32_1 = arith.constant 0 : i32
    return %c0_i32, %c0_i32_0 : i32, i32
  }
  func.func @transform_15(%arg0: i32) -> (i32, i32) {
    %c0_i32 = arith.constant 0 : i32
    %c0_i32_0 = arith.constant 0 : i32
    %c0_i32_1 = arith.constant 0 : i32
    return %c0_i32, %c0_i32_0 : i32, i32
  }
  func.func @transform_16(%arg0: i32) -> (i32, i32) {
    %c0_i32 = arith.constant 0 : i32
    %c0_i32_0 = arith.constant 0 : i32
    return %arg0, %c0_i32 : i32, i32
  }
}

module attributes {stable_mosaic.version = 11 : i64} {
  func.func @_outer_agg_kernel(%arg0: i32, %arg1: memref<5x16x32xbf16, #tpu.memory_space<vmem>>, %arg2: memref<5x16x32xbf16, #tpu.memory_space<vmem>>, %arg3: memref<16x5xf32, #tpu.memory_space<vmem>>, %arg4: memref<32x32xbf16, #tpu.memory_space<vmem>>, %arg5: memref<32x32xbf16, #tpu.memory_space<vmem>>, %arg6: memref<1x32xf32, #tpu.memory_space<vmem>>, %arg7: memref<1x32xf32, #tpu.memory_space<vmem>>, %arg8: memref<1x1xf32, #tpu.memory_space<vmem>>, %arg9: memref<32x32xbf16, #tpu.memory_space<vmem>>, %arg10: memref<1x32xf32, #tpu.memory_space<vmem>>, %arg11: memref<16x32xbf16, #tpu.memory_space<vmem>>) attributes {dimension_semantics = [#tpu.dimension_semantics<parallel>], iteration_bounds = array<i64: 1>, scalar_prefetch = 0 : i64, scratch_operands = 0 : i64, tpu.core_type = #tpu.core_type<tc>, window_params = [{transform_indices = @transform_0, window_bounds = array<i64: 5, 16, 32>}, {transform_indices = @transform_1, window_bounds = array<i64: 5, 16, 32>}, {transform_indices = @transform_2, window_bounds = array<i64: 16, 5>}, {pipeline_mode = #tpu.pipeline_mode<synchronous>, transform_indices = @transform_3, window_bounds = array<i64: 32, 32>}, {pipeline_mode = #tpu.pipeline_mode<synchronous>, transform_indices = @transform_4, window_bounds = array<i64: 32, 32>}, {pipeline_mode = #tpu.pipeline_mode<synchronous>, transform_indices = @transform_5, window_bounds = array<i64: 1, 32>}, {pipeline_mode = #tpu.pipeline_mode<synchronous>, transform_indices = @transform_6, window_bounds = array<i64: 1, 32>}, {pipeline_mode = #tpu.pipeline_mode<synchronous>, transform_indices = @transform_7, window_bounds = array<i64: 1, 1>}, {pipeline_mode = #tpu.pipeline_mode<synchronous>, transform_indices = @transform_8, window_bounds = array<i64: 32, 32>}, {pipeline_mode = #tpu.pipeline_mode<synchronous>, transform_indices = @transform_9, window_bounds = array<i64: 1, 32>}, {transform_indices = @transform_10, window_bounds = array<i64: 16, 32>}]} {
    %c0 = arith.constant 0 : index
    %c0_0 = arith.constant 0 : index
    %c0_1 = arith.constant 0 : index
    %0 = vector.load %arg1[%c0, %c0_0, %c0_1] : memref<5x16x32xbf16, #tpu.memory_space<vmem>>, vector<5x16x32xbf16>
    %1 = vector.shape_cast %0 : vector<5x16x32xbf16> to vector<80x32xbf16>
    %c0_2 = arith.constant 0 : index
    %c0_3 = arith.constant 0 : index
    %c0_4 = arith.constant 0 : index
    %2 = vector.load %arg2[%c0_2, %c0_3, %c0_4] : memref<5x16x32xbf16, #tpu.memory_space<vmem>>, vector<5x16x32xbf16>
    %3 = vector.shape_cast %2 : vector<5x16x32xbf16> to vector<80x32xbf16>
    %c0_5 = arith.constant 0 : index
    %c0_6 = arith.constant 0 : index
    %4 = vector.load %arg4[%c0_5, %c0_6] : memref<32x32xbf16, #tpu.memory_space<vmem>>, vector<32x32xbf16>
    %cst = arith.constant dense<0.000000e+00> : vector<80x32xf32>
    %5 = tpu.matmul %1, %4, %cst {dimension_numbers = #tpu.dot_dimension_numbers<[1], [0], [0], [1], [0, 0, 1, 1], [], []>} : vector<80x32xbf16>, vector<32x32xbf16>, vector<80x32xf32> -> vector<80x32xf32>
    %c0_7 = arith.constant 0 : index
    %c0_8 = arith.constant 0 : index
    %6 = vector.load %arg5[%c0_7, %c0_8] : memref<32x32xbf16, #tpu.memory_space<vmem>>, vector<32x32xbf16>
    %cst_9 = arith.constant dense<0.000000e+00> : vector<80x32xf32>
    %7 = tpu.matmul %3, %6, %cst_9 {dimension_numbers = #tpu.dot_dimension_numbers<[1], [0], [0], [1], [0, 0, 1, 1], [], []>} : vector<80x32xbf16>, vector<32x32xbf16>, vector<80x32xf32> -> vector<80x32xf32>
    %8 = arith.addf %5, %7 : vector<80x32xf32>
    %c0_10 = arith.constant 0 : index
    %c0_11 = arith.constant 0 : index
    %9 = vector.load %arg6[%c0_10, %c0_11] : memref<1x32xf32, #tpu.memory_space<vmem>>, vector<1x32xf32>
    %10 = vector.broadcast %9 : vector<1x32xf32> to vector<80x32xf32>
    %11 = arith.addf %8, %10 : vector<80x32xf32>
    %cst_12 = arith.constant 0.000000e+00 : f32
    %12 = vector.broadcast %cst_12 : f32 to vector<80x32xf32>
    %13 = arith.maximumf %11, %12 : vector<80x32xf32>
    %c0_13 = arith.constant 0 : index
    %c0_14 = arith.constant 0 : index
    %14 = vector.load %arg7[%c0_13, %c0_14] : memref<1x32xf32, #tpu.memory_space<vmem>>, vector<1x32xf32>
    %15 = vector.broadcast %14 : vector<1x32xf32> to vector<80x32xf32>
    %16 = arith.mulf %13, %15 : vector<80x32xf32>
    %cst_15 = arith.constant dense<0.000000e+00> : vector<80xf32>
    %17 = vector.multi_reduction <add>, %16, %cst_15 [1] : vector<80x32xf32> to vector<80xf32>
    %18 = vector.shape_cast %17 : vector<80xf32> to vector<80x1xf32>
    %c0_16 = arith.constant 0 : index
    %c0_17 = arith.constant 0 : index
    %19 = vector.load %arg8[%c0_16, %c0_17] : memref<1x1xf32, #tpu.memory_space<vmem>>, vector<1x1xf32>
    %20 = vector.broadcast %19 : vector<1x1xf32> to vector<80x1xf32>
    %21 = arith.addf %18, %20 : vector<80x1xf32>
    %22 = vector.shape_cast %1 : vector<80x32xbf16> to vector<5x16x32xbf16>
    %23 = vector.shape_cast %21 : vector<80x1xf32> to vector<5x16x1xf32>
    %c0_18 = arith.constant 0 : index
    %c0_19 = arith.constant 0 : index
    %24 = vector.load %arg3[%c0_18, %c0_19] : memref<16x5xf32, #tpu.memory_space<vmem>>, vector<16x5xf32>
    %cst_20 = arith.constant -1.000000e+30 : f32
    %25 = vector.broadcast %cst_20 : f32 to vector<16x1xf32>
    %cst_21 = arith.constant 0.000000e+00 : f32
    %26 = vector.broadcast %cst_21 : f32 to vector<16x1xf32>
    %cst_22 = arith.constant 0.000000e+00 : f32
    %27 = vector.broadcast %cst_22 : f32 to vector<16x32xf32>
    %28 = vector.extract_strided_slice %24 {offsets = [0, 0], sizes = [16, 1], strides = [1, 1]} : vector<16x5xf32> to vector<16x1xf32>
    %cst_23 = arith.constant 0.000000e+00 : f32
    %29 = vector.broadcast %cst_23 : f32 to vector<16x1xf32>
    %30 = arith.cmpf ogt, %28, %29 : vector<16x1xf32>
    %31 = vector.extract_strided_slice %23 {offsets = [0, 0, 0], sizes = [1, 16, 1], strides = [1, 1, 1]} : vector<5x16x1xf32> to vector<1x16x1xf32>
    %32 = vector.shape_cast %31 : vector<1x16x1xf32> to vector<16x1xf32>
    %cst_24 = arith.constant -1.000000e+30 : f32
    %33 = vector.broadcast %cst_24 : f32 to vector<16x1xf32>
    %34 = arith.select %30, %32, %33 : vector<16x1xi1>, vector<16x1xf32>
    %35 = arith.maximumf %25, %34 : vector<16x1xf32>
    %36 = arith.subf %25, %35 : vector<16x1xf32>
    %37 = math.exp %36 : vector<16x1xf32>
    %38 = arith.subf %34, %35 : vector<16x1xf32>
    %39 = math.exp %38 : vector<16x1xf32>
    %40 = arith.mulf %39, %28 : vector<16x1xf32>
    %41 = arith.mulf %26, %37 : vector<16x1xf32>
    %42 = arith.addf %41, %40 : vector<16x1xf32>
    %43 = vector.broadcast %37 : vector<16x1xf32> to vector<16x32xf32>
    %44 = arith.mulf %27, %43 : vector<16x32xf32>
    %45 = vector.extract_strided_slice %22 {offsets = [0, 0, 0], sizes = [1, 16, 32], strides = [1, 1, 1]} : vector<5x16x32xbf16> to vector<1x16x32xbf16>
    %46 = vector.shape_cast %45 : vector<1x16x32xbf16> to vector<16x32xbf16>
    %47 = arith.extf %46 : vector<16x32xbf16> to vector<16x32xf32>
    %48 = vector.broadcast %40 : vector<16x1xf32> to vector<16x32xf32>
    %49 = arith.mulf %48, %47 : vector<16x32xf32>
    %50 = arith.addf %44, %49 : vector<16x32xf32>
    %51 = vector.extract_strided_slice %24 {offsets = [0, 1], sizes = [16, 1], strides = [1, 1]} : vector<16x5xf32> to vector<16x1xf32>
    %cst_25 = arith.constant 0.000000e+00 : f32
    %52 = vector.broadcast %cst_25 : f32 to vector<16x1xf32>
    %53 = arith.cmpf ogt, %51, %52 : vector<16x1xf32>
    %54 = vector.extract_strided_slice %23 {offsets = [1, 0, 0], sizes = [1, 16, 1], strides = [1, 1, 1]} : vector<5x16x1xf32> to vector<1x16x1xf32>
    %55 = vector.shape_cast %54 : vector<1x16x1xf32> to vector<16x1xf32>
    %cst_26 = arith.constant -1.000000e+30 : f32
    %56 = vector.broadcast %cst_26 : f32 to vector<16x1xf32>
    %57 = arith.select %53, %55, %56 : vector<16x1xi1>, vector<16x1xf32>
    %58 = arith.maximumf %35, %57 : vector<16x1xf32>
    %59 = arith.subf %35, %58 : vector<16x1xf32>
    %60 = math.exp %59 : vector<16x1xf32>
    %61 = arith.subf %57, %58 : vector<16x1xf32>
    %62 = math.exp %61 : vector<16x1xf32>
    %63 = arith.mulf %62, %51 : vector<16x1xf32>
    %64 = arith.mulf %42, %60 : vector<16x1xf32>
    %65 = arith.addf %64, %63 : vector<16x1xf32>
    %66 = vector.broadcast %60 : vector<16x1xf32> to vector<16x32xf32>
    %67 = arith.mulf %50, %66 : vector<16x32xf32>
    %68 = vector.extract_strided_slice %22 {offsets = [1, 0, 0], sizes = [1, 16, 32], strides = [1, 1, 1]} : vector<5x16x32xbf16> to vector<1x16x32xbf16>
    %69 = vector.shape_cast %68 : vector<1x16x32xbf16> to vector<16x32xbf16>
    %70 = arith.extf %69 : vector<16x32xbf16> to vector<16x32xf32>
    %71 = vector.broadcast %63 : vector<16x1xf32> to vector<16x32xf32>
    %72 = arith.mulf %71, %70 : vector<16x32xf32>
    %73 = arith.addf %67, %72 : vector<16x32xf32>
    %74 = vector.extract_strided_slice %24 {offsets = [0, 2], sizes = [16, 1], strides = [1, 1]} : vector<16x5xf32> to vector<16x1xf32>
    %cst_27 = arith.constant 0.000000e+00 : f32
    %75 = vector.broadcast %cst_27 : f32 to vector<16x1xf32>
    %76 = arith.cmpf ogt, %74, %75 : vector<16x1xf32>
    %77 = vector.extract_strided_slice %23 {offsets = [2, 0, 0], sizes = [1, 16, 1], strides = [1, 1, 1]} : vector<5x16x1xf32> to vector<1x16x1xf32>
    %78 = vector.shape_cast %77 : vector<1x16x1xf32> to vector<16x1xf32>
    %cst_28 = arith.constant -1.000000e+30 : f32
    %79 = vector.broadcast %cst_28 : f32 to vector<16x1xf32>
    %80 = arith.select %76, %78, %79 : vector<16x1xi1>, vector<16x1xf32>
    %81 = arith.maximumf %58, %80 : vector<16x1xf32>
    %82 = arith.subf %58, %81 : vector<16x1xf32>
    %83 = math.exp %82 : vector<16x1xf32>
    %84 = arith.subf %80, %81 : vector<16x1xf32>
    %85 = math.exp %84 : vector<16x1xf32>
    %86 = arith.mulf %85, %74 : vector<16x1xf32>
    %87 = arith.mulf %65, %83 : vector<16x1xf32>
    %88 = arith.addf %87, %86 : vector<16x1xf32>
    %89 = vector.broadcast %83 : vector<16x1xf32> to vector<16x32xf32>
    %90 = arith.mulf %73, %89 : vector<16x32xf32>
    %91 = vector.extract_strided_slice %22 {offsets = [2, 0, 0], sizes = [1, 16, 32], strides = [1, 1, 1]} : vector<5x16x32xbf16> to vector<1x16x32xbf16>
    %92 = vector.shape_cast %91 : vector<1x16x32xbf16> to vector<16x32xbf16>
    %93 = arith.extf %92 : vector<16x32xbf16> to vector<16x32xf32>
    %94 = vector.broadcast %86 : vector<16x1xf32> to vector<16x32xf32>
    %95 = arith.mulf %94, %93 : vector<16x32xf32>
    %96 = arith.addf %90, %95 : vector<16x32xf32>
    %97 = vector.extract_strided_slice %24 {offsets = [0, 3], sizes = [16, 1], strides = [1, 1]} : vector<16x5xf32> to vector<16x1xf32>
    %cst_29 = arith.constant 0.000000e+00 : f32
    %98 = vector.broadcast %cst_29 : f32 to vector<16x1xf32>
    %99 = arith.cmpf ogt, %97, %98 : vector<16x1xf32>
    %100 = vector.extract_strided_slice %23 {offsets = [3, 0, 0], sizes = [1, 16, 1], strides = [1, 1, 1]} : vector<5x16x1xf32> to vector<1x16x1xf32>
    %101 = vector.shape_cast %100 : vector<1x16x1xf32> to vector<16x1xf32>
    %cst_30 = arith.constant -1.000000e+30 : f32
    %102 = vector.broadcast %cst_30 : f32 to vector<16x1xf32>
    %103 = arith.select %99, %101, %102 : vector<16x1xi1>, vector<16x1xf32>
    %104 = arith.maximumf %81, %103 : vector<16x1xf32>
    %105 = arith.subf %81, %104 : vector<16x1xf32>
    %106 = math.exp %105 : vector<16x1xf32>
    %107 = arith.subf %103, %104 : vector<16x1xf32>
    %108 = math.exp %107 : vector<16x1xf32>
    %109 = arith.mulf %108, %97 : vector<16x1xf32>
    %110 = arith.mulf %88, %106 : vector<16x1xf32>
    %111 = arith.addf %110, %109 : vector<16x1xf32>
    %112 = vector.broadcast %106 : vector<16x1xf32> to vector<16x32xf32>
    %113 = arith.mulf %96, %112 : vector<16x32xf32>
    %114 = vector.extract_strided_slice %22 {offsets = [3, 0, 0], sizes = [1, 16, 32], strides = [1, 1, 1]} : vector<5x16x32xbf16> to vector<1x16x32xbf16>
    %115 = vector.shape_cast %114 : vector<1x16x32xbf16> to vector<16x32xbf16>
    %116 = arith.extf %115 : vector<16x32xbf16> to vector<16x32xf32>
    %117 = vector.broadcast %109 : vector<16x1xf32> to vector<16x32xf32>
    %118 = arith.mulf %117, %116 : vector<16x32xf32>
    %119 = arith.addf %113, %118 : vector<16x32xf32>
    %120 = vector.extract_strided_slice %24 {offsets = [0, 4], sizes = [16, 1], strides = [1, 1]} : vector<16x5xf32> to vector<16x1xf32>
    %cst_31 = arith.constant 0.000000e+00 : f32
    %121 = vector.broadcast %cst_31 : f32 to vector<16x1xf32>
    %122 = arith.cmpf ogt, %120, %121 : vector<16x1xf32>
    %123 = vector.extract_strided_slice %23 {offsets = [4, 0, 0], sizes = [1, 16, 1], strides = [1, 1, 1]} : vector<5x16x1xf32> to vector<1x16x1xf32>
    %124 = vector.shape_cast %123 : vector<1x16x1xf32> to vector<16x1xf32>
    %cst_32 = arith.constant -1.000000e+30 : f32
    %125 = vector.broadcast %cst_32 : f32 to vector<16x1xf32>
    %126 = arith.select %122, %124, %125 : vector<16x1xi1>, vector<16x1xf32>
    %127 = arith.maximumf %104, %126 : vector<16x1xf32>
    %128 = arith.subf %104, %127 : vector<16x1xf32>
    %129 = math.exp %128 : vector<16x1xf32>
    %130 = arith.subf %126, %127 : vector<16x1xf32>
    %131 = math.exp %130 : vector<16x1xf32>
    %132 = arith.mulf %131, %120 : vector<16x1xf32>
    %133 = arith.mulf %111, %129 : vector<16x1xf32>
    %134 = arith.addf %133, %132 : vector<16x1xf32>
    %135 = vector.broadcast %129 : vector<16x1xf32> to vector<16x32xf32>
    %136 = arith.mulf %119, %135 : vector<16x32xf32>
    %137 = vector.extract_strided_slice %22 {offsets = [4, 0, 0], sizes = [1, 16, 32], strides = [1, 1, 1]} : vector<5x16x32xbf16> to vector<1x16x32xbf16>
    %138 = vector.shape_cast %137 : vector<1x16x32xbf16> to vector<16x32xbf16>
    %139 = arith.extf %138 : vector<16x32xbf16> to vector<16x32xf32>
    %140 = vector.broadcast %132 : vector<16x1xf32> to vector<16x32xf32>
    %141 = arith.mulf %140, %139 : vector<16x32xf32>
    %142 = arith.addf %136, %141 : vector<16x32xf32>
    %cst_33 = arith.constant 1.000000e-10 : f32
    %143 = vector.broadcast %cst_33 : f32 to vector<16x1xf32>
    %144 = arith.addf %134, %143 : vector<16x1xf32>
    %145 = tpu.reciprocal %144 {approx = true} : vector<16x1xf32> -> vector<16x1xf32>
    %146 = vector.broadcast %145 : vector<16x1xf32> to vector<16x32xf32>
    %147 = arith.mulf %142, %146 : vector<16x32xf32>
    %148 = arith.truncf %147 : vector<16x32xf32> to vector<16x32xbf16>
    %c0_34 = arith.constant 0 : index
    %c0_35 = arith.constant 0 : index
    %149 = vector.load %arg9[%c0_34, %c0_35] : memref<32x32xbf16, #tpu.memory_space<vmem>>, vector<32x32xbf16>
    %cst_36 = arith.constant dense<0.000000e+00> : vector<16x32xf32>
    %150 = tpu.matmul %148, %149, %cst_36 {dimension_numbers = #tpu.dot_dimension_numbers<[1], [0], [0], [1], [0, 0, 1, 1], [], []>} : vector<16x32xbf16>, vector<32x32xbf16>, vector<16x32xf32> -> vector<16x32xf32>
    %c0_37 = arith.constant 0 : index
    %c0_38 = arith.constant 0 : index
    %151 = vector.load %arg10[%c0_37, %c0_38] : memref<1x32xf32, #tpu.memory_space<vmem>>, vector<1x32xf32>
    %152 = vector.broadcast %151 : vector<1x32xf32> to vector<16x32xf32>
    %153 = arith.addf %150, %152 : vector<16x32xf32>
    %cst_39 = arith.constant 0.000000e+00 : f32
    %154 = vector.broadcast %cst_39 : f32 to vector<16x32xf32>
    %155 = arith.maximumf %153, %154 : vector<16x32xf32>
    %156 = arith.truncf %155 : vector<16x32xf32> to vector<16x32xbf16>
    %c0_40 = arith.constant 0 : index
    %c0_41 = arith.constant 0 : index
    %157 = vector.load %arg11[%c0_40, %c0_41] : memref<16x32xbf16, #tpu.memory_space<vmem>>, vector<16x32xbf16>
    tpu.vector_store %arg11[%c0_40, %c0_41], %156 {strides = array<i32>} : memref<16x32xbf16, #tpu.memory_space<vmem>>, vector<16x32xbf16>,
    return
  }
  func.func @transform_0(%arg0: i32) -> (i32, i32, i32) {
    %c0_i32 = arith.constant 0 : i32
    %c0_i32_0 = arith.constant 0 : i32
    %c0_i32_1 = arith.constant 0 : i32
    return %c0_i32, %arg0, %c0_i32_0 : i32, i32, i32
  }
  func.func @transform_1(%arg0: i32) -> (i32, i32, i32) {
    %c0_i32 = arith.constant 0 : i32
    %c0_i32_0 = arith.constant 0 : i32
    %c0_i32_1 = arith.constant 0 : i32
    return %c0_i32, %arg0, %c0_i32_0 : i32, i32, i32
  }
  func.func @transform_2(%arg0: i32) -> (i32, i32) {
    %c0_i32 = arith.constant 0 : i32
    %c0_i32_0 = arith.constant 0 : i32
    return %arg0, %c0_i32 : i32, i32
  }
  func.func @transform_3(%arg0: i32) -> (i32, i32) {
    %c0_i32 = arith.constant 0 : i32
    %c0_i32_0 = arith.constant 0 : i32
    %c0_i32_1 = arith.constant 0 : i32
    return %c0_i32, %c0_i32_0 : i32, i32
  }
  func.func @transform_4(%arg0: i32) -> (i32, i32) {
    %c0_i32 = arith.constant 0 : i32
    %c0_i32_0 = arith.constant 0 : i32
    %c0_i32_1 = arith.constant 0 : i32
    return %c0_i32, %c0_i32_0 : i32, i32
  }
  func.func @transform_5(%arg0: i32) -> (i32, i32) {
    %c0_i32 = arith.constant 0 : i32
    %c0_i32_0 = arith.constant 0 : i32
    %c0_i32_1 = arith.constant 0 : i32
    return %c0_i32, %c0_i32_0 : i32, i32
  }
  func.func @transform_6(%arg0: i32) -> (i32, i32) {
    %c0_i32 = arith.constant 0 : i32
    %c0_i32_0 = arith.constant 0 : i32
    %c0_i32_1 = arith.constant 0 : i32
    return %c0_i32, %c0_i32_0 : i32, i32
  }
  func.func @transform_7(%arg0: i32) -> (i32, i32) {
    %c0_i32 = arith.constant 0 : i32
    %c0_i32_0 = arith.constant 0 : i32
    %c0_i32_1 = arith.constant 0 : i32
    return %c0_i32, %c0_i32_0 : i32, i32
  }
  func.func @transform_8(%arg0: i32) -> (i32, i32) {
    %c0_i32 = arith.constant 0 : i32
    %c0_i32_0 = arith.constant 0 : i32
    %c0_i32_1 = arith.constant 0 : i32
    return %c0_i32, %c0_i32_0 : i32, i32
  }
  func.func @transform_9(%arg0: i32) -> (i32, i32) {
    %c0_i32 = arith.constant 0 : i32
    %c0_i32_0 = arith.constant 0 : i32
    %c0_i32_1 = arith.constant 0 : i32
    return %c0_i32, %c0_i32_0 : i32, i32
  }
  func.func @transform_10(%arg0: i32) -> (i32, i32) {
    %c0_i32 = arith.constant 0 : i32
    %c0_i32_0 = arith.constant 0 : i32
    return %arg0, %c0_i32 : i32, i32
  }
}

module attributes {stable_mosaic.version = 11 : i64} {
  func.func @_neighbor_agg_kernel(%arg0: i32, %arg1: memref<8x16x32xbf16, #tpu.memory_space<vmem>>, %arg2: memref<8x16x32xbf16, #tpu.memory_space<vmem>>, %arg3: memref<16x32xbf16, #tpu.memory_space<vmem>>, %arg4: memref<16x8xf32, #tpu.memory_space<vmem>>, %arg5: memref<32x32xbf16, #tpu.memory_space<vmem>>, %arg6: memref<32x32xbf16, #tpu.memory_space<vmem>>, %arg7: memref<1x32xf32, #tpu.memory_space<vmem>>, %arg8: memref<32x32xbf16, #tpu.memory_space<vmem>>, %arg9: memref<1x32xf32, #tpu.memory_space<vmem>>, %arg10: memref<32x32xbf16, #tpu.memory_space<vmem>>, %arg11: memref<32x32xbf16, #tpu.memory_space<vmem>>, %arg12: memref<1x32xf32, #tpu.memory_space<vmem>>, %arg13: memref<1x32xf32, #tpu.memory_space<vmem>>, %arg14: memref<1x1xf32, #tpu.memory_space<vmem>>, %arg15: memref<32x32xbf16, #tpu.memory_space<vmem>>, %arg16: memref<1x32xf32, #tpu.memory_space<vmem>>, %arg17: memref<16x32xbf16, #tpu.memory_space<vmem>>) attributes {dimension_semantics = [#tpu.dimension_semantics<parallel>], iteration_bounds = array<i64: 1>, scalar_prefetch = 0 : i64, scratch_operands = 0 : i64, tpu.core_type = #tpu.core_type<tc>, window_params = [{transform_indices = @transform_0, window_bounds = array<i64: 8, 16, 32>}, {transform_indices = @transform_1, window_bounds = array<i64: 8, 16, 32>}, {transform_indices = @transform_2, window_bounds = array<i64: 16, 32>}, {transform_indices = @transform_3, window_bounds = array<i64: 16, 8>}, {pipeline_mode = #tpu.pipeline_mode<synchronous>, transform_indices = @transform_4, window_bounds = array<i64: 32, 32>}, {pipeline_mode = #tpu.pipeline_mode<synchronous>, transform_indices = @transform_5, window_bounds = array<i64: 32, 32>}, {pipeline_mode = #tpu.pipeline_mode<synchronous>, transform_indices = @transform_6, window_bounds = array<i64: 1, 32>}, {pipeline_mode = #tpu.pipeline_mode<synchronous>, transform_indices = @transform_7, window_bounds = array<i64: 32, 32>}, {pipeline_mode = #tpu.pipeline_mode<synchronous>, transform_indices = @transform_8, window_bounds = array<i64: 1, 32>}, {pipeline_mode = #tpu.pipeline_mode<synchronous>, transform_indices = @transform_9, window_bounds = array<i64: 32, 32>}, {pipeline_mode = #tpu.pipeline_mode<synchronous>, transform_indices = @transform_10, window_bounds = array<i64: 32, 32>}, {pipeline_mode = #tpu.pipeline_mode<synchronous>, transform_indices = @transform_11, window_bounds = array<i64: 1, 32>}, {pipeline_mode = #tpu.pipeline_mode<synchronous>, transform_indices = @transform_12, window_bounds = array<i64: 1, 32>}, {pipeline_mode = #tpu.pipeline_mode<synchronous>, transform_indices = @transform_13, window_bounds = array<i64: 1, 1>}, {pipeline_mode = #tpu.pipeline_mode<synchronous>, transform_indices = @transform_14, window_bounds = array<i64: 32, 32>}, {pipeline_mode = #tpu.pipeline_mode<synchronous>, transform_indices = @transform_15, window_bounds = array<i64: 1, 32>}, {transform_indices = @transform_16, window_bounds = array<i64: 16, 32>}]} {
    %c0 = arith.constant 0 : index
    %c0_0 = arith.constant 0 : index
    %c0_1 = arith.constant 0 : index
    %0 = vector.load %arg1[%c0, %c0_0, %c0_1] : memref<8x16x32xbf16, #tpu.memory_space<vmem>>, vector<8x16x32xbf16>
    %1 = vector.shape_cast %0 : vector<8x16x32xbf16> to vector<128x32xbf16>
    %c0_2 = arith.constant 0 : index
    %c0_3 = arith.constant 0 : index
    %c0_4 = arith.constant 0 : index
    %2 = vector.load %arg2[%c0_2, %c0_3, %c0_4] : memref<8x16x32xbf16, #tpu.memory_space<vmem>>, vector<8x16x32xbf16>
    %3 = vector.shape_cast %2 : vector<8x16x32xbf16> to vector<128x32xbf16>
    %c0_5 = arith.constant 0 : index
    %c0_6 = arith.constant 0 : index
    %4 = vector.load %arg5[%c0_5, %c0_6] : memref<32x32xbf16, #tpu.memory_space<vmem>>, vector<32x32xbf16>
    %cst = arith.constant dense<0.000000e+00> : vector<128x32xf32>
    %5 = tpu.matmul %1, %4, %cst {dimension_numbers = #tpu.dot_dimension_numbers<[1], [0], [0], [1], [0, 0, 1, 1], [], []>} : vector<128x32xbf16>, vector<32x32xbf16>, vector<128x32xf32> -> vector<128x32xf32>
    %c0_7 = arith.constant 0 : index
    %c0_8 = arith.constant 0 : index
    %6 = vector.load %arg6[%c0_7, %c0_8] : memref<32x32xbf16, #tpu.memory_space<vmem>>, vector<32x32xbf16>
    %cst_9 = arith.constant dense<0.000000e+00> : vector<128x32xf32>
    %7 = tpu.matmul %3, %6, %cst_9 {dimension_numbers = #tpu.dot_dimension_numbers<[1], [0], [0], [1], [0, 0, 1, 1], [], []>} : vector<128x32xbf16>, vector<32x32xbf16>, vector<128x32xf32> -> vector<128x32xf32>
    %8 = arith.addf %5, %7 : vector<128x32xf32>
    %c0_10 = arith.constant 0 : index
    %c0_11 = arith.constant 0 : index
    %9 = vector.load %arg7[%c0_10, %c0_11] : memref<1x32xf32, #tpu.memory_space<vmem>>, vector<1x32xf32>
    %10 = vector.broadcast %9 : vector<1x32xf32> to vector<128x32xf32>
    %11 = arith.addf %8, %10 : vector<128x32xf32>
    %cst_12 = arith.constant 0.000000e+00 : f32
    %12 = vector.broadcast %cst_12 : f32 to vector<128x32xf32>
    %13 = arith.maximumf %11, %12 : vector<128x32xf32>
    %14 = arith.truncf %13 : vector<128x32xf32> to vector<128x32xbf16>
    %c0_13 = arith.constant 0 : index
    %c0_14 = arith.constant 0 : index
    %15 = vector.load %arg8[%c0_13, %c0_14] : memref<32x32xbf16, #tpu.memory_space<vmem>>, vector<32x32xbf16>
    %cst_15 = arith.constant dense<0.000000e+00> : vector<128x32xf32>
    %16 = tpu.matmul %14, %15, %cst_15 {dimension_numbers = #tpu.dot_dimension_numbers<[1], [0], [0], [1], [0, 0, 1, 1], [], []>} : vector<128x32xbf16>, vector<32x32xbf16>, vector<128x32xf32> -> vector<128x32xf32>
    %c0_16 = arith.constant 0 : index
    %c0_17 = arith.constant 0 : index
    %17 = vector.load %arg9[%c0_16, %c0_17] : memref<1x32xf32, #tpu.memory_space<vmem>>, vector<1x32xf32>
    %18 = vector.broadcast %17 : vector<1x32xf32> to vector<128x32xf32>
    %19 = arith.addf %16, %18 : vector<128x32xf32>
    %20 = arith.truncf %19 : vector<128x32xf32> to vector<128x32xbf16>
    %c0_18 = arith.constant 0 : index
    %c0_19 = arith.constant 0 : index
    %21 = vector.load %arg10[%c0_18, %c0_19] : memref<32x32xbf16, #tpu.memory_space<vmem>>, vector<32x32xbf16>
    %cst_20 = arith.constant dense<0.000000e+00> : vector<128x32xf32>
    %22 = tpu.matmul %20, %21, %cst_20 {dimension_numbers = #tpu.dot_dimension_numbers<[1], [0], [0], [1], [0, 0, 1, 1], [], []>} : vector<128x32xbf16>, vector<32x32xbf16>, vector<128x32xf32> -> vector<128x32xf32>
    %c0_21 = arith.constant 0 : index
    %c0_22 = arith.constant 0 : index
    %23 = vector.load %arg3[%c0_21, %c0_22] : memref<16x32xbf16, #tpu.memory_space<vmem>>, vector<16x32xbf16>
    %c0_23 = arith.constant 0 : index
    %c0_24 = arith.constant 0 : index
    %24 = vector.load %arg11[%c0_23, %c0_24] : memref<32x32xbf16, #tpu.memory_space<vmem>>, vector<32x32xbf16>
    %cst_25 = arith.constant dense<0.000000e+00> : vector<16x32xf32>
    %25 = tpu.matmul %23, %24, %cst_25 {dimension_numbers = #tpu.dot_dimension_numbers<[1], [0], [0], [1], [0, 0, 1, 1], [], []>} : vector<16x32xbf16>, vector<32x32xbf16>, vector<16x32xf32> -> vector<16x32xf32>
    %26 = vector.shape_cast %19 : vector<128x32xf32> to vector<8x16x32xf32>
    %27 = vector.shape_cast %22 : vector<128x32xf32> to vector<8x16x32xf32>
    %c0_26 = arith.constant 0 : index
    %c0_27 = arith.constant 0 : index
    %28 = vector.load %arg4[%c0_26, %c0_27] : memref<16x8xf32, #tpu.memory_space<vmem>>, vector<16x8xf32>
    %c0_28 = arith.constant 0 : index
    %c0_29 = arith.constant 0 : index
    %29 = vector.load %arg12[%c0_28, %c0_29] : memref<1x32xf32, #tpu.memory_space<vmem>>, vector<1x32xf32>
    %30 = vector.shape_cast %29 : vector<1x32xf32> to vector<1x32xf32>
    %31 = vector.broadcast %30 : vector<1x32xf32> to vector<16x32xf32>
    %c0_30 = arith.constant 0 : index
    %c0_31 = arith.constant 0 : index
    %32 = vector.load %arg13[%c0_30, %c0_31] : memref<1x32xf32, #tpu.memory_space<vmem>>, vector<1x32xf32>
    %33 = vector.shape_cast %32 : vector<1x32xf32> to vector<1x32xf32>
    %34 = vector.broadcast %33 : vector<1x32xf32> to vector<16x32xf32>
    %c0_32 = arith.constant 0 : index
    %c0_33 = arith.constant 0 : index
    %35 = vector.load %arg14[%c0_32, %c0_33] : memref<1x1xf32, #tpu.memory_space<vmem>>, vector<1x1xf32>
    %36 = vector.shape_cast %35 : vector<1x1xf32> to vector<1x1xf32>
    %37 = vector.broadcast %36 : vector<1x1xf32> to vector<16x1xf32>
    %cst_34 = arith.constant -1.000000e+30 : f32
    %38 = vector.broadcast %cst_34 : f32 to vector<16x1xf32>
    %cst_35 = arith.constant 0.000000e+00 : f32
    %39 = vector.broadcast %cst_35 : f32 to vector<16x1xf32>
    %cst_36 = arith.constant 0.000000e+00 : f32
    %40 = vector.broadcast %cst_36 : f32 to vector<16x32xf32>
    %41 = vector.extract_strided_slice %28 {offsets = [0, 0], sizes = [16, 1], strides = [1, 1]} : vector<16x8xf32> to vector<16x1xf32>
    %42 = vector.extract_strided_slice %27 {offsets = [0, 0, 0], sizes = [1, 16, 32], strides = [1, 1, 1]} : vector<8x16x32xf32> to vector<1x16x32xf32>
    %43 = vector.shape_cast %42 : vector<1x16x32xf32> to vector<16x32xf32>
    %44 = vector.broadcast %41 : vector<16x1xf32> to vector<16x32xf32>
    %45 = arith.mulf %44, %25 : vector<16x32xf32>
    %46 = arith.addf %43, %45 : vector<16x32xf32>
    %47 = arith.addf %46, %31 : vector<16x32xf32>
    %cst_37 = arith.constant 0.000000e+00 : f32
    %48 = vector.broadcast %cst_37 : f32 to vector<16x32xf32>
    %49 = arith.maximumf %47, %48 : vector<16x32xf32>
    %50 = arith.mulf %49, %34 : vector<16x32xf32>
    %cst_38 = arith.constant dense<0.000000e+00> : vector<16xf32>
    %51 = vector.multi_reduction <add>, %50, %cst_38 [1] : vector<16x32xf32> to vector<16xf32>
    %52 = vector.shape_cast %51 : vector<16xf32> to vector<16x1xf32>
    %53 = arith.addf %52, %37 : vector<16x1xf32>
    %cst_39 = arith.constant 0.000000e+00 : f32
    %54 = vector.broadcast %cst_39 : f32 to vector<16x1xf32>
    %55 = arith.cmpf ogt, %41, %54 : vector<16x1xf32>
    %cst_40 = arith.constant -1.000000e+30 : f32
    %56 = vector.broadcast %cst_40 : f32 to vector<16x1xf32>
    %57 = arith.select %55, %53, %56 : vector<16x1xi1>, vector<16x1xf32>
    %58 = arith.maximumf %38, %57 : vector<16x1xf32>
    %59 = arith.subf %38, %58 : vector<16x1xf32>
    %60 = math.exp %59 : vector<16x1xf32>
    %61 = arith.subf %57, %58 : vector<16x1xf32>
    %62 = math.exp %61 : vector<16x1xf32>
    %63 = arith.mulf %62, %41 : vector<16x1xf32>
    %64 = arith.mulf %39, %60 : vector<16x1xf32>
    %65 = arith.addf %64, %63 : vector<16x1xf32>
    %66 = vector.broadcast %60 : vector<16x1xf32> to vector<16x32xf32>
    %67 = arith.mulf %40, %66 : vector<16x32xf32>
    %68 = vector.extract_strided_slice %26 {offsets = [0, 0, 0], sizes = [1, 16, 32], strides = [1, 1, 1]} : vector<8x16x32xf32> to vector<1x16x32xf32>
    %69 = vector.shape_cast %68 : vector<1x16x32xf32> to vector<16x32xf32>
    %70 = vector.broadcast %63 : vector<16x1xf32> to vector<16x32xf32>
    %71 = arith.mulf %70, %69 : vector<16x32xf32>
    %72 = arith.addf %67, %71 : vector<16x32xf32>
    %73 = vector.extract_strided_slice %28 {offsets = [0, 1], sizes = [16, 1], strides = [1, 1]} : vector<16x8xf32> to vector<16x1xf32>
    %74 = vector.extract_strided_slice %27 {offsets = [1, 0, 0], sizes = [1, 16, 32], strides = [1, 1, 1]} : vector<8x16x32xf32> to vector<1x16x32xf32>
    %75 = vector.shape_cast %74 : vector<1x16x32xf32> to vector<16x32xf32>
    %76 = vector.broadcast %73 : vector<16x1xf32> to vector<16x32xf32>
    %77 = arith.mulf %76, %25 : vector<16x32xf32>
    %78 = arith.addf %75, %77 : vector<16x32xf32>
    %79 = arith.addf %78, %31 : vector<16x32xf32>
    %cst_41 = arith.constant 0.000000e+00 : f32
    %80 = vector.broadcast %cst_41 : f32 to vector<16x32xf32>
    %81 = arith.maximumf %79, %80 : vector<16x32xf32>
    %82 = arith.mulf %81, %34 : vector<16x32xf32>
    %cst_42 = arith.constant dense<0.000000e+00> : vector<16xf32>
    %83 = vector.multi_reduction <add>, %82, %cst_42 [1] : vector<16x32xf32> to vector<16xf32>
    %84 = vector.shape_cast %83 : vector<16xf32> to vector<16x1xf32>
    %85 = arith.addf %84, %37 : vector<16x1xf32>
    %cst_43 = arith.constant 0.000000e+00 : f32
    %86 = vector.broadcast %cst_43 : f32 to vector<16x1xf32>
    %87 = arith.cmpf ogt, %73, %86 : vector<16x1xf32>
    %cst_44 = arith.constant -1.000000e+30 : f32
    %88 = vector.broadcast %cst_44 : f32 to vector<16x1xf32>
    %89 = arith.select %87, %85, %88 : vector<16x1xi1>, vector<16x1xf32>
    %90 = arith.maximumf %58, %89 : vector<16x1xf32>
    %91 = arith.subf %58, %90 : vector<16x1xf32>
    %92 = math.exp %91 : vector<16x1xf32>
    %93 = arith.subf %89, %90 : vector<16x1xf32>
    %94 = math.exp %93 : vector<16x1xf32>
    %95 = arith.mulf %94, %73 : vector<16x1xf32>
    %96 = arith.mulf %65, %92 : vector<16x1xf32>
    %97 = arith.addf %96, %95 : vector<16x1xf32>
    %98 = vector.broadcast %92 : vector<16x1xf32> to vector<16x32xf32>
    %99 = arith.mulf %72, %98 : vector<16x32xf32>
    %100 = vector.extract_strided_slice %26 {offsets = [1, 0, 0], sizes = [1, 16, 32], strides = [1, 1, 1]} : vector<8x16x32xf32> to vector<1x16x32xf32>
    %101 = vector.shape_cast %100 : vector<1x16x32xf32> to vector<16x32xf32>
    %102 = vector.broadcast %95 : vector<16x1xf32> to vector<16x32xf32>
    %103 = arith.mulf %102, %101 : vector<16x32xf32>
    %104 = arith.addf %99, %103 : vector<16x32xf32>
    %105 = vector.extract_strided_slice %28 {offsets = [0, 2], sizes = [16, 1], strides = [1, 1]} : vector<16x8xf32> to vector<16x1xf32>
    %106 = vector.extract_strided_slice %27 {offsets = [2, 0, 0], sizes = [1, 16, 32], strides = [1, 1, 1]} : vector<8x16x32xf32> to vector<1x16x32xf32>
    %107 = vector.shape_cast %106 : vector<1x16x32xf32> to vector<16x32xf32>
    %108 = vector.broadcast %105 : vector<16x1xf32> to vector<16x32xf32>
    %109 = arith.mulf %108, %25 : vector<16x32xf32>
    %110 = arith.addf %107, %109 : vector<16x32xf32>
    %111 = arith.addf %110, %31 : vector<16x32xf32>
    %cst_45 = arith.constant 0.000000e+00 : f32
    %112 = vector.broadcast %cst_45 : f32 to vector<16x32xf32>
    %113 = arith.maximumf %111, %112 : vector<16x32xf32>
    %114 = arith.mulf %113, %34 : vector<16x32xf32>
    %cst_46 = arith.constant dense<0.000000e+00> : vector<16xf32>
    %115 = vector.multi_reduction <add>, %114, %cst_46 [1] : vector<16x32xf32> to vector<16xf32>
    %116 = vector.shape_cast %115 : vector<16xf32> to vector<16x1xf32>
    %117 = arith.addf %116, %37 : vector<16x1xf32>
    %cst_47 = arith.constant 0.000000e+00 : f32
    %118 = vector.broadcast %cst_47 : f32 to vector<16x1xf32>
    %119 = arith.cmpf ogt, %105, %118 : vector<16x1xf32>
    %cst_48 = arith.constant -1.000000e+30 : f32
    %120 = vector.broadcast %cst_48 : f32 to vector<16x1xf32>
    %121 = arith.select %119, %117, %120 : vector<16x1xi1>, vector<16x1xf32>
    %122 = arith.maximumf %90, %121 : vector<16x1xf32>
    %123 = arith.subf %90, %122 : vector<16x1xf32>
    %124 = math.exp %123 : vector<16x1xf32>
    %125 = arith.subf %121, %122 : vector<16x1xf32>
    %126 = math.exp %125 : vector<16x1xf32>
    %127 = arith.mulf %126, %105 : vector<16x1xf32>
    %128 = arith.mulf %97, %124 : vector<16x1xf32>
    %129 = arith.addf %128, %127 : vector<16x1xf32>
    %130 = vector.broadcast %124 : vector<16x1xf32> to vector<16x32xf32>
    %131 = arith.mulf %104, %130 : vector<16x32xf32>
    %132 = vector.extract_strided_slice %26 {offsets = [2, 0, 0], sizes = [1, 16, 32], strides = [1, 1, 1]} : vector<8x16x32xf32> to vector<1x16x32xf32>
    %133 = vector.shape_cast %132 : vector<1x16x32xf32> to vector<16x32xf32>
    %134 = vector.broadcast %127 : vector<16x1xf32> to vector<16x32xf32>
    %135 = arith.mulf %134, %133 : vector<16x32xf32>
    %136 = arith.addf %131, %135 : vector<16x32xf32>
    %137 = vector.extract_strided_slice %28 {offsets = [0, 3], sizes = [16, 1], strides = [1, 1]} : vector<16x8xf32> to vector<16x1xf32>
    %138 = vector.extract_strided_slice %27 {offsets = [3, 0, 0], sizes = [1, 16, 32], strides = [1, 1, 1]} : vector<8x16x32xf32> to vector<1x16x32xf32>
    %139 = vector.shape_cast %138 : vector<1x16x32xf32> to vector<16x32xf32>
    %140 = vector.broadcast %137 : vector<16x1xf32> to vector<16x32xf32>
    %141 = arith.mulf %140, %25 : vector<16x32xf32>
    %142 = arith.addf %139, %141 : vector<16x32xf32>
    %143 = arith.addf %142, %31 : vector<16x32xf32>
    %cst_49 = arith.constant 0.000000e+00 : f32
    %144 = vector.broadcast %cst_49 : f32 to vector<16x32xf32>
    %145 = arith.maximumf %143, %144 : vector<16x32xf32>
    %146 = arith.mulf %145, %34 : vector<16x32xf32>
    %cst_50 = arith.constant dense<0.000000e+00> : vector<16xf32>
    %147 = vector.multi_reduction <add>, %146, %cst_50 [1] : vector<16x32xf32> to vector<16xf32>
    %148 = vector.shape_cast %147 : vector<16xf32> to vector<16x1xf32>
    %149 = arith.addf %148, %37 : vector<16x1xf32>
    %cst_51 = arith.constant 0.000000e+00 : f32
    %150 = vector.broadcast %cst_51 : f32 to vector<16x1xf32>
    %151 = arith.cmpf ogt, %137, %150 : vector<16x1xf32>
    %cst_52 = arith.constant -1.000000e+30 : f32
    %152 = vector.broadcast %cst_52 : f32 to vector<16x1xf32>
    %153 = arith.select %151, %149, %152 : vector<16x1xi1>, vector<16x1xf32>
    %154 = arith.maximumf %122, %153 : vector<16x1xf32>
    %155 = arith.subf %122, %154 : vector<16x1xf32>
    %156 = math.exp %155 : vector<16x1xf32>
    %157 = arith.subf %153, %154 : vector<16x1xf32>
    %158 = math.exp %157 : vector<16x1xf32>
    %159 = arith.mulf %158, %137 : vector<16x1xf32>
    %160 = arith.mulf %129, %156 : vector<16x1xf32>
    %161 = arith.addf %160, %159 : vector<16x1xf32>
    %162 = vector.broadcast %156 : vector<16x1xf32> to vector<16x32xf32>
    %163 = arith.mulf %136, %162 : vector<16x32xf32>
    %164 = vector.extract_strided_slice %26 {offsets = [3, 0, 0], sizes = [1, 16, 32], strides = [1, 1, 1]} : vector<8x16x32xf32> to vector<1x16x32xf32>
    %165 = vector.shape_cast %164 : vector<1x16x32xf32> to vector<16x32xf32>
    %166 = vector.broadcast %159 : vector<16x1xf32> to vector<16x32xf32>
    %167 = arith.mulf %166, %165 : vector<16x32xf32>
    %168 = arith.addf %163, %167 : vector<16x32xf32>
    %169 = vector.extract_strided_slice %28 {offsets = [0, 4], sizes = [16, 1], strides = [1, 1]} : vector<16x8xf32> to vector<16x1xf32>
    %170 = vector.extract_strided_slice %27 {offsets = [4, 0, 0], sizes = [1, 16, 32], strides = [1, 1, 1]} : vector<8x16x32xf32> to vector<1x16x32xf32>
    %171 = vector.shape_cast %170 : vector<1x16x32xf32> to vector<16x32xf32>
    %172 = vector.broadcast %169 : vector<16x1xf32> to vector<16x32xf32>
    %173 = arith.mulf %172, %25 : vector<16x32xf32>
    %174 = arith.addf %171, %173 : vector<16x32xf32>
    %175 = arith.addf %174, %31 : vector<16x32xf32>
    %cst_53 = arith.constant 0.000000e+00 : f32
    %176 = vector.broadcast %cst_53 : f32 to vector<16x32xf32>
    %177 = arith.maximumf %175, %176 : vector<16x32xf32>
    %178 = arith.mulf %177, %34 : vector<16x32xf32>
    %cst_54 = arith.constant dense<0.000000e+00> : vector<16xf32>
    %179 = vector.multi_reduction <add>, %178, %cst_54 [1] : vector<16x32xf32> to vector<16xf32>
    %180 = vector.shape_cast %179 : vector<16xf32> to vector<16x1xf32>
    %181 = arith.addf %180, %37 : vector<16x1xf32>
    %cst_55 = arith.constant 0.000000e+00 : f32
    %182 = vector.broadcast %cst_55 : f32 to vector<16x1xf32>
    %183 = arith.cmpf ogt, %169, %182 : vector<16x1xf32>
    %cst_56 = arith.constant -1.000000e+30 : f32
    %184 = vector.broadcast %cst_56 : f32 to vector<16x1xf32>
    %185 = arith.select %183, %181, %184 : vector<16x1xi1>, vector<16x1xf32>
    %186 = arith.maximumf %154, %185 : vector<16x1xf32>
    %187 = arith.subf %154, %186 : vector<16x1xf32>
    %188 = math.exp %187 : vector<16x1xf32>
    %189 = arith.subf %185, %186 : vector<16x1xf32>
    %190 = math.exp %189 : vector<16x1xf32>
    %191 = arith.mulf %190, %169 : vector<16x1xf32>
    %192 = arith.mulf %161, %188 : vector<16x1xf32>
    %193 = arith.addf %192, %191 : vector<16x1xf32>
    %194 = vector.broadcast %188 : vector<16x1xf32> to vector<16x32xf32>
    %195 = arith.mulf %168, %194 : vector<16x32xf32>
    %196 = vector.extract_strided_slice %26 {offsets = [4, 0, 0], sizes = [1, 16, 32], strides = [1, 1, 1]} : vector<8x16x32xf32> to vector<1x16x32xf32>
    %197 = vector.shape_cast %196 : vector<1x16x32xf32> to vector<16x32xf32>
    %198 = vector.broadcast %191 : vector<16x1xf32> to vector<16x32xf32>
    %199 = arith.mulf %198, %197 : vector<16x32xf32>
    %200 = arith.addf %195, %199 : vector<16x32xf32>
    %201 = vector.extract_strided_slice %28 {offsets = [0, 5], sizes = [16, 1], strides = [1, 1]} : vector<16x8xf32> to vector<16x1xf32>
    %202 = vector.extract_strided_slice %27 {offsets = [5, 0, 0], sizes = [1, 16, 32], strides = [1, 1, 1]} : vector<8x16x32xf32> to vector<1x16x32xf32>
    %203 = vector.shape_cast %202 : vector<1x16x32xf32> to vector<16x32xf32>
    %204 = vector.broadcast %201 : vector<16x1xf32> to vector<16x32xf32>
    %205 = arith.mulf %204, %25 : vector<16x32xf32>
    %206 = arith.addf %203, %205 : vector<16x32xf32>
    %207 = arith.addf %206, %31 : vector<16x32xf32>
    %cst_57 = arith.constant 0.000000e+00 : f32
    %208 = vector.broadcast %cst_57 : f32 to vector<16x32xf32>
    %209 = arith.maximumf %207, %208 : vector<16x32xf32>
    %210 = arith.mulf %209, %34 : vector<16x32xf32>
    %cst_58 = arith.constant dense<0.000000e+00> : vector<16xf32>
    %211 = vector.multi_reduction <add>, %210, %cst_58 [1] : vector<16x32xf32> to vector<16xf32>
    %212 = vector.shape_cast %211 : vector<16xf32> to vector<16x1xf32>
    %213 = arith.addf %212, %37 : vector<16x1xf32>
    %cst_59 = arith.constant 0.000000e+00 : f32
    %214 = vector.broadcast %cst_59 : f32 to vector<16x1xf32>
    %215 = arith.cmpf ogt, %201, %214 : vector<16x1xf32>
    %cst_60 = arith.constant -1.000000e+30 : f32
    %216 = vector.broadcast %cst_60 : f32 to vector<16x1xf32>
    %217 = arith.select %215, %213, %216 : vector<16x1xi1>, vector<16x1xf32>
    %218 = arith.maximumf %186, %217 : vector<16x1xf32>
    %219 = arith.subf %186, %218 : vector<16x1xf32>
    %220 = math.exp %219 : vector<16x1xf32>
    %221 = arith.subf %217, %218 : vector<16x1xf32>
    %222 = math.exp %221 : vector<16x1xf32>
    %223 = arith.mulf %222, %201 : vector<16x1xf32>
    %224 = arith.mulf %193, %220 : vector<16x1xf32>
    %225 = arith.addf %224, %223 : vector<16x1xf32>
    %226 = vector.broadcast %220 : vector<16x1xf32> to vector<16x32xf32>
    %227 = arith.mulf %200, %226 : vector<16x32xf32>
    %228 = vector.extract_strided_slice %26 {offsets = [5, 0, 0], sizes = [1, 16, 32], strides = [1, 1, 1]} : vector<8x16x32xf32> to vector<1x16x32xf32>
    %229 = vector.shape_cast %228 : vector<1x16x32xf32> to vector<16x32xf32>
    %230 = vector.broadcast %223 : vector<16x1xf32> to vector<16x32xf32>
    %231 = arith.mulf %230, %229 : vector<16x32xf32>
    %232 = arith.addf %227, %231 : vector<16x32xf32>
    %233 = vector.extract_strided_slice %28 {offsets = [0, 6], sizes = [16, 1], strides = [1, 1]} : vector<16x8xf32> to vector<16x1xf32>
    %234 = vector.extract_strided_slice %27 {offsets = [6, 0, 0], sizes = [1, 16, 32], strides = [1, 1, 1]} : vector<8x16x32xf32> to vector<1x16x32xf32>
    %235 = vector.shape_cast %234 : vector<1x16x32xf32> to vector<16x32xf32>
    %236 = vector.broadcast %233 : vector<16x1xf32> to vector<16x32xf32>
    %237 = arith.mulf %236, %25 : vector<16x32xf32>
    %238 = arith.addf %235, %237 : vector<16x32xf32>
    %239 = arith.addf %238, %31 : vector<16x32xf32>
    %cst_61 = arith.constant 0.000000e+00 : f32
    %240 = vector.broadcast %cst_61 : f32 to vector<16x32xf32>
    %241 = arith.maximumf %239, %240 : vector<16x32xf32>
    %242 = arith.mulf %241, %34 : vector<16x32xf32>
    %cst_62 = arith.constant dense<0.000000e+00> : vector<16xf32>
    %243 = vector.multi_reduction <add>, %242, %cst_62 [1] : vector<16x32xf32> to vector<16xf32>
    %244 = vector.shape_cast %243 : vector<16xf32> to vector<16x1xf32>
    %245 = arith.addf %244, %37 : vector<16x1xf32>
    %cst_63 = arith.constant 0.000000e+00 : f32
    %246 = vector.broadcast %cst_63 : f32 to vector<16x1xf32>
    %247 = arith.cmpf ogt, %233, %246 : vector<16x1xf32>
    %cst_64 = arith.constant -1.000000e+30 : f32
    %248 = vector.broadcast %cst_64 : f32 to vector<16x1xf32>
    %249 = arith.select %247, %245, %248 : vector<16x1xi1>, vector<16x1xf32>
    %250 = arith.maximumf %218, %249 : vector<16x1xf32>
    %251 = arith.subf %218, %250 : vector<16x1xf32>
    %252 = math.exp %251 : vector<16x1xf32>
    %253 = arith.subf %249, %250 : vector<16x1xf32>
    %254 = math.exp %253 : vector<16x1xf32>
    %255 = arith.mulf %254, %233 : vector<16x1xf32>
    %256 = arith.mulf %225, %252 : vector<16x1xf32>
    %257 = arith.addf %256, %255 : vector<16x1xf32>
    %258 = vector.broadcast %252 : vector<16x1xf32> to vector<16x32xf32>
    %259 = arith.mulf %232, %258 : vector<16x32xf32>
    %260 = vector.extract_strided_slice %26 {offsets = [6, 0, 0], sizes = [1, 16, 32], strides = [1, 1, 1]} : vector<8x16x32xf32> to vector<1x16x32xf32>
    %261 = vector.shape_cast %260 : vector<1x16x32xf32> to vector<16x32xf32>
    %262 = vector.broadcast %255 : vector<16x1xf32> to vector<16x32xf32>
    %263 = arith.mulf %262, %261 : vector<16x32xf32>
    %264 = arith.addf %259, %263 : vector<16x32xf32>
    %265 = vector.extract_strided_slice %28 {offsets = [0, 7], sizes = [16, 1], strides = [1, 1]} : vector<16x8xf32> to vector<16x1xf32>
    %266 = vector.extract_strided_slice %27 {offsets = [7, 0, 0], sizes = [1, 16, 32], strides = [1, 1, 1]} : vector<8x16x32xf32> to vector<1x16x32xf32>
    %267 = vector.shape_cast %266 : vector<1x16x32xf32> to vector<16x32xf32>
    %268 = vector.broadcast %265 : vector<16x1xf32> to vector<16x32xf32>
    %269 = arith.mulf %268, %25 : vector<16x32xf32>
    %270 = arith.addf %267, %269 : vector<16x32xf32>
    %271 = arith.addf %270, %31 : vector<16x32xf32>
    %cst_65 = arith.constant 0.000000e+00 : f32
    %272 = vector.broadcast %cst_65 : f32 to vector<16x32xf32>
    %273 = arith.maximumf %271, %272 : vector<16x32xf32>
    %274 = arith.mulf %273, %34 : vector<16x32xf32>
    %cst_66 = arith.constant dense<0.000000e+00> : vector<16xf32>
    %275 = vector.multi_reduction <add>, %274, %cst_66 [1] : vector<16x32xf32> to vector<16xf32>
    %276 = vector.shape_cast %275 : vector<16xf32> to vector<16x1xf32>
    %277 = arith.addf %276, %37 : vector<16x1xf32>
    %cst_67 = arith.constant 0.000000e+00 : f32
    %278 = vector.broadcast %cst_67 : f32 to vector<16x1xf32>
    %279 = arith.cmpf ogt, %265, %278 : vector<16x1xf32>
    %cst_68 = arith.constant -1.000000e+30 : f32
    %280 = vector.broadcast %cst_68 : f32 to vector<16x1xf32>
    %281 = arith.select %279, %277, %280 : vector<16x1xi1>, vector<16x1xf32>
    %282 = arith.maximumf %250, %281 : vector<16x1xf32>
    %283 = arith.subf %250, %282 : vector<16x1xf32>
    %284 = math.exp %283 : vector<16x1xf32>
    %285 = arith.subf %281, %282 : vector<16x1xf32>
    %286 = math.exp %285 : vector<16x1xf32>
    %287 = arith.mulf %286, %265 : vector<16x1xf32>
    %288 = arith.mulf %257, %284 : vector<16x1xf32>
    %289 = arith.addf %288, %287 : vector<16x1xf32>
    %290 = vector.broadcast %284 : vector<16x1xf32> to vector<16x32xf32>
    %291 = arith.mulf %264, %290 : vector<16x32xf32>
    %292 = vector.extract_strided_slice %26 {offsets = [7, 0, 0], sizes = [1, 16, 32], strides = [1, 1, 1]} : vector<8x16x32xf32> to vector<1x16x32xf32>
    %293 = vector.shape_cast %292 : vector<1x16x32xf32> to vector<16x32xf32>
    %294 = vector.broadcast %287 : vector<16x1xf32> to vector<16x32xf32>
    %295 = arith.mulf %294, %293 : vector<16x32xf32>
    %296 = arith.addf %291, %295 : vector<16x32xf32>
    %cst_69 = arith.constant 1.000000e-10 : f32
    %297 = vector.broadcast %cst_69 : f32 to vector<16x1xf32>
    %298 = arith.addf %289, %297 : vector<16x1xf32>
    %299 = tpu.reciprocal %298 {approx = true} : vector<16x1xf32> -> vector<16x1xf32>
    %300 = vector.broadcast %299 : vector<16x1xf32> to vector<16x32xf32>
    %301 = arith.mulf %296, %300 : vector<16x32xf32>
    %302 = arith.truncf %301 : vector<16x32xf32> to vector<16x32xbf16>
    %c0_70 = arith.constant 0 : index
    %c0_71 = arith.constant 0 : index
    %303 = vector.load %arg15[%c0_70, %c0_71] : memref<32x32xbf16, #tpu.memory_space<vmem>>, vector<32x32xbf16>
    %cst_72 = arith.constant dense<0.000000e+00> : vector<16x32xf32>
    %304 = tpu.matmul %302, %303, %cst_72 {dimension_numbers = #tpu.dot_dimension_numbers<[1], [0], [0], [1], [0, 0, 1, 1], [], []>} : vector<16x32xbf16>, vector<32x32xbf16>, vector<16x32xf32> -> vector<16x32xf32>
    %c0_73 = arith.constant 0 : index
    %c0_74 = arith.constant 0 : index
    %305 = vector.load %arg16[%c0_73, %c0_74] : memref<1x32xf32, #tpu.memory_space<vmem>>, vector<1x32xf32>
    %306 = vector.broadcast %305 : vector<1x32xf32> to vector<16x32xf32>
    %307 = arith.addf %304, %306 : vector<16x32xf32>
    %cst_75 = arith.constant 0.000000e+00 : f32
    %308 = vector.broadcast %cst_75 : f32 to vector<16x32xf32>
    %309 = arith.maximumf %307, %308 : vector<16x32xf32>
    %310 = arith.truncf %309 : vector<16x32xf32> to vector<16x32xbf16>
    %c0_76 = arith.constant 0 : index
    %c0_77 = arith.constant 0 : index
    %311 = vector.load %arg17[%c0_76, %c0_77] : memref<16x32xbf16, #tpu.memory_space<vmem>>, vector<16x32xbf16>
    tpu.vector_store %arg17[%c0_76, %c0_77], %310 {strides = array<i32>} : memref<16x32xbf16, #tpu.memory_space<vmem>>, vector<16x32xbf16>,
    return
  }
  func.func @transform_0(%arg0: i32) -> (i32, i32, i32) {
    %c0_i32 = arith.constant 0 : i32
    %c0_i32_0 = arith.constant 0 : i32
    %c0_i32_1 = arith.constant 0 : i32
    return %c0_i32, %arg0, %c0_i32_0 : i32, i32, i32
  }
  func.func @transform_1(%arg0: i32) -> (i32, i32, i32) {
    %c0_i32 = arith.constant 0 : i32
    %c0_i32_0 = arith.constant 0 : i32
    %c0_i32_1 = arith.constant 0 : i32
    return %c0_i32, %arg0, %c0_i32_0 : i32, i32, i32
  }
  func.func @transform_2(%arg0: i32) -> (i32, i32) {
    %c0_i32 = arith.constant 0 : i32
    %c0_i32_0 = arith.constant 0 : i32
    return %arg0, %c0_i32 : i32, i32
  }
  func.func @transform_3(%arg0: i32) -> (i32, i32) {
    %c0_i32 = arith.constant 0 : i32
    %c0_i32_0 = arith.constant 0 : i32
    return %arg0, %c0_i32 : i32, i32
  }
  func.func @transform_4(%arg0: i32) -> (i32, i32) {
    %c0_i32 = arith.constant 0 : i32
    %c0_i32_0 = arith.constant 0 : i32
    %c0_i32_1 = arith.constant 0 : i32
    return %c0_i32, %c0_i32_0 : i32, i32
  }
  func.func @transform_5(%arg0: i32) -> (i32, i32) {
    %c0_i32 = arith.constant 0 : i32
    %c0_i32_0 = arith.constant 0 : i32
    %c0_i32_1 = arith.constant 0 : i32
    return %c0_i32, %c0_i32_0 : i32, i32
  }
  func.func @transform_6(%arg0: i32) -> (i32, i32) {
    %c0_i32 = arith.constant 0 : i32
    %c0_i32_0 = arith.constant 0 : i32
    %c0_i32_1 = arith.constant 0 : i32
    return %c0_i32, %c0_i32_0 : i32, i32
  }
  func.func @transform_7(%arg0: i32) -> (i32, i32) {
    %c0_i32 = arith.constant 0 : i32
    %c0_i32_0 = arith.constant 0 : i32
    %c0_i32_1 = arith.constant 0 : i32
    return %c0_i32, %c0_i32_0 : i32, i32
  }
  func.func @transform_8(%arg0: i32) -> (i32, i32) {
    %c0_i32 = arith.constant 0 : i32
    %c0_i32_0 = arith.constant 0 : i32
    %c0_i32_1 = arith.constant 0 : i32
    return %c0_i32, %c0_i32_0 : i32, i32
  }
  func.func @transform_9(%arg0: i32) -> (i32, i32) {
    %c0_i32 = arith.constant 0 : i32
    %c0_i32_0 = arith.constant 0 : i32
    %c0_i32_1 = arith.constant 0 : i32
    return %c0_i32, %c0_i32_0 : i32, i32
  }
  func.func @transform_10(%arg0: i32) -> (i32, i32) {
    %c0_i32 = arith.constant 0 : i32
    %c0_i32_0 = arith.constant 0 : i32
    %c0_i32_1 = arith.constant 0 : i32
    return %c0_i32, %c0_i32_0 : i32, i32
  }
  func.func @transform_11(%arg0: i32) -> (i32, i32) {
    %c0_i32 = arith.constant 0 : i32
    %c0_i32_0 = arith.constant 0 : i32
    %c0_i32_1 = arith.constant 0 : i32
    return %c0_i32, %c0_i32_0 : i32, i32
  }
  func.func @transform_12(%arg0: i32) -> (i32, i32) {
    %c0_i32 = arith.constant 0 : i32
    %c0_i32_0 = arith.constant 0 : i32
    %c0_i32_1 = arith.constant 0 : i32
    return %c0_i32, %c0_i32_0 : i32, i32
  }
  func.func @transform_13(%arg0: i32) -> (i32, i32) {
    %c0_i32 = arith.constant 0 : i32
    %c0_i32_0 = arith.constant 0 : i32
    %c0_i32_1 = arith.constant 0 : i32
    return %c0_i32, %c0_i32_0 : i32, i32
  }
  func.func @transform_14(%arg0: i32) -> (i32, i32) {
    %c0_i32 = arith.constant 0 : i32
    %c0_i32_0 = arith.constant 0 : i32
    %c0_i32_1 = arith.constant 0 : i32
    return %c0_i32, %c0_i32_0 : i32, i32
  }
  func.func @transform_15(%arg0: i32) -> (i32, i32) {
    %c0_i32 = arith.constant 0 : i32
    %c0_i32_0 = arith.constant 0 : i32
    %c0_i32_1 = arith.constant 0 : i32
    return %c0_i32, %c0_i32_0 : i32, i32
  }
  func.func @transform_16(%arg0: i32) -> (i32, i32) {
    %c0_i32 = arith.constant 0 : i32
    %c0_i32_0 = arith.constant 0 : i32
    return %arg0, %c0_i32 : i32, i32
  }
}

module attributes {stable_mosaic.version = 11 : i64} {
  func.func @_neighbor_agg_kernel(%arg0: i32, %arg1: memref<7x16x32xbf16, #tpu.memory_space<vmem>>, %arg2: memref<7x16x32xbf16, #tpu.memory_space<vmem>>, %arg3: memref<16x32xbf16, #tpu.memory_space<vmem>>, %arg4: memref<16x7xf32, #tpu.memory_space<vmem>>, %arg5: memref<32x32xbf16, #tpu.memory_space<vmem>>, %arg6: memref<32x32xbf16, #tpu.memory_space<vmem>>, %arg7: memref<1x32xf32, #tpu.memory_space<vmem>>, %arg8: memref<32x32xbf16, #tpu.memory_space<vmem>>, %arg9: memref<1x32xf32, #tpu.memory_space<vmem>>, %arg10: memref<32x32xbf16, #tpu.memory_space<vmem>>, %arg11: memref<32x32xbf16, #tpu.memory_space<vmem>>, %arg12: memref<1x32xf32, #tpu.memory_space<vmem>>, %arg13: memref<1x32xf32, #tpu.memory_space<vmem>>, %arg14: memref<1x1xf32, #tpu.memory_space<vmem>>, %arg15: memref<32x32xbf16, #tpu.memory_space<vmem>>, %arg16: memref<1x32xf32, #tpu.memory_space<vmem>>, %arg17: memref<16x32xbf16, #tpu.memory_space<vmem>>) attributes {dimension_semantics = [#tpu.dimension_semantics<parallel>], iteration_bounds = array<i64: 1>, scalar_prefetch = 0 : i64, scratch_operands = 0 : i64, tpu.core_type = #tpu.core_type<tc>, window_params = [{transform_indices = @transform_0, window_bounds = array<i64: 7, 16, 32>}, {transform_indices = @transform_1, window_bounds = array<i64: 7, 16, 32>}, {transform_indices = @transform_2, window_bounds = array<i64: 16, 32>}, {transform_indices = @transform_3, window_bounds = array<i64: 16, 7>}, {pipeline_mode = #tpu.pipeline_mode<synchronous>, transform_indices = @transform_4, window_bounds = array<i64: 32, 32>}, {pipeline_mode = #tpu.pipeline_mode<synchronous>, transform_indices = @transform_5, window_bounds = array<i64: 32, 32>}, {pipeline_mode = #tpu.pipeline_mode<synchronous>, transform_indices = @transform_6, window_bounds = array<i64: 1, 32>}, {pipeline_mode = #tpu.pipeline_mode<synchronous>, transform_indices = @transform_7, window_bounds = array<i64: 32, 32>}, {pipeline_mode = #tpu.pipeline_mode<synchronous>, transform_indices = @transform_8, window_bounds = array<i64: 1, 32>}, {pipeline_mode = #tpu.pipeline_mode<synchronous>, transform_indices = @transform_9, window_bounds = array<i64: 32, 32>}, {pipeline_mode = #tpu.pipeline_mode<synchronous>, transform_indices = @transform_10, window_bounds = array<i64: 32, 32>}, {pipeline_mode = #tpu.pipeline_mode<synchronous>, transform_indices = @transform_11, window_bounds = array<i64: 1, 32>}, {pipeline_mode = #tpu.pipeline_mode<synchronous>, transform_indices = @transform_12, window_bounds = array<i64: 1, 32>}, {pipeline_mode = #tpu.pipeline_mode<synchronous>, transform_indices = @transform_13, window_bounds = array<i64: 1, 1>}, {pipeline_mode = #tpu.pipeline_mode<synchronous>, transform_indices = @transform_14, window_bounds = array<i64: 32, 32>}, {pipeline_mode = #tpu.pipeline_mode<synchronous>, transform_indices = @transform_15, window_bounds = array<i64: 1, 32>}, {transform_indices = @transform_16, window_bounds = array<i64: 16, 32>}]} {
    %c0 = arith.constant 0 : index
    %c0_0 = arith.constant 0 : index
    %c0_1 = arith.constant 0 : index
    %0 = vector.load %arg1[%c0, %c0_0, %c0_1] : memref<7x16x32xbf16, #tpu.memory_space<vmem>>, vector<7x16x32xbf16>
    %1 = vector.shape_cast %0 : vector<7x16x32xbf16> to vector<112x32xbf16>
    %c0_2 = arith.constant 0 : index
    %c0_3 = arith.constant 0 : index
    %c0_4 = arith.constant 0 : index
    %2 = vector.load %arg2[%c0_2, %c0_3, %c0_4] : memref<7x16x32xbf16, #tpu.memory_space<vmem>>, vector<7x16x32xbf16>
    %3 = vector.shape_cast %2 : vector<7x16x32xbf16> to vector<112x32xbf16>
    %c0_5 = arith.constant 0 : index
    %c0_6 = arith.constant 0 : index
    %4 = vector.load %arg5[%c0_5, %c0_6] : memref<32x32xbf16, #tpu.memory_space<vmem>>, vector<32x32xbf16>
    %cst = arith.constant dense<0.000000e+00> : vector<112x32xf32>
    %5 = tpu.matmul %1, %4, %cst {dimension_numbers = #tpu.dot_dimension_numbers<[1], [0], [0], [1], [0, 0, 1, 1], [], []>} : vector<112x32xbf16>, vector<32x32xbf16>, vector<112x32xf32> -> vector<112x32xf32>
    %c0_7 = arith.constant 0 : index
    %c0_8 = arith.constant 0 : index
    %6 = vector.load %arg6[%c0_7, %c0_8] : memref<32x32xbf16, #tpu.memory_space<vmem>>, vector<32x32xbf16>
    %cst_9 = arith.constant dense<0.000000e+00> : vector<112x32xf32>
    %7 = tpu.matmul %3, %6, %cst_9 {dimension_numbers = #tpu.dot_dimension_numbers<[1], [0], [0], [1], [0, 0, 1, 1], [], []>} : vector<112x32xbf16>, vector<32x32xbf16>, vector<112x32xf32> -> vector<112x32xf32>
    %8 = arith.addf %5, %7 : vector<112x32xf32>
    %c0_10 = arith.constant 0 : index
    %c0_11 = arith.constant 0 : index
    %9 = vector.load %arg7[%c0_10, %c0_11] : memref<1x32xf32, #tpu.memory_space<vmem>>, vector<1x32xf32>
    %10 = vector.broadcast %9 : vector<1x32xf32> to vector<112x32xf32>
    %11 = arith.addf %8, %10 : vector<112x32xf32>
    %cst_12 = arith.constant 0.000000e+00 : f32
    %12 = vector.broadcast %cst_12 : f32 to vector<112x32xf32>
    %13 = arith.maximumf %11, %12 : vector<112x32xf32>
    %14 = arith.truncf %13 : vector<112x32xf32> to vector<112x32xbf16>
    %c0_13 = arith.constant 0 : index
    %c0_14 = arith.constant 0 : index
    %15 = vector.load %arg8[%c0_13, %c0_14] : memref<32x32xbf16, #tpu.memory_space<vmem>>, vector<32x32xbf16>
    %cst_15 = arith.constant dense<0.000000e+00> : vector<112x32xf32>
    %16 = tpu.matmul %14, %15, %cst_15 {dimension_numbers = #tpu.dot_dimension_numbers<[1], [0], [0], [1], [0, 0, 1, 1], [], []>} : vector<112x32xbf16>, vector<32x32xbf16>, vector<112x32xf32> -> vector<112x32xf32>
    %c0_16 = arith.constant 0 : index
    %c0_17 = arith.constant 0 : index
    %17 = vector.load %arg9[%c0_16, %c0_17] : memref<1x32xf32, #tpu.memory_space<vmem>>, vector<1x32xf32>
    %18 = vector.broadcast %17 : vector<1x32xf32> to vector<112x32xf32>
    %19 = arith.addf %16, %18 : vector<112x32xf32>
    %20 = arith.truncf %19 : vector<112x32xf32> to vector<112x32xbf16>
    %c0_18 = arith.constant 0 : index
    %c0_19 = arith.constant 0 : index
    %21 = vector.load %arg10[%c0_18, %c0_19] : memref<32x32xbf16, #tpu.memory_space<vmem>>, vector<32x32xbf16>
    %cst_20 = arith.constant dense<0.000000e+00> : vector<112x32xf32>
    %22 = tpu.matmul %20, %21, %cst_20 {dimension_numbers = #tpu.dot_dimension_numbers<[1], [0], [0], [1], [0, 0, 1, 1], [], []>} : vector<112x32xbf16>, vector<32x32xbf16>, vector<112x32xf32> -> vector<112x32xf32>
    %c0_21 = arith.constant 0 : index
    %c0_22 = arith.constant 0 : index
    %23 = vector.load %arg3[%c0_21, %c0_22] : memref<16x32xbf16, #tpu.memory_space<vmem>>, vector<16x32xbf16>
    %c0_23 = arith.constant 0 : index
    %c0_24 = arith.constant 0 : index
    %24 = vector.load %arg11[%c0_23, %c0_24] : memref<32x32xbf16, #tpu.memory_space<vmem>>, vector<32x32xbf16>
    %cst_25 = arith.constant dense<0.000000e+00> : vector<16x32xf32>
    %25 = tpu.matmul %23, %24, %cst_25 {dimension_numbers = #tpu.dot_dimension_numbers<[1], [0], [0], [1], [0, 0, 1, 1], [], []>} : vector<16x32xbf16>, vector<32x32xbf16>, vector<16x32xf32> -> vector<16x32xf32>
    %26 = vector.shape_cast %19 : vector<112x32xf32> to vector<7x16x32xf32>
    %27 = vector.shape_cast %22 : vector<112x32xf32> to vector<7x16x32xf32>
    %c0_26 = arith.constant 0 : index
    %c0_27 = arith.constant 0 : index
    %28 = vector.load %arg4[%c0_26, %c0_27] : memref<16x7xf32, #tpu.memory_space<vmem>>, vector<16x7xf32>
    %c0_28 = arith.constant 0 : index
    %c0_29 = arith.constant 0 : index
    %29 = vector.load %arg12[%c0_28, %c0_29] : memref<1x32xf32, #tpu.memory_space<vmem>>, vector<1x32xf32>
    %30 = vector.shape_cast %29 : vector<1x32xf32> to vector<1x32xf32>
    %31 = vector.broadcast %30 : vector<1x32xf32> to vector<16x32xf32>
    %c0_30 = arith.constant 0 : index
    %c0_31 = arith.constant 0 : index
    %32 = vector.load %arg13[%c0_30, %c0_31] : memref<1x32xf32, #tpu.memory_space<vmem>>, vector<1x32xf32>
    %33 = vector.shape_cast %32 : vector<1x32xf32> to vector<1x32xf32>
    %34 = vector.broadcast %33 : vector<1x32xf32> to vector<16x32xf32>
    %c0_32 = arith.constant 0 : index
    %c0_33 = arith.constant 0 : index
    %35 = vector.load %arg14[%c0_32, %c0_33] : memref<1x1xf32, #tpu.memory_space<vmem>>, vector<1x1xf32>
    %36 = vector.shape_cast %35 : vector<1x1xf32> to vector<1x1xf32>
    %37 = vector.broadcast %36 : vector<1x1xf32> to vector<16x1xf32>
    %cst_34 = arith.constant -1.000000e+30 : f32
    %38 = vector.broadcast %cst_34 : f32 to vector<16x1xf32>
    %cst_35 = arith.constant 0.000000e+00 : f32
    %39 = vector.broadcast %cst_35 : f32 to vector<16x1xf32>
    %cst_36 = arith.constant 0.000000e+00 : f32
    %40 = vector.broadcast %cst_36 : f32 to vector<16x32xf32>
    %41 = vector.extract_strided_slice %28 {offsets = [0, 0], sizes = [16, 1], strides = [1, 1]} : vector<16x7xf32> to vector<16x1xf32>
    %42 = vector.extract_strided_slice %27 {offsets = [0, 0, 0], sizes = [1, 16, 32], strides = [1, 1, 1]} : vector<7x16x32xf32> to vector<1x16x32xf32>
    %43 = vector.shape_cast %42 : vector<1x16x32xf32> to vector<16x32xf32>
    %44 = vector.broadcast %41 : vector<16x1xf32> to vector<16x32xf32>
    %45 = arith.mulf %44, %25 : vector<16x32xf32>
    %46 = arith.addf %43, %45 : vector<16x32xf32>
    %47 = arith.addf %46, %31 : vector<16x32xf32>
    %cst_37 = arith.constant 0.000000e+00 : f32
    %48 = vector.broadcast %cst_37 : f32 to vector<16x32xf32>
    %49 = arith.maximumf %47, %48 : vector<16x32xf32>
    %50 = arith.mulf %49, %34 : vector<16x32xf32>
    %cst_38 = arith.constant dense<0.000000e+00> : vector<16xf32>
    %51 = vector.multi_reduction <add>, %50, %cst_38 [1] : vector<16x32xf32> to vector<16xf32>
    %52 = vector.shape_cast %51 : vector<16xf32> to vector<16x1xf32>
    %53 = arith.addf %52, %37 : vector<16x1xf32>
    %cst_39 = arith.constant 0.000000e+00 : f32
    %54 = vector.broadcast %cst_39 : f32 to vector<16x1xf32>
    %55 = arith.cmpf ogt, %41, %54 : vector<16x1xf32>
    %cst_40 = arith.constant -1.000000e+30 : f32
    %56 = vector.broadcast %cst_40 : f32 to vector<16x1xf32>
    %57 = arith.select %55, %53, %56 : vector<16x1xi1>, vector<16x1xf32>
    %58 = arith.maximumf %38, %57 : vector<16x1xf32>
    %59 = arith.subf %38, %58 : vector<16x1xf32>
    %60 = math.exp %59 : vector<16x1xf32>
    %61 = arith.subf %57, %58 : vector<16x1xf32>
    %62 = math.exp %61 : vector<16x1xf32>
    %63 = arith.mulf %62, %41 : vector<16x1xf32>
    %64 = arith.mulf %39, %60 : vector<16x1xf32>
    %65 = arith.addf %64, %63 : vector<16x1xf32>
    %66 = vector.broadcast %60 : vector<16x1xf32> to vector<16x32xf32>
    %67 = arith.mulf %40, %66 : vector<16x32xf32>
    %68 = vector.extract_strided_slice %26 {offsets = [0, 0, 0], sizes = [1, 16, 32], strides = [1, 1, 1]} : vector<7x16x32xf32> to vector<1x16x32xf32>
    %69 = vector.shape_cast %68 : vector<1x16x32xf32> to vector<16x32xf32>
    %70 = vector.broadcast %63 : vector<16x1xf32> to vector<16x32xf32>
    %71 = arith.mulf %70, %69 : vector<16x32xf32>
    %72 = arith.addf %67, %71 : vector<16x32xf32>
    %73 = vector.extract_strided_slice %28 {offsets = [0, 1], sizes = [16, 1], strides = [1, 1]} : vector<16x7xf32> to vector<16x1xf32>
    %74 = vector.extract_strided_slice %27 {offsets = [1, 0, 0], sizes = [1, 16, 32], strides = [1, 1, 1]} : vector<7x16x32xf32> to vector<1x16x32xf32>
    %75 = vector.shape_cast %74 : vector<1x16x32xf32> to vector<16x32xf32>
    %76 = vector.broadcast %73 : vector<16x1xf32> to vector<16x32xf32>
    %77 = arith.mulf %76, %25 : vector<16x32xf32>
    %78 = arith.addf %75, %77 : vector<16x32xf32>
    %79 = arith.addf %78, %31 : vector<16x32xf32>
    %cst_41 = arith.constant 0.000000e+00 : f32
    %80 = vector.broadcast %cst_41 : f32 to vector<16x32xf32>
    %81 = arith.maximumf %79, %80 : vector<16x32xf32>
    %82 = arith.mulf %81, %34 : vector<16x32xf32>
    %cst_42 = arith.constant dense<0.000000e+00> : vector<16xf32>
    %83 = vector.multi_reduction <add>, %82, %cst_42 [1] : vector<16x32xf32> to vector<16xf32>
    %84 = vector.shape_cast %83 : vector<16xf32> to vector<16x1xf32>
    %85 = arith.addf %84, %37 : vector<16x1xf32>
    %cst_43 = arith.constant 0.000000e+00 : f32
    %86 = vector.broadcast %cst_43 : f32 to vector<16x1xf32>
    %87 = arith.cmpf ogt, %73, %86 : vector<16x1xf32>
    %cst_44 = arith.constant -1.000000e+30 : f32
    %88 = vector.broadcast %cst_44 : f32 to vector<16x1xf32>
    %89 = arith.select %87, %85, %88 : vector<16x1xi1>, vector<16x1xf32>
    %90 = arith.maximumf %58, %89 : vector<16x1xf32>
    %91 = arith.subf %58, %90 : vector<16x1xf32>
    %92 = math.exp %91 : vector<16x1xf32>
    %93 = arith.subf %89, %90 : vector<16x1xf32>
    %94 = math.exp %93 : vector<16x1xf32>
    %95 = arith.mulf %94, %73 : vector<16x1xf32>
    %96 = arith.mulf %65, %92 : vector<16x1xf32>
    %97 = arith.addf %96, %95 : vector<16x1xf32>
    %98 = vector.broadcast %92 : vector<16x1xf32> to vector<16x32xf32>
    %99 = arith.mulf %72, %98 : vector<16x32xf32>
    %100 = vector.extract_strided_slice %26 {offsets = [1, 0, 0], sizes = [1, 16, 32], strides = [1, 1, 1]} : vector<7x16x32xf32> to vector<1x16x32xf32>
    %101 = vector.shape_cast %100 : vector<1x16x32xf32> to vector<16x32xf32>
    %102 = vector.broadcast %95 : vector<16x1xf32> to vector<16x32xf32>
    %103 = arith.mulf %102, %101 : vector<16x32xf32>
    %104 = arith.addf %99, %103 : vector<16x32xf32>
    %105 = vector.extract_strided_slice %28 {offsets = [0, 2], sizes = [16, 1], strides = [1, 1]} : vector<16x7xf32> to vector<16x1xf32>
    %106 = vector.extract_strided_slice %27 {offsets = [2, 0, 0], sizes = [1, 16, 32], strides = [1, 1, 1]} : vector<7x16x32xf32> to vector<1x16x32xf32>
    %107 = vector.shape_cast %106 : vector<1x16x32xf32> to vector<16x32xf32>
    %108 = vector.broadcast %105 : vector<16x1xf32> to vector<16x32xf32>
    %109 = arith.mulf %108, %25 : vector<16x32xf32>
    %110 = arith.addf %107, %109 : vector<16x32xf32>
    %111 = arith.addf %110, %31 : vector<16x32xf32>
    %cst_45 = arith.constant 0.000000e+00 : f32
    %112 = vector.broadcast %cst_45 : f32 to vector<16x32xf32>
    %113 = arith.maximumf %111, %112 : vector<16x32xf32>
    %114 = arith.mulf %113, %34 : vector<16x32xf32>
    %cst_46 = arith.constant dense<0.000000e+00> : vector<16xf32>
    %115 = vector.multi_reduction <add>, %114, %cst_46 [1] : vector<16x32xf32> to vector<16xf32>
    %116 = vector.shape_cast %115 : vector<16xf32> to vector<16x1xf32>
    %117 = arith.addf %116, %37 : vector<16x1xf32>
    %cst_47 = arith.constant 0.000000e+00 : f32
    %118 = vector.broadcast %cst_47 : f32 to vector<16x1xf32>
    %119 = arith.cmpf ogt, %105, %118 : vector<16x1xf32>
    %cst_48 = arith.constant -1.000000e+30 : f32
    %120 = vector.broadcast %cst_48 : f32 to vector<16x1xf32>
    %121 = arith.select %119, %117, %120 : vector<16x1xi1>, vector<16x1xf32>
    %122 = arith.maximumf %90, %121 : vector<16x1xf32>
    %123 = arith.subf %90, %122 : vector<16x1xf32>
    %124 = math.exp %123 : vector<16x1xf32>
    %125 = arith.subf %121, %122 : vector<16x1xf32>
    %126 = math.exp %125 : vector<16x1xf32>
    %127 = arith.mulf %126, %105 : vector<16x1xf32>
    %128 = arith.mulf %97, %124 : vector<16x1xf32>
    %129 = arith.addf %128, %127 : vector<16x1xf32>
    %130 = vector.broadcast %124 : vector<16x1xf32> to vector<16x32xf32>
    %131 = arith.mulf %104, %130 : vector<16x32xf32>
    %132 = vector.extract_strided_slice %26 {offsets = [2, 0, 0], sizes = [1, 16, 32], strides = [1, 1, 1]} : vector<7x16x32xf32> to vector<1x16x32xf32>
    %133 = vector.shape_cast %132 : vector<1x16x32xf32> to vector<16x32xf32>
    %134 = vector.broadcast %127 : vector<16x1xf32> to vector<16x32xf32>
    %135 = arith.mulf %134, %133 : vector<16x32xf32>
    %136 = arith.addf %131, %135 : vector<16x32xf32>
    %137 = vector.extract_strided_slice %28 {offsets = [0, 3], sizes = [16, 1], strides = [1, 1]} : vector<16x7xf32> to vector<16x1xf32>
    %138 = vector.extract_strided_slice %27 {offsets = [3, 0, 0], sizes = [1, 16, 32], strides = [1, 1, 1]} : vector<7x16x32xf32> to vector<1x16x32xf32>
    %139 = vector.shape_cast %138 : vector<1x16x32xf32> to vector<16x32xf32>
    %140 = vector.broadcast %137 : vector<16x1xf32> to vector<16x32xf32>
    %141 = arith.mulf %140, %25 : vector<16x32xf32>
    %142 = arith.addf %139, %141 : vector<16x32xf32>
    %143 = arith.addf %142, %31 : vector<16x32xf32>
    %cst_49 = arith.constant 0.000000e+00 : f32
    %144 = vector.broadcast %cst_49 : f32 to vector<16x32xf32>
    %145 = arith.maximumf %143, %144 : vector<16x32xf32>
    %146 = arith.mulf %145, %34 : vector<16x32xf32>
    %cst_50 = arith.constant dense<0.000000e+00> : vector<16xf32>
    %147 = vector.multi_reduction <add>, %146, %cst_50 [1] : vector<16x32xf32> to vector<16xf32>
    %148 = vector.shape_cast %147 : vector<16xf32> to vector<16x1xf32>
    %149 = arith.addf %148, %37 : vector<16x1xf32>
    %cst_51 = arith.constant 0.000000e+00 : f32
    %150 = vector.broadcast %cst_51 : f32 to vector<16x1xf32>
    %151 = arith.cmpf ogt, %137, %150 : vector<16x1xf32>
    %cst_52 = arith.constant -1.000000e+30 : f32
    %152 = vector.broadcast %cst_52 : f32 to vector<16x1xf32>
    %153 = arith.select %151, %149, %152 : vector<16x1xi1>, vector<16x1xf32>
    %154 = arith.maximumf %122, %153 : vector<16x1xf32>
    %155 = arith.subf %122, %154 : vector<16x1xf32>
    %156 = math.exp %155 : vector<16x1xf32>
    %157 = arith.subf %153, %154 : vector<16x1xf32>
    %158 = math.exp %157 : vector<16x1xf32>
    %159 = arith.mulf %158, %137 : vector<16x1xf32>
    %160 = arith.mulf %129, %156 : vector<16x1xf32>
    %161 = arith.addf %160, %159 : vector<16x1xf32>
    %162 = vector.broadcast %156 : vector<16x1xf32> to vector<16x32xf32>
    %163 = arith.mulf %136, %162 : vector<16x32xf32>
    %164 = vector.extract_strided_slice %26 {offsets = [3, 0, 0], sizes = [1, 16, 32], strides = [1, 1, 1]} : vector<7x16x32xf32> to vector<1x16x32xf32>
    %165 = vector.shape_cast %164 : vector<1x16x32xf32> to vector<16x32xf32>
    %166 = vector.broadcast %159 : vector<16x1xf32> to vector<16x32xf32>
    %167 = arith.mulf %166, %165 : vector<16x32xf32>
    %168 = arith.addf %163, %167 : vector<16x32xf32>
    %169 = vector.extract_strided_slice %28 {offsets = [0, 4], sizes = [16, 1], strides = [1, 1]} : vector<16x7xf32> to vector<16x1xf32>
    %170 = vector.extract_strided_slice %27 {offsets = [4, 0, 0], sizes = [1, 16, 32], strides = [1, 1, 1]} : vector<7x16x32xf32> to vector<1x16x32xf32>
    %171 = vector.shape_cast %170 : vector<1x16x32xf32> to vector<16x32xf32>
    %172 = vector.broadcast %169 : vector<16x1xf32> to vector<16x32xf32>
    %173 = arith.mulf %172, %25 : vector<16x32xf32>
    %174 = arith.addf %171, %173 : vector<16x32xf32>
    %175 = arith.addf %174, %31 : vector<16x32xf32>
    %cst_53 = arith.constant 0.000000e+00 : f32
    %176 = vector.broadcast %cst_53 : f32 to vector<16x32xf32>
    %177 = arith.maximumf %175, %176 : vector<16x32xf32>
    %178 = arith.mulf %177, %34 : vector<16x32xf32>
    %cst_54 = arith.constant dense<0.000000e+00> : vector<16xf32>
    %179 = vector.multi_reduction <add>, %178, %cst_54 [1] : vector<16x32xf32> to vector<16xf32>
    %180 = vector.shape_cast %179 : vector<16xf32> to vector<16x1xf32>
    %181 = arith.addf %180, %37 : vector<16x1xf32>
    %cst_55 = arith.constant 0.000000e+00 : f32
    %182 = vector.broadcast %cst_55 : f32 to vector<16x1xf32>
    %183 = arith.cmpf ogt, %169, %182 : vector<16x1xf32>
    %cst_56 = arith.constant -1.000000e+30 : f32
    %184 = vector.broadcast %cst_56 : f32 to vector<16x1xf32>
    %185 = arith.select %183, %181, %184 : vector<16x1xi1>, vector<16x1xf32>
    %186 = arith.maximumf %154, %185 : vector<16x1xf32>
    %187 = arith.subf %154, %186 : vector<16x1xf32>
    %188 = math.exp %187 : vector<16x1xf32>
    %189 = arith.subf %185, %186 : vector<16x1xf32>
    %190 = math.exp %189 : vector<16x1xf32>
    %191 = arith.mulf %190, %169 : vector<16x1xf32>
    %192 = arith.mulf %161, %188 : vector<16x1xf32>
    %193 = arith.addf %192, %191 : vector<16x1xf32>
    %194 = vector.broadcast %188 : vector<16x1xf32> to vector<16x32xf32>
    %195 = arith.mulf %168, %194 : vector<16x32xf32>
    %196 = vector.extract_strided_slice %26 {offsets = [4, 0, 0], sizes = [1, 16, 32], strides = [1, 1, 1]} : vector<7x16x32xf32> to vector<1x16x32xf32>
    %197 = vector.shape_cast %196 : vector<1x16x32xf32> to vector<16x32xf32>
    %198 = vector.broadcast %191 : vector<16x1xf32> to vector<16x32xf32>
    %199 = arith.mulf %198, %197 : vector<16x32xf32>
    %200 = arith.addf %195, %199 : vector<16x32xf32>
    %201 = vector.extract_strided_slice %28 {offsets = [0, 5], sizes = [16, 1], strides = [1, 1]} : vector<16x7xf32> to vector<16x1xf32>
    %202 = vector.extract_strided_slice %27 {offsets = [5, 0, 0], sizes = [1, 16, 32], strides = [1, 1, 1]} : vector<7x16x32xf32> to vector<1x16x32xf32>
    %203 = vector.shape_cast %202 : vector<1x16x32xf32> to vector<16x32xf32>
    %204 = vector.broadcast %201 : vector<16x1xf32> to vector<16x32xf32>
    %205 = arith.mulf %204, %25 : vector<16x32xf32>
    %206 = arith.addf %203, %205 : vector<16x32xf32>
    %207 = arith.addf %206, %31 : vector<16x32xf32>
    %cst_57 = arith.constant 0.000000e+00 : f32
    %208 = vector.broadcast %cst_57 : f32 to vector<16x32xf32>
    %209 = arith.maximumf %207, %208 : vector<16x32xf32>
    %210 = arith.mulf %209, %34 : vector<16x32xf32>
    %cst_58 = arith.constant dense<0.000000e+00> : vector<16xf32>
    %211 = vector.multi_reduction <add>, %210, %cst_58 [1] : vector<16x32xf32> to vector<16xf32>
    %212 = vector.shape_cast %211 : vector<16xf32> to vector<16x1xf32>
    %213 = arith.addf %212, %37 : vector<16x1xf32>
    %cst_59 = arith.constant 0.000000e+00 : f32
    %214 = vector.broadcast %cst_59 : f32 to vector<16x1xf32>
    %215 = arith.cmpf ogt, %201, %214 : vector<16x1xf32>
    %cst_60 = arith.constant -1.000000e+30 : f32
    %216 = vector.broadcast %cst_60 : f32 to vector<16x1xf32>
    %217 = arith.select %215, %213, %216 : vector<16x1xi1>, vector<16x1xf32>
    %218 = arith.maximumf %186, %217 : vector<16x1xf32>
    %219 = arith.subf %186, %218 : vector<16x1xf32>
    %220 = math.exp %219 : vector<16x1xf32>
    %221 = arith.subf %217, %218 : vector<16x1xf32>
    %222 = math.exp %221 : vector<16x1xf32>
    %223 = arith.mulf %222, %201 : vector<16x1xf32>
    %224 = arith.mulf %193, %220 : vector<16x1xf32>
    %225 = arith.addf %224, %223 : vector<16x1xf32>
    %226 = vector.broadcast %220 : vector<16x1xf32> to vector<16x32xf32>
    %227 = arith.mulf %200, %226 : vector<16x32xf32>
    %228 = vector.extract_strided_slice %26 {offsets = [5, 0, 0], sizes = [1, 16, 32], strides = [1, 1, 1]} : vector<7x16x32xf32> to vector<1x16x32xf32>
    %229 = vector.shape_cast %228 : vector<1x16x32xf32> to vector<16x32xf32>
    %230 = vector.broadcast %223 : vector<16x1xf32> to vector<16x32xf32>
    %231 = arith.mulf %230, %229 : vector<16x32xf32>
    %232 = arith.addf %227, %231 : vector<16x32xf32>
    %233 = vector.extract_strided_slice %28 {offsets = [0, 6], sizes = [16, 1], strides = [1, 1]} : vector<16x7xf32> to vector<16x1xf32>
    %234 = vector.extract_strided_slice %27 {offsets = [6, 0, 0], sizes = [1, 16, 32], strides = [1, 1, 1]} : vector<7x16x32xf32> to vector<1x16x32xf32>
    %235 = vector.shape_cast %234 : vector<1x16x32xf32> to vector<16x32xf32>
    %236 = vector.broadcast %233 : vector<16x1xf32> to vector<16x32xf32>
    %237 = arith.mulf %236, %25 : vector<16x32xf32>
    %238 = arith.addf %235, %237 : vector<16x32xf32>
    %239 = arith.addf %238, %31 : vector<16x32xf32>
    %cst_61 = arith.constant 0.000000e+00 : f32
    %240 = vector.broadcast %cst_61 : f32 to vector<16x32xf32>
    %241 = arith.maximumf %239, %240 : vector<16x32xf32>
    %242 = arith.mulf %241, %34 : vector<16x32xf32>
    %cst_62 = arith.constant dense<0.000000e+00> : vector<16xf32>
    %243 = vector.multi_reduction <add>, %242, %cst_62 [1] : vector<16x32xf32> to vector<16xf32>
    %244 = vector.shape_cast %243 : vector<16xf32> to vector<16x1xf32>
    %245 = arith.addf %244, %37 : vector<16x1xf32>
    %cst_63 = arith.constant 0.000000e+00 : f32
    %246 = vector.broadcast %cst_63 : f32 to vector<16x1xf32>
    %247 = arith.cmpf ogt, %233, %246 : vector<16x1xf32>
    %cst_64 = arith.constant -1.000000e+30 : f32
    %248 = vector.broadcast %cst_64 : f32 to vector<16x1xf32>
    %249 = arith.select %247, %245, %248 : vector<16x1xi1>, vector<16x1xf32>
    %250 = arith.maximumf %218, %249 : vector<16x1xf32>
    %251 = arith.subf %218, %250 : vector<16x1xf32>
    %252 = math.exp %251 : vector<16x1xf32>
    %253 = arith.subf %249, %250 : vector<16x1xf32>
    %254 = math.exp %253 : vector<16x1xf32>
    %255 = arith.mulf %254, %233 : vector<16x1xf32>
    %256 = arith.mulf %225, %252 : vector<16x1xf32>
    %257 = arith.addf %256, %255 : vector<16x1xf32>
    %258 = vector.broadcast %252 : vector<16x1xf32> to vector<16x32xf32>
    %259 = arith.mulf %232, %258 : vector<16x32xf32>
    %260 = vector.extract_strided_slice %26 {offsets = [6, 0, 0], sizes = [1, 16, 32], strides = [1, 1, 1]} : vector<7x16x32xf32> to vector<1x16x32xf32>
    %261 = vector.shape_cast %260 : vector<1x16x32xf32> to vector<16x32xf32>
    %262 = vector.broadcast %255 : vector<16x1xf32> to vector<16x32xf32>
    %263 = arith.mulf %262, %261 : vector<16x32xf32>
    %264 = arith.addf %259, %263 : vector<16x32xf32>
    %cst_65 = arith.constant 1.000000e-10 : f32
    %265 = vector.broadcast %cst_65 : f32 to vector<16x1xf32>
    %266 = arith.addf %257, %265 : vector<16x1xf32>
    %267 = tpu.reciprocal %266 {approx = true} : vector<16x1xf32> -> vector<16x1xf32>
    %268 = vector.broadcast %267 : vector<16x1xf32> to vector<16x32xf32>
    %269 = arith.mulf %264, %268 : vector<16x32xf32>
    %270 = arith.truncf %269 : vector<16x32xf32> to vector<16x32xbf16>
    %c0_66 = arith.constant 0 : index
    %c0_67 = arith.constant 0 : index
    %271 = vector.load %arg15[%c0_66, %c0_67] : memref<32x32xbf16, #tpu.memory_space<vmem>>, vector<32x32xbf16>
    %cst_68 = arith.constant dense<0.000000e+00> : vector<16x32xf32>
    %272 = tpu.matmul %270, %271, %cst_68 {dimension_numbers = #tpu.dot_dimension_numbers<[1], [0], [0], [1], [0, 0, 1, 1], [], []>} : vector<16x32xbf16>, vector<32x32xbf16>, vector<16x32xf32> -> vector<16x32xf32>
    %c0_69 = arith.constant 0 : index
    %c0_70 = arith.constant 0 : index
    %273 = vector.load %arg16[%c0_69, %c0_70] : memref<1x32xf32, #tpu.memory_space<vmem>>, vector<1x32xf32>
    %274 = vector.broadcast %273 : vector<1x32xf32> to vector<16x32xf32>
    %275 = arith.addf %272, %274 : vector<16x32xf32>
    %cst_71 = arith.constant 0.000000e+00 : f32
    %276 = vector.broadcast %cst_71 : f32 to vector<16x32xf32>
    %277 = arith.maximumf %275, %276 : vector<16x32xf32>
    %278 = arith.truncf %277 : vector<16x32xf32> to vector<16x32xbf16>
    %c0_72 = arith.constant 0 : index
    %c0_73 = arith.constant 0 : index
    %279 = vector.load %arg17[%c0_72, %c0_73] : memref<16x32xbf16, #tpu.memory_space<vmem>>, vector<16x32xbf16>
    tpu.vector_store %arg17[%c0_72, %c0_73], %278 {strides = array<i32>} : memref<16x32xbf16, #tpu.memory_space<vmem>>, vector<16x32xbf16>,
    return
  }
  func.func @transform_0(%arg0: i32) -> (i32, i32, i32) {
    %c0_i32 = arith.constant 0 : i32
    %c0_i32_0 = arith.constant 0 : i32
    %c0_i32_1 = arith.constant 0 : i32
    return %c0_i32, %arg0, %c0_i32_0 : i32, i32, i32
  }
  func.func @transform_1(%arg0: i32) -> (i32, i32, i32) {
    %c0_i32 = arith.constant 0 : i32
    %c0_i32_0 = arith.constant 0 : i32
    %c0_i32_1 = arith.constant 0 : i32
    return %c0_i32, %arg0, %c0_i32_0 : i32, i32, i32
  }
  func.func @transform_2(%arg0: i32) -> (i32, i32) {
    %c0_i32 = arith.constant 0 : i32
    %c0_i32_0 = arith.constant 0 : i32
    return %arg0, %c0_i32 : i32, i32
  }
  func.func @transform_3(%arg0: i32) -> (i32, i32) {
    %c0_i32 = arith.constant 0 : i32
    %c0_i32_0 = arith.constant 0 : i32
    return %arg0, %c0_i32 : i32, i32
  }
  func.func @transform_4(%arg0: i32) -> (i32, i32) {
    %c0_i32 = arith.constant 0 : i32
    %c0_i32_0 = arith.constant 0 : i32
    %c0_i32_1 = arith.constant 0 : i32
    return %c0_i32, %c0_i32_0 : i32, i32
  }
  func.func @transform_5(%arg0: i32) -> (i32, i32) {
    %c0_i32 = arith.constant 0 : i32
    %c0_i32_0 = arith.constant 0 : i32
    %c0_i32_1 = arith.constant 0 : i32
    return %c0_i32, %c0_i32_0 : i32, i32
  }
  func.func @transform_6(%arg0: i32) -> (i32, i32) {
    %c0_i32 = arith.constant 0 : i32
    %c0_i32_0 = arith.constant 0 : i32
    %c0_i32_1 = arith.constant 0 : i32
    return %c0_i32, %c0_i32_0 : i32, i32
  }
  func.func @transform_7(%arg0: i32) -> (i32, i32) {
    %c0_i32 = arith.constant 0 : i32
    %c0_i32_0 = arith.constant 0 : i32
    %c0_i32_1 = arith.constant 0 : i32
    return %c0_i32, %c0_i32_0 : i32, i32
  }
  func.func @transform_8(%arg0: i32) -> (i32, i32) {
    %c0_i32 = arith.constant 0 : i32
    %c0_i32_0 = arith.constant 0 : i32
    %c0_i32_1 = arith.constant 0 : i32
    return %c0_i32, %c0_i32_0 : i32, i32
  }
  func.func @transform_9(%arg0: i32) -> (i32, i32) {
    %c0_i32 = arith.constant 0 : i32
    %c0_i32_0 = arith.constant 0 : i32
    %c0_i32_1 = arith.constant 0 : i32
    return %c0_i32, %c0_i32_0 : i32, i32
  }
  func.func @transform_10(%arg0: i32) -> (i32, i32) {
    %c0_i32 = arith.constant 0 : i32
    %c0_i32_0 = arith.constant 0 : i32
    %c0_i32_1 = arith.constant 0 : i32
    return %c0_i32, %c0_i32_0 : i32, i32
  }
  func.func @transform_11(%arg0: i32) -> (i32, i32) {
    %c0_i32 = arith.constant 0 : i32
    %c0_i32_0 = arith.constant 0 : i32
    %c0_i32_1 = arith.constant 0 : i32
    return %c0_i32, %c0_i32_0 : i32, i32
  }
  func.func @transform_12(%arg0: i32) -> (i32, i32) {
    %c0_i32 = arith.constant 0 : i32
    %c0_i32_0 = arith.constant 0 : i32
    %c0_i32_1 = arith.constant 0 : i32
    return %c0_i32, %c0_i32_0 : i32, i32
  }
  func.func @transform_13(%arg0: i32) -> (i32, i32) {
    %c0_i32 = arith.constant 0 : i32
    %c0_i32_0 = arith.constant 0 : i32
    %c0_i32_1 = arith.constant 0 : i32
    return %c0_i32, %c0_i32_0 : i32, i32
  }
  func.func @transform_14(%arg0: i32) -> (i32, i32) {
    %c0_i32 = arith.constant 0 : i32
    %c0_i32_0 = arith.constant 0 : i32
    %c0_i32_1 = arith.constant 0 : i32
    return %c0_i32, %c0_i32_0 : i32, i32
  }
  func.func @transform_15(%arg0: i32) -> (i32, i32) {
    %c0_i32 = arith.constant 0 : i32
    %c0_i32_0 = arith.constant 0 : i32
    %c0_i32_1 = arith.constant 0 : i32
    return %c0_i32, %c0_i32_0 : i32, i32
  }
  func.func @transform_16(%arg0: i32) -> (i32, i32) {
    %c0_i32 = arith.constant 0 : i32
    %c0_i32_0 = arith.constant 0 : i32
    return %arg0, %c0_i32 : i32, i32
  }
}

module attributes {stable_mosaic.version = 11 : i64} {
  func.func @_combine_rate_kernel(%arg0: i32, %arg1: memref<16x32xbf16, #tpu.memory_space<vmem>>, %arg2: memref<16x32xbf16, #tpu.memory_space<vmem>>, %arg3: memref<16x32xbf16, #tpu.memory_space<vmem>>, %arg4: memref<32x32xbf16, #tpu.memory_space<vmem>>, %arg5: memref<32x32xbf16, #tpu.memory_space<vmem>>, %arg6: memref<1x32xf32, #tpu.memory_space<vmem>>, %arg7: memref<32x32xbf16, #tpu.memory_space<vmem>>, %arg8: memref<1x32xf32, #tpu.memory_space<vmem>>, %arg9: memref<32x32xbf16, #tpu.memory_space<vmem>>, %arg10: memref<1x32xf32, #tpu.memory_space<vmem>>, %arg11: memref<32x32xbf16, #tpu.memory_space<vmem>>, %arg12: memref<32x32xbf16, #tpu.memory_space<vmem>>, %arg13: memref<1x32xf32, #tpu.memory_space<vmem>>, %arg14: memref<32x32xbf16, #tpu.memory_space<vmem>>, %arg15: memref<1x32xf32, #tpu.memory_space<vmem>>, %arg16: memref<1x32xf32, #tpu.memory_space<vmem>>, %arg17: memref<1x1xf32, #tpu.memory_space<vmem>>, %arg18: memref<16x1xf32, #tpu.memory_space<vmem>>) attributes {dimension_semantics = [#tpu.dimension_semantics<parallel>], iteration_bounds = array<i64: 1>, scalar_prefetch = 0 : i64, scratch_operands = 0 : i64, tpu.core_type = #tpu.core_type<tc>, window_params = [{transform_indices = @transform_0, window_bounds = array<i64: 16, 32>}, {transform_indices = @transform_1, window_bounds = array<i64: 16, 32>}, {transform_indices = @transform_2, window_bounds = array<i64: 16, 32>}, {pipeline_mode = #tpu.pipeline_mode<synchronous>, transform_indices = @transform_3, window_bounds = array<i64: 32, 32>}, {pipeline_mode = #tpu.pipeline_mode<synchronous>, transform_indices = @transform_4, window_bounds = array<i64: 32, 32>}, {pipeline_mode = #tpu.pipeline_mode<synchronous>, transform_indices = @transform_5, window_bounds = array<i64: 1, 32>}, {pipeline_mode = #tpu.pipeline_mode<synchronous>, transform_indices = @transform_6, window_bounds = array<i64: 32, 32>}, {pipeline_mode = #tpu.pipeline_mode<synchronous>, transform_indices = @transform_7, window_bounds = array<i64: 1, 32>}, {pipeline_mode = #tpu.pipeline_mode<synchronous>, transform_indices = @transform_8, window_bounds = array<i64: 32, 32>}, {pipeline_mode = #tpu.pipeline_mode<synchronous>, transform_indices = @transform_9, window_bounds = array<i64: 1, 32>}, {pipeline_mode = #tpu.pipeline_mode<synchronous>, transform_indices = @transform_10, window_bounds = array<i64: 32, 32>}, {pipeline_mode = #tpu.pipeline_mode<synchronous>, transform_indices = @transform_11, window_bounds = array<i64: 32, 32>}, {pipeline_mode = #tpu.pipeline_mode<synchronous>, transform_indices = @transform_12, window_bounds = array<i64: 1, 32>}, {pipeline_mode = #tpu.pipeline_mode<synchronous>, transform_indices = @transform_13, window_bounds = array<i64: 32, 32>}, {pipeline_mode = #tpu.pipeline_mode<synchronous>, transform_indices = @transform_14, window_bounds = array<i64: 1, 32>}, {pipeline_mode = #tpu.pipeline_mode<synchronous>, transform_indices = @transform_15, window_bounds = array<i64: 1, 32>}, {pipeline_mode = #tpu.pipeline_mode<synchronous>, transform_indices = @transform_16, window_bounds = array<i64: 1, 1>}, {transform_indices = @transform_17, window_bounds = array<i64: 16, 1>}]} {
    %c0 = arith.constant 0 : index
    %c0_0 = arith.constant 0 : index
    %0 = vector.load %arg4[%c0, %c0_0] : memref<32x32xbf16, #tpu.memory_space<vmem>>, vector<32x32xbf16>
    %c0_1 = arith.constant 0 : index
    %c0_2 = arith.constant 0 : index
    %1 = vector.load %arg1[%c0_1, %c0_2] : memref<16x32xbf16, #tpu.memory_space<vmem>>, vector<16x32xbf16>
    %cst = arith.constant dense<0.000000e+00> : vector<16x32xf32>
    %2 = tpu.matmul %1, %0, %cst {dimension_numbers = #tpu.dot_dimension_numbers<[1], [0], [0], [1], [0, 0, 1, 1], [], []>} : vector<16x32xbf16>, vector<32x32xbf16>, vector<16x32xf32> -> vector<16x32xf32>
    %c0_3 = arith.constant 0 : index
    %c0_4 = arith.constant 0 : index
    %3 = vector.load %arg2[%c0_3, %c0_4] : memref<16x32xbf16, #tpu.memory_space<vmem>>, vector<16x32xbf16>
    %c0_5 = arith.constant 0 : index
    %c0_6 = arith.constant 0 : index
    %4 = vector.load %arg5[%c0_5, %c0_6] : memref<32x32xbf16, #tpu.memory_space<vmem>>, vector<32x32xbf16>
    %cst_7 = arith.constant dense<0.000000e+00> : vector<16x32xf32>
    %5 = tpu.matmul %3, %4, %cst_7 {dimension_numbers = #tpu.dot_dimension_numbers<[1], [0], [0], [1], [0, 0, 1, 1], [], []>} : vector<16x32xbf16>, vector<32x32xbf16>, vector<16x32xf32> -> vector<16x32xf32>
    %6 = arith.addf %2, %5 : vector<16x32xf32>
    %c0_8 = arith.constant 0 : index
    %c0_9 = arith.constant 0 : index
    %7 = vector.load %arg6[%c0_8, %c0_9] : memref<1x32xf32, #tpu.memory_space<vmem>>, vector<1x32xf32>
    %8 = vector.broadcast %7 : vector<1x32xf32> to vector<16x32xf32>
    %9 = arith.addf %6, %8 : vector<16x32xf32>
    %cst_10 = arith.constant 0.000000e+00 : f32
    %10 = vector.broadcast %cst_10 : f32 to vector<16x32xf32>
    %11 = arith.maximumf %9, %10 : vector<16x32xf32>
    %12 = arith.truncf %11 : vector<16x32xf32> to vector<16x32xbf16>
    %c0_11 = arith.constant 0 : index
    %c0_12 = arith.constant 0 : index
    %13 = vector.load %arg7[%c0_11, %c0_12] : memref<32x32xbf16, #tpu.memory_space<vmem>>, vector<32x32xbf16>
    %cst_13 = arith.constant dense<0.000000e+00> : vector<16x32xf32>
    %14 = tpu.matmul %12, %13, %cst_13 {dimension_numbers = #tpu.dot_dimension_numbers<[1], [0], [0], [1], [0, 0, 1, 1], [], []>} : vector<16x32xbf16>, vector<32x32xbf16>, vector<16x32xf32> -> vector<16x32xf32>
    %c0_14 = arith.constant 0 : index
    %c0_15 = arith.constant 0 : index
    %15 = vector.load %arg8[%c0_14, %c0_15] : memref<1x32xf32, #tpu.memory_space<vmem>>, vector<1x32xf32>
    %16 = vector.broadcast %15 : vector<1x32xf32> to vector<16x32xf32>
    %17 = arith.addf %14, %16 : vector<16x32xf32>
    %cst_16 = arith.constant 0.000000e+00 : f32
    %18 = vector.broadcast %cst_16 : f32 to vector<16x32xf32>
    %19 = arith.maximumf %17, %18 : vector<16x32xf32>
    %20 = arith.truncf %19 : vector<16x32xf32> to vector<16x32xbf16>
    %c0_17 = arith.constant 0 : index
    %c0_18 = arith.constant 0 : index
    %21 = vector.load %arg9[%c0_17, %c0_18] : memref<32x32xbf16, #tpu.memory_space<vmem>>, vector<32x32xbf16>
    %cst_19 = arith.constant dense<0.000000e+00> : vector<16x32xf32>
    %22 = tpu.matmul %20, %21, %cst_19 {dimension_numbers = #tpu.dot_dimension_numbers<[1], [0], [0], [1], [0, 0, 1, 1], [], []>} : vector<16x32xbf16>, vector<32x32xbf16>, vector<16x32xf32> -> vector<16x32xf32>
    %c0_20 = arith.constant 0 : index
    %c0_21 = arith.constant 0 : index
    %23 = vector.load %arg10[%c0_20, %c0_21] : memref<1x32xf32, #tpu.memory_space<vmem>>, vector<1x32xf32>
    %24 = vector.broadcast %23 : vector<1x32xf32> to vector<16x32xf32>
    %25 = arith.addf %22, %24 : vector<16x32xf32>
    %cst_22 = arith.constant 0.000000e+00 : f32
    %26 = vector.broadcast %cst_22 : f32 to vector<16x32xf32>
    %27 = arith.maximumf %25, %26 : vector<16x32xf32>
    %28 = arith.truncf %27 : vector<16x32xf32> to vector<16x32xbf16>
    %c0_23 = arith.constant 0 : index
    %c0_24 = arith.constant 0 : index
    %29 = vector.load %arg11[%c0_23, %c0_24] : memref<32x32xbf16, #tpu.memory_space<vmem>>, vector<32x32xbf16>
    %cst_25 = arith.constant dense<0.000000e+00> : vector<16x32xf32>
    %30 = tpu.matmul %28, %29, %cst_25 {dimension_numbers = #tpu.dot_dimension_numbers<[1], [0], [0], [1], [0, 0, 1, 1], [], []>} : vector<16x32xbf16>, vector<32x32xbf16>, vector<16x32xf32> -> vector<16x32xf32>
    %c0_26 = arith.constant 0 : index
    %c0_27 = arith.constant 0 : index
    %31 = vector.load %arg3[%c0_26, %c0_27] : memref<16x32xbf16, #tpu.memory_space<vmem>>, vector<16x32xbf16>
    %c0_28 = arith.constant 0 : index
    %c0_29 = arith.constant 0 : index
    %32 = vector.load %arg12[%c0_28, %c0_29] : memref<32x32xbf16, #tpu.memory_space<vmem>>, vector<32x32xbf16>
    %cst_30 = arith.constant dense<0.000000e+00> : vector<16x32xf32>
    %33 = tpu.matmul %31, %32, %cst_30 {dimension_numbers = #tpu.dot_dimension_numbers<[1], [0], [0], [1], [0, 0, 1, 1], [], []>} : vector<16x32xbf16>, vector<32x32xbf16>, vector<16x32xf32> -> vector<16x32xf32>
    %34 = arith.addf %30, %33 : vector<16x32xf32>
    %c0_31 = arith.constant 0 : index
    %c0_32 = arith.constant 0 : index
    %35 = vector.load %arg13[%c0_31, %c0_32] : memref<1x32xf32, #tpu.memory_space<vmem>>, vector<1x32xf32>
    %36 = vector.broadcast %35 : vector<1x32xf32> to vector<16x32xf32>
    %37 = arith.addf %34, %36 : vector<16x32xf32>
    %cst_33 = arith.constant 0.000000e+00 : f32
    %38 = vector.broadcast %cst_33 : f32 to vector<16x32xf32>
    %39 = arith.maximumf %37, %38 : vector<16x32xf32>
    %40 = arith.truncf %39 : vector<16x32xf32> to vector<16x32xbf16>
    %c0_34 = arith.constant 0 : index
    %c0_35 = arith.constant 0 : index
    %41 = vector.load %arg14[%c0_34, %c0_35] : memref<32x32xbf16, #tpu.memory_space<vmem>>, vector<32x32xbf16>
    %cst_36 = arith.constant dense<0.000000e+00> : vector<16x32xf32>
    %42 = tpu.matmul %40, %41, %cst_36 {dimension_numbers = #tpu.dot_dimension_numbers<[1], [0], [0], [1], [0, 0, 1, 1], [], []>} : vector<16x32xbf16>, vector<32x32xbf16>, vector<16x32xf32> -> vector<16x32xf32>
    %c0_37 = arith.constant 0 : index
    %c0_38 = arith.constant 0 : index
    %43 = vector.load %arg15[%c0_37, %c0_38] : memref<1x32xf32, #tpu.memory_space<vmem>>, vector<1x32xf32>
    %44 = vector.broadcast %43 : vector<1x32xf32> to vector<16x32xf32>
    %45 = arith.addf %42, %44 : vector<16x32xf32>
    %cst_39 = arith.constant 0.000000e+00 : f32
    %46 = vector.broadcast %cst_39 : f32 to vector<16x32xf32>
    %47 = arith.maximumf %45, %46 : vector<16x32xf32>
    %c0_40 = arith.constant 0 : index
    %c0_41 = arith.constant 0 : index
    %48 = vector.load %arg16[%c0_40, %c0_41] : memref<1x32xf32, #tpu.memory_space<vmem>>, vector<1x32xf32>
    %49 = vector.broadcast %48 : vector<1x32xf32> to vector<16x32xf32>
    %50 = arith.mulf %47, %49 : vector<16x32xf32>
    %cst_42 = arith.constant dense<0.000000e+00> : vector<16xf32>
    %51 = vector.multi_reduction <add>, %50, %cst_42 [1] : vector<16x32xf32> to vector<16xf32>
    %52 = vector.shape_cast %51 : vector<16xf32> to vector<16x1xf32>
    %c0_43 = arith.constant 0 : index
    %c0_44 = arith.constant 0 : index
    %53 = vector.load %arg17[%c0_43, %c0_44] : memref<1x1xf32, #tpu.memory_space<vmem>>, vector<1x1xf32>
    %54 = vector.broadcast %53 : vector<1x1xf32> to vector<16x1xf32>
    %55 = arith.addf %52, %54 : vector<16x1xf32>
    %c0_45 = arith.constant 0 : index
    %c0_46 = arith.constant 0 : index
    %56 = vector.load %arg18[%c0_45, %c0_46] : memref<16x1xf32, #tpu.memory_space<vmem>>, vector<16x1xf32>
    tpu.vector_store %arg18[%c0_45, %c0_46], %55 {strides = array<i32>} : memref<16x1xf32, #tpu.memory_space<vmem>>, vector<16x1xf32>,
    return
  }
  func.func @transform_0(%arg0: i32) -> (i32, i32) {
    %c0_i32 = arith.constant 0 : i32
    %c0_i32_0 = arith.constant 0 : i32
    return %arg0, %c0_i32 : i32, i32
  }
  func.func @transform_1(%arg0: i32) -> (i32, i32) {
    %c0_i32 = arith.constant 0 : i32
    %c0_i32_0 = arith.constant 0 : i32
    return %arg0, %c0_i32 : i32, i32
  }
  func.func @transform_2(%arg0: i32) -> (i32, i32) {
    %c0_i32 = arith.constant 0 : i32
    %c0_i32_0 = arith.constant 0 : i32
    return %arg0, %c0_i32 : i32, i32
  }
  func.func @transform_3(%arg0: i32) -> (i32, i32) {
    %c0_i32 = arith.constant 0 : i32
    %c0_i32_0 = arith.constant 0 : i32
    %c0_i32_1 = arith.constant 0 : i32
    return %c0_i32, %c0_i32_0 : i32, i32
  }
  func.func @transform_4(%arg0: i32) -> (i32, i32) {
    %c0_i32 = arith.constant 0 : i32
    %c0_i32_0 = arith.constant 0 : i32
    %c0_i32_1 = arith.constant 0 : i32
    return %c0_i32, %c0_i32_0 : i32, i32
  }
  func.func @transform_5(%arg0: i32) -> (i32, i32) {
    %c0_i32 = arith.constant 0 : i32
    %c0_i32_0 = arith.constant 0 : i32
    %c0_i32_1 = arith.constant 0 : i32
    return %c0_i32, %c0_i32_0 : i32, i32
  }
  func.func @transform_6(%arg0: i32) -> (i32, i32) {
    %c0_i32 = arith.constant 0 : i32
    %c0_i32_0 = arith.constant 0 : i32
    %c0_i32_1 = arith.constant 0 : i32
    return %c0_i32, %c0_i32_0 : i32, i32
  }
  func.func @transform_7(%arg0: i32) -> (i32, i32) {
    %c0_i32 = arith.constant 0 : i32
    %c0_i32_0 = arith.constant 0 : i32
    %c0_i32_1 = arith.constant 0 : i32
    return %c0_i32, %c0_i32_0 : i32, i32
  }
  func.func @transform_8(%arg0: i32) -> (i32, i32) {
    %c0_i32 = arith.constant 0 : i32
    %c0_i32_0 = arith.constant 0 : i32
    %c0_i32_1 = arith.constant 0 : i32
    return %c0_i32, %c0_i32_0 : i32, i32
  }
  func.func @transform_9(%arg0: i32) -> (i32, i32) {
    %c0_i32 = arith.constant 0 : i32
    %c0_i32_0 = arith.constant 0 : i32
    %c0_i32_1 = arith.constant 0 : i32
    return %c0_i32, %c0_i32_0 : i32, i32
  }
  func.func @transform_10(%arg0: i32) -> (i32, i32) {
    %c0_i32 = arith.constant 0 : i32
    %c0_i32_0 = arith.constant 0 : i32
    %c0_i32_1 = arith.constant 0 : i32
    return %c0_i32, %c0_i32_0 : i32, i32
  }
  func.func @transform_11(%arg0: i32) -> (i32, i32) {
    %c0_i32 = arith.constant 0 : i32
    %c0_i32_0 = arith.constant 0 : i32
    %c0_i32_1 = arith.constant 0 : i32
    return %c0_i32, %c0_i32_0 : i32, i32
  }
  func.func @transform_12(%arg0: i32) -> (i32, i32) {
    %c0_i32 = arith.constant 0 : i32
    %c0_i32_0 = arith.constant 0 : i32
    %c0_i32_1 = arith.constant 0 : i32
    return %c0_i32, %c0_i32_0 : i32, i32
  }
  func.func @transform_13(%arg0: i32) -> (i32, i32) {
    %c0_i32 = arith.constant 0 : i32
    %c0_i32_0 = arith.constant 0 : i32
    %c0_i32_1 = arith.constant 0 : i32
    return %c0_i32, %c0_i32_0 : i32, i32
  }
  func.func @transform_14(%arg0: i32) -> (i32, i32) {
    %c0_i32 = arith.constant 0 : i32
    %c0_i32_0 = arith.constant 0 : i32
    %c0_i32_1 = arith.constant 0 : i32
    return %c0_i32, %c0_i32_0 : i32, i32
  }
  func.func @transform_15(%arg0: i32) -> (i32, i32) {
    %c0_i32 = arith.constant 0 : i32
    %c0_i32_0 = arith.constant 0 : i32
    %c0_i32_1 = arith.constant 0 : i32
    return %c0_i32, %c0_i32_0 : i32, i32
  }
  func.func @transform_16(%arg0: i32) -> (i32, i32) {
    %c0_i32 = arith.constant 0 : i32
    %c0_i32_0 = arith.constant 0 : i32
    %c0_i32_1 = arith.constant 0 : i32
    return %c0_i32, %c0_i32_0 : i32, i32
  }
  func.func @transform_17(%arg0: i32) -> (i32, i32) {
    %c0_i32 = arith.constant 0 : i32
    %c0_i32_0 = arith.constant 0 : i32
    return %arg0, %c0_i32 : i32, i32
  }
}

</mosaic_0001>

<llo_original>
// kernel: gnn_forward.6
$region0: #{gnn_forward.6}
  #allocation0 [shape = 'u32[]', space=smem, size = 0x4, offset = 0x4, fixed_abs, tag = 'smem constant byte address 0x4 - core index']
  #allocation1 [shape = 'u32[144,128]{1,0:T(1,128)}', space=vmem, size = 0x12000, scoped, tag = 'internal scratch']
  #allocation2 [shape = 'f32[1,1]{1,0:T(1,128)S(1)}', space=vmem, size = 0x200, scoped, tag = 'scoped memory for gnn_forward.6']
  %s0 = inlined_call_operand.vmem [shape: bf16[6,16,32], index: 0, kind: input, shape index: {}]
  %s1 = inlined_call_operand.vmem [shape: bf16[6,16,32], index: 1, kind: input, shape index: {}]
  %s2 = inlined_call_operand.vmem [shape: bf16[16,32], index: 2, kind: input, shape index: {}]
  %s3 = inlined_call_operand.vmem [shape: f32[16,6], index: 3, kind: input, shape index: {}]
  %s4 = inlined_call_operand.vmem [shape: bf16[32,32], index: 4, kind: input, shape index: {}]
  %s5 = inlined_call_operand.vmem [shape: bf16[32,32], index: 5, kind: input, shape index: {}]
  %s6 = inlined_call_operand.vmem [shape: f32[1,32], index: 6, kind: input, shape index: {}]
  %s7 = inlined_call_operand.vmem [shape: bf16[32,32], index: 7, kind: input, shape index: {}]
  %s8 = inlined_call_operand.vmem [shape: f32[1,32], index: 8, kind: input, shape index: {}]
  %s9 = inlined_call_operand.vmem [shape: bf16[32,32], index: 9, kind: input, shape index: {}]
  %s10 = inlined_call_operand.vmem [shape: bf16[32,32], index: 10, kind: input, shape index: {}]
  %s11 = inlined_call_operand.vmem [shape: f32[1,32], index: 11, kind: input, shape index: {}]
  %s12 = inlined_call_operand.vmem [shape: f32[1,32], index: 12, kind: input, shape index: {}]
  %s13 = inlined_call_operand.<no memory space> [shape: f32[1,1], index: 13, kind: input, shape index: {}]
  %s14 = inlined_call_operand.vmem [shape: bf16[32,32], index: 14, kind: input, shape index: {}]
  %s15 = inlined_call_operand.vmem [shape: f32[1,32], index: 15, kind: input, shape index: {}]
  %s16 = inlined_call_operand.vmem [shape: bf16[16,32], index: 16, kind: output, shape index: {}]
  %s17 = sld [smem:[#allocation0]]
  $region74: #{gnn_forward.6} parent=0
    _
  %s19 = ssub.s32 1, %s17
  %s20 = scalar_select 0, %s19, %s17
  %v21 = vstv %s13
  %22 = vst [vmem:[#allocation2] sm:$0x1] %v21
  // Predicated region
  $region2: #{gnn_forward.6} parent=0 // pred_check
    _
  $region3: #{gnn_forward.6} parent=0 // pred_check_branch
    %24 = sbr.rel (0) target = $region5
  $region4: #{gnn_forward.6} parent=0 // pred_region
    _
  $region5: #{gnn_forward.6} parent=0 // pred_fallthru
    _
  // Predicated region
  $region6: #{gnn_forward.6} parent=0 // pred_check
    _
  $region7: #{gnn_forward.6} parent=0 // pred_check_branch
    %26 = sbr.rel (0) target = $region9
  $region8: #{gnn_forward.6} parent=0 // pred_region
    _
  $region9: #{gnn_forward.6} parent=0 // pred_fallthru
    _
  // Predicated region
  $region10: #{gnn_forward.6} parent=0 // pred_check
    _
  $region11: #{gnn_forward.6} parent=0 // pred_check_branch
    %28 = sbr.rel (0) target = $region13
  $region12: #{gnn_forward.6} parent=0 // pred_region
    _
  $region13: #{gnn_forward.6} parent=0 // pred_fallthru
    _
  // Predicated region
  $region14: #{gnn_forward.6} parent=0 // pred_check
    _
  $region15: #{gnn_forward.6} parent=0 // pred_check_branch
    %30 = sbr.rel (0) target = $region17
  $region16: #{gnn_forward.6} parent=0 // pred_region
    _
  $region17: #{gnn_forward.6} parent=0 // pred_fallthru
    _
  // Predicated region
  $region18: #{gnn_forward.6} parent=0 // pred_check
    _
  $region19: #{gnn_forward.6} parent=0 // pred_check_branch
    %32 = sbr.rel (0) target = $region21
  $region20: #{gnn_forward.6} parent=0 // pred_region
    _
  $region21: #{gnn_forward.6} parent=0 // pred_fallthru
    _
  // Predicated region
  $region22: #{gnn_forward.6} parent=0 // pred_check
    _
  $region23: #{gnn_forward.6} parent=0 // pred_check_branch
    %34 = sbr.rel (0) target = $region25
  $region24: #{gnn_forward.6} parent=0 // pred_region
    _
  $region25: #{gnn_forward.6} parent=0 // pred_fallthru
    _
  // Predicated region
  $region26: #{gnn_forward.6} parent=0 // pred_check
    _
  $region27: #{gnn_forward.6} parent=0 // pred_check_branch
    %36 = sbr.rel (0) target = $region29
  $region28: #{gnn_forward.6} parent=0 // pred_region
    _
  $region29: #{gnn_forward.6} parent=0 // pred_fallthru
    _
  // Predicated region
  $region30: #{gnn_forward.6} parent=0 // pred_check
    _
  $region31: #{gnn_forward.6} parent=0 // pred_check_branch
    %38 = sbr.rel (0) target = $region33
  $region32: #{gnn_forward.6} parent=0 // pred_region
    _
  $region33: #{gnn_forward.6} parent=0 // pred_fallthru
    _
  // Predicated region
  $region34: #{gnn_forward.6} parent=0 // pred_check
    _
  $region35: #{gnn_forward.6} parent=0 // pred_check_branch
    %40 = sbr.rel (0) target = $region37
  $region36: #{gnn_forward.6} parent=0 // pred_region
    _
  $region37: #{gnn_forward.6} parent=0 // pred_fallthru
    _
  // Predicated region
  $region38: #{gnn_forward.6} parent=0 // pred_check
    _
  $region39: #{gnn_forward.6} parent=0 // pred_check_branch
    %42 = sbr.rel (0) target = $region41
  $region40: #{gnn_forward.6} parent=0 // pred_region
    _
  $region41: #{gnn_forward.6} parent=0 // pred_fallthru
    _
  // Predicated region
  $region42: #{gnn_forward.6} parent=0 // pred_check
    _
  $region43: #{gnn_forward.6} parent=0 // pred_check_branch
    %44 = sbr.rel (0) target = $region45
  $region44: #{gnn_forward.6} parent=0 // pred_region
    _
  $region45: #{gnn_forward.6} parent=0 // pred_fallthru
    _
  // Predicated region
  $region46: #{gnn_forward.6} parent=0 // pred_check
    _
  $region47: #{gnn_forward.6} parent=0 // pred_check_branch
    %46 = sbr.rel (0) target = $region49
  $region48: #{gnn_forward.6} parent=0 // pred_region
    _
  $region49: #{gnn_forward.6} parent=0 // pred_fallthru
    _
  // Predicated region
  $region50: #{gnn_forward.6} parent=0 // pred_check
    _
  $region51: #{gnn_forward.6} parent=0 // pred_check_branch
    %48 = sbr.rel (0) target = $region53
  $region52: #{gnn_forward.6} parent=0 // pred_region
    _
  $region53: #{gnn_forward.6} parent=0 // pred_fallthru
    _
  // Predicated region
  $region54: #{gnn_forward.6} parent=0 // pred_check
    _
  $region55: #{gnn_forward.6} parent=0 // pred_check_branch
    %50 = sbr.rel (0) target = $region57
  $region56: #{gnn_forward.6} parent=0 // pred_region
    _
  $region57: #{gnn_forward.6} parent=0 // pred_fallthru
    _
  // Predicated region
  $region58: #{gnn_forward.6} parent=0 // pred_check
    _
  $region59: #{gnn_forward.6} parent=0 // pred_check_branch
    %52 = sbr.rel (0) target = $region61
  $region60: #{gnn_forward.6} parent=0 // pred_region
    _
  $region61: #{gnn_forward.6} parent=0 // pred_fallthru
    _
  // Predicated region
  $region62: #{gnn_forward.6} parent=0 // pred_check
    _
  $region63: #{gnn_forward.6} parent=0 // pred_check_branch
    %54 = sbr.rel (0) target = $region65
  $region64: #{gnn_forward.6} parent=0 // pred_region
    _
  $region65: #{gnn_forward.6} parent=0 // pred_fallthru
    _
  %v56 = vld [vmem:[%s0] sm:$0xf]
  %v57 = vld [vmem:[%s0 + $0x4] sm:$0xf]
  %v58 = vld [vmem:[%s0 + $0x8] sm:$0xf]
  %v59 = vld [vmem:[%s0 + $0xc] sm:$0xf]
  %v60 = vld [vmem:[%s0 + $0x10] sm:$0xf]
  %v61 = vld [vmem:[%s0 + $0x14] sm:$0xf]
  %v62 = vld [vmem:[%s0 + $0x18] sm:$0xf]
  %v63 = vld [vmem:[%s0 + $0x1c] sm:$0xf]
  %v64 = vld [vmem:[%s0 + $0x20] sm:$0xf]
  %v65 = vld [vmem:[%s0 + $0x24] sm:$0xf]
  %v66 = vld [vmem:[%s0 + $0x28] sm:$0xf]
  %v67 = vld [vmem:[%s0 + $0x2c] sm:$0xf]
  %v68 = vld [vmem:[%s1] sm:$0xf]
  %v69 = vld [vmem:[%s1 + $0x4] sm:$0xf]
  %v70 = vld [vmem:[%s1 + $0x8] sm:$0xf]
  %v71 = vld [vmem:[%s1 + $0xc] sm:$0xf]
  %v72 = vld [vmem:[%s1 + $0x10] sm:$0xf]
  %v73 = vld [vmem:[%s1 + $0x14] sm:$0xf]
  %v74 = vld [vmem:[%s1 + $0x18] sm:$0xf]
  %v75 = vld [vmem:[%s1 + $0x1c] sm:$0xf]
  %v76 = vld [vmem:[%s1 + $0x20] sm:$0xf]
  %v77 = vld [vmem:[%s1 + $0x24] sm:$0xf]
  %v78 = vld [vmem:[%s1 + $0x28] sm:$0xf]
  %v79 = vld [vmem:[%s1 + $0x2c] sm:$0xf]
  %v80 = vld [vmem:[%s4] sm:$0xf]
  %v81 = vld [vmem:[%s4 + $0x4] sm:$0xf]
  %v82 = vld [vmem:[%s4 + $0x8] sm:$0xf]
  %v83 = vld [vmem:[%s4 + $0xc] sm:$0xf]
  %v84 = vld [vmem:[%s5] sm:$0xf]
  %v85 = vld [vmem:[%s5 + $0x4] sm:$0xf]
  %v86 = vld [vmem:[%s5 + $0x8] sm:$0xf]
  %v87 = vld [vmem:[%s5 + $0xc] sm:$0xf]
  %v100 = vunpack.c.l.b16 %v68
  %v101 = vunpack.c.l.b16 %v69
  %v102 = vunpack.c.l.b16 %v70
  %v103 = vunpack.c.l.b16 %v71
  %v104 = vunpack.c.l.b16 %v72
  %v105 = vunpack.c.l.b16 %v73
  %v106 = vunpack.c.l.b16 %v74
  %v107 = vunpack.c.l.b16 %v75
  %v108 = vunpack.c.l.b16 %v76
  %v109 = vunpack.c.l.b16 %v77
  %v110 = vunpack.c.l.b16 %v78
  %v111 = vunpack.c.l.b16 %v79
  %v112 = vpack.c.b16 %v101, %v100
  %v113 = vpack.c.b16 %v103, %v102
  %v114 = vpack.c.b16 %v105, %v104
  %v115 = vpack.c.b16 %v107, %v106
  %v116 = vpack.c.b16 %v109, %v108
  %v117 = vpack.c.b16 %v111, %v110
  %v122 = vunpack.c.l.b16 %v84
  %v123 = vunpack.c.l.b16 %v85
  %v124 = vunpack.c.l.b16 %v86
  %v125 = vunpack.c.l.b16 %v87
  %v126 = vpack.c.b16 %v123, %v122
  %v127 = vpack.c.b16 %v125, %v124
  %vm130 = vcmask 261120
  %v132 = vsel %vm130, %v112, 0
  %v135 = vsel %vm130, %v113, 0
  %v138 = vsel %vm130, %v114, 0
  %v141 = vsel %vm130, %v115, 0
  %v144 = vsel %vm130, %v116, 0
  %v147 = vsel %vm130, %v117, 0
  %149 = vmatprep.subr.bf16.mxu0 0
  %150 = vmatpush1.bf16.msra.mxu0 %v126
  %151 = vmatprep.subr.bf16.mxu0 0
  %152 = vmatpush1.bf16.msra.mxu0 %v127
  %153 = vmatprep.subr.bf16.mxu0 0
  %154 = vmatpush1.bf16.msra.mxu0 0
  %155 = vmatprep.subr.bf16.mxu0 0
  %156 = vmatpush1.bf16.msra.mxu0 0
  %157 = vmatprep.subr.bf16.mxu0 0
  %158 = vmatpush1.bf16.msra.mxu0 0
  %159 = vmatprep.subr.bf16.mxu0 0
  %160 = vmatpush1.bf16.msra.mxu0 0
  %161 = vmatprep.subr.bf16.mxu0 0
  %162 = vmatpush1.bf16.msra.mxu0 0
  %163 = vmatprep.subr.bf16.mxu0 0
  %164 = vmatpush1.bf16.msra.mxu0 0
  %165 = vmatprep.subr.bf16.mxu0 0
  %166 = vmatpush1.bf16.msra.mxu0 0
  %167 = vmatprep.subr.bf16.mxu0 0
  %168 = vmatpush1.bf16.msra.mxu0 0
  %169 = vmatprep.subr.bf16.mxu0 0
  %170 = vmatpush1.bf16.msra.mxu0 0
  %171 = vmatprep.subr.bf16.mxu0 0
  %172 = vmatpush1.bf16.msra.mxu0 0
  %173 = vmatprep.subr.bf16.mxu0 0
  %174 = vmatpush1.bf16.msra.mxu0 0
  %175 = vmatprep.subr.bf16.mxu0 0
  %176 = vmatpush1.bf16.msra.mxu0 0
  %177 = vmatprep.subr.bf16.mxu0 0
  %178 = vmatpush1.bf16.msra.mxu0 0
  %179 = vmatprep.subr.bf16.mxu0 0
  %180 = vmatpush1.bf16.msra.mxu0 0
  %181 = vmatprep.mubr.bf16.mxu0 0
  %182 = vmatmul.mubr.bf16.gmra.mrb[0].mxu0 %v132
  %v183 = vpop.f32.mrb[0].mxu0
  %v184 = vadd.f32 0.0, %v183
  %v185 = vpop.f32.mrb[0].mxu0
  %v186 = vpop.f32.mrb[0].mxu0
  %v187 = vadd.f32 0.0, %v186
  %v188 = vpop.f32.mrb[0].mxu0
  %189 = vmatprep.mubr.bf16.mxu0 0
  %190 = vmatmul.mubr.bf16.gmra.mrb[0].mxu0 %v135
  %v191 = vpop.f32.mrb[0].mxu0
  %v192 = vadd.f32 0.0, %v191
  %v193 = vpop.f32.mrb[0].mxu0
  %v194 = vpop.f32.mrb[0].mxu0
  %v195 = vadd.f32 0.0, %v194
  %v196 = vpop.f32.mrb[0].mxu0
  %197 = vmatprep.mubr.bf16.mxu0 0
  %198 = vmatmul.mubr.bf16.gmra.mrb[0].mxu0 %v138
  %v199 = vpop.f32.mrb[0].mxu0
  %v200 = vadd.f32 0.0, %v199
  %v201 = vpop.f32.mrb[0].mxu0
  %v202 = vpop.f32.mrb[0].mxu0
  %v203 = vadd.f32 0.0, %v202
  %v204 = vpop.f32.mrb[0].mxu0
  %205 = vmatprep.mubr.bf16.mxu0 0
  %206 = vmatmul.mubr.bf16.gmra.mrb[0].mxu0 %v141
  %v207 = vpop.f32.mrb[0].mxu0
  %v208 = vadd.f32 0.0, %v207
  %v209 = vpop.f32.mrb[0].mxu0
  %v210 = vpop.f32.mrb[0].mxu0
  %v211 = vadd.f32 0.0, %v210
  %v212 = vpop.f32.mrb[0].mxu0
  %213 = vmatprep.mubr.bf16.mxu0 0
  %214 = vmatmul.mubr.bf16.gmra.mrb[0].mxu0 %v144
  %v215 = vpop.f32.mrb[0].mxu0
  %v216 = vadd.f32 0.0, %v215
  %v217 = vpop.f32.mrb[0].mxu0
  %v218 = vpop.f32.mrb[0].mxu0
  %v219 = vadd.f32 0.0, %v218
  %v220 = vpop.f32.mrb[0].mxu0
  %221 = vmatprep.mubr.bf16.mxu0 0
  %222 = vmatmul.mubr.bf16.gmra.mrb[0].mxu0 %v147
  %v223 = vpop.f32.mrb[0].mxu0
  %v224 = vadd.f32 0.0, %v223
  %v225 = vpop.f32.mrb[0].mxu0
  %v226 = vpop.f32.mrb[0].mxu0
  %v227 = vadd.f32 0.0, %v226
  %v228 = vpop.f32.mrb[0].mxu0
  %229 = vdwg.mxu0
  %v242 = vunpack.c.l.b16 %v56
  %v243 = vunpack.c.l.b16 %v57
  %v244 = vunpack.c.l.b16 %v58
  %v245 = vunpack.c.l.b16 %v59
  %v246 = vunpack.c.l.b16 %v60
  %v247 = vunpack.c.l.b16 %v61
  %v248 = vunpack.c.l.b16 %v62
  %v249 = vunpack.c.l.b16 %v63
  %v250 = vunpack.c.l.b16 %v64
  %v251 = vunpack.c.l.b16 %v65
  %v252 = vunpack.c.l.b16 %v66
  %v253 = vunpack.c.l.b16 %v67
  %v254 = vpack.c.b16 %v243, %v242
  %v255 = vpack.c.b16 %v245, %v244
  %v256 = vpack.c.b16 %v247, %v246
  %v257 = vpack.c.b16 %v249, %v248
  %v258 = vpack.c.b16 %v251, %v250
  %v259 = vpack.c.b16 %v253, %v252
  %v264 = vunpack.c.l.b16 %v80
  %v265 = vunpack.c.l.b16 %v81
  %v266 = vunpack.c.l.b16 %v82
  %v267 = vunpack.c.l.b16 %v83
  %v268 = vpack.c.b16 %v265, %v264
  %v269 = vpack.c.b16 %v267, %v266
  %v273 = vsel %vm130, %v254, 0
  %v276 = vsel %vm130, %v255, 0
  %v279 = vsel %vm130, %v256, 0
  %v282 = vsel %vm130, %v257, 0
  %v285 = vsel %vm130, %v258, 0
  %v288 = vsel %vm130, %v259, 0
  %290 = vmatprep.subr.bf16.mxu0 0
  %291 = vmatpush1.bf16.msra.mxu0 %v268
  %292 = vmatprep.subr.bf16.mxu0 0
  %293 = vmatpush1.bf16.msra.mxu0 %v269
  %294 = vmatprep.subr.bf16.mxu0 0
  %295 = vmatpush1.bf16.msra.mxu0 0
  %296 = vmatprep.subr.bf16.mxu0 0
  %297 = vmatpush1.bf16.msra.mxu0 0
  %298 = vmatprep.subr.bf16.mxu0 0
  %299 = vmatpush1.bf16.msra.mxu0 0
  %300 = vmatprep.subr.bf16.mxu0 0
  %301 = vmatpush1.bf16.msra.mxu0 0
  %302 = vmatprep.subr.bf16.mxu0 0
  %303 = vmatpush1.bf16.msra.mxu0 0
  %304 = vmatprep.subr.bf16.mxu0 0
  %305 = vmatpush1.bf16.msra.mxu0 0
  %306 = vmatprep.subr.bf16.mxu0 0
  %307 = vmatpush1.bf16.msra.mxu0 0
  %308 = vmatprep.subr.bf16.mxu0 0
  %309 = vmatpush1.bf16.msra.mxu0 0
  %310 = vmatprep.subr.bf16.mxu0 0
  %311 = vmatpush1.bf16.msra.mxu0 0
  %312 = vmatprep.subr.bf16.mxu0 0
  %313 = vmatpush1.bf16.msra.mxu0 0
  %314 = vmatprep.subr.bf16.mxu0 0
  %315 = vmatpush1.bf16.msra.mxu0 0
  %316 = vmatprep.subr.bf16.mxu0 0
  %317 = vmatpush1.bf16.msra.mxu0 0
  %318 = vmatprep.subr.bf16.mxu0 0
  %319 = vmatpush1.bf16.msra.mxu0 0
  %320 = vmatprep.subr.bf16.mxu0 0
  %321 = vmatpush1.bf16.msra.mxu0 0
  %322 = vmatprep.mubr.bf16.mxu0 0
  %323 = vmatmul.mubr.bf16.gmra.mrb[0].mxu0 %v273
  %v324 = vpop.f32.mrb[0].mxu0
  %v325 = vadd.f32 %v184, %v324
  %v326 = vpop.f32.mrb[0].mxu0
  %v327 = vpop.f32.mrb[0].mxu0
  %v328 = vadd.f32 %v187, %v327
  %v329 = vpop.f32.mrb[0].mxu0
  %330 = vmatprep.mubr.bf16.mxu0 0
  %331 = vmatmul.mubr.bf16.gmra.mrb[0].mxu0 %v276
  %v332 = vpop.f32.mrb[0].mxu0
  %v333 = vadd.f32 %v192, %v332
  %v334 = vpop.f32.mrb[0].mxu0
  %v335 = vpop.f32.mrb[0].mxu0
  %v336 = vadd.f32 %v195, %v335
  %v337 = vpop.f32.mrb[0].mxu0
  %338 = vmatprep.mubr.bf16.mxu0 0
  %339 = vmatmul.mubr.bf16.gmra.mrb[0].mxu0 %v279
  %v340 = vpop.f32.mrb[0].mxu0
  %v341 = vadd.f32 %v200, %v340
  %v342 = vpop.f32.mrb[0].mxu0
  %v343 = vpop.f32.mrb[0].mxu0
  %v344 = vadd.f32 %v203, %v343
  %v345 = vpop.f32.mrb[0].mxu0
  %346 = vmatprep.mubr.bf16.mxu0 0
  %347 = vmatmul.mubr.bf16.gmra.mrb[0].mxu0 %v282
  %v348 = vpop.f32.mrb[0].mxu0
  %v349 = vadd.f32 %v208, %v348
  %v350 = vpop.f32.mrb[0].mxu0
  %v351 = vpop.f32.mrb[0].mxu0
  %v352 = vadd.f32 %v211, %v351
  %v353 = vpop.f32.mrb[0].mxu0
  %354 = vmatprep.mubr.bf16.mxu0 0
  %355 = vmatmul.mubr.bf16.gmra.mrb[0].mxu0 %v285
  %v356 = vpop.f32.mrb[0].mxu0
  %v357 = vadd.f32 %v216, %v356
  %v358 = vpop.f32.mrb[0].mxu0
  %v359 = vpop.f32.mrb[0].mxu0
  %v360 = vadd.f32 %v219, %v359
  %v361 = vpop.f32.mrb[0].mxu0
  %362 = vmatprep.mubr.bf16.mxu0 0
  %363 = vmatmul.mubr.bf16.gmra.mrb[0].mxu0 %v288
  %v364 = vpop.f32.mrb[0].mxu0
  %v365 = vadd.f32 %v224, %v364
  %v366 = vpop.f32.mrb[0].mxu0
  %v367 = vpop.f32.mrb[0].mxu0
  %v368 = vadd.f32 %v227, %v367
  %v369 = vpop.f32.mrb[0].mxu0
  %370 = vdwg.mxu0
  %v371 = vld [vmem:[%s6] sm:$0x1]
  %v373 = vlaneseq
  %v374 = vshrl.u32 %v373, 7
  %v375 = vsub.s32 0, %v374
  %v376 = vrot.slane %v371, %v375
  %v378 = vadd.f32 %v325, %v376
  %v379 = vadd.f32 %v328, %v376
  %v380 = vadd.f32 %v333, %v376
  %v381 = vadd.f32 %v336, %v376
  %v382 = vadd.f32 %v341, %v376
  %v383 = vadd.f32 %v344, %v376
  %v384 = vadd.f32 %v349, %v376
  %v385 = vadd.f32 %v352, %v376
  %v386 = vadd.f32 %v357, %v376
  %v387 = vadd.f32 %v360, %v376
  %v388 = vadd.f32 %v365, %v376
  %v389 = vadd.f32 %v368, %v376
  %v390 = vmax.f32 %v378, 0.0
  %v391 = vmax.f32 %v379, 0.0
  %v392 = vmax.f32 %v380, 0.0
  %v393 = vmax.f32 %v381, 0.0
  %v394 = vmax.f32 %v382, 0.0
  %v395 = vmax.f32 %v383, 0.0
  %v396 = vmax.f32 %v384, 0.0
  %v397 = vmax.f32 %v385, 0.0
  %v398 = vmax.f32 %v386, 0.0
  %v399 = vmax.f32 %v387, 0.0
  %v400 = vmax.f32 %v388, 0.0
  %v401 = vmax.f32 %v389, 0.0
  %v402 = vpack.c.bf16 %v391, %v390
  %v403 = vpack.c.bf16 %v393, %v392
  %v404 = vpack.c.bf16 %v395, %v394
  %v405 = vpack.c.bf16 %v397, %v396
  %v406 = vpack.c.bf16 %v399, %v398
  %v407 = vpack.c.bf16 %v401, %v400
  %v408 = vld [vmem:[%s7] sm:$0xf]
  %v409 = vld [vmem:[%s7 + $0x4] sm:$0xf]
  %v410 = vld [vmem:[%s7 + $0x8] sm:$0xf]
  %v411 = vld [vmem:[%s7 + $0xc] sm:$0xf]
  %v412 = vld [vmem:[%s8] sm:$0x1]
  %v414 = vlaneseq
  %v415 = vshrl.u32 %v414, 7
  %v416 = vsub.s32 0, %v415
  %v417 = vrot.slane %v412, %v416
  %v423 = vunpack.c.l.b16 %v408
  %v424 = vunpack.c.l.b16 %v409
  %v425 = vunpack.c.l.b16 %v410
  %v426 = vunpack.c.l.b16 %v411
  %v427 = vpack.c.b16 %v424, %v423
  %v428 = vpack.c.b16 %v426, %v425
  %v432 = vsel %vm130, %v402, 0
  %v435 = vsel %vm130, %v403, 0
  %v438 = vsel %vm130, %v404, 0
  %v441 = vsel %vm130, %v405, 0
  %v444 = vsel %vm130, %v406, 0
  %v447 = vsel %vm130, %v407, 0
  %449 = vmatprep.subr.bf16.mxu0 0
  %450 = vmatpush1.bf16.msra.mxu0 %v427
  %451 = vmatprep.subr.bf16.mxu0 0
  %452 = vmatpush1.bf16.msra.mxu0 %v428
  %453 = vmatprep.subr.bf16.mxu0 0
  %454 = vmatpush1.bf16.msra.mxu0 0
  %455 = vmatprep.subr.bf16.mxu0 0
  %456 = vmatpush1.bf16.msra.mxu0 0
  %457 = vmatprep.subr.bf16.mxu0 0
  %458 = vmatpush1.bf16.msra.mxu0 0
  %459 = vmatprep.subr.bf16.mxu0 0
  %460 = vmatpush1.bf16.msra.mxu0 0
  %461 = vmatprep.subr.bf16.mxu0 0
  %462 = vmatpush1.bf16.msra.mxu0 0
  %463 = vmatprep.subr.bf16.mxu0 0
  %464 = vmatpush1.bf16.msra.mxu0 0
  %465 = vmatprep.subr.bf16.mxu0 0
  %466 = vmatpush1.bf16.msra.mxu0 0
  %467 = vmatprep.subr.bf16.mxu0 0
  %468 = vmatpush1.bf16.msra.mxu0 0
  %469 = vmatprep.subr.bf16.mxu0 0
  %470 = vmatpush1.bf16.msra.mxu0 0
  %471 = vmatprep.subr.bf16.mxu0 0
  %472 = vmatpush1.bf16.msra.mxu0 0
  %473 = vmatprep.subr.bf16.mxu0 0
  %474 = vmatpush1.bf16.msra.mxu0 0
  %475 = vmatprep.subr.bf16.mxu0 0
  %476 = vmatpush1.bf16.msra.mxu0 0
  %477 = vmatprep.subr.bf16.mxu0 0
  %478 = vmatpush1.bf16.msra.mxu0 0
  %479 = vmatprep.subr.bf16.mxu0 0
  %480 = vmatpush1.bf16.msra.mxu0 0
  %481 = vmatprep.mubr.bf16.mxu0 0
  %482 = vmatmul.mubr.bf16.gmra.mrb[0].mxu0 %v432
  %v483 = vpop.f32.mrb[0].mxu0
  %v484 = vadd.f32 %v417, %v483
  %v485 = vpop.f32.mrb[0].mxu0
  %v486 = vpop.f32.mrb[0].mxu0
  %v487 = vadd.f32 %v417, %v486
  %v488 = vpop.f32.mrb[0].mxu0
  %489 = vmatprep.mubr.bf16.mxu0 0
  %490 = vmatmul.mubr.bf16.gmra.mrb[0].mxu0 %v435
  %v491 = vpop.f32.mrb[0].mxu0
  %v492 = vadd.f32 %v417, %v491
  %v493 = vpop.f32.mrb[0].mxu0
  %v494 = vpop.f32.mrb[0].mxu0
  %v495 = vadd.f32 %v417, %v494
  %v496 = vpop.f32.mrb[0].mxu0
  %497 = vmatprep.mubr.bf16.mxu0 0
  %498 = vmatmul.mubr.bf16.gmra.mrb[0].mxu0 %v438
  %v499 = vpop.f32.mrb[0].mxu0
  %v500 = vadd.f32 %v417, %v499
  %v501 = vpop.f32.mrb[0].mxu0
  %v502 = vpop.f32.mrb[0].mxu0
  %v503 = vadd.f32 %v417, %v502
  %v504 = vpop.f32.mrb[0].mxu0
  %505 = vmatprep.mubr.bf16.mxu0 0
  %506 = vmatmul.mubr.bf16.gmra.mrb[0].mxu0 %v441
  %v507 = vpop.f32.mrb[0].mxu0
  %v508 = vadd.f32 %v417, %v507
  %v509 = vpop.f32.mrb[0].mxu0
  %v510 = vpop.f32.mrb[0].mxu0
  %v511 = vadd.f32 %v417, %v510
  %v512 = vpop.f32.mrb[0].mxu0
  %513 = vmatprep.mubr.bf16.mxu0 0
  %514 = vmatmul.mubr.bf16.gmra.mrb[0].mxu0 %v444
  %v515 = vpop.f32.mrb[0].mxu0
  %v516 = vadd.f32 %v417, %v515
  %v517 = vpop.f32.mrb[0].mxu0
  %v518 = vpop.f32.mrb[0].mxu0
  %v519 = vadd.f32 %v417, %v518
  %v520 = vpop.f32.mrb[0].mxu0
  %521 = vmatprep.mubr.bf16.mxu0 0
  %522 = vmatmul.mubr.bf16.gmra.mrb[0].mxu0 %v447
  %v523 = vpop.f32.mrb[0].mxu0
  %v524 = vadd.f32 %v417, %v523
  %v525 = vpop.f32.mrb[0].mxu0
  %v526 = vpop.f32.mrb[0].mxu0
  %v527 = vadd.f32 %v417, %v526
  %v528 = vpop.f32.mrb[0].mxu0
  %529 = vdwg.mxu0
  %v530 = vpack.c.bf16 %v487, %v484
  %v531 = vpack.c.bf16 %v495, %v492
  %v532 = vpack.c.bf16 %v503, %v500
  %v533 = vpack.c.bf16 %v511, %v508
  %v534 = vpack.c.bf16 %v519, %v516
  %v535 = vpack.c.bf16 %v527, %v524
  %v536 = vld [vmem:[%s9] sm:$0xf]
  %v537 = vld [vmem:[%s9 + $0x4] sm:$0xf]
  %v538 = vld [vmem:[%s9 + $0x8] sm:$0xf]
  %v539 = vld [vmem:[%s9 + $0xc] sm:$0xf]
  %v544 = vunpack.c.l.b16 %v536
  %v545 = vunpack.c.l.b16 %v537
  %v546 = vunpack.c.l.b16 %v538
  %v547 = vunpack.c.l.b16 %v539
  %v548 = vpack.c.b16 %v545, %v544
  %v549 = vpack.c.b16 %v547, %v546
  %v553 = vsel %vm130, %v530, 0
  %v556 = vsel %vm130, %v531, 0
  %v559 = vsel %vm130, %v532, 0
  %v562 = vsel %vm130, %v533, 0
  %v565 = vsel %vm130, %v534, 0
  %v568 = vsel %vm130, %v535, 0
  %570 = vmatprep.subr.bf16.mxu0 0
  %571 = vmatpush1.bf16.msra.mxu0 %v548
  %572 = vmatprep.subr.bf16.mxu0 0
  %573 = vmatpush1.bf16.msra.mxu0 %v549
  %574 = vmatprep.subr.bf16.mxu0 0
  %575 = vmatpush1.bf16.msra.mxu0 0
  %576 = vmatprep.subr.bf16.mxu0 0
  %577 = vmatpush1.bf16.msra.mxu0 0
  %578 = vmatprep.subr.bf16.mxu0 0
  %579 = vmatpush1.bf16.msra.mxu0 0
  %580 = vmatprep.subr.bf16.mxu0 0
  %581 = vmatpush1.bf16.msra.mxu0 0
  %582 = vmatprep.subr.bf16.mxu0 0
  %583 = vmatpush1.bf16.msra.mxu0 0
  %584 = vmatprep.subr.bf16.mxu0 0
  %585 = vmatpush1.bf16.msra.mxu0 0
  %586 = vmatprep.subr.bf16.mxu0 0
  %587 = vmatpush1.bf16.msra.mxu0 0
  %588 = vmatprep.subr.bf16.mxu0 0
  %589 = vmatpush1.bf16.msra.mxu0 0
  %590 = vmatprep.subr.bf16.mxu0 0
  %591 = vmatpush1.bf16.msra.mxu0 0
  %592 = vmatprep.subr.bf16.mxu0 0
  %593 = vmatpush1.bf16.msra.mxu0 0
  %594 = vmatprep.subr.bf16.mxu0 0
  %595 = vmatpush1.bf16.msra.mxu0 0
  %596 = vmatprep.subr.bf16.mxu0 0
  %597 = vmatpush1.bf16.msra.mxu0 0
  %598 = vmatprep.subr.bf16.mxu0 0
  %599 = vmatpush1.bf16.msra.mxu0 0
  %600 = vmatprep.subr.bf16.mxu0 0
  %601 = vmatpush1.bf16.msra.mxu0 0
  %602 = vmatprep.mubr.bf16.mxu0 0
  %603 = vmatmul.mubr.bf16.gmra.mrb[0].mxu0 %v553
  %v604 = vpop.f32.mrb[0].mxu0
  %v605 = vadd.f32 0.0, %v604
  %v606 = vpop.f32.mrb[0].mxu0
  %v607 = vpop.f32.mrb[0].mxu0
  %v608 = vadd.f32 0.0, %v607
  %v609 = vpop.f32.mrb[0].mxu0
  %610 = vmatprep.mubr.bf16.mxu0 0
  %611 = vmatmul.mubr.bf16.gmra.mrb[0].mxu0 %v556
  %v612 = vpop.f32.mrb[0].mxu0
  %v613 = vadd.f32 0.0, %v612
  %v614 = vpop.f32.mrb[0].mxu0
  %v615 = vpop.f32.mrb[0].mxu0
  %v616 = vadd.f32 0.0, %v615
  %v617 = vpop.f32.mrb[0].mxu0
  %618 = vmatprep.mubr.bf16.mxu0 0
  %619 = vmatmul.mubr.bf16.gmra.mrb[0].mxu0 %v559
  %v620 = vpop.f32.mrb[0].mxu0
  %v621 = vadd.f32 0.0, %v620
  %v622 = vpop.f32.mrb[0].mxu0
  %v623 = vpop.f32.mrb[0].mxu0
  %v624 = vadd.f32 0.0, %v623
  %v625 = vpop.f32.mrb[0].mxu0
  %626 = vmatprep.mubr.bf16.mxu0 0
  %627 = vmatmul.mubr.bf16.gmra.mrb[0].mxu0 %v562
  %v628 = vpop.f32.mrb[0].mxu0
  %v629 = vadd.f32 0.0, %v628
  %v630 = vpop.f32.mrb[0].mxu0
  %v631 = vpop.f32.mrb[0].mxu0
  %v632 = vadd.f32 0.0, %v631
  %v633 = vpop.f32.mrb[0].mxu0
  %634 = vmatprep.mubr.bf16.mxu0 0
  %635 = vmatmul.mubr.bf16.gmra.mrb[0].mxu0 %v565
  %v636 = vpop.f32.mrb[0].mxu0
  %v637 = vadd.f32 0.0, %v636
  %v638 = vpop.f32.mrb[0].mxu0
  %v639 = vpop.f32.mrb[0].mxu0
  %v640 = vadd.f32 0.0, %v639
  %v641 = vpop.f32.mrb[0].mxu0
  %642 = vmatprep.mubr.bf16.mxu0 0
  %643 = vmatmul.mubr.bf16.gmra.mrb[0].mxu0 %v568
  %v644 = vpop.f32.mrb[0].mxu0
  %v645 = vadd.f32 0.0, %v644
  %v646 = vpop.f32.mrb[0].mxu0
  %v647 = vpop.f32.mrb[0].mxu0
  %v648 = vadd.f32 0.0, %v647
  %v649 = vpop.f32.mrb[0].mxu0
  %650 = vdwg.mxu0
  %v651 = vld [vmem:[%s2] sm:$0xf]
  %v652 = vld [vmem:[%s2 + $0x4] sm:$0xf]
  %v653 = vld [vmem:[%s10] sm:$0xf]
  %v654 = vld [vmem:[%s10 + $0x4] sm:$0xf]
  %v655 = vld [vmem:[%s10 + $0x8] sm:$0xf]
  %v656 = vld [vmem:[%s10 + $0xc] sm:$0xf]
  %v659 = vunpack.c.l.b16 %v651
  %v660 = vunpack.c.l.b16 %v652
  %v661 = vpack.c.b16 %v660, %v659
  %v666 = vunpack.c.l.b16 %v653
  %v667 = vunpack.c.l.b16 %v654
  %v668 = vunpack.c.l.b16 %v655
  %v669 = vunpack.c.l.b16 %v656
  %v670 = vpack.c.b16 %v667, %v666
  %v671 = vpack.c.b16 %v669, %v668
  %v675 = vsel %vm130, %v661, 0
  %677 = vmatprep.subr.bf16.mxu0 0
  %678 = vmatpush1.bf16.msra.mxu0 %v670
  %679 = vmatprep.subr.bf16.mxu0 0
  %680 = vmatpush1.bf16.msra.mxu0 %v671
  %681 = vmatprep.subr.bf16.mxu0 0
  %682 = vmatpush1.bf16.msra.mxu0 0
  %683 = vmatprep.subr.bf16.mxu0 0
  %684 = vmatpush1.bf16.msra.mxu0 0
  %685 = vmatprep.subr.bf16.mxu0 0
  %686 = vmatpush1.bf16.msra.mxu0 0
  %687 = vmatprep.subr.bf16.mxu0 0
  %688 = vmatpush1.bf16.msra.mxu0 0
  %689 = vmatprep.subr.bf16.mxu0 0
  %690 = vmatpush1.bf16.msra.mxu0 0
  %691 = vmatprep.subr.bf16.mxu0 0
  %692 = vmatpush1.bf16.msra.mxu0 0
  %693 = vmatprep.subr.bf16.mxu0 0
  %694 = vmatpush1.bf16.msra.mxu0 0
  %695 = vmatprep.subr.bf16.mxu0 0
  %696 = vmatpush1.bf16.msra.mxu0 0
  %697 = vmatprep.subr.bf16.mxu0 0
  %698 = vmatpush1.bf16.msra.mxu0 0
  %699 = vmatprep.subr.bf16.mxu0 0
  %700 = vmatpush1.bf16.msra.mxu0 0
  %701 = vmatprep.subr.bf16.mxu0 0
  %702 = vmatpush1.bf16.msra.mxu0 0
  %703 = vmatprep.subr.bf16.mxu0 0
  %704 = vmatpush1.bf16.msra.mxu0 0
  %705 = vmatprep.subr.bf16.mxu0 0
  %706 = vmatpush1.bf16.msra.mxu0 0
  %707 = vmatprep.subr.bf16.mxu0 0
  %708 = vmatpush1.bf16.msra.mxu0 0
  %709 = vmatprep.mubr.bf16.mxu0 0
  %710 = vmatmul.mubr.bf16.gmra.mrb[0].mxu0 %v675
  %v711 = vpop.f32.mrb[0].mxu0
  %v712 = vadd.f32 0.0, %v711
  %v713 = vpop.f32.mrb[0].mxu0
  %v714 = vpop.f32.mrb[0].mxu0
  %v715 = vadd.f32 0.0, %v714
  %v716 = vpop.f32.mrb[0].mxu0
  %717 = vdwg.mxu0
  %v718 = vld [vmem:[%s3] sm:$0xff]
  %v719 = vld [vmem:[%s3 + $0x8] sm:$0xff]
  %v720 = vld [vmem:[%s11] sm:$0x1]
  %v722 = vlaneseq
  %v723 = vshrl.u32 %v722, 7
  %v724 = vsub.s32 0, %v723
  %v725 = vrot.slane %v720, %v724
  %v727 = vld [vmem:[%s12] sm:$0x1]
  %v729 = vlaneseq
  %v730 = vshrl.u32 %v729, 7
  %v731 = vsub.s32 0, %v730
  %v732 = vrot.slane %v727, %v731
  %v734 = vld [vmem:[#allocation2] sm:$0x1]
  %v736 = vlaneseq
  %v737 = vshrl.u32 %v736, 7
  %v738 = vsub.s32 0, %v737
  %v739 = vrot.slane %v734, %v738
  %742 = vset.pattern.permute.xlu0 0
  %743 = vperm.xlu0 %742, %v718
  %v744 = vpop.permute.xlu0 %743
  %747 = vset.pattern.permute.xlu0 0
  %748 = vperm.xlu0 %747, %v719
  %v749 = vpop.permute.xlu0 %748
  %v751 = vmul.f32 %v744, %v712
  %v752 = vmul.f32 %v749, %v715
  %v753 = vadd.f32 %v605, %v751
  %v754 = vadd.f32 %v608, %v752
  %v755 = vadd.f32 %v753, %v725
  %v756 = vadd.f32 %v754, %v725
  %v757 = vmax.f32 %v755, 0.0
  %v758 = vmax.f32 %v756, 0.0
  %v759 = vmul.f32 %v757, %v732
  %v760 = vmul.f32 %v758, %v732
  %v761 = vsel %vm130, %v759, 0.0
  %762 = vadd.xlane.f32.xlu0 %v761
  %v763 = vpop.xlane.xlu0 %762
  %v764 = vsel %vm130, %v760, 0.0
  %765 = vadd.xlane.f32.xlu0 %v764
  %v766 = vpop.xlane.xlu0 %765
  %v767 = vadd.f32 %v763, %v739
  %v768 = vadd.f32 %v766, %v739
  %vm769 = vcmp.gt.f32.partialorder %v718, 0.0
  %vm770 = vcmp.gt.f32.partialorder %v719, 0.0
  %v771 = vsel %vm769, %v767, -1e+30
  %v772 = vsel %vm770, %v768, -1e+30
  %v773 = vmax.f32 %v771, -1e+30
  %v774 = vmax.f32 %v772, -1e+30
  %v775 = vsub.f32 -1e+30, %v773
  %v776 = vsub.f32 -1e+30, %v774
  %v777 = vmul.f32 %v775, 1.442695
  %v778 = vpow.pop %v777
  %v779 = vmul.f32 %v776, 1.442695
  %v780 = vpow.pop %v779
  %v781 = vsub.f32 %v771, %v773
  %v782 = vsub.f32 %v772, %v774
  %v783 = vmul.f32 %v781, 1.442695
  %v784 = vpow.pop %v783
  %v785 = vmul.f32 %v782, 1.442695
  %v786 = vpow.pop %v785
  %v787 = vmul.f32 %v784, %v718
  %v788 = vmul.f32 %v786, %v719
  %v789 = vmul.f32 %v778, 0.0
  %v790 = vmul.f32 %v780, 0.0
  %v791 = vadd.f32 %v789, %v787
  %v792 = vadd.f32 %v790, %v788
  %794 = vset.pattern.permute.xlu0 0
  %795 = vperm.xlu0 %794, %v778
  %v796 = vpop.permute.xlu0 %795
  %799 = vset.pattern.permute.xlu0 0
  %800 = vperm.xlu0 %799, %v780
  %v801 = vpop.permute.xlu0 %800
  %v803 = vmul.f32 %v796, 0.0
  %v804 = vmul.f32 %v801, 0.0
  %806 = vset.pattern.permute.xlu0 0
  %807 = vperm.xlu0 %806, %v787
  %v808 = vpop.permute.xlu0 %807
  %811 = vset.pattern.permute.xlu0 0
  %812 = vperm.xlu0 %811, %v788
  %v813 = vpop.permute.xlu0 %812
  %v815 = vmul.f32 %v808, %v484
  %v816 = vmul.f32 %v813, %v487
  %v817 = vadd.f32 %v803, %v815
  %v818 = vadd.f32 %v804, %v816
  %819 = vset.pattern.permute.xlu0 1
  %820 = vperm.xlu0 %819, %v718
  %v821 = vpop.permute.xlu0 %820
  %823 = vset.pattern.permute.xlu0 1
  %824 = vperm.xlu0 %823, %v719
  %v825 = vpop.permute.xlu0 %824
  %v827 = vmul.f32 %v821, %v712
  %v828 = vmul.f32 %v825, %v715
  %v829 = vadd.f32 %v613, %v827
  %v830 = vadd.f32 %v616, %v828
  %v831 = vadd.f32 %v829, %v725
  %v832 = vadd.f32 %v830, %v725
  %v833 = vmax.f32 %v831, 0.0
  %v834 = vmax.f32 %v832, 0.0
  %v835 = vmul.f32 %v833, %v732
  %v836 = vmul.f32 %v834, %v732
  %v837 = vsel %vm130, %v835, 0.0
  %838 = vadd.xlane.f32.xlu0 %v837
  %v839 = vpop.xlane.xlu0 %838
  %v840 = vsel %vm130, %v836, 0.0
  %841 = vadd.xlane.f32.xlu0 %v840
  %v842 = vpop.xlane.xlu0 %841
  %v843 = vadd.f32 %v839, %v739
  %v844 = vadd.f32 %v842, %v739
  %847 = vrot.lane.b32.xlu0 %v843, 1
  %v848 = vpop.permute.xlu0 %847
  %849 = vrot.lane.b32.xlu0 %v844, 1
  %v850 = vpop.permute.xlu0 %849
  %v853 = vsel %vm769, %v848, -1e+30
  %v854 = vsel %vm770, %v850, -1e+30
  %857 = vrot.lane.b32.xlu0 %v853, 127
  %v858 = vpop.permute.xlu0 %857
  %859 = vrot.lane.b32.xlu0 %v854, 127
  %v860 = vpop.permute.xlu0 %859
  %v863 = vmax.f32 %v773, %v858
  %v864 = vmax.f32 %v774, %v860
  %v865 = vsub.f32 %v773, %v863
  %v866 = vsub.f32 %v774, %v864
  %v867 = vmul.f32 %v865, 1.442695
  %v868 = vpow.pop %v867
  %v869 = vmul.f32 %v866, 1.442695
  %v870 = vpow.pop %v869
  %873 = vrot.lane.b32.xlu0 %v863, 1
  %v874 = vpop.permute.xlu0 %873
  %875 = vrot.lane.b32.xlu0 %v864, 1
  %v876 = vpop.permute.xlu0 %875
  %v879 = vsub.f32 %v853, %v874
  %v880 = vsub.f32 %v854, %v876
  %v881 = vmul.f32 %v879, 1.442695
  %v882 = vpow.pop %v881
  %v883 = vmul.f32 %v880, 1.442695
  %v884 = vpow.pop %v883
  %v885 = vmul.f32 %v882, %v718
  %v886 = vmul.f32 %v884, %v719
  %v887 = vmul.f32 %v791, %v868
  %v888 = vmul.f32 %v792, %v870
  %891 = vrot.lane.b32.xlu0 %v885, 127
  %v892 = vpop.permute.xlu0 %891
  %893 = vrot.lane.b32.xlu0 %v886, 127
  %v894 = vpop.permute.xlu0 %893
  %v897 = vadd.f32 %v887, %v892
  %v898 = vadd.f32 %v888, %v894
  %900 = vset.pattern.permute.xlu0 0
  %901 = vperm.xlu0 %900, %v868
  %v902 = vpop.permute.xlu0 %901
  %905 = vset.pattern.permute.xlu0 0
  %906 = vperm.xlu0 %905, %v870
  %v907 = vpop.permute.xlu0 %906
  %v909 = vmul.f32 %v817, %v902
  %v910 = vmul.f32 %v818, %v907
  %911 = vset.pattern.permute.xlu0 1
  %912 = vperm.xlu0 %911, %v885
  %v913 = vpop.permute.xlu0 %912
  %915 = vset.pattern.permute.xlu0 1
  %916 = vperm.xlu0 %915, %v886
  %v917 = vpop.permute.xlu0 %916
  %v919 = vmul.f32 %v913, %v492
  %v920 = vmul.f32 %v917, %v495
  %v921 = vadd.f32 %v909, %v919
  %v922 = vadd.f32 %v910, %v920
  %923 = vset.pattern.permute.xlu0 2
  %924 = vperm.xlu0 %923, %v718
  %v925 = vpop.permute.xlu0 %924
  %927 = vset.pattern.permute.xlu0 2
  %928 = vperm.xlu0 %927, %v719
  %v929 = vpop.permute.xlu0 %928
  %v931 = vmul.f32 %v925, %v712
  %v932 = vmul.f32 %v929, %v715
  %v933 = vadd.f32 %v621, %v931
  %v934 = vadd.f32 %v624, %v932
  %v935 = vadd.f32 %v933, %v725
  %v936 = vadd.f32 %v934, %v725
  %v937 = vmax.f32 %v935, 0.0
  %v938 = vmax.f32 %v936, 0.0
  %v939 = vmul.f32 %v937, %v732
  %v940 = vmul.f32 %v938, %v732
  %v941 = vsel %vm130, %v939, 0.0
  %942 = vadd.xlane.f32.xlu0 %v941
  %v943 = vpop.xlane.xlu0 %942
  %v944 = vsel %vm130, %v940, 0.0
  %945 = vadd.xlane.f32.xlu0 %v944
  %v946 = vpop.xlane.xlu0 %945
  %v947 = vadd.f32 %v943, %v739
  %v948 = vadd.f32 %v946, %v739
  %951 = vrot.lane.b32.xlu0 %v947, 2
  %v952 = vpop.permute.xlu0 %951
  %953 = vrot.lane.b32.xlu0 %v948, 2
  %v954 = vpop.permute.xlu0 %953
  %v957 = vsel %vm769, %v952, -1e+30
  %v958 = vsel %vm770, %v954, -1e+30
  %961 = vrot.lane.b32.xlu0 %v957, 126
  %v962 = vpop.permute.xlu0 %961
  %963 = vrot.lane.b32.xlu0 %v958, 126
  %v964 = vpop.permute.xlu0 %963
  %v967 = vmax.f32 %v863, %v962
  %v968 = vmax.f32 %v864, %v964
  %v969 = vsub.f32 %v863, %v967
  %v970 = vsub.f32 %v864, %v968
  %v971 = vmul.f32 %v969, 1.442695
  %v972 = vpow.pop %v971
  %v973 = vmul.f32 %v970, 1.442695
  %v974 = vpow.pop %v973
  %977 = vrot.lane.b32.xlu0 %v967, 2
  %v978 = vpop.permute.xlu0 %977
  %979 = vrot.lane.b32.xlu0 %v968, 2
  %v980 = vpop.permute.xlu0 %979
  %v983 = vsub.f32 %v957, %v978
  %v984 = vsub.f32 %v958, %v980
  %v985 = vmul.f32 %v983, 1.442695
  %v986 = vpow.pop %v985
  %v987 = vmul.f32 %v984, 1.442695
  %v988 = vpow.pop %v987
  %v989 = vmul.f32 %v986, %v718
  %v990 = vmul.f32 %v988, %v719
  %v991 = vmul.f32 %v897, %v972
  %v992 = vmul.f32 %v898, %v974
  %995 = vrot.lane.b32.xlu0 %v989, 126
  %v996 = vpop.permute.xlu0 %995
  %997 = vrot.lane.b32.xlu0 %v990, 126
  %v998 = vpop.permute.xlu0 %997
  %v1001 = vadd.f32 %v991, %v996
  %v1002 = vadd.f32 %v992, %v998
  %1004 = vset.pattern.permute.xlu0 0
  %1005 = vperm.xlu0 %1004, %v972
  %v1006 = vpop.permute.xlu0 %1005
  %1009 = vset.pattern.permute.xlu0 0
  %1010 = vperm.xlu0 %1009, %v974
  %v1011 = vpop.permute.xlu0 %1010
  %v1013 = vmul.f32 %v921, %v1006
  %v1014 = vmul.f32 %v922, %v1011
  %1015 = vset.pattern.permute.xlu0 2
  %1016 = vperm.xlu0 %1015, %v989
  %v1017 = vpop.permute.xlu0 %1016
  %1019 = vset.pattern.permute.xlu0 2
  %1020 = vperm.xlu0 %1019, %v990
  %v1021 = vpop.permute.xlu0 %1020
  %v1023 = vmul.f32 %v1017, %v500
  %v1024 = vmul.f32 %v1021, %v503
  %v1025 = vadd.f32 %v1013, %v1023
  %v1026 = vadd.f32 %v1014, %v1024
  %1027 = vset.pattern.permute.xlu0 3
  %1028 = vperm.xlu0 %1027, %v718
  %v1029 = vpop.permute.xlu0 %1028
  %1031 = vset.pattern.permute.xlu0 3
  %1032 = vperm.xlu0 %1031, %v719
  %v1033 = vpop.permute.xlu0 %1032
  %v1035 = vmul.f32 %v1029, %v712
  %v1036 = vmul.f32 %v1033, %v715
  %v1037 = vadd.f32 %v629, %v1035
  %v1038 = vadd.f32 %v632, %v1036
  %v1039 = vadd.f32 %v1037, %v725
  %v1040 = vadd.f32 %v1038, %v725
  %v1041 = vmax.f32 %v1039, 0.0
  %v1042 = vmax.f32 %v1040, 0.0
  %v1043 = vmul.f32 %v1041, %v732
  %v1044 = vmul.f32 %v1042, %v732
  %v1045 = vsel %vm130, %v1043, 0.0
  %1046 = vadd.xlane.f32.xlu0 %v1045
  %v1047 = vpop.xlane.xlu0 %1046
  %v1048 = vsel %vm130, %v1044, 0.0
  %1049 = vadd.xlane.f32.xlu0 %v1048
  %v1050 = vpop.xlane.xlu0 %1049
  %v1051 = vadd.f32 %v1047, %v739
  %v1052 = vadd.f32 %v1050, %v739
  %1055 = vrot.lane.b32.xlu0 %v1051, 3
  %v1056 = vpop.permute.xlu0 %1055
  %1057 = vrot.lane.b32.xlu0 %v1052, 3
  %v1058 = vpop.permute.xlu0 %1057
  %v1061 = vsel %vm769, %v1056, -1e+30
  %v1062 = vsel %vm770, %v1058, -1e+30
  %1065 = vrot.lane.b32.xlu0 %v1061, 125
  %v1066 = vpop.permute.xlu0 %1065
  %1067 = vrot.lane.b32.xlu0 %v1062, 125
  %v1068 = vpop.permute.xlu0 %1067
  %v1071 = vmax.f32 %v967, %v1066
  %v1072 = vmax.f32 %v968, %v1068
  %v1073 = vsub.f32 %v967, %v1071
  %v1074 = vsub.f32 %v968, %v1072
  %v1075 = vmul.f32 %v1073, 1.442695
  %v1076 = vpow.pop %v1075
  %v1077 = vmul.f32 %v1074, 1.442695
  %v1078 = vpow.pop %v1077
  %1081 = vrot.lane.b32.xlu0 %v1071, 3
  %v1082 = vpop.permute.xlu0 %1081
  %1083 = vrot.lane.b32.xlu0 %v1072, 3
  %v1084 = vpop.permute.xlu0 %1083
  %v1087 = vsub.f32 %v1061, %v1082
  %v1088 = vsub.f32 %v1062, %v1084
  %v1089 = vmul.f32 %v1087, 1.442695
  %v1090 = vpow.pop %v1089
  %v1091 = vmul.f32 %v1088, 1.442695
  %v1092 = vpow.pop %v1091
  %v1093 = vmul.f32 %v1090, %v718
  %v1094 = vmul.f32 %v1092, %v719
  %v1095 = vmul.f32 %v1001, %v1076
  %v1096 = vmul.f32 %v1002, %v1078
  %1099 = vrot.lane.b32.xlu0 %v1093, 125
  %v1100 = vpop.permute.xlu0 %1099
  %1101 = vrot.lane.b32.xlu0 %v1094, 125
  %v1102 = vpop.permute.xlu0 %1101
  %v1105 = vadd.f32 %v1095, %v1100
  %v1106 = vadd.f32 %v1096, %v1102
  %1108 = vset.pattern.permute.xlu0 0
  %1109 = vperm.xlu0 %1108, %v1076
  %v1110 = vpop.permute.xlu0 %1109
  %1113 = vset.pattern.permute.xlu0 0
  %1114 = vperm.xlu0 %1113, %v1078
  %v1115 = vpop.permute.xlu0 %1114
  %v1117 = vmul.f32 %v1025, %v1110
  %v1118 = vmul.f32 %v1026, %v1115
  %1119 = vset.pattern.permute.xlu0 3
  %1120 = vperm.xlu0 %1119, %v1093
  %v1121 = vpop.permute.xlu0 %1120
  %1123 = vset.pattern.permute.xlu0 3
  %1124 = vperm.xlu0 %1123, %v1094
  %v1125 = vpop.permute.xlu0 %1124
  %v1127 = vmul.f32 %v1121, %v508
  %v1128 = vmul.f32 %v1125, %v511
  %v1129 = vadd.f32 %v1117, %v1127
  %v1130 = vadd.f32 %v1118, %v1128
  %1131 = vset.pattern.permute.xlu0 4
  %1132 = vperm.xlu0 %1131, %v718
  %v1133 = vpop.permute.xlu0 %1132
  %1135 = vset.pattern.permute.xlu0 4
  %1136 = vperm.xlu0 %1135, %v719
  %v1137 = vpop.permute.xlu0 %1136
  %v1139 = vmul.f32 %v1133, %v712
  %v1140 = vmul.f32 %v1137, %v715
  %v1141 = vadd.f32 %v637, %v1139
  %v1142 = vadd.f32 %v640, %v1140
  %v1143 = vadd.f32 %v1141, %v725
  %v1144 = vadd.f32 %v1142, %v725
  %v1145 = vmax.f32 %v1143, 0.0
  %v1146 = vmax.f32 %v1144, 0.0
  %v1147 = vmul.f32 %v1145, %v732
  %v1148 = vmul.f32 %v1146, %v732
  %v1149 = vsel %vm130, %v1147, 0.0
  %1150 = vadd.xlane.f32.xlu0 %v1149
  %v1151 = vpop.xlane.xlu0 %1150
  %v1152 = vsel %vm130, %v1148, 0.0
  %1153 = vadd.xlane.f32.xlu0 %v1152
  %v1154 = vpop.xlane.xlu0 %1153
  %v1155 = vadd.f32 %v1151, %v739
  %v1156 = vadd.f32 %v1154, %v739
  %1159 = vrot.lane.b32.xlu0 %v1155, 4
  %v1160 = vpop.permute.xlu0 %1159
  %1161 = vrot.lane.b32.xlu0 %v1156, 4
  %v1162 = vpop.permute.xlu0 %1161
  %v1165 = vsel %vm769, %v1160, -1e+30
  %v1166 = vsel %vm770, %v1162, -1e+30
  %1169 = vrot.lane.b32.xlu0 %v1165, 124
  %v1170 = vpop.permute.xlu0 %1169
  %1171 = vrot.lane.b32.xlu0 %v1166, 124
  %v1172 = vpop.permute.xlu0 %1171
  %v1175 = vmax.f32 %v1071, %v1170
  %v1176 = vmax.f32 %v1072, %v1172
  %v1177 = vsub.f32 %v1071, %v1175
  %v1178 = vsub.f32 %v1072, %v1176
  %v1179 = vmul.f32 %v1177, 1.442695
  %v1180 = vpow.pop %v1179
  %v1181 = vmul.f32 %v1178, 1.442695
  %v1182 = vpow.pop %v1181
  %1185 = vrot.lane.b32.xlu0 %v1175, 4
  %v1186 = vpop.permute.xlu0 %1185
  %1187 = vrot.lane.b32.xlu0 %v1176, 4
  %v1188 = vpop.permute.xlu0 %1187
  %v1191 = vsub.f32 %v1165, %v1186
  %v1192 = vsub.f32 %v1166, %v1188
  %v1193 = vmul.f32 %v1191, 1.442695
  %v1194 = vpow.pop %v1193
  %v1195 = vmul.f32 %v1192, 1.442695
  %v1196 = vpow.pop %v1195
  %v1197 = vmul.f32 %v1194, %v718
  %v1198 = vmul.f32 %v1196, %v719
  %v1199 = vmul.f32 %v1105, %v1180
  %v1200 = vmul.f32 %v1106, %v1182
  %1203 = vrot.lane.b32.xlu0 %v1197, 124
  %v1204 = vpop.permute.xlu0 %1203
  %1205 = vrot.lane.b32.xlu0 %v1198, 124
  %v1206 = vpop.permute.xlu0 %1205
  %v1209 = vadd.f32 %v1199, %v1204
  %v1210 = vadd.f32 %v1200, %v1206
  %1212 = vset.pattern.permute.xlu0 0
  %1213 = vperm.xlu0 %1212, %v1180
  %v1214 = vpop.permute.xlu0 %1213
  %1217 = vset.pattern.permute.xlu0 0
  %1218 = vperm.xlu0 %1217, %v1182
  %v1219 = vpop.permute.xlu0 %1218
  %v1221 = vmul.f32 %v1129, %v1214
  %v1222 = vmul.f32 %v1130, %v1219
  %1223 = vset.pattern.permute.xlu0 4
  %1224 = vperm.xlu0 %1223, %v1197
  %v1225 = vpop.permute.xlu0 %1224
  %1227 = vset.pattern.permute.xlu0 4
  %1228 = vperm.xlu0 %1227, %v1198
  %v1229 = vpop.permute.xlu0 %1228
  %v1231 = vmul.f32 %v1225, %v516
  %v1232 = vmul.f32 %v1229, %v519
  %v1233 = vadd.f32 %v1221, %v1231
  %v1234 = vadd.f32 %v1222, %v1232
  %1235 = vset.pattern.permute.xlu0 5
  %1236 = vperm.xlu0 %1235, %v718
  %v1237 = vpop.permute.xlu0 %1236
  %1239 = vset.pattern.permute.xlu0 5
  %1240 = vperm.xlu0 %1239, %v719
  %v1241 = vpop.permute.xlu0 %1240
  %v1243 = vmul.f32 %v1237, %v712
  %v1244 = vmul.f32 %v1241, %v715
  %v1245 = vadd.f32 %v645, %v1243
  %v1246 = vadd.f32 %v648, %v1244
  %v1247 = vadd.f32 %v1245, %v725
  %v1248 = vadd.f32 %v1246, %v725
  %v1249 = vmax.f32 %v1247, 0.0
  %v1250 = vmax.f32 %v1248, 0.0
  %v1251 = vmul.f32 %v1249, %v732
  %v1252 = vmul.f32 %v1250, %v732
  %v1253 = vsel %vm130, %v1251, 0.0
  %1254 = vadd.xlane.f32.xlu0 %v1253
  %v1255 = vpop.xlane.xlu0 %1254
  %v1256 = vsel %vm130, %v1252, 0.0
  %1257 = vadd.xlane.f32.xlu0 %v1256
  %v1258 = vpop.xlane.xlu0 %1257
  %v1259 = vadd.f32 %v1255, %v739
  %v1260 = vadd.f32 %v1258, %v739
  %1263 = vrot.lane.b32.xlu0 %v1259, 5
  %v1264 = vpop.permute.xlu0 %1263
  %1265 = vrot.lane.b32.xlu0 %v1260, 5
  %v1266 = vpop.permute.xlu0 %1265
  %v1269 = vsel %vm769, %v1264, -1e+30
  %v1270 = vsel %vm770, %v1266, -1e+30
  %1273 = vrot.lane.b32.xlu0 %v1269, 123
  %v1274 = vpop.permute.xlu0 %1273
  %1275 = vrot.lane.b32.xlu0 %v1270, 123
  %v1276 = vpop.permute.xlu0 %1275
  %v1279 = vmax.f32 %v1175, %v1274
  %v1280 = vmax.f32 %v1176, %v1276
  %v1281 = vsub.f32 %v1175, %v1279
  %v1282 = vsub.f32 %v1176, %v1280
  %v1283 = vmul.f32 %v1281, 1.442695
  %v1284 = vpow.pop %v1283
  %v1285 = vmul.f32 %v1282, 1.442695
  %v1286 = vpow.pop %v1285
  %1289 = vrot.lane.b32.xlu0 %v1279, 5
  %v1290 = vpop.permute.xlu0 %1289
  %1291 = vrot.lane.b32.xlu0 %v1280, 5
  %v1292 = vpop.permute.xlu0 %1291
  %v1295 = vsub.f32 %v1269, %v1290
  %v1296 = vsub.f32 %v1270, %v1292
  %v1297 = vmul.f32 %v1295, 1.442695
  %v1298 = vpow.pop %v1297
  %v1299 = vmul.f32 %v1296, 1.442695
  %v1300 = vpow.pop %v1299
  %v1301 = vmul.f32 %v1298, %v718
  %v1302 = vmul.f32 %v1300, %v719
  %v1303 = vmul.f32 %v1209, %v1284
  %v1304 = vmul.f32 %v1210, %v1286
  %1307 = vrot.lane.b32.xlu0 %v1301, 123
  %v1308 = vpop.permute.xlu0 %1307
  %1309 = vrot.lane.b32.xlu0 %v1302, 123
  %v1310 = vpop.permute.xlu0 %1309
  %v1313 = vadd.f32 %v1303, %v1308
  %v1314 = vadd.f32 %v1304, %v1310
  %1316 = vset.pattern.permute.xlu0 0
  %1317 = vperm.xlu0 %1316, %v1284
  %v1318 = vpop.permute.xlu0 %1317
  %1321 = vset.pattern.permute.xlu0 0
  %1322 = vperm.xlu0 %1321, %v1286
  %v1323 = vpop.permute.xlu0 %1322
  %v1325 = vmul.f32 %v1233, %v1318
  %v1326 = vmul.f32 %v1234, %v1323
  %1327 = vset.pattern.permute.xlu0 5
  %1328 = vperm.xlu0 %1327, %v1301
  %v1329 = vpop.permute.xlu0 %1328
  %1331 = vset.pattern.permute.xlu0 5
  %1332 = vperm.xlu0 %1331, %v1302
  %v1333 = vpop.permute.xlu0 %1332
  %v1335 = vmul.f32 %v1329, %v524
  %v1336 = vmul.f32 %v1333, %v527
  %v1337 = vadd.f32 %v1325, %v1335
  %v1338 = vadd.f32 %v1326, %v1336
  %v1339 = vadd.f32 %v1313, 1e-10
  %v1340 = vadd.f32 %v1314, 1e-10
  %v1341 = vrcp.pop %v1339
  %v1342 = vrcp.pop %v1340
  %1344 = vset.pattern.permute.xlu0 0
  %1345 = vperm.xlu0 %1344, %v1341
  %v1346 = vpop.permute.xlu0 %1345
  %1349 = vset.pattern.permute.xlu0 0
  %1350 = vperm.xlu0 %1349, %v1342
  %v1351 = vpop.permute.xlu0 %1350
  %v1353 = vmul.f32 %v1337, %v1346
  %v1354 = vmul.f32 %v1338, %v1351
  %v1355 = vpack.c.bf16 %v1354, %v1353
  %v1356 = vld [vmem:[%s14] sm:$0xf]
  %v1357 = vld [vmem:[%s14 + $0x4] sm:$0xf]
  %v1358 = vld [vmem:[%s14 + $0x8] sm:$0xf]
  %v1359 = vld [vmem:[%s14 + $0xc] sm:$0xf]
  %v1360 = vld [vmem:[%s15] sm:$0x1]
  %v1362 = vlaneseq
  %v1363 = vshrl.u32 %v1362, 7
  %v1364 = vsub.s32 0, %v1363
  %v1365 = vrot.slane %v1360, %v1364
  %v1371 = vunpack.c.l.b16 %v1356
  %v1372 = vunpack.c.l.b16 %v1357
  %v1373 = vunpack.c.l.b16 %v1358
  %v1374 = vunpack.c.l.b16 %v1359
  %v1375 = vpack.c.b16 %v1372, %v1371
  %v1376 = vpack.c.b16 %v1374, %v1373
  %v1380 = vsel %vm130, %v1355, 0
  %1382 = vmatprep.subr.bf16.mxu0 0
  %1383 = vmatpush1.bf16.msra.mxu0 %v1375
  %1384 = vmatprep.subr.bf16.mxu0 0
  %1385 = vmatpush1.bf16.msra.mxu0 %v1376
  %1386 = vmatprep.subr.bf16.mxu0 0
  %1387 = vmatpush1.bf16.msra.mxu0 0
  %1388 = vmatprep.subr.bf16.mxu0 0
  %1389 = vmatpush1.bf16.msra.mxu0 0
  %1390 = vmatprep.subr.bf16.mxu0 0
  %1391 = vmatpush1.bf16.msra.mxu0 0
  %1392 = vmatprep.subr.bf16.mxu0 0
  %1393 = vmatpush1.bf16.msra.mxu0 0
  %1394 = vmatprep.subr.bf16.mxu0 0
  %1395 = vmatpush1.bf16.msra.mxu0 0
  %1396 = vmatprep.subr.bf16.mxu0 0
  %1397 = vmatpush1.bf16.msra.mxu0 0
  %1398 = vmatprep.subr.bf16.mxu0 0
  %1399 = vmatpush1.bf16.msra.mxu0 0
  %1400 = vmatprep.subr.bf16.mxu0 0
  %1401 = vmatpush1.bf16.msra.mxu0 0
  %1402 = vmatprep.subr.bf16.mxu0 0
  %1403 = vmatpush1.bf16.msra.mxu0 0
  %1404 = vmatprep.subr.bf16.mxu0 0
  %1405 = vmatpush1.bf16.msra.mxu0 0
  %1406 = vmatprep.subr.bf16.mxu0 0
  %1407 = vmatpush1.bf16.msra.mxu0 0
  %1408 = vmatprep.subr.bf16.mxu0 0
  %1409 = vmatpush1.bf16.msra.mxu0 0
  %1410 = vmatprep.subr.bf16.mxu0 0
  %1411 = vmatpush1.bf16.msra.mxu0 0
  %1412 = vmatprep.subr.bf16.mxu0 0
  %1413 = vmatpush1.bf16.msra.mxu0 0
  %1414 = vmatprep.mubr.bf16.mxu0 0
  %1415 = vmatmul.mubr.bf16.gmra.mrb[0].mxu0 %v1380
  %v1416 = vpop.f32.mrb[0].mxu0
  %v1417 = vadd.f32 %v1365, %v1416
  %v1418 = vpop.f32.mrb[0].mxu0
  %v1419 = vpop.f32.mrb[0].mxu0
  %v1420 = vadd.f32 %v1365, %v1419
  %v1421 = vpop.f32.mrb[0].mxu0
  %1422 = vdwg.mxu0
  %v1423 = vmax.f32 %v1417, 0.0
  %v1424 = vmax.f32 %v1420, 0.0
  %v1425 = vpack.c.bf16 %v1424, %v1423
  %v1427 = vunpack.c.l.b16 %v1425
  %v1428 = vunpack.c.h.b16 %v1425
  %v1429 = vpack.c.b16 %v1427, %v1427
  %v1430 = vpack.c.b16 %v1428, %v1428
  %vm1433 = vcmask 257024
  %1434 = vst.msk [vmem:[%s16] sm:$0xf] %vm1433, %v1429
  %1435 = vst.msk [vmem:[%s16 + $0x4] sm:$0xf] %vm1433, %v1430
  // Predicated region
  $region66: #{gnn_forward.6} parent=0 // pred_check
    _
  $region67: #{gnn_forward.6} parent=0 // pred_check_branch
    %1437 = sbr.rel (0) target = $region69
  $region68: #{gnn_forward.6} parent=0 // pred_region
    _
  $region69: #{gnn_forward.6} parent=0 // pred_fallthru
    _
  // Predicated region
  $region70: #{gnn_forward.6} parent=0 // pred_check
    _
  $region71: #{gnn_forward.6} parent=0 // pred_check_branch
    %1439 = sbr.rel (0) target = $region73
  $region72: #{gnn_forward.6} parent=0 // pred_region
    _
  $region73: #{gnn_forward.6} parent=0 // pred_fallthru
    _

// kernel: gnn_forward.7
$region0: #{gnn_forward.7}
  #allocation0 [shape = 'u32[]', space=smem, size = 0x4, offset = 0x4, fixed_abs, tag = 'smem constant byte address 0x4 - core index']
  #allocation1 [shape = 'u32[144,128]{1,0:T(1,128)}', space=vmem, size = 0x12000, scoped, tag = 'internal scratch']
  #allocation2 [shape = 'f32[1,1]{1,0:T(1,128)S(1)}', space=vmem, size = 0x200, scoped, tag = 'scoped memory for gnn_forward.7']
  %s0 = inlined_call_operand.vmem [shape: bf16[5,16,32], index: 0, kind: input, shape index: {}]
  %s1 = inlined_call_operand.vmem [shape: bf16[5,16,32], index: 1, kind: input, shape index: {}]
  %s2 = inlined_call_operand.vmem [shape: f32[16,5], index: 2, kind: input, shape index: {}]
  %s3 = inlined_call_operand.vmem [shape: bf16[32,32], index: 3, kind: input, shape index: {}]
  %s4 = inlined_call_operand.vmem [shape: bf16[32,32], index: 4, kind: input, shape index: {}]
  %s5 = inlined_call_operand.vmem [shape: f32[1,32], index: 5, kind: input, shape index: {}]
  %s6 = inlined_call_operand.vmem [shape: f32[1,32], index: 6, kind: input, shape index: {}]
  %s7 = inlined_call_operand.<no memory space> [shape: f32[1,1], index: 7, kind: input, shape index: {}]
  %s8 = inlined_call_operand.vmem [shape: bf16[32,32], index: 8, kind: input, shape index: {}]
  %s9 = inlined_call_operand.vmem [shape: f32[1,32], index: 9, kind: input, shape index: {}]
  %s10 = inlined_call_operand.vmem [shape: bf16[16,32], index: 10, kind: output, shape index: {}]
  %s11 = sld [smem:[#allocation0]]
  $region50: #{gnn_forward.7} parent=0
    _
  %s13 = ssub.s32 1, %s11
  %s14 = scalar_select 0, %s13, %s11
  %v15 = vstv %s7
  %16 = vst [vmem:[#allocation2] sm:$0x1] %v15
  // Predicated region
  $region2: #{gnn_forward.7} parent=0 // pred_check
    _
  $region3: #{gnn_forward.7} parent=0 // pred_check_branch
    %18 = sbr.rel (0) target = $region5
  $region4: #{gnn_forward.7} parent=0 // pred_region
    _
  $region5: #{gnn_forward.7} parent=0 // pred_fallthru
    _
  // Predicated region
  $region6: #{gnn_forward.7} parent=0 // pred_check
    _
  $region7: #{gnn_forward.7} parent=0 // pred_check_branch
    %20 = sbr.rel (0) target = $region9
  $region8: #{gnn_forward.7} parent=0 // pred_region
    _
  $region9: #{gnn_forward.7} parent=0 // pred_fallthru
    _
  // Predicated region
  $region10: #{gnn_forward.7} parent=0 // pred_check
    _
  $region11: #{gnn_forward.7} parent=0 // pred_check_branch
    %22 = sbr.rel (0) target = $region13
  $region12: #{gnn_forward.7} parent=0 // pred_region
    _
  $region13: #{gnn_forward.7} parent=0 // pred_fallthru
    _
  // Predicated region
  $region14: #{gnn_forward.7} parent=0 // pred_check
    _
  $region15: #{gnn_forward.7} parent=0 // pred_check_branch
    %24 = sbr.rel (0) target = $region17
  $region16: #{gnn_forward.7} parent=0 // pred_region
    _
  $region17: #{gnn_forward.7} parent=0 // pred_fallthru
    _
  // Predicated region
  $region18: #{gnn_forward.7} parent=0 // pred_check
    _
  $region19: #{gnn_forward.7} parent=0 // pred_check_branch
    %26 = sbr.rel (0) target = $region21
  $region20: #{gnn_forward.7} parent=0 // pred_region
    _
  $region21: #{gnn_forward.7} parent=0 // pred_fallthru
    _
  // Predicated region
  $region22: #{gnn_forward.7} parent=0 // pred_check
    _
  $region23: #{gnn_forward.7} parent=0 // pred_check_branch
    %28 = sbr.rel (0) target = $region25
  $region24: #{gnn_forward.7} parent=0 // pred_region
    _
  $region25: #{gnn_forward.7} parent=0 // pred_fallthru
    _
  // Predicated region
  $region26: #{gnn_forward.7} parent=0 // pred_check
    _
  $region27: #{gnn_forward.7} parent=0 // pred_check_branch
    %30 = sbr.rel (0) target = $region29
  $region28: #{gnn_forward.7} parent=0 // pred_region
    _
  $region29: #{gnn_forward.7} parent=0 // pred_fallthru
    _
  // Predicated region
  $region30: #{gnn_forward.7} parent=0 // pred_check
    _
  $region31: #{gnn_forward.7} parent=0 // pred_check_branch
    %32 = sbr.rel (0) target = $region33
  $region32: #{gnn_forward.7} parent=0 // pred_region
    _
  $region33: #{gnn_forward.7} parent=0 // pred_fallthru
    _
  // Predicated region
  $region34: #{gnn_forward.7} parent=0 // pred_check
    _
  $region35: #{gnn_forward.7} parent=0 // pred_check_branch
    %34 = sbr.rel (0) target = $region37
  $region36: #{gnn_forward.7} parent=0 // pred_region
    _
  $region37: #{gnn_forward.7} parent=0 // pred_fallthru
    _
  // Predicated region
  $region38: #{gnn_forward.7} parent=0 // pred_check
    _
  $region39: #{gnn_forward.7} parent=0 // pred_check_branch
    %36 = sbr.rel (0) target = $region41
  $region40: #{gnn_forward.7} parent=0 // pred_region
    _
  $region41: #{gnn_forward.7} parent=0 // pred_fallthru
    _
  %v38 = vld [vmem:[%s0] sm:$0xf]
  %v39 = vld [vmem:[%s0 + $0x4] sm:$0xf]
  %v40 = vld [vmem:[%s0 + $0x8] sm:$0xf]
  %v41 = vld [vmem:[%s0 + $0xc] sm:$0xf]
  %v42 = vld [vmem:[%s0 + $0x10] sm:$0xf]
  %v43 = vld [vmem:[%s0 + $0x14] sm:$0xf]
  %v44 = vld [vmem:[%s0 + $0x18] sm:$0xf]
  %v45 = vld [vmem:[%s0 + $0x1c] sm:$0xf]
  %v46 = vld [vmem:[%s0 + $0x20] sm:$0xf]
  %v47 = vld [vmem:[%s0 + $0x24] sm:$0xf]
  %v48 = vld [vmem:[%s1] sm:$0xf]
  %v49 = vld [vmem:[%s1 + $0x4] sm:$0xf]
  %v50 = vld [vmem:[%s1 + $0x8] sm:$0xf]
  %v51 = vld [vmem:[%s1 + $0xc] sm:$0xf]
  %v52 = vld [vmem:[%s1 + $0x10] sm:$0xf]
  %v53 = vld [vmem:[%s1 + $0x14] sm:$0xf]
  %v54 = vld [vmem:[%s1 + $0x18] sm:$0xf]
  %v55 = vld [vmem:[%s1 + $0x1c] sm:$0xf]
  %v56 = vld [vmem:[%s1 + $0x20] sm:$0xf]
  %v57 = vld [vmem:[%s1 + $0x24] sm:$0xf]
  %v58 = vld [vmem:[%s3] sm:$0xf]
  %v59 = vld [vmem:[%s3 + $0x4] sm:$0xf]
  %v60 = vld [vmem:[%s3 + $0x8] sm:$0xf]
  %v61 = vld [vmem:[%s3 + $0xc] sm:$0xf]
  %v62 = vld [vmem:[%s4] sm:$0xf]
  %v63 = vld [vmem:[%s4 + $0x4] sm:$0xf]
  %v64 = vld [vmem:[%s4 + $0x8] sm:$0xf]
  %v65 = vld [vmem:[%s4 + $0xc] sm:$0xf]
  %v76 = vunpack.c.l.b16 %v48
  %v77 = vunpack.c.l.b16 %v49
  %v78 = vunpack.c.l.b16 %v50
  %v79 = vunpack.c.l.b16 %v51
  %v80 = vunpack.c.l.b16 %v52
  %v81 = vunpack.c.l.b16 %v53
  %v82 = vunpack.c.l.b16 %v54
  %v83 = vunpack.c.l.b16 %v55
  %v84 = vunpack.c.l.b16 %v56
  %v85 = vunpack.c.l.b16 %v57
  %v86 = vpack.c.b16 %v77, %v76
  %v87 = vpack.c.b16 %v79, %v78
  %v88 = vpack.c.b16 %v81, %v80
  %v89 = vpack.c.b16 %v83, %v82
  %v90 = vpack.c.b16 %v85, %v84
  %v95 = vunpack.c.l.b16 %v62
  %v96 = vunpack.c.l.b16 %v63
  %v97 = vunpack.c.l.b16 %v64
  %v98 = vunpack.c.l.b16 %v65
  %v99 = vpack.c.b16 %v96, %v95
  %v100 = vpack.c.b16 %v98, %v97
  %vm103 = vcmask 261120
  %v105 = vsel %vm103, %v86, 0
  %v108 = vsel %vm103, %v87, 0
  %v111 = vsel %vm103, %v88, 0
  %v114 = vsel %vm103, %v89, 0
  %v117 = vsel %vm103, %v90, 0
  %119 = vmatprep.subr.bf16.mxu0 0
  %120 = vmatpush1.bf16.msra.mxu0 %v99
  %121 = vmatprep.subr.bf16.mxu0 0
  %122 = vmatpush1.bf16.msra.mxu0 %v100
  %123 = vmatprep.subr.bf16.mxu0 0
  %124 = vmatpush1.bf16.msra.mxu0 0
  %125 = vmatprep.subr.bf16.mxu0 0
  %126 = vmatpush1.bf16.msra.mxu0 0
  %127 = vmatprep.subr.bf16.mxu0 0
  %128 = vmatpush1.bf16.msra.mxu0 0
  %129 = vmatprep.subr.bf16.mxu0 0
  %130 = vmatpush1.bf16.msra.mxu0 0
  %131 = vmatprep.subr.bf16.mxu0 0
  %132 = vmatpush1.bf16.msra.mxu0 0
  %133 = vmatprep.subr.bf16.mxu0 0
  %134 = vmatpush1.bf16.msra.mxu0 0
  %135 = vmatprep.subr.bf16.mxu0 0
  %136 = vmatpush1.bf16.msra.mxu0 0
  %137 = vmatprep.subr.bf16.mxu0 0
  %138 = vmatpush1.bf16.msra.mxu0 0
  %139 = vmatprep.subr.bf16.mxu0 0
  %140 = vmatpush1.bf16.msra.mxu0 0
  %141 = vmatprep.subr.bf16.mxu0 0
  %142 = vmatpush1.bf16.msra.mxu0 0
  %143 = vmatprep.subr.bf16.mxu0 0
  %144 = vmatpush1.bf16.msra.mxu0 0
  %145 = vmatprep.subr.bf16.mxu0 0
  %146 = vmatpush1.bf16.msra.mxu0 0
  %147 = vmatprep.subr.bf16.mxu0 0
  %148 = vmatpush1.bf16.msra.mxu0 0
  %149 = vmatprep.subr.bf16.mxu0 0
  %150 = vmatpush1.bf16.msra.mxu0 0
  %151 = vmatprep.mubr.bf16.mxu0 0
  %152 = vmatmul.mubr.bf16.gmra.mrb[0].mxu0 %v105
  %v153 = vpop.f32.mrb[0].mxu0
  %v154 = vadd.f32 0.0, %v153
  %v155 = vpop.f32.mrb[0].mxu0
  %v156 = vpop.f32.mrb[0].mxu0
  %v157 = vadd.f32 0.0, %v156
  %v158 = vpop.f32.mrb[0].mxu0
  %159 = vmatprep.mubr.bf16.mxu0 0
  %160 = vmatmul.mubr.bf16.gmra.mrb[0].mxu0 %v108
  %v161 = vpop.f32.mrb[0].mxu0
  %v162 = vadd.f32 0.0, %v161
  %v163 = vpop.f32.mrb[0].mxu0
  %v164 = vpop.f32.mrb[0].mxu0
  %v165 = vadd.f32 0.0, %v164
  %v166 = vpop.f32.mrb[0].mxu0
  %167 = vmatprep.mubr.bf16.mxu0 0
  %168 = vmatmul.mubr.bf16.gmra.mrb[0].mxu0 %v111
  %v169 = vpop.f32.mrb[0].mxu0
  %v170 = vadd.f32 0.0, %v169
  %v171 = vpop.f32.mrb[0].mxu0
  %v172 = vpop.f32.mrb[0].mxu0
  %v173 = vadd.f32 0.0, %v172
  %v174 = vpop.f32.mrb[0].mxu0
  %175 = vmatprep.mubr.bf16.mxu0 0
  %176 = vmatmul.mubr.bf16.gmra.mrb[0].mxu0 %v114
  %v177 = vpop.f32.mrb[0].mxu0
  %v178 = vadd.f32 0.0, %v177
  %v179 = vpop.f32.mrb[0].mxu0
  %v180 = vpop.f32.mrb[0].mxu0
  %v181 = vadd.f32 0.0, %v180
  %v182 = vpop.f32.mrb[0].mxu0
  %183 = vmatprep.mubr.bf16.mxu0 0
  %184 = vmatmul.mubr.bf16.gmra.mrb[0].mxu0 %v117
  %v185 = vpop.f32.mrb[0].mxu0
  %v186 = vadd.f32 0.0, %v185
  %v187 = vpop.f32.mrb[0].mxu0
  %v188 = vpop.f32.mrb[0].mxu0
  %v189 = vadd.f32 0.0, %v188
  %v190 = vpop.f32.mrb[0].mxu0
  %191 = vdwg.mxu0
  %v202 = vunpack.c.l.b16 %v38
  %v203 = vunpack.c.l.b16 %v39
  %v204 = vunpack.c.l.b16 %v40
  %v205 = vunpack.c.l.b16 %v41
  %v206 = vunpack.c.l.b16 %v42
  %v207 = vunpack.c.l.b16 %v43
  %v208 = vunpack.c.l.b16 %v44
  %v209 = vunpack.c.l.b16 %v45
  %v210 = vunpack.c.l.b16 %v46
  %v211 = vunpack.c.l.b16 %v47
  %v212 = vpack.c.b16 %v203, %v202
  %v213 = vpack.c.b16 %v205, %v204
  %v214 = vpack.c.b16 %v207, %v206
  %v215 = vpack.c.b16 %v209, %v208
  %v216 = vpack.c.b16 %v211, %v210
  %v221 = vunpack.c.l.b16 %v58
  %v222 = vunpack.c.l.b16 %v59
  %v223 = vunpack.c.l.b16 %v60
  %v224 = vunpack.c.l.b16 %v61
  %v225 = vpack.c.b16 %v222, %v221
  %v226 = vpack.c.b16 %v224, %v223
  %v230 = vsel %vm103, %v212, 0
  %v233 = vsel %vm103, %v213, 0
  %v236 = vsel %vm103, %v214, 0
  %v239 = vsel %vm103, %v215, 0
  %v242 = vsel %vm103, %v216, 0
  %244 = vmatprep.subr.bf16.mxu0 0
  %245 = vmatpush1.bf16.msra.mxu0 %v225
  %246 = vmatprep.subr.bf16.mxu0 0
  %247 = vmatpush1.bf16.msra.mxu0 %v226
  %248 = vmatprep.subr.bf16.mxu0 0
  %249 = vmatpush1.bf16.msra.mxu0 0
  %250 = vmatprep.subr.bf16.mxu0 0
  %251 = vmatpush1.bf16.msra.mxu0 0
  %252 = vmatprep.subr.bf16.mxu0 0
  %253 = vmatpush1.bf16.msra.mxu0 0
  %254 = vmatprep.subr.bf16.mxu0 0
  %255 = vmatpush1.bf16.msra.mxu0 0
  %256 = vmatprep.subr.bf16.mxu0 0
  %257 = vmatpush1.bf16.msra.mxu0 0
  %258 = vmatprep.subr.bf16.mxu0 0
  %259 = vmatpush1.bf16.msra.mxu0 0
  %260 = vmatprep.subr.bf16.mxu0 0
  %261 = vmatpush1.bf16.msra.mxu0 0
  %262 = vmatprep.subr.bf16.mxu0 0
  %263 = vmatpush1.bf16.msra.mxu0 0
  %264 = vmatprep.subr.bf16.mxu0 0
  %265 = vmatpush1.bf16.msra.mxu0 0
  %266 = vmatprep.subr.bf16.mxu0 0
  %267 = vmatpush1.bf16.msra.mxu0 0
  %268 = vmatprep.subr.bf16.mxu0 0
  %269 = vmatpush1.bf16.msra.mxu0 0
  %270 = vmatprep.subr.bf16.mxu0 0
  %271 = vmatpush1.bf16.msra.mxu0 0
  %272 = vmatprep.subr.bf16.mxu0 0
  %273 = vmatpush1.bf16.msra.mxu0 0
  %274 = vmatprep.subr.bf16.mxu0 0
  %275 = vmatpush1.bf16.msra.mxu0 0
  %276 = vmatprep.mubr.bf16.mxu0 0
  %277 = vmatmul.mubr.bf16.gmra.mrb[0].mxu0 %v230
  %v278 = vpop.f32.mrb[0].mxu0
  %v279 = vadd.f32 %v154, %v278
  %v280 = vpop.f32.mrb[0].mxu0
  %v281 = vpop.f32.mrb[0].mxu0
  %v282 = vadd.f32 %v157, %v281
  %v283 = vpop.f32.mrb[0].mxu0
  %284 = vmatprep.mubr.bf16.mxu0 0
  %285 = vmatmul.mubr.bf16.gmra.mrb[0].mxu0 %v233
  %v286 = vpop.f32.mrb[0].mxu0
  %v287 = vadd.f32 %v162, %v286
  %v288 = vpop.f32.mrb[0].mxu0
  %v289 = vpop.f32.mrb[0].mxu0
  %v290 = vadd.f32 %v165, %v289
  %v291 = vpop.f32.mrb[0].mxu0
  %292 = vmatprep.mubr.bf16.mxu0 0
  %293 = vmatmul.mubr.bf16.gmra.mrb[0].mxu0 %v236
  %v294 = vpop.f32.mrb[0].mxu0
  %v295 = vadd.f32 %v170, %v294
  %v296 = vpop.f32.mrb[0].mxu0
  %v297 = vpop.f32.mrb[0].mxu0
  %v298 = vadd.f32 %v173, %v297
  %v299 = vpop.f32.mrb[0].mxu0
  %300 = vmatprep.mubr.bf16.mxu0 0
  %301 = vmatmul.mubr.bf16.gmra.mrb[0].mxu0 %v239
  %v302 = vpop.f32.mrb[0].mxu0
  %v303 = vadd.f32 %v178, %v302
  %v304 = vpop.f32.mrb[0].mxu0
  %v305 = vpop.f32.mrb[0].mxu0
  %v306 = vadd.f32 %v181, %v305
  %v307 = vpop.f32.mrb[0].mxu0
  %308 = vmatprep.mubr.bf16.mxu0 0
  %309 = vmatmul.mubr.bf16.gmra.mrb[0].mxu0 %v242
  %v310 = vpop.f32.mrb[0].mxu0
  %v311 = vadd.f32 %v186, %v310
  %v312 = vpop.f32.mrb[0].mxu0
  %v313 = vpop.f32.mrb[0].mxu0
  %v314 = vadd.f32 %v189, %v313
  %v315 = vpop.f32.mrb[0].mxu0
  %316 = vdwg.mxu0
  %v317 = vld [vmem:[%s5] sm:$0x1]
  %v319 = vlaneseq
  %v320 = vshrl.u32 %v319, 7
  %v321 = vsub.s32 0, %v320
  %v322 = vrot.slane %v317, %v321
  %v324 = vadd.f32 %v279, %v322
  %v325 = vadd.f32 %v282, %v322
  %v326 = vadd.f32 %v287, %v322
  %v327 = vadd.f32 %v290, %v322
  %v328 = vadd.f32 %v295, %v322
  %v329 = vadd.f32 %v298, %v322
  %v330 = vadd.f32 %v303, %v322
  %v331 = vadd.f32 %v306, %v322
  %v332 = vadd.f32 %v311, %v322
  %v333 = vadd.f32 %v314, %v322
  %v334 = vmax.f32 %v324, 0.0
  %v335 = vmax.f32 %v325, 0.0
  %v336 = vmax.f32 %v326, 0.0
  %v337 = vmax.f32 %v327, 0.0
  %v338 = vmax.f32 %v328, 0.0
  %v339 = vmax.f32 %v329, 0.0
  %v340 = vmax.f32 %v330, 0.0
  %v341 = vmax.f32 %v331, 0.0
  %v342 = vmax.f32 %v332, 0.0
  %v343 = vmax.f32 %v333, 0.0
  %v344 = vld [vmem:[%s6] sm:$0x1]
  %v346 = vlaneseq
  %v347 = vshrl.u32 %v346, 7
  %v348 = vsub.s32 0, %v347
  %v349 = vrot.slane %v344, %v348
  %v351 = vmul.f32 %v334, %v349
  %v352 = vmul.f32 %v335, %v349
  %v353 = vmul.f32 %v336, %v349
  %v354 = vmul.f32 %v337, %v349
  %v355 = vmul.f32 %v338, %v349
  %v356 = vmul.f32 %v339, %v349
  %v357 = vmul.f32 %v340, %v349
  %v358 = vmul.f32 %v341, %v349
  %v359 = vmul.f32 %v342, %v349
  %v360 = vmul.f32 %v343, %v349
  %v361 = vsel %vm103, %v351, 0.0
  %362 = vadd.xlane.f32.xlu0 %v361
  %v363 = vpop.xlane.xlu0 %362
  %v364 = vsel %vm103, %v352, 0.0
  %365 = vadd.xlane.f32.xlu0 %v364
  %v366 = vpop.xlane.xlu0 %365
  %v367 = vsel %vm103, %v353, 0.0
  %368 = vadd.xlane.f32.xlu0 %v367
  %v369 = vpop.xlane.xlu0 %368
  %v370 = vsel %vm103, %v354, 0.0
  %371 = vadd.xlane.f32.xlu0 %v370
  %v372 = vpop.xlane.xlu0 %371
  %v373 = vsel %vm103, %v355, 0.0
  %374 = vadd.xlane.f32.xlu0 %v373
  %v375 = vpop.xlane.xlu0 %374
  %v376 = vsel %vm103, %v356, 0.0
  %377 = vadd.xlane.f32.xlu0 %v376
  %v378 = vpop.xlane.xlu0 %377
  %v379 = vsel %vm103, %v357, 0.0
  %380 = vadd.xlane.f32.xlu0 %v379
  %v381 = vpop.xlane.xlu0 %380
  %v382 = vsel %vm103, %v358, 0.0
  %383 = vadd.xlane.f32.xlu0 %v382
  %v384 = vpop.xlane.xlu0 %383
  %v385 = vsel %vm103, %v359, 0.0
  %386 = vadd.xlane.f32.xlu0 %v385
  %v387 = vpop.xlane.xlu0 %386
  %v388 = vsel %vm103, %v360, 0.0
  %389 = vadd.xlane.f32.xlu0 %v388
  %v390 = vpop.xlane.xlu0 %389
  %v391 = vld [vmem:[#allocation2] sm:$0x1]
  %v393 = vlaneseq
  %v394 = vshrl.u32 %v393, 7
  %v395 = vsub.s32 0, %v394
  %v396 = vrot.slane %v391, %v395
  %v398 = vadd.f32 %v363, %v396
  %v399 = vadd.f32 %v366, %v396
  %v400 = vadd.f32 %v369, %v396
  %v401 = vadd.f32 %v372, %v396
  %v402 = vadd.f32 %v375, %v396
  %v403 = vadd.f32 %v378, %v396
  %v404 = vadd.f32 %v381, %v396
  %v405 = vadd.f32 %v384, %v396
  %v406 = vadd.f32 %v387, %v396
  %v407 = vadd.f32 %v390, %v396
  %v408 = vld [vmem:[%s2] sm:$0xff]
  %v409 = vld [vmem:[%s2 + $0x8] sm:$0xff]
  %vm410 = vcmp.gt.f32.partialorder %v408, 0.0
  %vm411 = vcmp.gt.f32.partialorder %v409, 0.0
  %v412 = vsel %vm410, %v398, -1e+30
  %v413 = vsel %vm411, %v399, -1e+30
  %v414 = vmax.f32 %v412, -1e+30
  %v415 = vmax.f32 %v413, -1e+30
  %v416 = vsub.f32 -1e+30, %v414
  %v417 = vsub.f32 -1e+30, %v415
  %v418 = vmul.f32 %v416, 1.442695
  %v419 = vpow.pop %v418
  %v420 = vmul.f32 %v417, 1.442695
  %v421 = vpow.pop %v420
  %v422 = vsub.f32 %v412, %v414
  %v423 = vsub.f32 %v413, %v415
  %v424 = vmul.f32 %v422, 1.442695
  %v425 = vpow.pop %v424
  %v426 = vmul.f32 %v423, 1.442695
  %v427 = vpow.pop %v426
  %v428 = vmul.f32 %v425, %v408
  %v429 = vmul.f32 %v427, %v409
  %v430 = vmul.f32 %v419, 0.0
  %v431 = vmul.f32 %v421, 0.0
  %v432 = vadd.f32 %v430, %v428
  %v433 = vadd.f32 %v431, %v429
  %435 = vset.pattern.permute.xlu0 0
  %436 = vperm.xlu0 %435, %v419
  %v437 = vpop.permute.xlu0 %436
  %440 = vset.pattern.permute.xlu0 0
  %441 = vperm.xlu0 %440, %v421
  %v442 = vpop.permute.xlu0 %441
  %v444 = vmul.f32 %v437, 0.0
  %v445 = vmul.f32 %v442, 0.0
  %v446 = vunpack.c.l.bf16 %v38
  %v447 = vunpack.c.l.bf16 %v39
  %449 = vset.pattern.permute.xlu0 0
  %450 = vperm.xlu0 %449, %v428
  %v451 = vpop.permute.xlu0 %450
  %454 = vset.pattern.permute.xlu0 0
  %455 = vperm.xlu0 %454, %v429
  %v456 = vpop.permute.xlu0 %455
  %v458 = vmul.f32 %v451, %v446
  %v459 = vmul.f32 %v456, %v447
  %v460 = vadd.f32 %v444, %v458
  %v461 = vadd.f32 %v445, %v459
  %464 = vrot.lane.b32.xlu0 %v400, 1
  %v465 = vpop.permute.xlu0 %464
  %466 = vrot.lane.b32.xlu0 %v401, 1
  %v467 = vpop.permute.xlu0 %466
  %v470 = vsel %vm410, %v465, -1e+30
  %v471 = vsel %vm411, %v467, -1e+30
  %474 = vrot.lane.b32.xlu0 %v470, 127
  %v475 = vpop.permute.xlu0 %474
  %476 = vrot.lane.b32.xlu0 %v471, 127
  %v477 = vpop.permute.xlu0 %476
  %v480 = vmax.f32 %v414, %v475
  %v481 = vmax.f32 %v415, %v477
  %v482 = vsub.f32 %v414, %v480
  %v483 = vsub.f32 %v415, %v481
  %v484 = vmul.f32 %v482, 1.442695
  %v485 = vpow.pop %v484
  %v486 = vmul.f32 %v483, 1.442695
  %v487 = vpow.pop %v486
  %490 = vrot.lane.b32.xlu0 %v480, 1
  %v491 = vpop.permute.xlu0 %490
  %492 = vrot.lane.b32.xlu0 %v481, 1
  %v493 = vpop.permute.xlu0 %492
  %v496 = vsub.f32 %v470, %v491
  %v497 = vsub.f32 %v471, %v493
  %v498 = vmul.f32 %v496, 1.442695
  %v499 = vpow.pop %v498
  %v500 = vmul.f32 %v497, 1.442695
  %v501 = vpow.pop %v500
  %v502 = vmul.f32 %v499, %v408
  %v503 = vmul.f32 %v501, %v409
  %v504 = vmul.f32 %v432, %v485
  %v505 = vmul.f32 %v433, %v487
  %508 = vrot.lane.b32.xlu0 %v502, 127
  %v509 = vpop.permute.xlu0 %508
  %510 = vrot.lane.b32.xlu0 %v503, 127
  %v511 = vpop.permute.xlu0 %510
  %v514 = vadd.f32 %v504, %v509
  %v515 = vadd.f32 %v505, %v511
  %517 = vset.pattern.permute.xlu0 0
  %518 = vperm.xlu0 %517, %v485
  %v519 = vpop.permute.xlu0 %518
  %522 = vset.pattern.permute.xlu0 0
  %523 = vperm.xlu0 %522, %v487
  %v524 = vpop.permute.xlu0 %523
  %v526 = vmul.f32 %v460, %v519
  %v527 = vmul.f32 %v461, %v524
  %v528 = vunpack.c.l.bf16 %v40
  %v529 = vunpack.c.l.bf16 %v41
  %530 = vset.pattern.permute.xlu0 1
  %531 = vperm.xlu0 %530, %v502
  %v532 = vpop.permute.xlu0 %531
  %534 = vset.pattern.permute.xlu0 1
  %535 = vperm.xlu0 %534, %v503
  %v536 = vpop.permute.xlu0 %535
  %v538 = vmul.f32 %v532, %v528
  %v539 = vmul.f32 %v536, %v529
  %v540 = vadd.f32 %v526, %v538
  %v541 = vadd.f32 %v527, %v539
  %544 = vrot.lane.b32.xlu0 %v402, 2
  %v545 = vpop.permute.xlu0 %544
  %546 = vrot.lane.b32.xlu0 %v403, 2
  %v547 = vpop.permute.xlu0 %546
  %v550 = vsel %vm410, %v545, -1e+30
  %v551 = vsel %vm411, %v547, -1e+30
  %554 = vrot.lane.b32.xlu0 %v550, 126
  %v555 = vpop.permute.xlu0 %554
  %556 = vrot.lane.b32.xlu0 %v551, 126
  %v557 = vpop.permute.xlu0 %556
  %v560 = vmax.f32 %v480, %v555
  %v561 = vmax.f32 %v481, %v557
  %v562 = vsub.f32 %v480, %v560
  %v563 = vsub.f32 %v481, %v561
  %v564 = vmul.f32 %v562, 1.442695
  %v565 = vpow.pop %v564
  %v566 = vmul.f32 %v563, 1.442695
  %v567 = vpow.pop %v566
  %570 = vrot.lane.b32.xlu0 %v560, 2
  %v571 = vpop.permute.xlu0 %570
  %572 = vrot.lane.b32.xlu0 %v561, 2
  %v573 = vpop.permute.xlu0 %572
  %v576 = vsub.f32 %v550, %v571
  %v577 = vsub.f32 %v551, %v573
  %v578 = vmul.f32 %v576, 1.442695
  %v579 = vpow.pop %v578
  %v580 = vmul.f32 %v577, 1.442695
  %v581 = vpow.pop %v580
  %v582 = vmul.f32 %v579, %v408
  %v583 = vmul.f32 %v581, %v409
  %v584 = vmul.f32 %v514, %v565
  %v585 = vmul.f32 %v515, %v567
  %588 = vrot.lane.b32.xlu0 %v582, 126
  %v589 = vpop.permute.xlu0 %588
  %590 = vrot.lane.b32.xlu0 %v583, 126
  %v591 = vpop.permute.xlu0 %590
  %v594 = vadd.f32 %v584, %v589
  %v595 = vadd.f32 %v585, %v591
  %597 = vset.pattern.permute.xlu0 0
  %598 = vperm.xlu0 %597, %v565
  %v599 = vpop.permute.xlu0 %598
  %602 = vset.pattern.permute.xlu0 0
  %603 = vperm.xlu0 %602, %v567
  %v604 = vpop.permute.xlu0 %603
  %v606 = vmul.f32 %v540, %v599
  %v607 = vmul.f32 %v541, %v604
  %v608 = vunpack.c.l.bf16 %v42
  %v609 = vunpack.c.l.bf16 %v43
  %610 = vset.pattern.permute.xlu0 2
  %611 = vperm.xlu0 %610, %v582
  %v612 = vpop.permute.xlu0 %611
  %614 = vset.pattern.permute.xlu0 2
  %615 = vperm.xlu0 %614, %v583
  %v616 = vpop.permute.xlu0 %615
  %v618 = vmul.f32 %v612, %v608
  %v619 = vmul.f32 %v616, %v609
  %v620 = vadd.f32 %v606, %v618
  %v621 = vadd.f32 %v607, %v619
  %624 = vrot.lane.b32.xlu0 %v404, 3
  %v625 = vpop.permute.xlu0 %624
  %626 = vrot.lane.b32.xlu0 %v405, 3
  %v627 = vpop.permute.xlu0 %626
  %v630 = vsel %vm410, %v625, -1e+30
  %v631 = vsel %vm411, %v627, -1e+30
  %634 = vrot.lane.b32.xlu0 %v630, 125
  %v635 = vpop.permute.xlu0 %634
  %636 = vrot.lane.b32.xlu0 %v631, 125
  %v637 = vpop.permute.xlu0 %636
  %v640 = vmax.f32 %v560, %v635
  %v641 = vmax.f32 %v561, %v637
  %v642 = vsub.f32 %v560, %v640
  %v643 = vsub.f32 %v561, %v641
  %v644 = vmul.f32 %v642, 1.442695
  %v645 = vpow.pop %v644
  %v646 = vmul.f32 %v643, 1.442695
  %v647 = vpow.pop %v646
  %650 = vrot.lane.b32.xlu0 %v640, 3
  %v651 = vpop.permute.xlu0 %650
  %652 = vrot.lane.b32.xlu0 %v641, 3
  %v653 = vpop.permute.xlu0 %652
  %v656 = vsub.f32 %v630, %v651
  %v657 = vsub.f32 %v631, %v653
  %v658 = vmul.f32 %v656, 1.442695
  %v659 = vpow.pop %v658
  %v660 = vmul.f32 %v657, 1.442695
  %v661 = vpow.pop %v660
  %v662 = vmul.f32 %v659, %v408
  %v663 = vmul.f32 %v661, %v409
  %v664 = vmul.f32 %v594, %v645
  %v665 = vmul.f32 %v595, %v647
  %668 = vrot.lane.b32.xlu0 %v662, 125
  %v669 = vpop.permute.xlu0 %668
  %670 = vrot.lane.b32.xlu0 %v663, 125
  %v671 = vpop.permute.xlu0 %670
  %v674 = vadd.f32 %v664, %v669
  %v675 = vadd.f32 %v665, %v671
  %677 = vset.pattern.permute.xlu0 0
  %678 = vperm.xlu0 %677, %v645
  %v679 = vpop.permute.xlu0 %678
  %682 = vset.pattern.permute.xlu0 0
  %683 = vperm.xlu0 %682, %v647
  %v684 = vpop.permute.xlu0 %683
  %v686 = vmul.f32 %v620, %v679
  %v687 = vmul.f32 %v621, %v684
  %v688 = vunpack.c.l.bf16 %v44
  %v689 = vunpack.c.l.bf16 %v45
  %690 = vset.pattern.permute.xlu0 3
  %691 = vperm.xlu0 %690, %v662
  %v692 = vpop.permute.xlu0 %691
  %694 = vset.pattern.permute.xlu0 3
  %695 = vperm.xlu0 %694, %v663
  %v696 = vpop.permute.xlu0 %695
  %v698 = vmul.f32 %v692, %v688
  %v699 = vmul.f32 %v696, %v689
  %v700 = vadd.f32 %v686, %v698
  %v701 = vadd.f32 %v687, %v699
  %704 = vrot.lane.b32.xlu0 %v406, 4
  %v705 = vpop.permute.xlu0 %704
  %706 = vrot.lane.b32.xlu0 %v407, 4
  %v707 = vpop.permute.xlu0 %706
  %v710 = vsel %vm410, %v705, -1e+30
  %v711 = vsel %vm411, %v707, -1e+30
  %714 = vrot.lane.b32.xlu0 %v710, 124
  %v715 = vpop.permute.xlu0 %714
  %716 = vrot.lane.b32.xlu0 %v711, 124
  %v717 = vpop.permute.xlu0 %716
  %v720 = vmax.f32 %v640, %v715
  %v721 = vmax.f32 %v641, %v717
  %v722 = vsub.f32 %v640, %v720
  %v723 = vsub.f32 %v641, %v721
  %v724 = vmul.f32 %v722, 1.442695
  %v725 = vpow.pop %v724
  %v726 = vmul.f32 %v723, 1.442695
  %v727 = vpow.pop %v726
  %730 = vrot.lane.b32.xlu0 %v720, 4
  %v731 = vpop.permute.xlu0 %730
  %732 = vrot.lane.b32.xlu0 %v721, 4
  %v733 = vpop.permute.xlu0 %732
  %v736 = vsub.f32 %v710, %v731
  %v737 = vsub.f32 %v711, %v733
  %v738 = vmul.f32 %v736, 1.442695
  %v739 = vpow.pop %v738
  %v740 = vmul.f32 %v737, 1.442695
  %v741 = vpow.pop %v740
  %v742 = vmul.f32 %v739, %v408
  %v743 = vmul.f32 %v741, %v409
  %v744 = vmul.f32 %v674, %v725
  %v745 = vmul.f32 %v675, %v727
  %748 = vrot.lane.b32.xlu0 %v742, 124
  %v749 = vpop.permute.xlu0 %748
  %750 = vrot.lane.b32.xlu0 %v743, 124
  %v751 = vpop.permute.xlu0 %750
  %v754 = vadd.f32 %v744, %v749
  %v755 = vadd.f32 %v745, %v751
  %757 = vset.pattern.permute.xlu0 0
  %758 = vperm.xlu0 %757, %v725
  %v759 = vpop.permute.xlu0 %758
  %762 = vset.pattern.permute.xlu0 0
  %763 = vperm.xlu0 %762, %v727
  %v764 = vpop.permute.xlu0 %763
  %v766 = vmul.f32 %v700, %v759
  %v767 = vmul.f32 %v701, %v764
  %v768 = vunpack.c.l.bf16 %v46
  %v769 = vunpack.c.l.bf16 %v47
  %770 = vset.pattern.permute.xlu0 4
  %771 = vperm.xlu0 %770, %v742
  %v772 = vpop.permute.xlu0 %771
  %774 = vset.pattern.permute.xlu0 4
  %775 = vperm.xlu0 %774, %v743
  %v776 = vpop.permute.xlu0 %775
  %v778 = vmul.f32 %v772, %v768
  %v779 = vmul.f32 %v776, %v769
  %v780 = vadd.f32 %v766, %v778
  %v781 = vadd.f32 %v767, %v779
  %v782 = vadd.f32 %v754, 1e-10
  %v783 = vadd.f32 %v755, 1e-10
  %v784 = vrcp.pop %v782
  %v785 = vrcp.pop %v783
  %787 = vset.pattern.permute.xlu0 0
  %788 = vperm.xlu0 %787, %v784
  %v789 = vpop.permute.xlu0 %788
  %792 = vset.pattern.permute.xlu0 0
  %793 = vperm.xlu0 %792, %v785
  %v794 = vpop.permute.xlu0 %793
  %v796 = vmul.f32 %v780, %v789
  %v797 = vmul.f32 %v781, %v794
  %v798 = vpack.c.bf16 %v797, %v796
  %v799 = vld [vmem:[%s8] sm:$0xf]
  %v800 = vld [vmem:[%s8 + $0x4] sm:$0xf]
  %v801 = vld [vmem:[%s8 + $0x8] sm:$0xf]
  %v802 = vld [vmem:[%s8 + $0xc] sm:$0xf]
  %v803 = vld [vmem:[%s9] sm:$0x1]
  %v805 = vlaneseq
  %v806 = vshrl.u32 %v805, 7
  %v807 = vsub.s32 0, %v806
  %v808 = vrot.slane %v803, %v807
  %v814 = vunpack.c.l.b16 %v799
  %v815 = vunpack.c.l.b16 %v800
  %v816 = vunpack.c.l.b16 %v801
  %v817 = vunpack.c.l.b16 %v802
  %v818 = vpack.c.b16 %v815, %v814
  %v819 = vpack.c.b16 %v817, %v816
  %v823 = vsel %vm103, %v798, 0
  %825 = vmatprep.subr.bf16.mxu0 0
  %826 = vmatpush1.bf16.msra.mxu0 %v818
  %827 = vmatprep.subr.bf16.mxu0 0
  %828 = vmatpush1.bf16.msra.mxu0 %v819
  %829 = vmatprep.subr.bf16.mxu0 0
  %830 = vmatpush1.bf16.msra.mxu0 0
  %831 = vmatprep.subr.bf16.mxu0 0
  %832 = vmatpush1.bf16.msra.mxu0 0
  %833 = vmatprep.subr.bf16.mxu0 0
  %834 = vmatpush1.bf16.msra.mxu0 0
  %835 = vmatprep.subr.bf16.mxu0 0
  %836 = vmatpush1.bf16.msra.mxu0 0
  %837 = vmatprep.subr.bf16.mxu0 0
  %838 = vmatpush1.bf16.msra.mxu0 0
  %839 = vmatprep.subr.bf16.mxu0 0
  %840 = vmatpush1.bf16.msra.mxu0 0
  %841 = vmatprep.subr.bf16.mxu0 0
  %842 = vmatpush1.bf16.msra.mxu0 0
  %843 = vmatprep.subr.bf16.mxu0 0
  %844 = vmatpush1.bf16.msra.mxu0 0
  %845 = vmatprep.subr.bf16.mxu0 0
  %846 = vmatpush1.bf16.msra.mxu0 0
  %847 = vmatprep.subr.bf16.mxu0 0
  %848 = vmatpush1.bf16.msra.mxu0 0
  %849 = vmatprep.subr.bf16.mxu0 0
  %850 = vmatpush1.bf16.msra.mxu0 0
  %851 = vmatprep.subr.bf16.mxu0 0
  %852 = vmatpush1.bf16.msra.mxu0 0
  %853 = vmatprep.subr.bf16.mxu0 0
  %854 = vmatpush1.bf16.msra.mxu0 0
  %855 = vmatprep.subr.bf16.mxu0 0
  %856 = vmatpush1.bf16.msra.mxu0 0
  %857 = vmatprep.mubr.bf16.mxu0 0
  %858 = vmatmul.mubr.bf16.gmra.mrb[0].mxu0 %v823
  %v859 = vpop.f32.mrb[0].mxu0
  %v860 = vadd.f32 %v808, %v859
  %v861 = vpop.f32.mrb[0].mxu0
  %v862 = vpop.f32.mrb[0].mxu0
  %v863 = vadd.f32 %v808, %v862
  %v864 = vpop.f32.mrb[0].mxu0
  %865 = vdwg.mxu0
  %v866 = vmax.f32 %v860, 0.0
  %v867 = vmax.f32 %v863, 0.0
  %v868 = vpack.c.bf16 %v867, %v866
  %v870 = vunpack.c.l.b16 %v868
  %v871 = vunpack.c.h.b16 %v868
  %v872 = vpack.c.b16 %v870, %v870
  %v873 = vpack.c.b16 %v871, %v871
  %vm876 = vcmask 257024
  %877 = vst.msk [vmem:[%s10] sm:$0xf] %vm876, %v872
  %878 = vst.msk [vmem:[%s10 + $0x4] sm:$0xf] %vm876, %v873
  // Predicated region
  $region42: #{gnn_forward.7} parent=0 // pred_check
    _
  $region43: #{gnn_forward.7} parent=0 // pred_check_branch
    %880 = sbr.rel (0) target = $region45
  $region44: #{gnn_forward.7} parent=0 // pred_region
    _
  $region45: #{gnn_forward.7} parent=0 // pred_fallthru
    _
  // Predicated region
  $region46: #{gnn_forward.7} parent=0 // pred_check
    _
  $region47: #{gnn_forward.7} parent=0 // pred_check_branch
    %882 = sbr.rel (0) target = $region49
  $region48: #{gnn_forward.7} parent=0 // pred_region
    _
  $region49: #{gnn_forward.7} parent=0 // pred_fallthru
    _

// kernel: gnn_forward.5
$region0: #{gnn_forward.5}
  #allocation0 [shape = 'u32[]', space=smem, size = 0x4, offset = 0x4, fixed_abs, tag = 'smem constant byte address 0x4 - core index']
  #allocation1 [shape = 'u32[144,128]{1,0:T(1,128)}', space=vmem, size = 0x12000, scoped, tag = 'internal scratch']
  #allocation2 [shape = 'f32[1,1]{1,0:T(1,128)S(1)}', space=vmem, size = 0x200, scoped, tag = 'scoped memory for gnn_forward.5']
  %s0 = inlined_call_operand.vmem [shape: bf16[8,16,32], index: 0, kind: input, shape index: {}]
  %s1 = inlined_call_operand.vmem [shape: bf16[8,16,32], index: 1, kind: input, shape index: {}]
  %s2 = inlined_call_operand.vmem [shape: bf16[16,32], index: 2, kind: input, shape index: {}]
  %s3 = inlined_call_operand.vmem [shape: f32[16,8], index: 3, kind: input, shape index: {}]
  %s4 = inlined_call_operand.vmem [shape: bf16[32,32], index: 4, kind: input, shape index: {}]
  %s5 = inlined_call_operand.vmem [shape: bf16[32,32], index: 5, kind: input, shape index: {}]
  %s6 = inlined_call_operand.vmem [shape: f32[1,32], index: 6, kind: input, shape index: {}]
  %s7 = inlined_call_operand.vmem [shape: bf16[32,32], index: 7, kind: input, shape index: {}]
  %s8 = inlined_call_operand.vmem [shape: f32[1,32], index: 8, kind: input, shape index: {}]
  %s9 = inlined_call_operand.vmem [shape: bf16[32,32], index: 9, kind: input, shape index: {}]
  %s10 = inlined_call_operand.vmem [shape: bf16[32,32], index: 10, kind: input, shape index: {}]
  %s11 = inlined_call_operand.vmem [shape: f32[1,32], index: 11, kind: input, shape index: {}]
  %s12 = inlined_call_operand.vmem [shape: f32[1,32], index: 12, kind: input, shape index: {}]
  %s13 = inlined_call_operand.<no memory space> [shape: f32[1,1], index: 13, kind: input, shape index: {}]
  %s14 = inlined_call_operand.vmem [shape: bf16[32,32], index: 14, kind: input, shape index: {}]
  %s15 = inlined_call_operand.vmem [shape: f32[1,32], index: 15, kind: input, shape index: {}]
  %s16 = inlined_call_operand.vmem [shape: bf16[16,32], index: 16, kind: output, shape index: {}]
  %s17 = sld [smem:[#allocation0]]
  $region74: #{gnn_forward.5} parent=0
    _
  %s19 = ssub.s32 1, %s17
  %s20 = scalar_select 0, %s19, %s17
  %v21 = vstv %s13
  %22 = vst [vmem:[#allocation2] sm:$0x1] %v21
  // Predicated region
  $region2: #{gnn_forward.5} parent=0 // pred_check
    _
  $region3: #{gnn_forward.5} parent=0 // pred_check_branch
    %24 = sbr.rel (0) target = $region5
  $region4: #{gnn_forward.5} parent=0 // pred_region
    _
  $region5: #{gnn_forward.5} parent=0 // pred_fallthru
    _
  // Predicated region
  $region6: #{gnn_forward.5} parent=0 // pred_check
    _
  $region7: #{gnn_forward.5} parent=0 // pred_check_branch
    %26 = sbr.rel (0) target = $region9
  $region8: #{gnn_forward.5} parent=0 // pred_region
    _
  $region9: #{gnn_forward.5} parent=0 // pred_fallthru
    _
  // Predicated region
  $region10: #{gnn_forward.5} parent=0 // pred_check
    _
  $region11: #{gnn_forward.5} parent=0 // pred_check_branch
    %28 = sbr.rel (0) target = $region13
  $region12: #{gnn_forward.5} parent=0 // pred_region
    _
  $region13: #{gnn_forward.5} parent=0 // pred_fallthru
    _
  // Predicated region
  $region14: #{gnn_forward.5} parent=0 // pred_check
    _
  $region15: #{gnn_forward.5} parent=0 // pred_check_branch
    %30 = sbr.rel (0) target = $region17
  $region16: #{gnn_forward.5} parent=0 // pred_region
    _
  $region17: #{gnn_forward.5} parent=0 // pred_fallthru
    _
  // Predicated region
  $region18: #{gnn_forward.5} parent=0 // pred_check
    _
  $region19: #{gnn_forward.5} parent=0 // pred_check_branch
    %32 = sbr.rel (0) target = $region21
  $region20: #{gnn_forward.5} parent=0 // pred_region
    _
  $region21: #{gnn_forward.5} parent=0 // pred_fallthru
    _
  // Predicated region
  $region22: #{gnn_forward.5} parent=0 // pred_check
    _
  $region23: #{gnn_forward.5} parent=0 // pred_check_branch
    %34 = sbr.rel (0) target = $region25
  $region24: #{gnn_forward.5} parent=0 // pred_region
    _
  $region25: #{gnn_forward.5} parent=0 // pred_fallthru
    _
  // Predicated region
  $region26: #{gnn_forward.5} parent=0 // pred_check
    _
  $region27: #{gnn_forward.5} parent=0 // pred_check_branch
    %36 = sbr.rel (0) target = $region29
  $region28: #{gnn_forward.5} parent=0 // pred_region
    _
  $region29: #{gnn_forward.5} parent=0 // pred_fallthru
    _
  // Predicated region
  $region30: #{gnn_forward.5} parent=0 // pred_check
    _
  $region31: #{gnn_forward.5} parent=0 // pred_check_branch
    %38 = sbr.rel (0) target = $region33
  $region32: #{gnn_forward.5} parent=0 // pred_region
    _
  $region33: #{gnn_forward.5} parent=0 // pred_fallthru
    _
  // Predicated region
  $region34: #{gnn_forward.5} parent=0 // pred_check
    _
  $region35: #{gnn_forward.5} parent=0 // pred_check_branch
    %40 = sbr.rel (0) target = $region37
  $region36: #{gnn_forward.5} parent=0 // pred_region
    _
  $region37: #{gnn_forward.5} parent=0 // pred_fallthru
    _
  // Predicated region
  $region38: #{gnn_forward.5} parent=0 // pred_check
    _
  $region39: #{gnn_forward.5} parent=0 // pred_check_branch
    %42 = sbr.rel (0) target = $region41
  $region40: #{gnn_forward.5} parent=0 // pred_region
    _
  $region41: #{gnn_forward.5} parent=0 // pred_fallthru
    _
  // Predicated region
  $region42: #{gnn_forward.5} parent=0 // pred_check
    _
  $region43: #{gnn_forward.5} parent=0 // pred_check_branch
    %44 = sbr.rel (0) target = $region45
  $region44: #{gnn_forward.5} parent=0 // pred_region
    _
  $region45: #{gnn_forward.5} parent=0 // pred_fallthru
    _
  // Predicated region
  $region46: #{gnn_forward.5} parent=0 // pred_check
    _
  $region47: #{gnn_forward.5} parent=0 // pred_check_branch
    %46 = sbr.rel (0) target = $region49
  $region48: #{gnn_forward.5} parent=0 // pred_region
    _
  $region49: #{gnn_forward.5} parent=0 // pred_fallthru
    _
  // Predicated region
  $region50: #{gnn_forward.5} parent=0 // pred_check
    _
  $region51: #{gnn_forward.5} parent=0 // pred_check_branch
    %48 = sbr.rel (0) target = $region53
  $region52: #{gnn_forward.5} parent=0 // pred_region
    _
  $region53: #{gnn_forward.5} parent=0 // pred_fallthru
    _
  // Predicated region
  $region54: #{gnn_forward.5} parent=0 // pred_check
    _
  $region55: #{gnn_forward.5} parent=0 // pred_check_branch
    %50 = sbr.rel (0) target = $region57
  $region56: #{gnn_forward.5} parent=0 // pred_region
    _
  $region57: #{gnn_forward.5} parent=0 // pred_fallthru
    _
  // Predicated region
  $region58: #{gnn_forward.5} parent=0 // pred_check
    _
  $region59: #{gnn_forward.5} parent=0 // pred_check_branch
    %52 = sbr.rel (0) target = $region61
  $region60: #{gnn_forward.5} parent=0 // pred_region
    _
  $region61: #{gnn_forward.5} parent=0 // pred_fallthru
    _
  // Predicated region
  $region62: #{gnn_forward.5} parent=0 // pred_check
    _
  $region63: #{gnn_forward.5} parent=0 // pred_check_branch
    %54 = sbr.rel (0) target = $region65
  $region64: #{gnn_forward.5} parent=0 // pred_region
    _
  $region65: #{gnn_forward.5} parent=0 // pred_fallthru
    _
  %v56 = vld [vmem:[%s0] sm:$0xf]
  %v57 = vld [vmem:[%s0 + $0x4] sm:$0xf]
  %v58 = vld [vmem:[%s0 + $0x8] sm:$0xf]
  %v59 = vld [vmem:[%s0 + $0xc] sm:$0xf]
  %v60 = vld [vmem:[%s0 + $0x10] sm:$0xf]
  %v61 = vld [vmem:[%s0 + $0x14] sm:$0xf]
  %v62 = vld [vmem:[%s0 + $0x18] sm:$0xf]
  %v63 = vld [vmem:[%s0 + $0x1c] sm:$0xf]
  %v64 = vld [vmem:[%s0 + $0x20] sm:$0xf]
  %v65 = vld [vmem:[%s0 + $0x24] sm:$0xf]
  %v66 = vld [vmem:[%s0 + $0x28] sm:$0xf]
  %v67 = vld [vmem:[%s0 + $0x2c] sm:$0xf]
  %v68 = vld [vmem:[%s0 + $0x30] sm:$0xf]
  %v69 = vld [vmem:[%s0 + $0x34] sm:$0xf]
  %v70 = vld [vmem:[%s0 + $0x38] sm:$0xf]
  %v71 = vld [vmem:[%s0 + $0x3c] sm:$0xf]
  %v72 = vld [vmem:[%s1] sm:$0xf]
  %v73 = vld [vmem:[%s1 + $0x4] sm:$0xf]
  %v74 = vld [vmem:[%s1 + $0x8] sm:$0xf]
  %v75 = vld [vmem:[%s1 + $0xc] sm:$0xf]
  %v76 = vld [vmem:[%s1 + $0x10] sm:$0xf]
  %v77 = vld [vmem:[%s1 + $0x14] sm:$0xf]
  %v78 = vld [vmem:[%s1 + $0x18] sm:$0xf]
  %v79 = vld [vmem:[%s1 + $0x1c] sm:$0xf]
  %v80 = vld [vmem:[%s1 + $0x20] sm:$0xf]
  %v81 = vld [vmem:[%s1 + $0x24] sm:$0xf]
  %v82 = vld [vmem:[%s1 + $0x28] sm:$0xf]
  %v83 = vld [vmem:[%s1 + $0x2c] sm:$0xf]
  %v84 = vld [vmem:[%s1 + $0x30] sm:$0xf]
  %v85 = vld [vmem:[%s1 + $0x34] sm:$0xf]
  %v86 = vld [vmem:[%s1 + $0x38] sm:$0xf]
  %v87 = vld [vmem:[%s1 + $0x3c] sm:$0xf]
  %v88 = vld [vmem:[%s4] sm:$0xf]
  %v89 = vld [vmem:[%s4 + $0x4] sm:$0xf]
  %v90 = vld [vmem:[%s4 + $0x8] sm:$0xf]
  %v91 = vld [vmem:[%s4 + $0xc] sm:$0xf]
  %v92 = vld [vmem:[%s5] sm:$0xf]
  %v93 = vld [vmem:[%s5 + $0x4] sm:$0xf]
  %v94 = vld [vmem:[%s5 + $0x8] sm:$0xf]
  %v95 = vld [vmem:[%s5 + $0xc] sm:$0xf]
  %v112 = vunpack.c.l.b16 %v72
  %v113 = vunpack.c.l.b16 %v73
  %v114 = vunpack.c.l.b16 %v74
  %v115 = vunpack.c.l.b16 %v75
  %v116 = vunpack.c.l.b16 %v76
  %v117 = vunpack.c.l.b16 %v77
  %v118 = vunpack.c.l.b16 %v78
  %v119 = vunpack.c.l.b16 %v79
  %v120 = vunpack.c.l.b16 %v80
  %v121 = vunpack.c.l.b16 %v81
  %v122 = vunpack.c.l.b16 %v82
  %v123 = vunpack.c.l.b16 %v83
  %v124 = vunpack.c.l.b16 %v84
  %v125 = vunpack.c.l.b16 %v85
  %v126 = vunpack.c.l.b16 %v86
  %v127 = vunpack.c.l.b16 %v87
  %v128 = vpack.c.b16 %v113, %v112
  %v129 = vpack.c.b16 %v115, %v114
  %v130 = vpack.c.b16 %v117, %v116
  %v131 = vpack.c.b16 %v119, %v118
  %v132 = vpack.c.b16 %v121, %v120
  %v133 = vpack.c.b16 %v123, %v122
  %v134 = vpack.c.b16 %v125, %v124
  %v135 = vpack.c.b16 %v127, %v126
  %v140 = vunpack.c.l.b16 %v92
  %v141 = vunpack.c.l.b16 %v93
  %v142 = vunpack.c.l.b16 %v94
  %v143 = vunpack.c.l.b16 %v95
  %v144 = vpack.c.b16 %v141, %v140
  %v145 = vpack.c.b16 %v143, %v142
  %vm148 = vcmask 261120
  %v150 = vsel %vm148, %v128, 0
  %v153 = vsel %vm148, %v129, 0
  %v156 = vsel %vm148, %v130, 0
  %v159 = vsel %vm148, %v131, 0
  %v162 = vsel %vm148, %v132, 0
  %v165 = vsel %vm148, %v133, 0
  %v168 = vsel %vm148, %v134, 0
  %v171 = vsel %vm148, %v135, 0
  %173 = vmatprep.subr.bf16.mxu0 0
  %174 = vmatpush1.bf16.msra.mxu0 %v144
  %175 = vmatprep.subr.bf16.mxu0 0
  %176 = vmatpush1.bf16.msra.mxu0 %v145
  %177 = vmatprep.subr.bf16.mxu0 0
  %178 = vmatpush1.bf16.msra.mxu0 0
  %179 = vmatprep.subr.bf16.mxu0 0
  %180 = vmatpush1.bf16.msra.mxu0 0
  %181 = vmatprep.subr.bf16.mxu0 0
  %182 = vmatpush1.bf16.msra.mxu0 0
  %183 = vmatprep.subr.bf16.mxu0 0
  %184 = vmatpush1.bf16.msra.mxu0 0
  %185 = vmatprep.subr.bf16.mxu0 0
  %186 = vmatpush1.bf16.msra.mxu0 0
  %187 = vmatprep.subr.bf16.mxu0 0
  %188 = vmatpush1.bf16.msra.mxu0 0
  %189 = vmatprep.subr.bf16.mxu0 0
  %190 = vmatpush1.bf16.msra.mxu0 0
  %191 = vmatprep.subr.bf16.mxu0 0
  %192 = vmatpush1.bf16.msra.mxu0 0
  %193 = vmatprep.subr.bf16.mxu0 0
  %194 = vmatpush1.bf16.msra.mxu0 0
  %195 = vmatprep.subr.bf16.mxu0 0
  %196 = vmatpush1.bf16.msra.mxu0 0
  %197 = vmatprep.subr.bf16.mxu0 0
  %198 = vmatpush1.bf16.msra.mxu0 0
  %199 = vmatprep.subr.bf16.mxu0 0
  %200 = vmatpush1.bf16.msra.mxu0 0
  %201 = vmatprep.subr.bf16.mxu0 0
  %202 = vmatpush1.bf16.msra.mxu0 0
  %203 = vmatprep.subr.bf16.mxu0 0
  %204 = vmatpush1.bf16.msra.mxu0 0
  %205 = vmatprep.mubr.bf16.mxu0 0
  %206 = vmatmul.mubr.bf16.gmra.mrb[0].mxu0 %v150
  %v207 = vpop.f32.mrb[0].mxu0
  %v208 = vadd.f32 0.0, %v207
  %v209 = vpop.f32.mrb[0].mxu0
  %v210 = vpop.f32.mrb[0].mxu0
  %v211 = vadd.f32 0.0, %v210
  %v212 = vpop.f32.mrb[0].mxu0
  %213 = vmatprep.mubr.bf16.mxu0 0
  %214 = vmatmul.mubr.bf16.gmra.mrb[0].mxu0 %v153
  %v215 = vpop.f32.mrb[0].mxu0
  %v216 = vadd.f32 0.0, %v215
  %v217 = vpop.f32.mrb[0].mxu0
  %v218 = vpop.f32.mrb[0].mxu0
  %v219 = vadd.f32 0.0, %v218
  %v220 = vpop.f32.mrb[0].mxu0
  %221 = vmatprep.mubr.bf16.mxu0 0
  %222 = vmatmul.mubr.bf16.gmra.mrb[0].mxu0 %v156
  %v223 = vpop.f32.mrb[0].mxu0
  %v224 = vadd.f32 0.0, %v223
  %v225 = vpop.f32.mrb[0].mxu0
  %v226 = vpop.f32.mrb[0].mxu0
  %v227 = vadd.f32 0.0, %v226
  %v228 = vpop.f32.mrb[0].mxu0
  %229 = vmatprep.mubr.bf16.mxu0 0
  %230 = vmatmul.mubr.bf16.gmra.mrb[0].mxu0 %v159
  %v231 = vpop.f32.mrb[0].mxu0
  %v232 = vadd.f32 0.0, %v231
  %v233 = vpop.f32.mrb[0].mxu0
  %v234 = vpop.f32.mrb[0].mxu0
  %v235 = vadd.f32 0.0, %v234
  %v236 = vpop.f32.mrb[0].mxu0
  %237 = vmatprep.mubr.bf16.mxu0 0
  %238 = vmatmul.mubr.bf16.gmra.mrb[0].mxu0 %v162
  %v239 = vpop.f32.mrb[0].mxu0
  %v240 = vadd.f32 0.0, %v239
  %v241 = vpop.f32.mrb[0].mxu0
  %v242 = vpop.f32.mrb[0].mxu0
  %v243 = vadd.f32 0.0, %v242
  %v244 = vpop.f32.mrb[0].mxu0
  %245 = vmatprep.mubr.bf16.mxu0 0
  %246 = vmatmul.mubr.bf16.gmra.mrb[0].mxu0 %v165
  %v247 = vpop.f32.mrb[0].mxu0
  %v248 = vadd.f32 0.0, %v247
  %v249 = vpop.f32.mrb[0].mxu0
  %v250 = vpop.f32.mrb[0].mxu0
  %v251 = vadd.f32 0.0, %v250
  %v252 = vpop.f32.mrb[0].mxu0
  %253 = vmatprep.mubr.bf16.mxu0 0
  %254 = vmatmul.mubr.bf16.gmra.mrb[0].mxu0 %v168
  %v255 = vpop.f32.mrb[0].mxu0
  %v256 = vadd.f32 0.0, %v255
  %v257 = vpop.f32.mrb[0].mxu0
  %v258 = vpop.f32.mrb[0].mxu0
  %v259 = vadd.f32 0.0, %v258
  %v260 = vpop.f32.mrb[0].mxu0
  %261 = vmatprep.mubr.bf16.mxu0 0
  %262 = vmatmul.mubr.bf16.gmra.mrb[0].mxu0 %v171
  %v263 = vpop.f32.mrb[0].mxu0
  %v264 = vadd.f32 0.0, %v263
  %v265 = vpop.f32.mrb[0].mxu0
  %v266 = vpop.f32.mrb[0].mxu0
  %v267 = vadd.f32 0.0, %v266
  %v268 = vpop.f32.mrb[0].mxu0
  %269 = vdwg.mxu0
  %v286 = vunpack.c.l.b16 %v56
  %v287 = vunpack.c.l.b16 %v57
  %v288 = vunpack.c.l.b16 %v58
  %v289 = vunpack.c.l.b16 %v59
  %v290 = vunpack.c.l.b16 %v60
  %v291 = vunpack.c.l.b16 %v61
  %v292 = vunpack.c.l.b16 %v62
  %v293 = vunpack.c.l.b16 %v63
  %v294 = vunpack.c.l.b16 %v64
  %v295 = vunpack.c.l.b16 %v65
  %v296 = vunpack.c.l.b16 %v66
  %v297 = vunpack.c.l.b16 %v67
  %v298 = vunpack.c.l.b16 %v68
  %v299 = vunpack.c.l.b16 %v69
  %v300 = vunpack.c.l.b16 %v70
  %v301 = vunpack.c.l.b16 %v71
  %v302 = vpack.c.b16 %v287, %v286
  %v303 = vpack.c.b16 %v289, %v288
  %v304 = vpack.c.b16 %v291, %v290
  %v305 = vpack.c.b16 %v293, %v292
  %v306 = vpack.c.b16 %v295, %v294
  %v307 = vpack.c.b16 %v297, %v296
  %v308 = vpack.c.b16 %v299, %v298
  %v309 = vpack.c.b16 %v301, %v300
  %v314 = vunpack.c.l.b16 %v88
  %v315 = vunpack.c.l.b16 %v89
  %v316 = vunpack.c.l.b16 %v90
  %v317 = vunpack.c.l.b16 %v91
  %v318 = vpack.c.b16 %v315, %v314
  %v319 = vpack.c.b16 %v317, %v316
  %v323 = vsel %vm148, %v302, 0
  %v326 = vsel %vm148, %v303, 0
  %v329 = vsel %vm148, %v304, 0
  %v332 = vsel %vm148, %v305, 0
  %v335 = vsel %vm148, %v306, 0
  %v338 = vsel %vm148, %v307, 0
  %v341 = vsel %vm148, %v308, 0
  %v344 = vsel %vm148, %v309, 0
  %346 = vmatprep.subr.bf16.mxu0 0
  %347 = vmatpush1.bf16.msra.mxu0 %v318
  %348 = vmatprep.subr.bf16.mxu0 0
  %349 = vmatpush1.bf16.msra.mxu0 %v319
  %350 = vmatprep.subr.bf16.mxu0 0
  %351 = vmatpush1.bf16.msra.mxu0 0
  %352 = vmatprep.subr.bf16.mxu0 0
  %353 = vmatpush1.bf16.msra.mxu0 0
  %354 = vmatprep.subr.bf16.mxu0 0
  %355 = vmatpush1.bf16.msra.mxu0 0
  %356 = vmatprep.subr.bf16.mxu0 0
  %357 = vmatpush1.bf16.msra.mxu0 0
  %358 = vmatprep.subr.bf16.mxu0 0
  %359 = vmatpush1.bf16.msra.mxu0 0
  %360 = vmatprep.subr.bf16.mxu0 0
  %361 = vmatpush1.bf16.msra.mxu0 0
  %362 = vmatprep.subr.bf16.mxu0 0
  %363 = vmatpush1.bf16.msra.mxu0 0
  %364 = vmatprep.subr.bf16.mxu0 0
  %365 = vmatpush1.bf16.msra.mxu0 0
  %366 = vmatprep.subr.bf16.mxu0 0
  %367 = vmatpush1.bf16.msra.mxu0 0
  %368 = vmatprep.subr.bf16.mxu0 0
  %369 = vmatpush1.bf16.msra.mxu0 0
  %370 = vmatprep.subr.bf16.mxu0 0
  %371 = vmatpush1.bf16.msra.mxu0 0
  %372 = vmatprep.subr.bf16.mxu0 0
  %373 = vmatpush1.bf16.msra.mxu0 0
  %374 = vmatprep.subr.bf16.mxu0 0
  %375 = vmatpush1.bf16.msra.mxu0 0
  %376 = vmatprep.subr.bf16.mxu0 0
  %377 = vmatpush1.bf16.msra.mxu0 0
  %378 = vmatprep.mubr.bf16.mxu0 0
  %379 = vmatmul.mubr.bf16.gmra.mrb[0].mxu0 %v323
  %v380 = vpop.f32.mrb[0].mxu0
  %v381 = vadd.f32 %v208, %v380
  %v382 = vpop.f32.mrb[0].mxu0
  %v383 = vpop.f32.mrb[0].mxu0
  %v384 = vadd.f32 %v211, %v383
  %v385 = vpop.f32.mrb[0].mxu0
  %386 = vmatprep.mubr.bf16.mxu0 0
  %387 = vmatmul.mubr.bf16.gmra.mrb[0].mxu0 %v326
  %v388 = vpop.f32.mrb[0].mxu0
  %v389 = vadd.f32 %v216, %v388
  %v390 = vpop.f32.mrb[0].mxu0
  %v391 = vpop.f32.mrb[0].mxu0
  %v392 = vadd.f32 %v219, %v391
  %v393 = vpop.f32.mrb[0].mxu0
  %394 = vmatprep.mubr.bf16.mxu0 0
  %395 = vmatmul.mubr.bf16.gmra.mrb[0].mxu0 %v329
  %v396 = vpop.f32.mrb[0].mxu0
  %v397 = vadd.f32 %v224, %v396
  %v398 = vpop.f32.mrb[0].mxu0
  %v399 = vpop.f32.mrb[0].mxu0
  %v400 = vadd.f32 %v227, %v399
  %v401 = vpop.f32.mrb[0].mxu0
  %402 = vmatprep.mubr.bf16.mxu0 0
  %403 = vmatmul.mubr.bf16.gmra.mrb[0].mxu0 %v332
  %v404 = vpop.f32.mrb[0].mxu0
  %v405 = vadd.f32 %v232, %v404
  %v406 = vpop.f32.mrb[0].mxu0
  %v407 = vpop.f32.mrb[0].mxu0
  %v408 = vadd.f32 %v235, %v407
  %v409 = vpop.f32.mrb[0].mxu0
  %410 = vmatprep.mubr.bf16.mxu0 0
  %411 = vmatmul.mubr.bf16.gmra.mrb[0].mxu0 %v335
  %v412 = vpop.f32.mrb[0].mxu0
  %v413 = vadd.f32 %v240, %v412
  %v414 = vpop.f32.mrb[0].mxu0
  %v415 = vpop.f32.mrb[0].mxu0
  %v416 = vadd.f32 %v243, %v415
  %v417 = vpop.f32.mrb[0].mxu0
  %418 = vmatprep.mubr.bf16.mxu0 0
  %419 = vmatmul.mubr.bf16.gmra.mrb[0].mxu0 %v338
  %v420 = vpop.f32.mrb[0].mxu0
  %v421 = vadd.f32 %v248, %v420
  %v422 = vpop.f32.mrb[0].mxu0
  %v423 = vpop.f32.mrb[0].mxu0
  %v424 = vadd.f32 %v251, %v423
  %v425 = vpop.f32.mrb[0].mxu0
  %426 = vmatprep.mubr.bf16.mxu0 0
  %427 = vmatmul.mubr.bf16.gmra.mrb[0].mxu0 %v341
  %v428 = vpop.f32.mrb[0].mxu0
  %v429 = vadd.f32 %v256, %v428
  %v430 = vpop.f32.mrb[0].mxu0
  %v431 = vpop.f32.mrb[0].mxu0
  %v432 = vadd.f32 %v259, %v431
  %v433 = vpop.f32.mrb[0].mxu0
  %434 = vmatprep.mubr.bf16.mxu0 0
  %435 = vmatmul.mubr.bf16.gmra.mrb[0].mxu0 %v344
  %v436 = vpop.f32.mrb[0].mxu0
  %v437 = vadd.f32 %v264, %v436
  %v438 = vpop.f32.mrb[0].mxu0
  %v439 = vpop.f32.mrb[0].mxu0
  %v440 = vadd.f32 %v267, %v439
  %v441 = vpop.f32.mrb[0].mxu0
  %442 = vdwg.mxu0
  %v443 = vld [vmem:[%s6] sm:$0x1]
  %v445 = vlaneseq
  %v446 = vshrl.u32 %v445, 7
  %v447 = vsub.s32 0, %v446
  %v448 = vrot.slane %v443, %v447
  %v450 = vadd.f32 %v381, %v448
  %v451 = vadd.f32 %v384, %v448
  %v452 = vadd.f32 %v389, %v448
  %v453 = vadd.f32 %v392, %v448
  %v454 = vadd.f32 %v397, %v448
  %v455 = vadd.f32 %v400, %v448
  %v456 = vadd.f32 %v405, %v448
  %v457 = vadd.f32 %v408, %v448
  %v458 = vadd.f32 %v413, %v448
  %v459 = vadd.f32 %v416, %v448
  %v460 = vadd.f32 %v421, %v448
  %v461 = vadd.f32 %v424, %v448
  %v462 = vadd.f32 %v429, %v448
  %v463 = vadd.f32 %v432, %v448
  %v464 = vadd.f32 %v437, %v448
  %v465 = vadd.f32 %v440, %v448
  %v466 = vmax.f32 %v450, 0.0
  %v467 = vmax.f32 %v451, 0.0
  %v468 = vmax.f32 %v452, 0.0
  %v469 = vmax.f32 %v453, 0.0
  %v470 = vmax.f32 %v454, 0.0
  %v471 = vmax.f32 %v455, 0.0
  %v472 = vmax.f32 %v456, 0.0
  %v473 = vmax.f32 %v457, 0.0
  %v474 = vmax.f32 %v458, 0.0
  %v475 = vmax.f32 %v459, 0.0
  %v476 = vmax.f32 %v460, 0.0
  %v477 = vmax.f32 %v461, 0.0
  %v478 = vmax.f32 %v462, 0.0
  %v479 = vmax.f32 %v463, 0.0
  %v480 = vmax.f32 %v464, 0.0
  %v481 = vmax.f32 %v465, 0.0
  %v482 = vpack.c.bf16 %v467, %v466
  %v483 = vpack.c.bf16 %v469, %v468
  %v484 = vpack.c.bf16 %v471, %v470
  %v485 = vpack.c.bf16 %v473, %v472
  %v486 = vpack.c.bf16 %v475, %v474
  %v487 = vpack.c.bf16 %v477, %v476
  %v488 = vpack.c.bf16 %v479, %v478
  %v489 = vpack.c.bf16 %v481, %v480
  %v490 = vld [vmem:[%s7] sm:$0xf]
  %v491 = vld [vmem:[%s7 + $0x4] sm:$0xf]
  %v492 = vld [vmem:[%s7 + $0x8] sm:$0xf]
  %v493 = vld [vmem:[%s7 + $0xc] sm:$0xf]
  %v494 = vld [vmem:[%s8] sm:$0x1]
  %v496 = vlaneseq
  %v497 = vshrl.u32 %v496, 7
  %v498 = vsub.s32 0, %v497
  %v499 = vrot.slane %v494, %v498
  %v505 = vunpack.c.l.b16 %v490
  %v506 = vunpack.c.l.b16 %v491
  %v507 = vunpack.c.l.b16 %v492
  %v508 = vunpack.c.l.b16 %v493
  %v509 = vpack.c.b16 %v506, %v505
  %v510 = vpack.c.b16 %v508, %v507
  %v514 = vsel %vm148, %v482, 0
  %v517 = vsel %vm148, %v483, 0
  %v520 = vsel %vm148, %v484, 0
  %v523 = vsel %vm148, %v485, 0
  %v526 = vsel %vm148, %v486, 0
  %v529 = vsel %vm148, %v487, 0
  %v532 = vsel %vm148, %v488, 0
  %v535 = vsel %vm148, %v489, 0
  %537 = vmatprep.subr.bf16.mxu0 0
  %538 = vmatpush1.bf16.msra.mxu0 %v509
  %539 = vmatprep.subr.bf16.mxu0 0
  %540 = vmatpush1.bf16.msra.mxu0 %v510
  %541 = vmatprep.subr.bf16.mxu0 0
  %542 = vmatpush1.bf16.msra.mxu0 0
  %543 = vmatprep.subr.bf16.mxu0 0
  %544 = vmatpush1.bf16.msra.mxu0 0
  %545 = vmatprep.subr.bf16.mxu0 0
  %546 = vmatpush1.bf16.msra.mxu0 0
  %547 = vmatprep.subr.bf16.mxu0 0
  %548 = vmatpush1.bf16.msra.mxu0 0
  %549 = vmatprep.subr.bf16.mxu0 0
  %550 = vmatpush1.bf16.msra.mxu0 0
  %551 = vmatprep.subr.bf16.mxu0 0
  %552 = vmatpush1.bf16.msra.mxu0 0
  %553 = vmatprep.subr.bf16.mxu0 0
  %554 = vmatpush1.bf16.msra.mxu0 0
  %555 = vmatprep.subr.bf16.mxu0 0
  %556 = vmatpush1.bf16.msra.mxu0 0
  %557 = vmatprep.subr.bf16.mxu0 0
  %558 = vmatpush1.bf16.msra.mxu0 0
  %559 = vmatprep.subr.bf16.mxu0 0
  %560 = vmatpush1.bf16.msra.mxu0 0
  %561 = vmatprep.subr.bf16.mxu0 0
  %562 = vmatpush1.bf16.msra.mxu0 0
  %563 = vmatprep.subr.bf16.mxu0 0
  %564 = vmatpush1.bf16.msra.mxu0 0
  %565 = vmatprep.subr.bf16.mxu0 0
  %566 = vmatpush1.bf16.msra.mxu0 0
  %567 = vmatprep.subr.bf16.mxu0 0
  %568 = vmatpush1.bf16.msra.mxu0 0
  %569 = vmatprep.mubr.bf16.mxu0 0
  %570 = vmatmul.mubr.bf16.gmra.mrb[0].mxu0 %v514
  %v571 = vpop.f32.mrb[0].mxu0
  %v572 = vadd.f32 %v499, %v571
  %v573 = vpop.f32.mrb[0].mxu0
  %v574 = vpop.f32.mrb[0].mxu0
  %v575 = vadd.f32 %v499, %v574
  %v576 = vpop.f32.mrb[0].mxu0
  %577 = vmatprep.mubr.bf16.mxu0 0
  %578 = vmatmul.mubr.bf16.gmra.mrb[0].mxu0 %v517
  %v579 = vpop.f32.mrb[0].mxu0
  %v580 = vadd.f32 %v499, %v579
  %v581 = vpop.f32.mrb[0].mxu0
  %v582 = vpop.f32.mrb[0].mxu0
  %v583 = vadd.f32 %v499, %v582
  %v584 = vpop.f32.mrb[0].mxu0
  %585 = vmatprep.mubr.bf16.mxu0 0
  %586 = vmatmul.mubr.bf16.gmra.mrb[0].mxu0 %v520
  %v587 = vpop.f32.mrb[0].mxu0
  %v588 = vadd.f32 %v499, %v587
  %v589 = vpop.f32.mrb[0].mxu0
  %v590 = vpop.f32.mrb[0].mxu0
  %v591 = vadd.f32 %v499, %v590
  %v592 = vpop.f32.mrb[0].mxu0
  %593 = vmatprep.mubr.bf16.mxu0 0
  %594 = vmatmul.mubr.bf16.gmra.mrb[0].mxu0 %v523
  %v595 = vpop.f32.mrb[0].mxu0
  %v596 = vadd.f32 %v499, %v595
  %v597 = vpop.f32.mrb[0].mxu0
  %v598 = vpop.f32.mrb[0].mxu0
  %v599 = vadd.f32 %v499, %v598
  %v600 = vpop.f32.mrb[0].mxu0
  %601 = vmatprep.mubr.bf16.mxu0 0
  %602 = vmatmul.mubr.bf16.gmra.mrb[0].mxu0 %v526
  %v603 = vpop.f32.mrb[0].mxu0
  %v604 = vadd.f32 %v499, %v603
  %v605 = vpop.f32.mrb[0].mxu0
  %v606 = vpop.f32.mrb[0].mxu0
  %v607 = vadd.f32 %v499, %v606
  %v608 = vpop.f32.mrb[0].mxu0
  %609 = vmatprep.mubr.bf16.mxu0 0
  %610 = vmatmul.mubr.bf16.gmra.mrb[0].mxu0 %v529
  %v611 = vpop.f32.mrb[0].mxu0
  %v612 = vadd.f32 %v499, %v611
  %v613 = vpop.f32.mrb[0].mxu0
  %v614 = vpop.f32.mrb[0].mxu0
  %v615 = vadd.f32 %v499, %v614
  %v616 = vpop.f32.mrb[0].mxu0
  %617 = vmatprep.mubr.bf16.mxu0 0
  %618 = vmatmul.mubr.bf16.gmra.mrb[0].mxu0 %v532
  %v619 = vpop.f32.mrb[0].mxu0
  %v620 = vadd.f32 %v499, %v619
  %v621 = vpop.f32.mrb[0].mxu0
  %v622 = vpop.f32.mrb[0].mxu0
  %v623 = vadd.f32 %v499, %v622
  %v624 = vpop.f32.mrb[0].mxu0
  %625 = vmatprep.mubr.bf16.mxu0 0
  %626 = vmatmul.mubr.bf16.gmra.mrb[0].mxu0 %v535
  %v627 = vpop.f32.mrb[0].mxu0
  %v628 = vadd.f32 %v499, %v627
  %v629 = vpop.f32.mrb[0].mxu0
  %v630 = vpop.f32.mrb[0].mxu0
  %v631 = vadd.f32 %v499, %v630
  %v632 = vpop.f32.mrb[0].mxu0
  %633 = vdwg.mxu0
  %v634 = vpack.c.bf16 %v575, %v572
  %v635 = vpack.c.bf16 %v583, %v580
  %v636 = vpack.c.bf16 %v591, %v588
  %v637 = vpack.c.bf16 %v599, %v596
  %v638 = vpack.c.bf16 %v607, %v604
  %v639 = vpack.c.bf16 %v615, %v612
  %v640 = vpack.c.bf16 %v623, %v620
  %v641 = vpack.c.bf16 %v631, %v628
  %v642 = vld [vmem:[%s9] sm:$0xf]
  %v643 = vld [vmem:[%s9 + $0x4] sm:$0xf]
  %v644 = vld [vmem:[%s9 + $0x8] sm:$0xf]
  %v645 = vld [vmem:[%s9 + $0xc] sm:$0xf]
  %v650 = vunpack.c.l.b16 %v642
  %v651 = vunpack.c.l.b16 %v643
  %v652 = vunpack.c.l.b16 %v644
  %v653 = vunpack.c.l.b16 %v645
  %v654 = vpack.c.b16 %v651, %v650
  %v655 = vpack.c.b16 %v653, %v652
  %v659 = vsel %vm148, %v634, 0
  %v662 = vsel %vm148, %v635, 0
  %v665 = vsel %vm148, %v636, 0
  %v668 = vsel %vm148, %v637, 0
  %v671 = vsel %vm148, %v638, 0
  %v674 = vsel %vm148, %v639, 0
  %v677 = vsel %vm148, %v640, 0
  %v680 = vsel %vm148, %v641, 0
  %682 = vmatprep.subr.bf16.mxu0 0
  %683 = vmatpush1.bf16.msra.mxu0 %v654
  %684 = vmatprep.subr.bf16.mxu0 0
  %685 = vmatpush1.bf16.msra.mxu0 %v655
  %686 = vmatprep.subr.bf16.mxu0 0
  %687 = vmatpush1.bf16.msra.mxu0 0
  %688 = vmatprep.subr.bf16.mxu0 0
  %689 = vmatpush1.bf16.msra.mxu0 0
  %690 = vmatprep.subr.bf16.mxu0 0
  %691 = vmatpush1.bf16.msra.mxu0 0
  %692 = vmatprep.subr.bf16.mxu0 0
  %693 = vmatpush1.bf16.msra.mxu0 0
  %694 = vmatprep.subr.bf16.mxu0 0
  %695 = vmatpush1.bf16.msra.mxu0 0
  %696 = vmatprep.subr.bf16.mxu0 0
  %697 = vmatpush1.bf16.msra.mxu0 0
  %698 = vmatprep.subr.bf16.mxu0 0
  %699 = vmatpush1.bf16.msra.mxu0 0
  %700 = vmatprep.subr.bf16.mxu0 0
  %701 = vmatpush1.bf16.msra.mxu0 0
  %702 = vmatprep.subr.bf16.mxu0 0
  %703 = vmatpush1.bf16.msra.mxu0 0
  %704 = vmatprep.subr.bf16.mxu0 0
  %705 = vmatpush1.bf16.msra.mxu0 0
  %706 = vmatprep.subr.bf16.mxu0 0
  %707 = vmatpush1.bf16.msra.mxu0 0
  %708 = vmatprep.subr.bf16.mxu0 0
  %709 = vmatpush1.bf16.msra.mxu0 0
  %710 = vmatprep.subr.bf16.mxu0 0
  %711 = vmatpush1.bf16.msra.mxu0 0
  %712 = vmatprep.subr.bf16.mxu0 0
  %713 = vmatpush1.bf16.msra.mxu0 0
  %714 = vmatprep.mubr.bf16.mxu0 0
  %715 = vmatmul.mubr.bf16.gmra.mrb[0].mxu0 %v659
  %v716 = vpop.f32.mrb[0].mxu0
  %v717 = vadd.f32 0.0, %v716
  %v718 = vpop.f32.mrb[0].mxu0
  %v719 = vpop.f32.mrb[0].mxu0
  %v720 = vadd.f32 0.0, %v719
  %v721 = vpop.f32.mrb[0].mxu0
  %722 = vmatprep.mubr.bf16.mxu0 0
  %723 = vmatmul.mubr.bf16.gmra.mrb[0].mxu0 %v662
  %v724 = vpop.f32.mrb[0].mxu0
  %v725 = vadd.f32 0.0, %v724
  %v726 = vpop.f32.mrb[0].mxu0
  %v727 = vpop.f32.mrb[0].mxu0
  %v728 = vadd.f32 0.0, %v727
  %v729 = vpop.f32.mrb[0].mxu0
  %730 = vmatprep.mubr.bf16.mxu0 0
  %731 = vmatmul.mubr.bf16.gmra.mrb[0].mxu0 %v665
  %v732 = vpop.f32.mrb[0].mxu0
  %v733 = vadd.f32 0.0, %v732
  %v734 = vpop.f32.mrb[0].mxu0
  %v735 = vpop.f32.mrb[0].mxu0
  %v736 = vadd.f32 0.0, %v735
  %v737 = vpop.f32.mrb[0].mxu0
  %738 = vmatprep.mubr.bf16.mxu0 0
  %739 = vmatmul.mubr.bf16.gmra.mrb[0].mxu0 %v668
  %v740 = vpop.f32.mrb[0].mxu0
  %v741 = vadd.f32 0.0, %v740
  %v742 = vpop.f32.mrb[0].mxu0
  %v743 = vpop.f32.mrb[0].mxu0
  %v744 = vadd.f32 0.0, %v743
  %v745 = vpop.f32.mrb[0].mxu0
  %746 = vmatprep.mubr.bf16.mxu0 0
  %747 = vmatmul.mubr.bf16.gmra.mrb[0].mxu0 %v671
  %v748 = vpop.f32.mrb[0].mxu0
  %v749 = vadd.f32 0.0, %v748
  %v750 = vpop.f32.mrb[0].mxu0
  %v751 = vpop.f32.mrb[0].mxu0
  %v752 = vadd.f32 0.0, %v751
  %v753 = vpop.f32.mrb[0].mxu0
  %754 = vmatprep.mubr.bf16.mxu0 0
  %755 = vmatmul.mubr.bf16.gmra.mrb[0].mxu0 %v674
  %v756 = vpop.f32.mrb[0].mxu0
  %v757 = vadd.f32 0.0, %v756
  %v758 = vpop.f32.mrb[0].mxu0
  %v759 = vpop.f32.mrb[0].mxu0
  %v760 = vadd.f32 0.0, %v759
  %v761 = vpop.f32.mrb[0].mxu0
  %762 = vmatprep.mubr.bf16.mxu0 0
  %763 = vmatmul.mubr.bf16.gmra.mrb[0].mxu0 %v677
  %v764 = vpop.f32.mrb[0].mxu0
  %v765 = vadd.f32 0.0, %v764
  %v766 = vpop.f32.mrb[0].mxu0
  %v767 = vpop.f32.mrb[0].mxu0
  %v768 = vadd.f32 0.0, %v767
  %v769 = vpop.f32.mrb[0].mxu0
  %770 = vmatprep.mubr.bf16.mxu0 0
  %771 = vmatmul.mubr.bf16.gmra.mrb[0].mxu0 %v680
  %v772 = vpop.f32.mrb[0].mxu0
  %v773 = vadd.f32 0.0, %v772
  %v774 = vpop.f32.mrb[0].mxu0
  %v775 = vpop.f32.mrb[0].mxu0
  %v776 = vadd.f32 0.0, %v775
  %v777 = vpop.f32.mrb[0].mxu0
  %778 = vdwg.mxu0
  %v779 = vld [vmem:[%s2] sm:$0xf]
  %v780 = vld [vmem:[%s2 + $0x4] sm:$0xf]
  %v781 = vld [vmem:[%s10] sm:$0xf]
  %v782 = vld [vmem:[%s10 + $0x4] sm:$0xf]
  %v783 = vld [vmem:[%s10 + $0x8] sm:$0xf]
  %v784 = vld [vmem:[%s10 + $0xc] sm:$0xf]
  %v787 = vunpack.c.l.b16 %v779
  %v788 = vunpack.c.l.b16 %v780
  %v789 = vpack.c.b16 %v788, %v787
  %v794 = vunpack.c.l.b16 %v781
  %v795 = vunpack.c.l.b16 %v782
  %v796 = vunpack.c.l.b16 %v783
  %v797 = vunpack.c.l.b16 %v784
  %v798 = vpack.c.b16 %v795, %v794
  %v799 = vpack.c.b16 %v797, %v796
  %v803 = vsel %vm148, %v789, 0
  %805 = vmatprep.subr.bf16.mxu0 0
  %806 = vmatpush1.bf16.msra.mxu0 %v798
  %807 = vmatprep.subr.bf16.mxu0 0
  %808 = vmatpush1.bf16.msra.mxu0 %v799
  %809 = vmatprep.subr.bf16.mxu0 0
  %810 = vmatpush1.bf16.msra.mxu0 0
  %811 = vmatprep.subr.bf16.mxu0 0
  %812 = vmatpush1.bf16.msra.mxu0 0
  %813 = vmatprep.subr.bf16.mxu0 0
  %814 = vmatpush1.bf16.msra.mxu0 0
  %815 = vmatprep.subr.bf16.mxu0 0
  %816 = vmatpush1.bf16.msra.mxu0 0
  %817 = vmatprep.subr.bf16.mxu0 0
  %818 = vmatpush1.bf16.msra.mxu0 0
  %819 = vmatprep.subr.bf16.mxu0 0
  %820 = vmatpush1.bf16.msra.mxu0 0
  %821 = vmatprep.subr.bf16.mxu0 0
  %822 = vmatpush1.bf16.msra.mxu0 0
  %823 = vmatprep.subr.bf16.mxu0 0
  %824 = vmatpush1.bf16.msra.mxu0 0
  %825 = vmatprep.subr.bf16.mxu0 0
  %826 = vmatpush1.bf16.msra.mxu0 0
  %827 = vmatprep.subr.bf16.mxu0 0
  %828 = vmatpush1.bf16.msra.mxu0 0
  %829 = vmatprep.subr.bf16.mxu0 0
  %830 = vmatpush1.bf16.msra.mxu0 0
  %831 = vmatprep.subr.bf16.mxu0 0
  %832 = vmatpush1.bf16.msra.mxu0 0
  %833 = vmatprep.subr.bf16.mxu0 0
  %834 = vmatpush1.bf16.msra.mxu0 0
  %835 = vmatprep.subr.bf16.mxu0 0
  %836 = vmatpush1.bf16.msra.mxu0 0
  %837 = vmatprep.mubr.bf16.mxu0 0
  %838 = vmatmul.mubr.bf16.gmra.mrb[0].mxu0 %v803
  %v839 = vpop.f32.mrb[0].mxu0
  %v840 = vadd.f32 0.0, %v839
  %v841 = vpop.f32.mrb[0].mxu0
  %v842 = vpop.f32.mrb[0].mxu0
  %v843 = vadd.f32 0.0, %v842
  %v844 = vpop.f32.mrb[0].mxu0
  %845 = vdwg.mxu0
  %v846 = vld [vmem:[%s3] sm:$0xff]
  %v847 = vld [vmem:[%s3 + $0x8] sm:$0xff]
  %v848 = vld [vmem:[%s11] sm:$0x1]
  %v850 = vlaneseq
  %v851 = vshrl.u32 %v850, 7
  %v852 = vsub.s32 0, %v851
  %v853 = vrot.slane %v848, %v852
  %v855 = vld [vmem:[%s12] sm:$0x1]
  %v857 = vlaneseq
  %v858 = vshrl.u32 %v857, 7
  %v859 = vsub.s32 0, %v858
  %v860 = vrot.slane %v855, %v859
  %v862 = vld [vmem:[#allocation2] sm:$0x1]
  %v864 = vlaneseq
  %v865 = vshrl.u32 %v864, 7
  %v866 = vsub.s32 0, %v865
  %v867 = vrot.slane %v862, %v866
  %870 = vset.pattern.permute.xlu0 0
  %871 = vperm.xlu0 %870, %v846
  %v872 = vpop.permute.xlu0 %871
  %875 = vset.pattern.permute.xlu0 0
  %876 = vperm.xlu0 %875, %v847
  %v877 = vpop.permute.xlu0 %876
  %v879 = vmul.f32 %v872, %v840
  %v880 = vmul.f32 %v877, %v843
  %v881 = vadd.f32 %v717, %v879
  %v882 = vadd.f32 %v720, %v880
  %v883 = vadd.f32 %v881, %v853
  %v884 = vadd.f32 %v882, %v853
  %v885 = vmax.f32 %v883, 0.0
  %v886 = vmax.f32 %v884, 0.0
  %v887 = vmul.f32 %v885, %v860
  %v888 = vmul.f32 %v886, %v860
  %v889 = vsel %vm148, %v887, 0.0
  %890 = vadd.xlane.f32.xlu0 %v889
  %v891 = vpop.xlane.xlu0 %890
  %v892 = vsel %vm148, %v888, 0.0
  %893 = vadd.xlane.f32.xlu0 %v892
  %v894 = vpop.xlane.xlu0 %893
  %v895 = vadd.f32 %v891, %v867
  %v896 = vadd.f32 %v894, %v867
  %vm897 = vcmp.gt.f32.partialorder %v846, 0.0
  %vm898 = vcmp.gt.f32.partialorder %v847, 0.0
  %v899 = vsel %vm897, %v895, -1e+30
  %v900 = vsel %vm898, %v896, -1e+30
  %v901 = vmax.f32 %v899, -1e+30
  %v902 = vmax.f32 %v900, -1e+30
  %v903 = vsub.f32 -1e+30, %v901
  %v904 = vsub.f32 -1e+30, %v902
  %v905 = vmul.f32 %v903, 1.442695
  %v906 = vpow.pop %v905
  %v907 = vmul.f32 %v904, 1.442695
  %v908 = vpow.pop %v907
  %v909 = vsub.f32 %v899, %v901
  %v910 = vsub.f32 %v900, %v902
  %v911 = vmul.f32 %v909, 1.442695
  %v912 = vpow.pop %v911
  %v913 = vmul.f32 %v910, 1.442695
  %v914 = vpow.pop %v913
  %v915 = vmul.f32 %v912, %v846
  %v916 = vmul.f32 %v914, %v847
  %v917 = vmul.f32 %v906, 0.0
  %v918 = vmul.f32 %v908, 0.0
  %v919 = vadd.f32 %v917, %v915
  %v920 = vadd.f32 %v918, %v916
  %922 = vset.pattern.permute.xlu0 0
  %923 = vperm.xlu0 %922, %v906
  %v924 = vpop.permute.xlu0 %923
  %927 = vset.pattern.permute.xlu0 0
  %928 = vperm.xlu0 %927, %v908
  %v929 = vpop.permute.xlu0 %928
  %v931 = vmul.f32 %v924, 0.0
  %v932 = vmul.f32 %v929, 0.0
  %934 = vset.pattern.permute.xlu0 0
  %935 = vperm.xlu0 %934, %v915
  %v936 = vpop.permute.xlu0 %935
  %939 = vset.pattern.permute.xlu0 0
  %940 = vperm.xlu0 %939, %v916
  %v941 = vpop.permute.xlu0 %940
  %v943 = vmul.f32 %v936, %v572
  %v944 = vmul.f32 %v941, %v575
  %v945 = vadd.f32 %v931, %v943
  %v946 = vadd.f32 %v932, %v944
  %947 = vset.pattern.permute.xlu0 1
  %948 = vperm.xlu0 %947, %v846
  %v949 = vpop.permute.xlu0 %948
  %951 = vset.pattern.permute.xlu0 1
  %952 = vperm.xlu0 %951, %v847
  %v953 = vpop.permute.xlu0 %952
  %v955 = vmul.f32 %v949, %v840
  %v956 = vmul.f32 %v953, %v843
  %v957 = vadd.f32 %v725, %v955
  %v958 = vadd.f32 %v728, %v956
  %v959 = vadd.f32 %v957, %v853
  %v960 = vadd.f32 %v958, %v853
  %v961 = vmax.f32 %v959, 0.0
  %v962 = vmax.f32 %v960, 0.0
  %v963 = vmul.f32 %v961, %v860
  %v964 = vmul.f32 %v962, %v860
  %v965 = vsel %vm148, %v963, 0.0
  %966 = vadd.xlane.f32.xlu0 %v965
  %v967 = vpop.xlane.xlu0 %966
  %v968 = vsel %vm148, %v964, 0.0
  %969 = vadd.xlane.f32.xlu0 %v968
  %v970 = vpop.xlane.xlu0 %969
  %v971 = vadd.f32 %v967, %v867
  %v972 = vadd.f32 %v970, %v867
  %975 = vrot.lane.b32.xlu0 %v971, 1
  %v976 = vpop.permute.xlu0 %975
  %977 = vrot.lane.b32.xlu0 %v972, 1
  %v978 = vpop.permute.xlu0 %977
  %v981 = vsel %vm897, %v976, -1e+30
  %v982 = vsel %vm898, %v978, -1e+30
  %985 = vrot.lane.b32.xlu0 %v981, 127
  %v986 = vpop.permute.xlu0 %985
  %987 = vrot.lane.b32.xlu0 %v982, 127
  %v988 = vpop.permute.xlu0 %987
  %v991 = vmax.f32 %v901, %v986
  %v992 = vmax.f32 %v902, %v988
  %v993 = vsub.f32 %v901, %v991
  %v994 = vsub.f32 %v902, %v992
  %v995 = vmul.f32 %v993, 1.442695
  %v996 = vpow.pop %v995
  %v997 = vmul.f32 %v994, 1.442695
  %v998 = vpow.pop %v997
  %1001 = vrot.lane.b32.xlu0 %v991, 1
  %v1002 = vpop.permute.xlu0 %1001
  %1003 = vrot.lane.b32.xlu0 %v992, 1
  %v1004 = vpop.permute.xlu0 %1003
  %v1007 = vsub.f32 %v981, %v1002
  %v1008 = vsub.f32 %v982, %v1004
  %v1009 = vmul.f32 %v1007, 1.442695
  %v1010 = vpow.pop %v1009
  %v1011 = vmul.f32 %v1008, 1.442695
  %v1012 = vpow.pop %v1011
  %v1013 = vmul.f32 %v1010, %v846
  %v1014 = vmul.f32 %v1012, %v847
  %v1015 = vmul.f32 %v919, %v996
  %v1016 = vmul.f32 %v920, %v998
  %1019 = vrot.lane.b32.xlu0 %v1013, 127
  %v1020 = vpop.permute.xlu0 %1019
  %1021 = vrot.lane.b32.xlu0 %v1014, 127
  %v1022 = vpop.permute.xlu0 %1021
  %v1025 = vadd.f32 %v1015, %v1020
  %v1026 = vadd.f32 %v1016, %v1022
  %1028 = vset.pattern.permute.xlu0 0
  %1029 = vperm.xlu0 %1028, %v996
  %v1030 = vpop.permute.xlu0 %1029
  %1033 = vset.pattern.permute.xlu0 0
  %1034 = vperm.xlu0 %1033, %v998
  %v1035 = vpop.permute.xlu0 %1034
  %v1037 = vmul.f32 %v945, %v1030
  %v1038 = vmul.f32 %v946, %v1035
  %1039 = vset.pattern.permute.xlu0 1
  %1040 = vperm.xlu0 %1039, %v1013
  %v1041 = vpop.permute.xlu0 %1040
  %1043 = vset.pattern.permute.xlu0 1
  %1044 = vperm.xlu0 %1043, %v1014
  %v1045 = vpop.permute.xlu0 %1044
  %v1047 = vmul.f32 %v1041, %v580
  %v1048 = vmul.f32 %v1045, %v583
  %v1049 = vadd.f32 %v1037, %v1047
  %v1050 = vadd.f32 %v1038, %v1048
  %1051 = vset.pattern.permute.xlu0 2
  %1052 = vperm.xlu0 %1051, %v846
  %v1053 = vpop.permute.xlu0 %1052
  %1055 = vset.pattern.permute.xlu0 2
  %1056 = vperm.xlu0 %1055, %v847
  %v1057 = vpop.permute.xlu0 %1056
  %v1059 = vmul.f32 %v1053, %v840
  %v1060 = vmul.f32 %v1057, %v843
  %v1061 = vadd.f32 %v733, %v1059
  %v1062 = vadd.f32 %v736, %v1060
  %v1063 = vadd.f32 %v1061, %v853
  %v1064 = vadd.f32 %v1062, %v853
  %v1065 = vmax.f32 %v1063, 0.0
  %v1066 = vmax.f32 %v1064, 0.0
  %v1067 = vmul.f32 %v1065, %v860
  %v1068 = vmul.f32 %v1066, %v860
  %v1069 = vsel %vm148, %v1067, 0.0
  %1070 = vadd.xlane.f32.xlu0 %v1069
  %v1071 = vpop.xlane.xlu0 %1070
  %v1072 = vsel %vm148, %v1068, 0.0
  %1073 = vadd.xlane.f32.xlu0 %v1072
  %v1074 = vpop.xlane.xlu0 %1073
  %v1075 = vadd.f32 %v1071, %v867
  %v1076 = vadd.f32 %v1074, %v867
  %1079 = vrot.lane.b32.xlu0 %v1075, 2
  %v1080 = vpop.permute.xlu0 %1079
  %1081 = vrot.lane.b32.xlu0 %v1076, 2
  %v1082 = vpop.permute.xlu0 %1081
  %v1085 = vsel %vm897, %v1080, -1e+30
  %v1086 = vsel %vm898, %v1082, -1e+30
  %1089 = vrot.lane.b32.xlu0 %v1085, 126
  %v1090 = vpop.permute.xlu0 %1089
  %1091 = vrot.lane.b32.xlu0 %v1086, 126
  %v1092 = vpop.permute.xlu0 %1091
  %v1095 = vmax.f32 %v991, %v1090
  %v1096 = vmax.f32 %v992, %v1092
  %v1097 = vsub.f32 %v991, %v1095
  %v1098 = vsub.f32 %v992, %v1096
  %v1099 = vmul.f32 %v1097, 1.442695
  %v1100 = vpow.pop %v1099
  %v1101 = vmul.f32 %v1098, 1.442695
  %v1102 = vpow.pop %v1101
  %1105 = vrot.lane.b32.xlu0 %v1095, 2
  %v1106 = vpop.permute.xlu0 %1105
  %1107 = vrot.lane.b32.xlu0 %v1096, 2
  %v1108 = vpop.permute.xlu0 %1107
  %v1111 = vsub.f32 %v1085, %v1106
  %v1112 = vsub.f32 %v1086, %v1108
  %v1113 = vmul.f32 %v1111, 1.442695
  %v1114 = vpow.pop %v1113
  %v1115 = vmul.f32 %v1112, 1.442695
  %v1116 = vpow.pop %v1115
  %v1117 = vmul.f32 %v1114, %v846
  %v1118 = vmul.f32 %v1116, %v847
  %v1119 = vmul.f32 %v1025, %v1100
  %v1120 = vmul.f32 %v1026, %v1102
  %1123 = vrot.lane.b32.xlu0 %v1117, 126
  %v1124 = vpop.permute.xlu0 %1123
  %1125 = vrot.lane.b32.xlu0 %v1118, 126
  %v1126 = vpop.permute.xlu0 %1125
  %v1129 = vadd.f32 %v1119, %v1124
  %v1130 = vadd.f32 %v1120, %v1126
  %1132 = vset.pattern.permute.xlu0 0
  %1133 = vperm.xlu0 %1132, %v1100
  %v1134 = vpop.permute.xlu0 %1133
  %1137 = vset.pattern.permute.xlu0 0
  %1138 = vperm.xlu0 %1137, %v1102
  %v1139 = vpop.permute.xlu0 %1138
  %v1141 = vmul.f32 %v1049, %v1134
  %v1142 = vmul.f32 %v1050, %v1139
  %1143 = vset.pattern.permute.xlu0 2
  %1144 = vperm.xlu0 %1143, %v1117
  %v1145 = vpop.permute.xlu0 %1144
  %1147 = vset.pattern.permute.xlu0 2
  %1148 = vperm.xlu0 %1147, %v1118
  %v1149 = vpop.permute.xlu0 %1148
  %v1151 = vmul.f32 %v1145, %v588
  %v1152 = vmul.f32 %v1149, %v591
  %v1153 = vadd.f32 %v1141, %v1151
  %v1154 = vadd.f32 %v1142, %v1152
  %1155 = vset.pattern.permute.xlu0 3
  %1156 = vperm.xlu0 %1155, %v846
  %v1157 = vpop.permute.xlu0 %1156
  %1159 = vset.pattern.permute.xlu0 3
  %1160 = vperm.xlu0 %1159, %v847
  %v1161 = vpop.permute.xlu0 %1160
  %v1163 = vmul.f32 %v1157, %v840
  %v1164 = vmul.f32 %v1161, %v843
  %v1165 = vadd.f32 %v741, %v1163
  %v1166 = vadd.f32 %v744, %v1164
  %v1167 = vadd.f32 %v1165, %v853
  %v1168 = vadd.f32 %v1166, %v853
  %v1169 = vmax.f32 %v1167, 0.0
  %v1170 = vmax.f32 %v1168, 0.0
  %v1171 = vmul.f32 %v1169, %v860
  %v1172 = vmul.f32 %v1170, %v860
  %v1173 = vsel %vm148, %v1171, 0.0
  %1174 = vadd.xlane.f32.xlu0 %v1173
  %v1175 = vpop.xlane.xlu0 %1174
  %v1176 = vsel %vm148, %v1172, 0.0
  %1177 = vadd.xlane.f32.xlu0 %v1176
  %v1178 = vpop.xlane.xlu0 %1177
  %v1179 = vadd.f32 %v1175, %v867
  %v1180 = vadd.f32 %v1178, %v867
  %1183 = vrot.lane.b32.xlu0 %v1179, 3
  %v1184 = vpop.permute.xlu0 %1183
  %1185 = vrot.lane.b32.xlu0 %v1180, 3
  %v1186 = vpop.permute.xlu0 %1185
  %v1189 = vsel %vm897, %v1184, -1e+30
  %v1190 = vsel %vm898, %v1186, -1e+30
  %1193 = vrot.lane.b32.xlu0 %v1189, 125
  %v1194 = vpop.permute.xlu0 %1193
  %1195 = vrot.lane.b32.xlu0 %v1190, 125
  %v1196 = vpop.permute.xlu0 %1195
  %v1199 = vmax.f32 %v1095, %v1194
  %v1200 = vmax.f32 %v1096, %v1196
  %v1201 = vsub.f32 %v1095, %v1199
  %v1202 = vsub.f32 %v1096, %v1200
  %v1203 = vmul.f32 %v1201, 1.442695
  %v1204 = vpow.pop %v1203
  %v1205 = vmul.f32 %v1202, 1.442695
  %v1206 = vpow.pop %v1205
  %1209 = vrot.lane.b32.xlu0 %v1199, 3
  %v1210 = vpop.permute.xlu0 %1209
  %1211 = vrot.lane.b32.xlu0 %v1200, 3
  %v1212 = vpop.permute.xlu0 %1211
  %v1215 = vsub.f32 %v1189, %v1210
  %v1216 = vsub.f32 %v1190, %v1212
  %v1217 = vmul.f32 %v1215, 1.442695
  %v1218 = vpow.pop %v1217
  %v1219 = vmul.f32 %v1216, 1.442695
  %v1220 = vpow.pop %v1219
  %v1221 = vmul.f32 %v1218, %v846
  %v1222 = vmul.f32 %v1220, %v847
  %v1223 = vmul.f32 %v1129, %v1204
  %v1224 = vmul.f32 %v1130, %v1206
  %1227 = vrot.lane.b32.xlu0 %v1221, 125
  %v1228 = vpop.permute.xlu0 %1227
  %1229 = vrot.lane.b32.xlu0 %v1222, 125
  %v1230 = vpop.permute.xlu0 %1229
  %v1233 = vadd.f32 %v1223, %v1228
  %v1234 = vadd.f32 %v1224, %v1230
  %1236 = vset.pattern.permute.xlu0 0
  %1237 = vperm.xlu0 %1236, %v1204
  %v1238 = vpop.permute.xlu0 %1237
  %1241 = vset.pattern.permute.xlu0 0
  %1242 = vperm.xlu0 %1241, %v1206
  %v1243 = vpop.permute.xlu0 %1242
  %v1245 = vmul.f32 %v1153, %v1238
  %v1246 = vmul.f32 %v1154, %v1243
  %1247 = vset.pattern.permute.xlu0 3
  %1248 = vperm.xlu0 %1247, %v1221
  %v1249 = vpop.permute.xlu0 %1248
  %1251 = vset.pattern.permute.xlu0 3
  %1252 = vperm.xlu0 %1251, %v1222
  %v1253 = vpop.permute.xlu0 %1252
  %v1255 = vmul.f32 %v1249, %v596
  %v1256 = vmul.f32 %v1253, %v599
  %v1257 = vadd.f32 %v1245, %v1255
  %v1258 = vadd.f32 %v1246, %v1256
  %1259 = vset.pattern.permute.xlu0 4
  %1260 = vperm.xlu0 %1259, %v846
  %v1261 = vpop.permute.xlu0 %1260
  %1263 = vset.pattern.permute.xlu0 4
  %1264 = vperm.xlu0 %1263, %v847
  %v1265 = vpop.permute.xlu0 %1264
  %v1267 = vmul.f32 %v1261, %v840
  %v1268 = vmul.f32 %v1265, %v843
  %v1269 = vadd.f32 %v749, %v1267
  %v1270 = vadd.f32 %v752, %v1268
  %v1271 = vadd.f32 %v1269, %v853
  %v1272 = vadd.f32 %v1270, %v853
  %v1273 = vmax.f32 %v1271, 0.0
  %v1274 = vmax.f32 %v1272, 0.0
  %v1275 = vmul.f32 %v1273, %v860
  %v1276 = vmul.f32 %v1274, %v860
  %v1277 = vsel %vm148, %v1275, 0.0
  %1278 = vadd.xlane.f32.xlu0 %v1277
  %v1279 = vpop.xlane.xlu0 %1278
  %v1280 = vsel %vm148, %v1276, 0.0
  %1281 = vadd.xlane.f32.xlu0 %v1280
  %v1282 = vpop.xlane.xlu0 %1281
  %v1283 = vadd.f32 %v1279, %v867
  %v1284 = vadd.f32 %v1282, %v867
  %1287 = vrot.lane.b32.xlu0 %v1283, 4
  %v1288 = vpop.permute.xlu0 %1287
  %1289 = vrot.lane.b32.xlu0 %v1284, 4
  %v1290 = vpop.permute.xlu0 %1289
  %v1293 = vsel %vm897, %v1288, -1e+30
  %v1294 = vsel %vm898, %v1290, -1e+30
  %1297 = vrot.lane.b32.xlu0 %v1293, 124
  %v1298 = vpop.permute.xlu0 %1297
  %1299 = vrot.lane.b32.xlu0 %v1294, 124
  %v1300 = vpop.permute.xlu0 %1299
  %v1303 = vmax.f32 %v1199, %v1298
  %v1304 = vmax.f32 %v1200, %v1300
  %v1305 = vsub.f32 %v1199, %v1303
  %v1306 = vsub.f32 %v1200, %v1304
  %v1307 = vmul.f32 %v1305, 1.442695
  %v1308 = vpow.pop %v1307
  %v1309 = vmul.f32 %v1306, 1.442695
  %v1310 = vpow.pop %v1309
  %1313 = vrot.lane.b32.xlu0 %v1303, 4
  %v1314 = vpop.permute.xlu0 %1313
  %1315 = vrot.lane.b32.xlu0 %v1304, 4
  %v1316 = vpop.permute.xlu0 %1315
  %v1319 = vsub.f32 %v1293, %v1314
  %v1320 = vsub.f32 %v1294, %v1316
  %v1321 = vmul.f32 %v1319, 1.442695
  %v1322 = vpow.pop %v1321
  %v1323 = vmul.f32 %v1320, 1.442695
  %v1324 = vpow.pop %v1323
  %v1325 = vmul.f32 %v1322, %v846
  %v1326 = vmul.f32 %v1324, %v847
  %v1327 = vmul.f32 %v1233, %v1308
  %v1328 = vmul.f32 %v1234, %v1310
  %1331 = vrot.lane.b32.xlu0 %v1325, 124
  %v1332 = vpop.permute.xlu0 %1331
  %1333 = vrot.lane.b32.xlu0 %v1326, 124
  %v1334 = vpop.permute.xlu0 %1333
  %v1337 = vadd.f32 %v1327, %v1332
  %v1338 = vadd.f32 %v1328, %v1334
  %1340 = vset.pattern.permute.xlu0 0
  %1341 = vperm.xlu0 %1340, %v1308
  %v1342 = vpop.permute.xlu0 %1341
  %1345 = vset.pattern.permute.xlu0 0
  %1346 = vperm.xlu0 %1345, %v1310
  %v1347 = vpop.permute.xlu0 %1346
  %v1349 = vmul.f32 %v1257, %v1342
  %v1350 = vmul.f32 %v1258, %v1347
  %1351 = vset.pattern.permute.xlu0 4
  %1352 = vperm.xlu0 %1351, %v1325
  %v1353 = vpop.permute.xlu0 %1352
  %1355 = vset.pattern.permute.xlu0 4
  %1356 = vperm.xlu0 %1355, %v1326
  %v1357 = vpop.permute.xlu0 %1356
  %v1359 = vmul.f32 %v1353, %v604
  %v1360 = vmul.f32 %v1357, %v607
  %v1361 = vadd.f32 %v1349, %v1359
  %v1362 = vadd.f32 %v1350, %v1360
  %1363 = vset.pattern.permute.xlu0 5
  %1364 = vperm.xlu0 %1363, %v846
  %v1365 = vpop.permute.xlu0 %1364
  %1367 = vset.pattern.permute.xlu0 5
  %1368 = vperm.xlu0 %1367, %v847
  %v1369 = vpop.permute.xlu0 %1368
  %v1371 = vmul.f32 %v1365, %v840
  %v1372 = vmul.f32 %v1369, %v843
  %v1373 = vadd.f32 %v757, %v1371
  %v1374 = vadd.f32 %v760, %v1372
  %v1375 = vadd.f32 %v1373, %v853
  %v1376 = vadd.f32 %v1374, %v853
  %v1377 = vmax.f32 %v1375, 0.0
  %v1378 = vmax.f32 %v1376, 0.0
  %v1379 = vmul.f32 %v1377, %v860
  %v1380 = vmul.f32 %v1378, %v860
  %v1381 = vsel %vm148, %v1379, 0.0
  %1382 = vadd.xlane.f32.xlu0 %v1381
  %v1383 = vpop.xlane.xlu0 %1382
  %v1384 = vsel %vm148, %v1380, 0.0
  %1385 = vadd.xlane.f32.xlu0 %v1384
  %v1386 = vpop.xlane.xlu0 %1385
  %v1387 = vadd.f32 %v1383, %v867
  %v1388 = vadd.f32 %v1386, %v867
  %1391 = vrot.lane.b32.xlu0 %v1387, 5
  %v1392 = vpop.permute.xlu0 %1391
  %1393 = vrot.lane.b32.xlu0 %v1388, 5
  %v1394 = vpop.permute.xlu0 %1393
  %v1397 = vsel %vm897, %v1392, -1e+30
  %v1398 = vsel %vm898, %v1394, -1e+30
  %1401 = vrot.lane.b32.xlu0 %v1397, 123
  %v1402 = vpop.permute.xlu0 %1401
  %1403 = vrot.lane.b32.xlu0 %v1398, 123
  %v1404 = vpop.permute.xlu0 %1403
  %v1407 = vmax.f32 %v1303, %v1402
  %v1408 = vmax.f32 %v1304, %v1404
  %v1409 = vsub.f32 %v1303, %v1407
  %v1410 = vsub.f32 %v1304, %v1408
  %v1411 = vmul.f32 %v1409, 1.442695
  %v1412 = vpow.pop %v1411
  %v1413 = vmul.f32 %v1410, 1.442695
  %v1414 = vpow.pop %v1413
  %1417 = vrot.lane.b32.xlu0 %v1407, 5
  %v1418 = vpop.permute.xlu0 %1417
  %1419 = vrot.lane.b32.xlu0 %v1408, 5
  %v1420 = vpop.permute.xlu0 %1419
  %v1423 = vsub.f32 %v1397, %v1418
  %v1424 = vsub.f32 %v1398, %v1420
  %v1425 = vmul.f32 %v1423, 1.442695
  %v1426 = vpow.pop %v1425
  %v1427 = vmul.f32 %v1424, 1.442695
  %v1428 = vpow.pop %v1427
  %v1429 = vmul.f32 %v1426, %v846
  %v1430 = vmul.f32 %v1428, %v847
  %v1431 = vmul.f32 %v1337, %v1412
  %v1432 = vmul.f32 %v1338, %v1414
  %1435 = vrot.lane.b32.xlu0 %v1429, 123
  %v1436 = vpop.permute.xlu0 %1435
  %1437 = vrot.lane.b32.xlu0 %v1430, 123
  %v1438 = vpop.permute.xlu0 %1437
  %v1441 = vadd.f32 %v1431, %v1436
  %v1442 = vadd.f32 %v1432, %v1438
  %1444 = vset.pattern.permute.xlu0 0
  %1445 = vperm.xlu0 %1444, %v1412
  %v1446 = vpop.permute.xlu0 %1445
  %1449 = vset.pattern.permute.xlu0 0
  %1450 = vperm.xlu0 %1449, %v1414
  %v1451 = vpop.permute.xlu0 %1450
  %v1453 = vmul.f32 %v1361, %v1446
  %v1454 = vmul.f32 %v1362, %v1451
  %1455 = vset.pattern.permute.xlu0 5
  %1456 = vperm.xlu0 %1455, %v1429
  %v1457 = vpop.permute.xlu0 %1456
  %1459 = vset.pattern.permute.xlu0 5
  %1460 = vperm.xlu0 %1459, %v1430
  %v1461 = vpop.permute.xlu0 %1460
  %v1463 = vmul.f32 %v1457, %v612
  %v1464 = vmul.f32 %v1461, %v615
  %v1465 = vadd.f32 %v1453, %v1463
  %v1466 = vadd.f32 %v1454, %v1464
  %1467 = vset.pattern.permute.xlu0 6
  %1468 = vperm.xlu0 %1467, %v846
  %v1469 = vpop.permute.xlu0 %1468
  %1471 = vset.pattern.permute.xlu0 6
  %1472 = vperm.xlu0 %1471, %v847
  %v1473 = vpop.permute.xlu0 %1472
  %v1475 = vmul.f32 %v1469, %v840
  %v1476 = vmul.f32 %v1473, %v843
  %v1477 = vadd.f32 %v765, %v1475
  %v1478 = vadd.f32 %v768, %v1476
  %v1479 = vadd.f32 %v1477, %v853
  %v1480 = vadd.f32 %v1478, %v853
  %v1481 = vmax.f32 %v1479, 0.0
  %v1482 = vmax.f32 %v1480, 0.0
  %v1483 = vmul.f32 %v1481, %v860
  %v1484 = vmul.f32 %v1482, %v860
  %v1485 = vsel %vm148, %v1483, 0.0
  %1486 = vadd.xlane.f32.xlu0 %v1485
  %v1487 = vpop.xlane.xlu0 %1486
  %v1488 = vsel %vm148, %v1484, 0.0
  %1489 = vadd.xlane.f32.xlu0 %v1488
  %v1490 = vpop.xlane.xlu0 %1489
  %v1491 = vadd.f32 %v1487, %v867
  %v1492 = vadd.f32 %v1490, %v867
  %1495 = vrot.lane.b32.xlu0 %v1491, 6
  %v1496 = vpop.permute.xlu0 %1495
  %1497 = vrot.lane.b32.xlu0 %v1492, 6
  %v1498 = vpop.permute.xlu0 %1497
  %v1501 = vsel %vm897, %v1496, -1e+30
  %v1502 = vsel %vm898, %v1498, -1e+30
  %1505 = vrot.lane.b32.xlu0 %v1501, 122
  %v1506 = vpop.permute.xlu0 %1505
  %1507 = vrot.lane.b32.xlu0 %v1502, 122
  %v1508 = vpop.permute.xlu0 %1507
  %v1511 = vmax.f32 %v1407, %v1506
  %v1512 = vmax.f32 %v1408, %v1508
  %v1513 = vsub.f32 %v1407, %v1511
  %v1514 = vsub.f32 %v1408, %v1512
  %v1515 = vmul.f32 %v1513, 1.442695
  %v1516 = vpow.pop %v1515
  %v1517 = vmul.f32 %v1514, 1.442695
  %v1518 = vpow.pop %v1517
  %1521 = vrot.lane.b32.xlu0 %v1511, 6
  %v1522 = vpop.permute.xlu0 %1521
  %1523 = vrot.lane.b32.xlu0 %v1512, 6
  %v1524 = vpop.permute.xlu0 %1523
  %v1527 = vsub.f32 %v1501, %v1522
  %v1528 = vsub.f32 %v1502, %v1524
  %v1529 = vmul.f32 %v1527, 1.442695
  %v1530 = vpow.pop %v1529
  %v1531 = vmul.f32 %v1528, 1.442695
  %v1532 = vpow.pop %v1531
  %v1533 = vmul.f32 %v1530, %v846
  %v1534 = vmul.f32 %v1532, %v847
  %v1535 = vmul.f32 %v1441, %v1516
  %v1536 = vmul.f32 %v1442, %v1518
  %1539 = vrot.lane.b32.xlu0 %v1533, 122
  %v1540 = vpop.permute.xlu0 %1539
  %1541 = vrot.lane.b32.xlu0 %v1534, 122
  %v1542 = vpop.permute.xlu0 %1541
  %v1545 = vadd.f32 %v1535, %v1540
  %v1546 = vadd.f32 %v1536, %v1542
  %1548 = vset.pattern.permute.xlu0 0
  %1549 = vperm.xlu0 %1548, %v1516
  %v1550 = vpop.permute.xlu0 %1549
  %1553 = vset.pattern.permute.xlu0 0
  %1554 = vperm.xlu0 %1553, %v1518
  %v1555 = vpop.permute.xlu0 %1554
  %v1557 = vmul.f32 %v1465, %v1550
  %v1558 = vmul.f32 %v1466, %v1555
  %1559 = vset.pattern.permute.xlu0 6
  %1560 = vperm.xlu0 %1559, %v1533
  %v1561 = vpop.permute.xlu0 %1560
  %1563 = vset.pattern.permute.xlu0 6
  %1564 = vperm.xlu0 %1563, %v1534
  %v1565 = vpop.permute.xlu0 %1564
  %v1567 = vmul.f32 %v1561, %v620
  %v1568 = vmul.f32 %v1565, %v623
  %v1569 = vadd.f32 %v1557, %v1567
  %v1570 = vadd.f32 %v1558, %v1568
  %1571 = vset.pattern.permute.xlu0 7
  %1572 = vperm.xlu0 %1571, %v846
  %v1573 = vpop.permute.xlu0 %1572
  %1575 = vset.pattern.permute.xlu0 7
  %1576 = vperm.xlu0 %1575, %v847
  %v1577 = vpop.permute.xlu0 %1576
  %v1579 = vmul.f32 %v1573, %v840
  %v1580 = vmul.f32 %v1577, %v843
  %v1581 = vadd.f32 %v773, %v1579
  %v1582 = vadd.f32 %v776, %v1580
  %v1583 = vadd.f32 %v1581, %v853
  %v1584 = vadd.f32 %v1582, %v853
  %v1585 = vmax.f32 %v1583, 0.0
  %v1586 = vmax.f32 %v1584, 0.0
  %v1587 = vmul.f32 %v1585, %v860
  %v1588 = vmul.f32 %v1586, %v860
  %v1589 = vsel %vm148, %v1587, 0.0
  %1590 = vadd.xlane.f32.xlu0 %v1589
  %v1591 = vpop.xlane.xlu0 %1590
  %v1592 = vsel %vm148, %v1588, 0.0
  %1593 = vadd.xlane.f32.xlu0 %v1592
  %v1594 = vpop.xlane.xlu0 %1593
  %v1595 = vadd.f32 %v1591, %v867
  %v1596 = vadd.f32 %v1594, %v867
  %1599 = vrot.lane.b32.xlu0 %v1595, 7
  %v1600 = vpop.permute.xlu0 %1599
  %1601 = vrot.lane.b32.xlu0 %v1596, 7
  %v1602 = vpop.permute.xlu0 %1601
  %v1605 = vsel %vm897, %v1600, -1e+30
  %v1606 = vsel %vm898, %v1602, -1e+30
  %1609 = vrot.lane.b32.xlu0 %v1605, 121
  %v1610 = vpop.permute.xlu0 %1609
  %1611 = vrot.lane.b32.xlu0 %v1606, 121
  %v1612 = vpop.permute.xlu0 %1611
  %v1615 = vmax.f32 %v1511, %v1610
  %v1616 = vmax.f32 %v1512, %v1612
  %v1617 = vsub.f32 %v1511, %v1615
  %v1618 = vsub.f32 %v1512, %v1616
  %v1619 = vmul.f32 %v1617, 1.442695
  %v1620 = vpow.pop %v1619
  %v1621 = vmul.f32 %v1618, 1.442695
  %v1622 = vpow.pop %v1621
  %1625 = vrot.lane.b32.xlu0 %v1615, 7
  %v1626 = vpop.permute.xlu0 %1625
  %1627 = vrot.lane.b32.xlu0 %v1616, 7
  %v1628 = vpop.permute.xlu0 %1627
  %v1631 = vsub.f32 %v1605, %v1626
  %v1632 = vsub.f32 %v1606, %v1628
  %v1633 = vmul.f32 %v1631, 1.442695
  %v1634 = vpow.pop %v1633
  %v1635 = vmul.f32 %v1632, 1.442695
  %v1636 = vpow.pop %v1635
  %v1637 = vmul.f32 %v1634, %v846
  %v1638 = vmul.f32 %v1636, %v847
  %v1639 = vmul.f32 %v1545, %v1620
  %v1640 = vmul.f32 %v1546, %v1622
  %1643 = vrot.lane.b32.xlu0 %v1637, 121
  %v1644 = vpop.permute.xlu0 %1643
  %1645 = vrot.lane.b32.xlu0 %v1638, 121
  %v1646 = vpop.permute.xlu0 %1645
  %v1649 = vadd.f32 %v1639, %v1644
  %v1650 = vadd.f32 %v1640, %v1646
  %1652 = vset.pattern.permute.xlu0 0
  %1653 = vperm.xlu0 %1652, %v1620
  %v1654 = vpop.permute.xlu0 %1653
  %1657 = vset.pattern.permute.xlu0 0
  %1658 = vperm.xlu0 %1657, %v1622
  %v1659 = vpop.permute.xlu0 %1658
  %v1661 = vmul.f32 %v1569, %v1654
  %v1662 = vmul.f32 %v1570, %v1659
  %1663 = vset.pattern.permute.xlu0 7
  %1664 = vperm.xlu0 %1663, %v1637
  %v1665 = vpop.permute.xlu0 %1664
  %1667 = vset.pattern.permute.xlu0 7
  %1668 = vperm.xlu0 %1667, %v1638
  %v1669 = vpop.permute.xlu0 %1668
  %v1671 = vmul.f32 %v1665, %v628
  %v1672 = vmul.f32 %v1669, %v631
  %v1673 = vadd.f32 %v1661, %v1671
  %v1674 = vadd.f32 %v1662, %v1672
  %v1675 = vadd.f32 %v1649, 1e-10
  %v1676 = vadd.f32 %v1650, 1e-10
  %v1677 = vrcp.pop %v1675
  %v1678 = vrcp.pop %v1676
  %1680 = vset.pattern.permute.xlu0 0
  %1681 = vperm.xlu0 %1680, %v1677
  %v1682 = vpop.permute.xlu0 %1681
  %1685 = vset.pattern.permute.xlu0 0
  %1686 = vperm.xlu0 %1685, %v1678
  %v1687 = vpop.permute.xlu0 %1686
  %v1689 = vmul.f32 %v1673, %v1682
  %v1690 = vmul.f32 %v1674, %v1687
  %v1691 = vpack.c.bf16 %v1690, %v1689
  %v1692 = vld [vmem:[%s14] sm:$0xf]
  %v1693 = vld [vmem:[%s14 + $0x4] sm:$0xf]
  %v1694 = vld [vmem:[%s14 + $0x8] sm:$0xf]
  %v1695 = vld [vmem:[%s14 + $0xc] sm:$0xf]
  %v1696 = vld [vmem:[%s15] sm:$0x1]
  %v1698 = vlaneseq
  %v1699 = vshrl.u32 %v1698, 7
  %v1700 = vsub.s32 0, %v1699
  %v1701 = vrot.slane %v1696, %v1700
  %v1707 = vunpack.c.l.b16 %v1692
  %v1708 = vunpack.c.l.b16 %v1693
  %v1709 = vunpack.c.l.b16 %v1694
  %v1710 = vunpack.c.l.b16 %v1695
  %v1711 = vpack.c.b16 %v1708, %v1707
  %v1712 = vpack.c.b16 %v1710, %v1709
  %v1716 = vsel %vm148, %v1691, 0
  %1718 = vmatprep.subr.bf16.mxu0 0
  %1719 = vmatpush1.bf16.msra.mxu0 %v1711
  %1720 = vmatprep.subr.bf16.mxu0 0
  %1721 = vmatpush1.bf16.msra.mxu0 %v1712
  %1722 = vmatprep.subr.bf16.mxu0 0
  %1723 = vmatpush1.bf16.msra.mxu0 0
  %1724 = vmatprep.subr.bf16.mxu0 0
  %1725 = vmatpush1.bf16.msra.mxu0 0
  %1726 = vmatprep.subr.bf16.mxu0 0
  %1727 = vmatpush1.bf16.msra.mxu0 0
  %1728 = vmatprep.subr.bf16.mxu0 0
  %1729 = vmatpush1.bf16.msra.mxu0 0
  %1730 = vmatprep.subr.bf16.mxu0 0
  %1731 = vmatpush1.bf16.msra.mxu0 0
  %1732 = vmatprep.subr.bf16.mxu0 0
  %1733 = vmatpush1.bf16.msra.mxu0 0
  %1734 = vmatprep.subr.bf16.mxu0 0
  %1735 = vmatpush1.bf16.msra.mxu0 0
  %1736 = vmatprep.subr.bf16.mxu0 0
  %1737 = vmatpush1.bf16.msra.mxu0 0
  %1738 = vmatprep.subr.bf16.mxu0 0
  %1739 = vmatpush1.bf16.msra.mxu0 0
  %1740 = vmatprep.subr.bf16.mxu0 0
  %1741 = vmatpush1.bf16.msra.mxu0 0
  %1742 = vmatprep.subr.bf16.mxu0 0
  %1743 = vmatpush1.bf16.msra.mxu0 0
  %1744 = vmatprep.subr.bf16.mxu0 0
  %1745 = vmatpush1.bf16.msra.mxu0 0
  %1746 = vmatprep.subr.bf16.mxu0 0
  %1747 = vmatpush1.bf16.msra.mxu0 0
  %1748 = vmatprep.subr.bf16.mxu0 0
  %1749 = vmatpush1.bf16.msra.mxu0 0
  %1750 = vmatprep.mubr.bf16.mxu0 0
  %1751 = vmatmul.mubr.bf16.gmra.mrb[0].mxu0 %v1716
  %v1752 = vpop.f32.mrb[0].mxu0
  %v1753 = vadd.f32 %v1701, %v1752
  %v1754 = vpop.f32.mrb[0].mxu0
  %v1755 = vpop.f32.mrb[0].mxu0
  %v1756 = vadd.f32 %v1701, %v1755
  %v1757 = vpop.f32.mrb[0].mxu0
  %1758 = vdwg.mxu0
  %v1759 = vmax.f32 %v1753, 0.0
  %v1760 = vmax.f32 %v1756, 0.0
  %v1761 = vpack.c.bf16 %v1760, %v1759
  %v1763 = vunpack.c.l.b16 %v1761
  %v1764 = vunpack.c.h.b16 %v1761
  %v1765 = vpack.c.b16 %v1763, %v1763
  %v1766 = vpack.c.b16 %v1764, %v1764
  %vm1769 = vcmask 257024
  %1770 = vst.msk [vmem:[%s16] sm:$0xf] %vm1769, %v1765
  %1771 = vst.msk [vmem:[%s16 + $0x4] sm:$0xf] %vm1769, %v1766
  // Predicated region
  $region66: #{gnn_forward.5} parent=0 // pred_check
    _
  $region67: #{gnn_forward.5} parent=0 // pred_check_branch
    %1773 = sbr.rel (0) target = $region69
  $region68: #{gnn_forward.5} parent=0 // pred_region
    _
  $region69: #{gnn_forward.5} parent=0 // pred_fallthru
    _
  // Predicated region
  $region70: #{gnn_forward.5} parent=0 // pred_check
    _
  $region71: #{gnn_forward.5} parent=0 // pred_check_branch
    %1775 = sbr.rel (0) target = $region73
  $region72: #{gnn_forward.5} parent=0 // pred_region
    _
  $region73: #{gnn_forward.5} parent=0 // pred_fallthru
    _

// kernel: gnn_forward.9
$region0: #{gnn_forward.9}
  #allocation0 [shape = 'u32[]', space=smem, size = 0x4, offset = 0x4, fixed_abs, tag = 'smem constant byte address 0x4 - core index']
  #allocation1 [shape = 'u32[144,128]{1,0:T(1,128)}', space=vmem, size = 0x12000, scoped, tag = 'internal scratch']
  #allocation2 [shape = 'f32[1,1]{1,0:T(1,128)S(1)}', space=vmem, size = 0x200, scoped, tag = 'scoped memory for gnn_forward.9']
  %s0 = inlined_call_operand.vmem [shape: bf16[16,32], index: 0, kind: input, shape index: {}]
  %s1 = inlined_call_operand.vmem [shape: bf16[16,32], index: 1, kind: input, shape index: {}]
  %s2 = inlined_call_operand.vmem [shape: bf16[16,32], index: 2, kind: input, shape index: {}]
  %s3 = inlined_call_operand.vmem [shape: bf16[32,32], index: 3, kind: input, shape index: {}]
  %s4 = inlined_call_operand.vmem [shape: bf16[32,32], index: 4, kind: input, shape index: {}]
  %s5 = inlined_call_operand.vmem [shape: f32[1,32], index: 5, kind: input, shape index: {}]
  %s6 = inlined_call_operand.vmem [shape: bf16[32,32], index: 6, kind: input, shape index: {}]
  %s7 = inlined_call_operand.vmem [shape: f32[1,32], index: 7, kind: input, shape index: {}]
  %s8 = inlined_call_operand.vmem [shape: bf16[32,32], index: 8, kind: input, shape index: {}]
  %s9 = inlined_call_operand.vmem [shape: f32[1,32], index: 9, kind: input, shape index: {}]
  %s10 = inlined_call_operand.vmem [shape: bf16[32,32], index: 10, kind: input, shape index: {}]
  %s11 = inlined_call_operand.vmem [shape: bf16[32,32], index: 11, kind: input, shape index: {}]
  %s12 = inlined_call_operand.vmem [shape: f32[1,32], index: 12, kind: input, shape index: {}]
  %s13 = inlined_call_operand.vmem [shape: bf16[32,32], index: 13, kind: input, shape index: {}]
  %s14 = inlined_call_operand.vmem [shape: f32[1,32], index: 14, kind: input, shape index: {}]
  %s15 = inlined_call_operand.vmem [shape: f32[1,32], index: 15, kind: input, shape index: {}]
  %s16 = inlined_call_operand.<no memory space> [shape: f32[1,1], index: 16, kind: input, shape index: {}]
  %s17 = inlined_call_operand.vmem [shape: f32[16,1], index: 17, kind: output, shape index: {}]
  %s18 = sld [smem:[#allocation0]]
  $region78: #{gnn_forward.9} parent=0
    _
  %s20 = ssub.s32 1, %s18
  %s21 = scalar_select 0, %s20, %s18
  %v22 = vstv %s16
  %23 = vst [vmem:[#allocation2] sm:$0x1] %v22
  // Predicated region
  $region2: #{gnn_forward.9} parent=0 // pred_check
    _
  $region3: #{gnn_forward.9} parent=0 // pred_check_branch
    %25 = sbr.rel (0) target = $region5
  $region4: #{gnn_forward.9} parent=0 // pred_region
    _
  $region5: #{gnn_forward.9} parent=0 // pred_fallthru
    _
  // Predicated region
  $region6: #{gnn_forward.9} parent=0 // pred_check
    _
  $region7: #{gnn_forward.9} parent=0 // pred_check_branch
    %27 = sbr.rel (0) target = $region9
  $region8: #{gnn_forward.9} parent=0 // pred_region
    _
  $region9: #{gnn_forward.9} parent=0 // pred_fallthru
    _
  // Predicated region
  $region10: #{gnn_forward.9} parent=0 // pred_check
    _
  $region11: #{gnn_forward.9} parent=0 // pred_check_branch
    %29 = sbr.rel (0) target = $region13
  $region12: #{gnn_forward.9} parent=0 // pred_region
    _
  $region13: #{gnn_forward.9} parent=0 // pred_fallthru
    _
  // Predicated region
  $region14: #{gnn_forward.9} parent=0 // pred_check
    _
  $region15: #{gnn_forward.9} parent=0 // pred_check_branch
    %31 = sbr.rel (0) target = $region17
  $region16: #{gnn_forward.9} parent=0 // pred_region
    _
  $region17: #{gnn_forward.9} parent=0 // pred_fallthru
    _
  // Predicated region
  $region18: #{gnn_forward.9} parent=0 // pred_check
    _
  $region19: #{gnn_forward.9} parent=0 // pred_check_branch
    %33 = sbr.rel (0) target = $region21
  $region20: #{gnn_forward.9} parent=0 // pred_region
    _
  $region21: #{gnn_forward.9} parent=0 // pred_fallthru
    _
  // Predicated region
  $region22: #{gnn_forward.9} parent=0 // pred_check
    _
  $region23: #{gnn_forward.9} parent=0 // pred_check_branch
    %35 = sbr.rel (0) target = $region25
  $region24: #{gnn_forward.9} parent=0 // pred_region
    _
  $region25: #{gnn_forward.9} parent=0 // pred_fallthru
    _
  // Predicated region
  $region26: #{gnn_forward.9} parent=0 // pred_check
    _
  $region27: #{gnn_forward.9} parent=0 // pred_check_branch
    %37 = sbr.rel (0) target = $region29
  $region28: #{gnn_forward.9} parent=0 // pred_region
    _
  $region29: #{gnn_forward.9} parent=0 // pred_fallthru
    _
  // Predicated region
  $region30: #{gnn_forward.9} parent=0 // pred_check
    _
  $region31: #{gnn_forward.9} parent=0 // pred_check_branch
    %39 = sbr.rel (0) target = $region33
  $region32: #{gnn_forward.9} parent=0 // pred_region
    _
  $region33: #{gnn_forward.9} parent=0 // pred_fallthru
    _
  // Predicated region
  $region34: #{gnn_forward.9} parent=0 // pred_check
    _
  $region35: #{gnn_forward.9} parent=0 // pred_check_branch
    %41 = sbr.rel (0) target = $region37
  $region36: #{gnn_forward.9} parent=0 // pred_region
    _
  $region37: #{gnn_forward.9} parent=0 // pred_fallthru
    _
  // Predicated region
  $region38: #{gnn_forward.9} parent=0 // pred_check
    _
  $region39: #{gnn_forward.9} parent=0 // pred_check_branch
    %43 = sbr.rel (0) target = $region41
  $region40: #{gnn_forward.9} parent=0 // pred_region
    _
  $region41: #{gnn_forward.9} parent=0 // pred_fallthru
    _
  // Predicated region
  $region42: #{gnn_forward.9} parent=0 // pred_check
    _
  $region43: #{gnn_forward.9} parent=0 // pred_check_branch
    %45 = sbr.rel (0) target = $region45
  $region44: #{gnn_forward.9} parent=0 // pred_region
    _
  $region45: #{gnn_forward.9} parent=0 // pred_fallthru
    _
  // Predicated region
  $region46: #{gnn_forward.9} parent=0 // pred_check
    _
  $region47: #{gnn_forward.9} parent=0 // pred_check_branch
    %47 = sbr.rel (0) target = $region49
  $region48: #{gnn_forward.9} parent=0 // pred_region
    _
  $region49: #{gnn_forward.9} parent=0 // pred_fallthru
    _
  // Predicated region
  $region50: #{gnn_forward.9} parent=0 // pred_check
    _
  $region51: #{gnn_forward.9} parent=0 // pred_check_branch
    %49 = sbr.rel (0) target = $region53
  $region52: #{gnn_forward.9} parent=0 // pred_region
    _
  $region53: #{gnn_forward.9} parent=0 // pred_fallthru
    _
  // Predicated region
  $region54: #{gnn_forward.9} parent=0 // pred_check
    _
  $region55: #{gnn_forward.9} parent=0 // pred_check_branch
    %51 = sbr.rel (0) target = $region57
  $region56: #{gnn_forward.9} parent=0 // pred_region
    _
  $region57: #{gnn_forward.9} parent=0 // pred_fallthru
    _
  // Predicated region
  $region58: #{gnn_forward.9} parent=0 // pred_check
    _
  $region59: #{gnn_forward.9} parent=0 // pred_check_branch
    %53 = sbr.rel (0) target = $region61
  $region60: #{gnn_forward.9} parent=0 // pred_region
    _
  $region61: #{gnn_forward.9} parent=0 // pred_fallthru
    _
  // Predicated region
  $region62: #{gnn_forward.9} parent=0 // pred_check
    _
  $region63: #{gnn_forward.9} parent=0 // pred_check_branch
    %55 = sbr.rel (0) target = $region65
  $region64: #{gnn_forward.9} parent=0 // pred_region
    _
  $region65: #{gnn_forward.9} parent=0 // pred_fallthru
    _
  // Predicated region
  $region66: #{gnn_forward.9} parent=0 // pred_check
    _
  $region67: #{gnn_forward.9} parent=0 // pred_check_branch
    %57 = sbr.rel (0) target = $region69
  $region68: #{gnn_forward.9} parent=0 // pred_region
    _
  $region69: #{gnn_forward.9} parent=0 // pred_fallthru
    _
  %v59 = vld [vmem:[%s3] sm:$0xf]
  %v60 = vld [vmem:[%s3 + $0x4] sm:$0xf]
  %v61 = vld [vmem:[%s3 + $0x8] sm:$0xf]
  %v62 = vld [vmem:[%s3 + $0xc] sm:$0xf]
  %v63 = vld [vmem:[%s0] sm:$0xf]
  %v64 = vld [vmem:[%s0 + $0x4] sm:$0xf]
  %v65 = vld [vmem:[%s1] sm:$0xf]
  %v66 = vld [vmem:[%s1 + $0x4] sm:$0xf]
  %v67 = vld [vmem:[%s4] sm:$0xf]
  %v68 = vld [vmem:[%s4 + $0x4] sm:$0xf]
  %v69 = vld [vmem:[%s4 + $0x8] sm:$0xf]
  %v70 = vld [vmem:[%s4 + $0xc] sm:$0xf]
  %v73 = vunpack.c.l.b16 %v65
  %v74 = vunpack.c.l.b16 %v66
  %v75 = vpack.c.b16 %v74, %v73
  %v80 = vunpack.c.l.b16 %v67
  %v81 = vunpack.c.l.b16 %v68
  %v82 = vunpack.c.l.b16 %v69
  %v83 = vunpack.c.l.b16 %v70
  %v84 = vpack.c.b16 %v81, %v80
  %v85 = vpack.c.b16 %v83, %v82
  %vm88 = vcmask 261120
  %v90 = vsel %vm88, %v75, 0
  %92 = vmatprep.subr.bf16.mxu0 0
  %93 = vmatpush1.bf16.msra.mxu0 %v84
  %94 = vmatprep.subr.bf16.mxu0 0
  %95 = vmatpush1.bf16.msra.mxu0 %v85
  %96 = vmatprep.subr.bf16.mxu0 0
  %97 = vmatpush1.bf16.msra.mxu0 0
  %98 = vmatprep.subr.bf16.mxu0 0
  %99 = vmatpush1.bf16.msra.mxu0 0
  %100 = vmatprep.subr.bf16.mxu0 0
  %101 = vmatpush1.bf16.msra.mxu0 0
  %102 = vmatprep.subr.bf16.mxu0 0
  %103 = vmatpush1.bf16.msra.mxu0 0
  %104 = vmatprep.subr.bf16.mxu0 0
  %105 = vmatpush1.bf16.msra.mxu0 0
  %106 = vmatprep.subr.bf16.mxu0 0
  %107 = vmatpush1.bf16.msra.mxu0 0
  %108 = vmatprep.subr.bf16.mxu0 0
  %109 = vmatpush1.bf16.msra.mxu0 0
  %110 = vmatprep.subr.bf16.mxu0 0
  %111 = vmatpush1.bf16.msra.mxu0 0
  %112 = vmatprep.subr.bf16.mxu0 0
  %113 = vmatpush1.bf16.msra.mxu0 0
  %114 = vmatprep.subr.bf16.mxu0 0
  %115 = vmatpush1.bf16.msra.mxu0 0
  %116 = vmatprep.subr.bf16.mxu0 0
  %117 = vmatpush1.bf16.msra.mxu0 0
  %118 = vmatprep.subr.bf16.mxu0 0
  %119 = vmatpush1.bf16.msra.mxu0 0
  %120 = vmatprep.subr.bf16.mxu0 0
  %121 = vmatpush1.bf16.msra.mxu0 0
  %122 = vmatprep.subr.bf16.mxu0 0
  %123 = vmatpush1.bf16.msra.mxu0 0
  %124 = vmatprep.mubr.bf16.mxu0 0
  %125 = vmatmul.mubr.bf16.gmra.mrb[0].mxu0 %v90
  %v126 = vpop.f32.mrb[0].mxu0
  %v127 = vadd.f32 0.0, %v126
  %v128 = vpop.f32.mrb[0].mxu0
  %v129 = vpop.f32.mrb[0].mxu0
  %v130 = vadd.f32 0.0, %v129
  %v131 = vpop.f32.mrb[0].mxu0
  %132 = vdwg.mxu0
  %v135 = vunpack.c.l.b16 %v63
  %v136 = vunpack.c.l.b16 %v64
  %v137 = vpack.c.b16 %v136, %v135
  %v142 = vunpack.c.l.b16 %v59
  %v143 = vunpack.c.l.b16 %v60
  %v144 = vunpack.c.l.b16 %v61
  %v145 = vunpack.c.l.b16 %v62
  %v146 = vpack.c.b16 %v143, %v142
  %v147 = vpack.c.b16 %v145, %v144
  %v151 = vsel %vm88, %v137, 0
  %153 = vmatprep.subr.bf16.mxu0 0
  %154 = vmatpush1.bf16.msra.mxu0 %v146
  %155 = vmatprep.subr.bf16.mxu0 0
  %156 = vmatpush1.bf16.msra.mxu0 %v147
  %157 = vmatprep.subr.bf16.mxu0 0
  %158 = vmatpush1.bf16.msra.mxu0 0
  %159 = vmatprep.subr.bf16.mxu0 0
  %160 = vmatpush1.bf16.msra.mxu0 0
  %161 = vmatprep.subr.bf16.mxu0 0
  %162 = vmatpush1.bf16.msra.mxu0 0
  %163 = vmatprep.subr.bf16.mxu0 0
  %164 = vmatpush1.bf16.msra.mxu0 0
  %165 = vmatprep.subr.bf16.mxu0 0
  %166 = vmatpush1.bf16.msra.mxu0 0
  %167 = vmatprep.subr.bf16.mxu0 0
  %168 = vmatpush1.bf16.msra.mxu0 0
  %169 = vmatprep.subr.bf16.mxu0 0
  %170 = vmatpush1.bf16.msra.mxu0 0
  %171 = vmatprep.subr.bf16.mxu0 0
  %172 = vmatpush1.bf16.msra.mxu0 0
  %173 = vmatprep.subr.bf16.mxu0 0
  %174 = vmatpush1.bf16.msra.mxu0 0
  %175 = vmatprep.subr.bf16.mxu0 0
  %176 = vmatpush1.bf16.msra.mxu0 0
  %177 = vmatprep.subr.bf16.mxu0 0
  %178 = vmatpush1.bf16.msra.mxu0 0
  %179 = vmatprep.subr.bf16.mxu0 0
  %180 = vmatpush1.bf16.msra.mxu0 0
  %181 = vmatprep.subr.bf16.mxu0 0
  %182 = vmatpush1.bf16.msra.mxu0 0
  %183 = vmatprep.subr.bf16.mxu0 0
  %184 = vmatpush1.bf16.msra.mxu0 0
  %185 = vmatprep.mubr.bf16.mxu0 0
  %186 = vmatmul.mubr.bf16.gmra.mrb[0].mxu0 %v151
  %v187 = vpop.f32.mrb[0].mxu0
  %v188 = vadd.f32 %v127, %v187
  %v189 = vpop.f32.mrb[0].mxu0
  %v190 = vpop.f32.mrb[0].mxu0
  %v191 = vadd.f32 %v130, %v190
  %v192 = vpop.f32.mrb[0].mxu0
  %193 = vdwg.mxu0
  %v194 = vld [vmem:[%s5] sm:$0x1]
  %v196 = vlaneseq
  %v197 = vshrl.u32 %v196, 7
  %v198 = vsub.s32 0, %v197
  %v199 = vrot.slane %v194, %v198
  %v201 = vadd.f32 %v188, %v199
  %v202 = vadd.f32 %v191, %v199
  %v203 = vmax.f32 %v201, 0.0
  %v204 = vmax.f32 %v202, 0.0
  %v205 = vpack.c.bf16 %v204, %v203
  %v206 = vld [vmem:[%s6] sm:$0xf]
  %v207 = vld [vmem:[%s6 + $0x4] sm:$0xf]
  %v208 = vld [vmem:[%s6 + $0x8] sm:$0xf]
  %v209 = vld [vmem:[%s6 + $0xc] sm:$0xf]
  %v210 = vld [vmem:[%s7] sm:$0x1]
  %v212 = vlaneseq
  %v213 = vshrl.u32 %v212, 7
  %v214 = vsub.s32 0, %v213
  %v215 = vrot.slane %v210, %v214
  %v221 = vunpack.c.l.b16 %v206
  %v222 = vunpack.c.l.b16 %v207
  %v223 = vunpack.c.l.b16 %v208
  %v224 = vunpack.c.l.b16 %v209
  %v225 = vpack.c.b16 %v222, %v221
  %v226 = vpack.c.b16 %v224, %v223
  %v230 = vsel %vm88, %v205, 0
  %232 = vmatprep.subr.bf16.mxu0 0
  %233 = vmatpush1.bf16.msra.mxu0 %v225
  %234 = vmatprep.subr.bf16.mxu0 0
  %235 = vmatpush1.bf16.msra.mxu0 %v226
  %236 = vmatprep.subr.bf16.mxu0 0
  %237 = vmatpush1.bf16.msra.mxu0 0
  %238 = vmatprep.subr.bf16.mxu0 0
  %239 = vmatpush1.bf16.msra.mxu0 0
  %240 = vmatprep.subr.bf16.mxu0 0
  %241 = vmatpush1.bf16.msra.mxu0 0
  %242 = vmatprep.subr.bf16.mxu0 0
  %243 = vmatpush1.bf16.msra.mxu0 0
  %244 = vmatprep.subr.bf16.mxu0 0
  %245 = vmatpush1.bf16.msra.mxu0 0
  %246 = vmatprep.subr.bf16.mxu0 0
  %247 = vmatpush1.bf16.msra.mxu0 0
  %248 = vmatprep.subr.bf16.mxu0 0
  %249 = vmatpush1.bf16.msra.mxu0 0
  %250 = vmatprep.subr.bf16.mxu0 0
  %251 = vmatpush1.bf16.msra.mxu0 0
  %252 = vmatprep.subr.bf16.mxu0 0
  %253 = vmatpush1.bf16.msra.mxu0 0
  %254 = vmatprep.subr.bf16.mxu0 0
  %255 = vmatpush1.bf16.msra.mxu0 0
  %256 = vmatprep.subr.bf16.mxu0 0
  %257 = vmatpush1.bf16.msra.mxu0 0
  %258 = vmatprep.subr.bf16.mxu0 0
  %259 = vmatpush1.bf16.msra.mxu0 0
  %260 = vmatprep.subr.bf16.mxu0 0
  %261 = vmatpush1.bf16.msra.mxu0 0
  %262 = vmatprep.subr.bf16.mxu0 0
  %263 = vmatpush1.bf16.msra.mxu0 0
  %264 = vmatprep.mubr.bf16.mxu0 0
  %265 = vmatmul.mubr.bf16.gmra.mrb[0].mxu0 %v230
  %v266 = vpop.f32.mrb[0].mxu0
  %v267 = vadd.f32 %v215, %v266
  %v268 = vpop.f32.mrb[0].mxu0
  %v269 = vpop.f32.mrb[0].mxu0
  %v270 = vadd.f32 %v215, %v269
  %v271 = vpop.f32.mrb[0].mxu0
  %272 = vdwg.mxu0
  %v273 = vmax.f32 %v267, 0.0
  %v274 = vmax.f32 %v270, 0.0
  %v275 = vpack.c.bf16 %v274, %v273
  %v276 = vld [vmem:[%s8] sm:$0xf]
  %v277 = vld [vmem:[%s8 + $0x4] sm:$0xf]
  %v278 = vld [vmem:[%s8 + $0x8] sm:$0xf]
  %v279 = vld [vmem:[%s8 + $0xc] sm:$0xf]
  %v280 = vld [vmem:[%s9] sm:$0x1]
  %v282 = vlaneseq
  %v283 = vshrl.u32 %v282, 7
  %v284 = vsub.s32 0, %v283
  %v285 = vrot.slane %v280, %v284
  %v291 = vunpack.c.l.b16 %v276
  %v292 = vunpack.c.l.b16 %v277
  %v293 = vunpack.c.l.b16 %v278
  %v294 = vunpack.c.l.b16 %v279
  %v295 = vpack.c.b16 %v292, %v291
  %v296 = vpack.c.b16 %v294, %v293
  %v300 = vsel %vm88, %v275, 0
  %302 = vmatprep.subr.bf16.mxu0 0
  %303 = vmatpush1.bf16.msra.mxu0 %v295
  %304 = vmatprep.subr.bf16.mxu0 0
  %305 = vmatpush1.bf16.msra.mxu0 %v296
  %306 = vmatprep.subr.bf16.mxu0 0
  %307 = vmatpush1.bf16.msra.mxu0 0
  %308 = vmatprep.subr.bf16.mxu0 0
  %309 = vmatpush1.bf16.msra.mxu0 0
  %310 = vmatprep.subr.bf16.mxu0 0
  %311 = vmatpush1.bf16.msra.mxu0 0
  %312 = vmatprep.subr.bf16.mxu0 0
  %313 = vmatpush1.bf16.msra.mxu0 0
  %314 = vmatprep.subr.bf16.mxu0 0
  %315 = vmatpush1.bf16.msra.mxu0 0
  %316 = vmatprep.subr.bf16.mxu0 0
  %317 = vmatpush1.bf16.msra.mxu0 0
  %318 = vmatprep.subr.bf16.mxu0 0
  %319 = vmatpush1.bf16.msra.mxu0 0
  %320 = vmatprep.subr.bf16.mxu0 0
  %321 = vmatpush1.bf16.msra.mxu0 0
  %322 = vmatprep.subr.bf16.mxu0 0
  %323 = vmatpush1.bf16.msra.mxu0 0
  %324 = vmatprep.subr.bf16.mxu0 0
  %325 = vmatpush1.bf16.msra.mxu0 0
  %326 = vmatprep.subr.bf16.mxu0 0
  %327 = vmatpush1.bf16.msra.mxu0 0
  %328 = vmatprep.subr.bf16.mxu0 0
  %329 = vmatpush1.bf16.msra.mxu0 0
  %330 = vmatprep.subr.bf16.mxu0 0
  %331 = vmatpush1.bf16.msra.mxu0 0
  %332 = vmatprep.subr.bf16.mxu0 0
  %333 = vmatpush1.bf16.msra.mxu0 0
  %334 = vmatprep.mubr.bf16.mxu0 0
  %335 = vmatmul.mubr.bf16.gmra.mrb[0].mxu0 %v300
  %v336 = vpop.f32.mrb[0].mxu0
  %v337 = vadd.f32 %v285, %v336
  %v338 = vpop.f32.mrb[0].mxu0
  %v339 = vpop.f32.mrb[0].mxu0
  %v340 = vadd.f32 %v285, %v339
  %v341 = vpop.f32.mrb[0].mxu0
  %342 = vdwg.mxu0
  %v343 = vmax.f32 %v337, 0.0
  %v344 = vmax.f32 %v340, 0.0
  %v345 = vpack.c.bf16 %v344, %v343
  %v346 = vld [vmem:[%s10] sm:$0xf]
  %v347 = vld [vmem:[%s10 + $0x4] sm:$0xf]
  %v348 = vld [vmem:[%s10 + $0x8] sm:$0xf]
  %v349 = vld [vmem:[%s10 + $0xc] sm:$0xf]
  %v350 = vld [vmem:[%s2] sm:$0xf]
  %v351 = vld [vmem:[%s2 + $0x4] sm:$0xf]
  %v352 = vld [vmem:[%s11] sm:$0xf]
  %v353 = vld [vmem:[%s11 + $0x4] sm:$0xf]
  %v354 = vld [vmem:[%s11 + $0x8] sm:$0xf]
  %v355 = vld [vmem:[%s11 + $0xc] sm:$0xf]
  %v358 = vunpack.c.l.b16 %v350
  %v359 = vunpack.c.l.b16 %v351
  %v360 = vpack.c.b16 %v359, %v358
  %v365 = vunpack.c.l.b16 %v352
  %v366 = vunpack.c.l.b16 %v353
  %v367 = vunpack.c.l.b16 %v354
  %v368 = vunpack.c.l.b16 %v355
  %v369 = vpack.c.b16 %v366, %v365
  %v370 = vpack.c.b16 %v368, %v367
  %v374 = vsel %vm88, %v360, 0
  %376 = vmatprep.subr.bf16.mxu0 0
  %377 = vmatpush1.bf16.msra.mxu0 %v369
  %378 = vmatprep.subr.bf16.mxu0 0
  %379 = vmatpush1.bf16.msra.mxu0 %v370
  %380 = vmatprep.subr.bf16.mxu0 0
  %381 = vmatpush1.bf16.msra.mxu0 0
  %382 = vmatprep.subr.bf16.mxu0 0
  %383 = vmatpush1.bf16.msra.mxu0 0
  %384 = vmatprep.subr.bf16.mxu0 0
  %385 = vmatpush1.bf16.msra.mxu0 0
  %386 = vmatprep.subr.bf16.mxu0 0
  %387 = vmatpush1.bf16.msra.mxu0 0
  %388 = vmatprep.subr.bf16.mxu0 0
  %389 = vmatpush1.bf16.msra.mxu0 0
  %390 = vmatprep.subr.bf16.mxu0 0
  %391 = vmatpush1.bf16.msra.mxu0 0
  %392 = vmatprep.subr.bf16.mxu0 0
  %393 = vmatpush1.bf16.msra.mxu0 0
  %394 = vmatprep.subr.bf16.mxu0 0
  %395 = vmatpush1.bf16.msra.mxu0 0
  %396 = vmatprep.subr.bf16.mxu0 0
  %397 = vmatpush1.bf16.msra.mxu0 0
  %398 = vmatprep.subr.bf16.mxu0 0
  %399 = vmatpush1.bf16.msra.mxu0 0
  %400 = vmatprep.subr.bf16.mxu0 0
  %401 = vmatpush1.bf16.msra.mxu0 0
  %402 = vmatprep.subr.bf16.mxu0 0
  %403 = vmatpush1.bf16.msra.mxu0 0
  %404 = vmatprep.subr.bf16.mxu0 0
  %405 = vmatpush1.bf16.msra.mxu0 0
  %406 = vmatprep.subr.bf16.mxu0 0
  %407 = vmatpush1.bf16.msra.mxu0 0
  %408 = vmatprep.mubr.bf16.mxu0 0
  %409 = vmatmul.mubr.bf16.gmra.mrb[0].mxu0 %v374
  %v410 = vpop.f32.mrb[0].mxu0
  %v411 = vadd.f32 0.0, %v410
  %v412 = vpop.f32.mrb[0].mxu0
  %v413 = vpop.f32.mrb[0].mxu0
  %v414 = vadd.f32 0.0, %v413
  %v415 = vpop.f32.mrb[0].mxu0
  %416 = vdwg.mxu0
  %v421 = vunpack.c.l.b16 %v346
  %v422 = vunpack.c.l.b16 %v347
  %v423 = vunpack.c.l.b16 %v348
  %v424 = vunpack.c.l.b16 %v349
  %v425 = vpack.c.b16 %v422, %v421
  %v426 = vpack.c.b16 %v424, %v423
  %v430 = vsel %vm88, %v345, 0
  %432 = vmatprep.subr.bf16.mxu0 0
  %433 = vmatpush1.bf16.msra.mxu0 %v425
  %434 = vmatprep.subr.bf16.mxu0 0
  %435 = vmatpush1.bf16.msra.mxu0 %v426
  %436 = vmatprep.subr.bf16.mxu0 0
  %437 = vmatpush1.bf16.msra.mxu0 0
  %438 = vmatprep.subr.bf16.mxu0 0
  %439 = vmatpush1.bf16.msra.mxu0 0
  %440 = vmatprep.subr.bf16.mxu0 0
  %441 = vmatpush1.bf16.msra.mxu0 0
  %442 = vmatprep.subr.bf16.mxu0 0
  %443 = vmatpush1.bf16.msra.mxu0 0
  %444 = vmatprep.subr.bf16.mxu0 0
  %445 = vmatpush1.bf16.msra.mxu0 0
  %446 = vmatprep.subr.bf16.mxu0 0
  %447 = vmatpush1.bf16.msra.mxu0 0
  %448 = vmatprep.subr.bf16.mxu0 0
  %449 = vmatpush1.bf16.msra.mxu0 0
  %450 = vmatprep.subr.bf16.mxu0 0
  %451 = vmatpush1.bf16.msra.mxu0 0
  %452 = vmatprep.subr.bf16.mxu0 0
  %453 = vmatpush1.bf16.msra.mxu0 0
  %454 = vmatprep.subr.bf16.mxu0 0
  %455 = vmatpush1.bf16.msra.mxu0 0
  %456 = vmatprep.subr.bf16.mxu0 0
  %457 = vmatpush1.bf16.msra.mxu0 0
  %458 = vmatprep.subr.bf16.mxu0 0
  %459 = vmatpush1.bf16.msra.mxu0 0
  %460 = vmatprep.subr.bf16.mxu0 0
  %461 = vmatpush1.bf16.msra.mxu0 0
  %462 = vmatprep.subr.bf16.mxu0 0
  %463 = vmatpush1.bf16.msra.mxu0 0
  %464 = vmatprep.mubr.bf16.mxu0 0
  %465 = vmatmul.mubr.bf16.gmra.mrb[0].mxu0 %v430
  %v466 = vpop.f32.mrb[0].mxu0
  %v467 = vadd.f32 %v411, %v466
  %v468 = vpop.f32.mrb[0].mxu0
  %v469 = vpop.f32.mrb[0].mxu0
  %v470 = vadd.f32 %v414, %v469
  %v471 = vpop.f32.mrb[0].mxu0
  %472 = vdwg.mxu0
  %v473 = vld [vmem:[%s12] sm:$0x1]
  %v475 = vlaneseq
  %v476 = vshrl.u32 %v475, 7
  %v477 = vsub.s32 0, %v476
  %v478 = vrot.slane %v473, %v477
  %v480 = vadd.f32 %v467, %v478
  %v481 = vadd.f32 %v470, %v478
  %v482 = vmax.f32 %v480, 0.0
  %v483 = vmax.f32 %v481, 0.0
  %v484 = vpack.c.bf16 %v483, %v482
  %v485 = vld [vmem:[%s13] sm:$0xf]
  %v486 = vld [vmem:[%s13 + $0x4] sm:$0xf]
  %v487 = vld [vmem:[%s13 + $0x8] sm:$0xf]
  %v488 = vld [vmem:[%s13 + $0xc] sm:$0xf]
  %v489 = vld [vmem:[%s14] sm:$0x1]
  %v491 = vlaneseq
  %v492 = vshrl.u32 %v491, 7
  %v493 = vsub.s32 0, %v492
  %v494 = vrot.slane %v489, %v493
  %v500 = vunpack.c.l.b16 %v485
  %v501 = vunpack.c.l.b16 %v486
  %v502 = vunpack.c.l.b16 %v487
  %v503 = vunpack.c.l.b16 %v488
  %v504 = vpack.c.b16 %v501, %v500
  %v505 = vpack.c.b16 %v503, %v502
  %v509 = vsel %vm88, %v484, 0
  %511 = vmatprep.subr.bf16.mxu0 0
  %512 = vmatpush1.bf16.msra.mxu0 %v504
  %513 = vmatprep.subr.bf16.mxu0 0
  %514 = vmatpush1.bf16.msra.mxu0 %v505
  %515 = vmatprep.subr.bf16.mxu0 0
  %516 = vmatpush1.bf16.msra.mxu0 0
  %517 = vmatprep.subr.bf16.mxu0 0
  %518 = vmatpush1.bf16.msra.mxu0 0
  %519 = vmatprep.subr.bf16.mxu0 0
  %520 = vmatpush1.bf16.msra.mxu0 0
  %521 = vmatprep.subr.bf16.mxu0 0
  %522 = vmatpush1.bf16.msra.mxu0 0
  %523 = vmatprep.subr.bf16.mxu0 0
  %524 = vmatpush1.bf16.msra.mxu0 0
  %525 = vmatprep.subr.bf16.mxu0 0
  %526 = vmatpush1.bf16.msra.mxu0 0
  %527 = vmatprep.subr.bf16.mxu0 0
  %528 = vmatpush1.bf16.msra.mxu0 0
  %529 = vmatprep.subr.bf16.mxu0 0
  %530 = vmatpush1.bf16.msra.mxu0 0
  %531 = vmatprep.subr.bf16.mxu0 0
  %532 = vmatpush1.bf16.msra.mxu0 0
  %533 = vmatprep.subr.bf16.mxu0 0
  %534 = vmatpush1.bf16.msra.mxu0 0
  %535 = vmatprep.subr.bf16.mxu0 0
  %536 = vmatpush1.bf16.msra.mxu0 0
  %537 = vmatprep.subr.bf16.mxu0 0
  %538 = vmatpush1.bf16.msra.mxu0 0
  %539 = vmatprep.subr.bf16.mxu0 0
  %540 = vmatpush1.bf16.msra.mxu0 0
  %541 = vmatprep.subr.bf16.mxu0 0
  %542 = vmatpush1.bf16.msra.mxu0 0
  %543 = vmatprep.mubr.bf16.mxu0 0
  %544 = vmatmul.mubr.bf16.gmra.mrb[0].mxu0 %v509
  %v545 = vpop.f32.mrb[0].mxu0
  %v546 = vadd.f32 %v494, %v545
  %v547 = vpop.f32.mrb[0].mxu0
  %v548 = vpop.f32.mrb[0].mxu0
  %v549 = vadd.f32 %v494, %v548
  %v550 = vpop.f32.mrb[0].mxu0
  %551 = vdwg.mxu0
  %v552 = vmax.f32 %v546, 0.0
  %v553 = vmax.f32 %v549, 0.0
  %v554 = vld [vmem:[%s15] sm:$0x1]
  %v556 = vlaneseq
  %v557 = vshrl.u32 %v556, 7
  %v558 = vsub.s32 0, %v557
  %v559 = vrot.slane %v554, %v558
  %v561 = vmul.f32 %v552, %v559
  %v562 = vmul.f32 %v553, %v559
  %v563 = vsel %vm88, %v561, 0.0
  %564 = vadd.xlane.f32.xlu0 %v563
  %v565 = vpop.xlane.xlu0 %564
  %v566 = vsel %vm88, %v562, 0.0
  %567 = vadd.xlane.f32.xlu0 %v566
  %v568 = vpop.xlane.xlu0 %567
  %v569 = vld [vmem:[#allocation2] sm:$0x1]
  %v571 = vlaneseq
  %v572 = vshrl.u32 %v571, 7
  %v573 = vsub.s32 0, %v572
  %v574 = vrot.slane %v569, %v573
  %v576 = vadd.f32 %v565, %v574
  %v577 = vadd.f32 %v568, %v574
  %vm578 = vcmask 7168
  %579 = vst.msk [vmem:[%s17] sm:$0xff] %vm578, %v576
  %580 = vst.msk [vmem:[%s17 + $0x8] sm:$0xff] %vm578, %v577
  // Predicated region
  $region70: #{gnn_forward.9} parent=0 // pred_check
    _
  $region71: #{gnn_forward.9} parent=0 // pred_check_branch
    %582 = sbr.rel (0) target = $region73
  $region72: #{gnn_forward.9} parent=0 // pred_region
    _
  $region73: #{gnn_forward.9} parent=0 // pred_fallthru
    _
  // Predicated region
  $region74: #{gnn_forward.9} parent=0 // pred_check
    _
  $region75: #{gnn_forward.9} parent=0 // pred_check_branch
    %584 = sbr.rel (0) target = $region77
  $region76: #{gnn_forward.9} parent=0 // pred_region
    _
  $region77: #{gnn_forward.9} parent=0 // pred_fallthru
    _

// kernel: gnn_forward.8
$region0: #{gnn_forward.8}
  #allocation0 [shape = 'u32[]', space=smem, size = 0x4, offset = 0x4, fixed_abs, tag = 'smem constant byte address 0x4 - core index']
  #allocation1 [shape = 'u32[144,128]{1,0:T(1,128)}', space=vmem, size = 0x12000, scoped, tag = 'internal scratch']
  #allocation2 [shape = 'f32[1,1]{1,0:T(1,128)S(1)}', space=vmem, size = 0x200, scoped, tag = 'scoped memory for gnn_forward.8']
  %s0 = inlined_call_operand.vmem [shape: bf16[7,16,32], index: 0, kind: input, shape index: {}]
  %s1 = inlined_call_operand.vmem [shape: bf16[7,16,32], index: 1, kind: input, shape index: {}]
  %s2 = inlined_call_operand.vmem [shape: bf16[16,32], index: 2, kind: input, shape index: {}]
  %s3 = inlined_call_operand.vmem [shape: f32[16,7], index: 3, kind: input, shape index: {}]
  %s4 = inlined_call_operand.vmem [shape: bf16[32,32], index: 4, kind: input, shape index: {}]
  %s5 = inlined_call_operand.vmem [shape: bf16[32,32], index: 5, kind: input, shape index: {}]
  %s6 = inlined_call_operand.vmem [shape: f32[1,32], index: 6, kind: input, shape index: {}]
  %s7 = inlined_call_operand.vmem [shape: bf16[32,32], index: 7, kind: input, shape index: {}]
  %s8 = inlined_call_operand.vmem [shape: f32[1,32], index: 8, kind: input, shape index: {}]
  %s9 = inlined_call_operand.vmem [shape: bf16[32,32], index: 9, kind: input, shape index: {}]
  %s10 = inlined_call_operand.vmem [shape: bf16[32,32], index: 10, kind: input, shape index: {}]
  %s11 = inlined_call_operand.vmem [shape: f32[1,32], index: 11, kind: input, shape index: {}]
  %s12 = inlined_call_operand.vmem [shape: f32[1,32], index: 12, kind: input, shape index: {}]
  %s13 = inlined_call_operand.<no memory space> [shape: f32[1,1], index: 13, kind: input, shape index: {}]
  %s14 = inlined_call_operand.vmem [shape: bf16[32,32], index: 14, kind: input, shape index: {}]
  %s15 = inlined_call_operand.vmem [shape: f32[1,32], index: 15, kind: input, shape index: {}]
  %s16 = inlined_call_operand.vmem [shape: bf16[16,32], index: 16, kind: output, shape index: {}]
  %s17 = sld [smem:[#allocation0]]
  $region74: #{gnn_forward.8} parent=0
    _
  %s19 = ssub.s32 1, %s17
  %s20 = scalar_select 0, %s19, %s17
  %v21 = vstv %s13
  %22 = vst [vmem:[#allocation2] sm:$0x1] %v21
  // Predicated region
  $region2: #{gnn_forward.8} parent=0 // pred_check
    _
  $region3: #{gnn_forward.8} parent=0 // pred_check_branch
    %24 = sbr.rel (0) target = $region5
  $region4: #{gnn_forward.8} parent=0 // pred_region
    _
  $region5: #{gnn_forward.8} parent=0 // pred_fallthru
    _
  // Predicated region
  $region6: #{gnn_forward.8} parent=0 // pred_check
    _
  $region7: #{gnn_forward.8} parent=0 // pred_check_branch
    %26 = sbr.rel (0) target = $region9
  $region8: #{gnn_forward.8} parent=0 // pred_region
    _
  $region9: #{gnn_forward.8} parent=0 // pred_fallthru
    _
  // Predicated region
  $region10: #{gnn_forward.8} parent=0 // pred_check
    _
  $region11: #{gnn_forward.8} parent=0 // pred_check_branch
    %28 = sbr.rel (0) target = $region13
  $region12: #{gnn_forward.8} parent=0 // pred_region
    _
  $region13: #{gnn_forward.8} parent=0 // pred_fallthru
    _
  // Predicated region
  $region14: #{gnn_forward.8} parent=0 // pred_check
    _
  $region15: #{gnn_forward.8} parent=0 // pred_check_branch
    %30 = sbr.rel (0) target = $region17
  $region16: #{gnn_forward.8} parent=0 // pred_region
    _
  $region17: #{gnn_forward.8} parent=0 // pred_fallthru
    _
  // Predicated region
  $region18: #{gnn_forward.8} parent=0 // pred_check
    _
  $region19: #{gnn_forward.8} parent=0 // pred_check_branch
    %32 = sbr.rel (0) target = $region21
  $region20: #{gnn_forward.8} parent=0 // pred_region
    _
  $region21: #{gnn_forward.8} parent=0 // pred_fallthru
    _
  // Predicated region
  $region22: #{gnn_forward.8} parent=0 // pred_check
    _
  $region23: #{gnn_forward.8} parent=0 // pred_check_branch
    %34 = sbr.rel (0) target = $region25
  $region24: #{gnn_forward.8} parent=0 // pred_region
    _
  $region25: #{gnn_forward.8} parent=0 // pred_fallthru
    _
  // Predicated region
  $region26: #{gnn_forward.8} parent=0 // pred_check
    _
  $region27: #{gnn_forward.8} parent=0 // pred_check_branch
    %36 = sbr.rel (0) target = $region29
  $region28: #{gnn_forward.8} parent=0 // pred_region
    _
  $region29: #{gnn_forward.8} parent=0 // pred_fallthru
    _
  // Predicated region
  $region30: #{gnn_forward.8} parent=0 // pred_check
    _
  $region31: #{gnn_forward.8} parent=0 // pred_check_branch
    %38 = sbr.rel (0) target = $region33
  $region32: #{gnn_forward.8} parent=0 // pred_region
    _
  $region33: #{gnn_forward.8} parent=0 // pred_fallthru
    _
  // Predicated region
  $region34: #{gnn_forward.8} parent=0 // pred_check
    _
  $region35: #{gnn_forward.8} parent=0 // pred_check_branch
    %40 = sbr.rel (0) target = $region37
  $region36: #{gnn_forward.8} parent=0 // pred_region
    _
  $region37: #{gnn_forward.8} parent=0 // pred_fallthru
    _
  // Predicated region
  $region38: #{gnn_forward.8} parent=0 // pred_check
    _
  $region39: #{gnn_forward.8} parent=0 // pred_check_branch
    %42 = sbr.rel (0) target = $region41
  $region40: #{gnn_forward.8} parent=0 // pred_region
    _
  $region41: #{gnn_forward.8} parent=0 // pred_fallthru
    _
  // Predicated region
  $region42: #{gnn_forward.8} parent=0 // pred_check
    _
  $region43: #{gnn_forward.8} parent=0 // pred_check_branch
    %44 = sbr.rel (0) target = $region45
  $region44: #{gnn_forward.8} parent=0 // pred_region
    _
  $region45: #{gnn_forward.8} parent=0 // pred_fallthru
    _
  // Predicated region
  $region46: #{gnn_forward.8} parent=0 // pred_check
    _
  $region47: #{gnn_forward.8} parent=0 // pred_check_branch
    %46 = sbr.rel (0) target = $region49
  $region48: #{gnn_forward.8} parent=0 // pred_region
    _
  $region49: #{gnn_forward.8} parent=0 // pred_fallthru
    _
  // Predicated region
  $region50: #{gnn_forward.8} parent=0 // pred_check
    _
  $region51: #{gnn_forward.8} parent=0 // pred_check_branch
    %48 = sbr.rel (0) target = $region53
  $region52: #{gnn_forward.8} parent=0 // pred_region
    _
  $region53: #{gnn_forward.8} parent=0 // pred_fallthru
    _
  // Predicated region
  $region54: #{gnn_forward.8} parent=0 // pred_check
    _
  $region55: #{gnn_forward.8} parent=0 // pred_check_branch
    %50 = sbr.rel (0) target = $region57
  $region56: #{gnn_forward.8} parent=0 // pred_region
    _
  $region57: #{gnn_forward.8} parent=0 // pred_fallthru
    _
  // Predicated region
  $region58: #{gnn_forward.8} parent=0 // pred_check
    _
  $region59: #{gnn_forward.8} parent=0 // pred_check_branch
    %52 = sbr.rel (0) target = $region61
  $region60: #{gnn_forward.8} parent=0 // pred_region
    _
  $region61: #{gnn_forward.8} parent=0 // pred_fallthru
    _
  // Predicated region
  $region62: #{gnn_forward.8} parent=0 // pred_check
    _
  $region63: #{gnn_forward.8} parent=0 // pred_check_branch
    %54 = sbr.rel (0) target = $region65
  $region64: #{gnn_forward.8} parent=0 // pred_region
    _
  $region65: #{gnn_forward.8} parent=0 // pred_fallthru
    _
  %v56 = vld [vmem:[%s0] sm:$0xf]
  %v57 = vld [vmem:[%s0 + $0x4] sm:$0xf]
  %v58 = vld [vmem:[%s0 + $0x8] sm:$0xf]
  %v59 = vld [vmem:[%s0 + $0xc] sm:$0xf]
  %v60 = vld [vmem:[%s0 + $0x10] sm:$0xf]
  %v61 = vld [vmem:[%s0 + $0x14] sm:$0xf]
  %v62 = vld [vmem:[%s0 + $0x18] sm:$0xf]
  %v63 = vld [vmem:[%s0 + $0x1c] sm:$0xf]
  %v64 = vld [vmem:[%s0 + $0x20] sm:$0xf]
  %v65 = vld [vmem:[%s0 + $0x24] sm:$0xf]
  %v66 = vld [vmem:[%s0 + $0x28] sm:$0xf]
  %v67 = vld [vmem:[%s0 + $0x2c] sm:$0xf]
  %v68 = vld [vmem:[%s0 + $0x30] sm:$0xf]
  %v69 = vld [vmem:[%s0 + $0x34] sm:$0xf]
  %v70 = vld [vmem:[%s1] sm:$0xf]
  %v71 = vld [vmem:[%s1 + $0x4] sm:$0xf]
  %v72 = vld [vmem:[%s1 + $0x8] sm:$0xf]
  %v73 = vld [vmem:[%s1 + $0xc] sm:$0xf]
  %v74 = vld [vmem:[%s1 + $0x10] sm:$0xf]
  %v75 = vld [vmem:[%s1 + $0x14] sm:$0xf]
  %v76 = vld [vmem:[%s1 + $0x18] sm:$0xf]
  %v77 = vld [vmem:[%s1 + $0x1c] sm:$0xf]
  %v78 = vld [vmem:[%s1 + $0x20] sm:$0xf]
  %v79 = vld [vmem:[%s1 + $0x24] sm:$0xf]
  %v80 = vld [vmem:[%s1 + $0x28] sm:$0xf]
  %v81 = vld [vmem:[%s1 + $0x2c] sm:$0xf]
  %v82 = vld [vmem:[%s1 + $0x30] sm:$0xf]
  %v83 = vld [vmem:[%s1 + $0x34] sm:$0xf]
  %v84 = vld [vmem:[%s4] sm:$0xf]
  %v85 = vld [vmem:[%s4 + $0x4] sm:$0xf]
  %v86 = vld [vmem:[%s4 + $0x8] sm:$0xf]
  %v87 = vld [vmem:[%s4 + $0xc] sm:$0xf]
  %v88 = vld [vmem:[%s5] sm:$0xf]
  %v89 = vld [vmem:[%s5 + $0x4] sm:$0xf]
  %v90 = vld [vmem:[%s5 + $0x8] sm:$0xf]
  %v91 = vld [vmem:[%s5 + $0xc] sm:$0xf]
  %v106 = vunpack.c.l.b16 %v70
  %v107 = vunpack.c.l.b16 %v71
  %v108 = vunpack.c.l.b16 %v72
  %v109 = vunpack.c.l.b16 %v73
  %v110 = vunpack.c.l.b16 %v74
  %v111 = vunpack.c.l.b16 %v75
  %v112 = vunpack.c.l.b16 %v76
  %v113 = vunpack.c.l.b16 %v77
  %v114 = vunpack.c.l.b16 %v78
  %v115 = vunpack.c.l.b16 %v79
  %v116 = vunpack.c.l.b16 %v80
  %v117 = vunpack.c.l.b16 %v81
  %v118 = vunpack.c.l.b16 %v82
  %v119 = vunpack.c.l.b16 %v83
  %v120 = vpack.c.b16 %v107, %v106
  %v121 = vpack.c.b16 %v109, %v108
  %v122 = vpack.c.b16 %v111, %v110
  %v123 = vpack.c.b16 %v113, %v112
  %v124 = vpack.c.b16 %v115, %v114
  %v125 = vpack.c.b16 %v117, %v116
  %v126 = vpack.c.b16 %v119, %v118
  %v131 = vunpack.c.l.b16 %v88
  %v132 = vunpack.c.l.b16 %v89
  %v133 = vunpack.c.l.b16 %v90
  %v134 = vunpack.c.l.b16 %v91
  %v135 = vpack.c.b16 %v132, %v131
  %v136 = vpack.c.b16 %v134, %v133
  %vm139 = vcmask 261120
  %v141 = vsel %vm139, %v120, 0
  %v144 = vsel %vm139, %v121, 0
  %v147 = vsel %vm139, %v122, 0
  %v150 = vsel %vm139, %v123, 0
  %v153 = vsel %vm139, %v124, 0
  %v156 = vsel %vm139, %v125, 0
  %v159 = vsel %vm139, %v126, 0
  %161 = vmatprep.subr.bf16.mxu0 0
  %162 = vmatpush1.bf16.msra.mxu0 %v135
  %163 = vmatprep.subr.bf16.mxu0 0
  %164 = vmatpush1.bf16.msra.mxu0 %v136
  %165 = vmatprep.subr.bf16.mxu0 0
  %166 = vmatpush1.bf16.msra.mxu0 0
  %167 = vmatprep.subr.bf16.mxu0 0
  %168 = vmatpush1.bf16.msra.mxu0 0
  %169 = vmatprep.subr.bf16.mxu0 0
  %170 = vmatpush1.bf16.msra.mxu0 0
  %171 = vmatprep.subr.bf16.mxu0 0
  %172 = vmatpush1.bf16.msra.mxu0 0
  %173 = vmatprep.subr.bf16.mxu0 0
  %174 = vmatpush1.bf16.msra.mxu0 0
  %175 = vmatprep.subr.bf16.mxu0 0
  %176 = vmatpush1.bf16.msra.mxu0 0
  %177 = vmatprep.subr.bf16.mxu0 0
  %178 = vmatpush1.bf16.msra.mxu0 0
  %179 = vmatprep.subr.bf16.mxu0 0
  %180 = vmatpush1.bf16.msra.mxu0 0
  %181 = vmatprep.subr.bf16.mxu0 0
  %182 = vmatpush1.bf16.msra.mxu0 0
  %183 = vmatprep.subr.bf16.mxu0 0
  %184 = vmatpush1.bf16.msra.mxu0 0
  %185 = vmatprep.subr.bf16.mxu0 0
  %186 = vmatpush1.bf16.msra.mxu0 0
  %187 = vmatprep.subr.bf16.mxu0 0
  %188 = vmatpush1.bf16.msra.mxu0 0
  %189 = vmatprep.subr.bf16.mxu0 0
  %190 = vmatpush1.bf16.msra.mxu0 0
  %191 = vmatprep.subr.bf16.mxu0 0
  %192 = vmatpush1.bf16.msra.mxu0 0
  %193 = vmatprep.mubr.bf16.mxu0 0
  %194 = vmatmul.mubr.bf16.gmra.mrb[0].mxu0 %v141
  %v195 = vpop.f32.mrb[0].mxu0
  %v196 = vadd.f32 0.0, %v195
  %v197 = vpop.f32.mrb[0].mxu0
  %v198 = vpop.f32.mrb[0].mxu0
  %v199 = vadd.f32 0.0, %v198
  %v200 = vpop.f32.mrb[0].mxu0
  %201 = vmatprep.mubr.bf16.mxu0 0
  %202 = vmatmul.mubr.bf16.gmra.mrb[0].mxu0 %v144
  %v203 = vpop.f32.mrb[0].mxu0
  %v204 = vadd.f32 0.0, %v203
  %v205 = vpop.f32.mrb[0].mxu0
  %v206 = vpop.f32.mrb[0].mxu0
  %v207 = vadd.f32 0.0, %v206
  %v208 = vpop.f32.mrb[0].mxu0
  %209 = vmatprep.mubr.bf16.mxu0 0
  %210 = vmatmul.mubr.bf16.gmra.mrb[0].mxu0 %v147
  %v211 = vpop.f32.mrb[0].mxu0
  %v212 = vadd.f32 0.0, %v211
  %v213 = vpop.f32.mrb[0].mxu0
  %v214 = vpop.f32.mrb[0].mxu0
  %v215 = vadd.f32 0.0, %v214
  %v216 = vpop.f32.mrb[0].mxu0
  %217 = vmatprep.mubr.bf16.mxu0 0
  %218 = vmatmul.mubr.bf16.gmra.mrb[0].mxu0 %v150
  %v219 = vpop.f32.mrb[0].mxu0
  %v220 = vadd.f32 0.0, %v219
  %v221 = vpop.f32.mrb[0].mxu0
  %v222 = vpop.f32.mrb[0].mxu0
  %v223 = vadd.f32 0.0, %v222
  %v224 = vpop.f32.mrb[0].mxu0
  %225 = vmatprep.mubr.bf16.mxu0 0
  %226 = vmatmul.mubr.bf16.gmra.mrb[0].mxu0 %v153
  %v227 = vpop.f32.mrb[0].mxu0
  %v228 = vadd.f32 0.0, %v227
  %v229 = vpop.f32.mrb[0].mxu0
  %v230 = vpop.f32.mrb[0].mxu0
  %v231 = vadd.f32 0.0, %v230
  %v232 = vpop.f32.mrb[0].mxu0
  %233 = vmatprep.mubr.bf16.mxu0 0
  %234 = vmatmul.mubr.bf16.gmra.mrb[0].mxu0 %v156
  %v235 = vpop.f32.mrb[0].mxu0
  %v236 = vadd.f32 0.0, %v235
  %v237 = vpop.f32.mrb[0].mxu0
  %v238 = vpop.f32.mrb[0].mxu0
  %v239 = vadd.f32 0.0, %v238
  %v240 = vpop.f32.mrb[0].mxu0
  %241 = vmatprep.mubr.bf16.mxu0 0
  %242 = vmatmul.mubr.bf16.gmra.mrb[0].mxu0 %v159
  %v243 = vpop.f32.mrb[0].mxu0
  %v244 = vadd.f32 0.0, %v243
  %v245 = vpop.f32.mrb[0].mxu0
  %v246 = vpop.f32.mrb[0].mxu0
  %v247 = vadd.f32 0.0, %v246
  %v248 = vpop.f32.mrb[0].mxu0
  %249 = vdwg.mxu0
  %v264 = vunpack.c.l.b16 %v56
  %v265 = vunpack.c.l.b16 %v57
  %v266 = vunpack.c.l.b16 %v58
  %v267 = vunpack.c.l.b16 %v59
  %v268 = vunpack.c.l.b16 %v60
  %v269 = vunpack.c.l.b16 %v61
  %v270 = vunpack.c.l.b16 %v62
  %v271 = vunpack.c.l.b16 %v63
  %v272 = vunpack.c.l.b16 %v64
  %v273 = vunpack.c.l.b16 %v65
  %v274 = vunpack.c.l.b16 %v66
  %v275 = vunpack.c.l.b16 %v67
  %v276 = vunpack.c.l.b16 %v68
  %v277 = vunpack.c.l.b16 %v69
  %v278 = vpack.c.b16 %v265, %v264
  %v279 = vpack.c.b16 %v267, %v266
  %v280 = vpack.c.b16 %v269, %v268
  %v281 = vpack.c.b16 %v271, %v270
  %v282 = vpack.c.b16 %v273, %v272
  %v283 = vpack.c.b16 %v275, %v274
  %v284 = vpack.c.b16 %v277, %v276
  %v289 = vunpack.c.l.b16 %v84
  %v290 = vunpack.c.l.b16 %v85
  %v291 = vunpack.c.l.b16 %v86
  %v292 = vunpack.c.l.b16 %v87
  %v293 = vpack.c.b16 %v290, %v289
  %v294 = vpack.c.b16 %v292, %v291
  %v298 = vsel %vm139, %v278, 0
  %v301 = vsel %vm139, %v279, 0
  %v304 = vsel %vm139, %v280, 0
  %v307 = vsel %vm139, %v281, 0
  %v310 = vsel %vm139, %v282, 0
  %v313 = vsel %vm139, %v283, 0
  %v316 = vsel %vm139, %v284, 0
  %318 = vmatprep.subr.bf16.mxu0 0
  %319 = vmatpush1.bf16.msra.mxu0 %v293
  %320 = vmatprep.subr.bf16.mxu0 0
  %321 = vmatpush1.bf16.msra.mxu0 %v294
  %322 = vmatprep.subr.bf16.mxu0 0
  %323 = vmatpush1.bf16.msra.mxu0 0
  %324 = vmatprep.subr.bf16.mxu0 0
  %325 = vmatpush1.bf16.msra.mxu0 0
  %326 = vmatprep.subr.bf16.mxu0 0
  %327 = vmatpush1.bf16.msra.mxu0 0
  %328 = vmatprep.subr.bf16.mxu0 0
  %329 = vmatpush1.bf16.msra.mxu0 0
  %330 = vmatprep.subr.bf16.mxu0 0
  %331 = vmatpush1.bf16.msra.mxu0 0
  %332 = vmatprep.subr.bf16.mxu0 0
  %333 = vmatpush1.bf16.msra.mxu0 0
  %334 = vmatprep.subr.bf16.mxu0 0
  %335 = vmatpush1.bf16.msra.mxu0 0
  %336 = vmatprep.subr.bf16.mxu0 0
  %337 = vmatpush1.bf16.msra.mxu0 0
  %338 = vmatprep.subr.bf16.mxu0 0
  %339 = vmatpush1.bf16.msra.mxu0 0
  %340 = vmatprep.subr.bf16.mxu0 0
  %341 = vmatpush1.bf16.msra.mxu0 0
  %342 = vmatprep.subr.bf16.mxu0 0
  %343 = vmatpush1.bf16.msra.mxu0 0
  %344 = vmatprep.subr.bf16.mxu0 0
  %345 = vmatpush1.bf16.msra.mxu0 0
  %346 = vmatprep.subr.bf16.mxu0 0
  %347 = vmatpush1.bf16.msra.mxu0 0
  %348 = vmatprep.subr.bf16.mxu0 0
  %349 = vmatpush1.bf16.msra.mxu0 0
  %350 = vmatprep.mubr.bf16.mxu0 0
  %351 = vmatmul.mubr.bf16.gmra.mrb[0].mxu0 %v298
  %v352 = vpop.f32.mrb[0].mxu0
  %v353 = vadd.f32 %v196, %v352
  %v354 = vpop.f32.mrb[0].mxu0
  %v355 = vpop.f32.mrb[0].mxu0
  %v356 = vadd.f32 %v199, %v355
  %v357 = vpop.f32.mrb[0].mxu0
  %358 = vmatprep.mubr.bf16.mxu0 0
  %359 = vmatmul.mubr.bf16.gmra.mrb[0].mxu0 %v301
  %v360 = vpop.f32.mrb[0].mxu0
  %v361 = vadd.f32 %v204, %v360
  %v362 = vpop.f32.mrb[0].mxu0
  %v363 = vpop.f32.mrb[0].mxu0
  %v364 = vadd.f32 %v207, %v363
  %v365 = vpop.f32.mrb[0].mxu0
  %366 = vmatprep.mubr.bf16.mxu0 0
  %367 = vmatmul.mubr.bf16.gmra.mrb[0].mxu0 %v304
  %v368 = vpop.f32.mrb[0].mxu0
  %v369 = vadd.f32 %v212, %v368
  %v370 = vpop.f32.mrb[0].mxu0
  %v371 = vpop.f32.mrb[0].mxu0
  %v372 = vadd.f32 %v215, %v371
  %v373 = vpop.f32.mrb[0].mxu0
  %374 = vmatprep.mubr.bf16.mxu0 0
  %375 = vmatmul.mubr.bf16.gmra.mrb[0].mxu0 %v307
  %v376 = vpop.f32.mrb[0].mxu0
  %v377 = vadd.f32 %v220, %v376
  %v378 = vpop.f32.mrb[0].mxu0
  %v379 = vpop.f32.mrb[0].mxu0
  %v380 = vadd.f32 %v223, %v379
  %v381 = vpop.f32.mrb[0].mxu0
  %382 = vmatprep.mubr.bf16.mxu0 0
  %383 = vmatmul.mubr.bf16.gmra.mrb[0].mxu0 %v310
  %v384 = vpop.f32.mrb[0].mxu0
  %v385 = vadd.f32 %v228, %v384
  %v386 = vpop.f32.mrb[0].mxu0
  %v387 = vpop.f32.mrb[0].mxu0
  %v388 = vadd.f32 %v231, %v387
  %v389 = vpop.f32.mrb[0].mxu0
  %390 = vmatprep.mubr.bf16.mxu0 0
  %391 = vmatmul.mubr.bf16.gmra.mrb[0].mxu0 %v313
  %v392 = vpop.f32.mrb[0].mxu0
  %v393 = vadd.f32 %v236, %v392
  %v394 = vpop.f32.mrb[0].mxu0
  %v395 = vpop.f32.mrb[0].mxu0
  %v396 = vadd.f32 %v239, %v395
  %v397 = vpop.f32.mrb[0].mxu0
  %398 = vmatprep.mubr.bf16.mxu0 0
  %399 = vmatmul.mubr.bf16.gmra.mrb[0].mxu0 %v316
  %v400 = vpop.f32.mrb[0].mxu0
  %v401 = vadd.f32 %v244, %v400
  %v402 = vpop.f32.mrb[0].mxu0
  %v403 = vpop.f32.mrb[0].mxu0
  %v404 = vadd.f32 %v247, %v403
  %v405 = vpop.f32.mrb[0].mxu0
  %406 = vdwg.mxu0
  %v407 = vld [vmem:[%s6] sm:$0x1]
  %v409 = vlaneseq
  %v410 = vshrl.u32 %v409, 7
  %v411 = vsub.s32 0, %v410
  %v412 = vrot.slane %v407, %v411
  %v414 = vadd.f32 %v353, %v412
  %v415 = vadd.f32 %v356, %v412
  %v416 = vadd.f32 %v361, %v412
  %v417 = vadd.f32 %v364, %v412
  %v418 = vadd.f32 %v369, %v412
  %v419 = vadd.f32 %v372, %v412
  %v420 = vadd.f32 %v377, %v412
  %v421 = vadd.f32 %v380, %v412
  %v422 = vadd.f32 %v385, %v412
  %v423 = vadd.f32 %v388, %v412
  %v424 = vadd.f32 %v393, %v412
  %v425 = vadd.f32 %v396, %v412
  %v426 = vadd.f32 %v401, %v412
  %v427 = vadd.f32 %v404, %v412
  %v428 = vmax.f32 %v414, 0.0
  %v429 = vmax.f32 %v415, 0.0
  %v430 = vmax.f32 %v416, 0.0
  %v431 = vmax.f32 %v417, 0.0
  %v432 = vmax.f32 %v418, 0.0
  %v433 = vmax.f32 %v419, 0.0
  %v434 = vmax.f32 %v420, 0.0
  %v435 = vmax.f32 %v421, 0.0
  %v436 = vmax.f32 %v422, 0.0
  %v437 = vmax.f32 %v423, 0.0
  %v438 = vmax.f32 %v424, 0.0
  %v439 = vmax.f32 %v425, 0.0
  %v440 = vmax.f32 %v426, 0.0
  %v441 = vmax.f32 %v427, 0.0
  %v442 = vpack.c.bf16 %v429, %v428
  %v443 = vpack.c.bf16 %v431, %v430
  %v444 = vpack.c.bf16 %v433, %v432
  %v445 = vpack.c.bf16 %v435, %v434
  %v446 = vpack.c.bf16 %v437, %v436
  %v447 = vpack.c.bf16 %v439, %v438
  %v448 = vpack.c.bf16 %v441, %v440
  %v449 = vld [vmem:[%s7] sm:$0xf]
  %v450 = vld [vmem:[%s7 + $0x4] sm:$0xf]
  %v451 = vld [vmem:[%s7 + $0x8] sm:$0xf]
  %v452 = vld [vmem:[%s7 + $0xc] sm:$0xf]
  %v453 = vld [vmem:[%s8] sm:$0x1]
  %v455 = vlaneseq
  %v456 = vshrl.u32 %v455, 7
  %v457 = vsub.s32 0, %v456
  %v458 = vrot.slane %v453, %v457
  %v464 = vunpack.c.l.b16 %v449
  %v465 = vunpack.c.l.b16 %v450
  %v466 = vunpack.c.l.b16 %v451
  %v467 = vunpack.c.l.b16 %v452
  %v468 = vpack.c.b16 %v465, %v464
  %v469 = vpack.c.b16 %v467, %v466
  %v473 = vsel %vm139, %v442, 0
  %v476 = vsel %vm139, %v443, 0
  %v479 = vsel %vm139, %v444, 0
  %v482 = vsel %vm139, %v445, 0
  %v485 = vsel %vm139, %v446, 0
  %v488 = vsel %vm139, %v447, 0
  %v491 = vsel %vm139, %v448, 0
  %493 = vmatprep.subr.bf16.mxu0 0
  %494 = vmatpush1.bf16.msra.mxu0 %v468
  %495 = vmatprep.subr.bf16.mxu0 0
  %496 = vmatpush1.bf16.msra.mxu0 %v469
  %497 = vmatprep.subr.bf16.mxu0 0
  %498 = vmatpush1.bf16.msra.mxu0 0
  %499 = vmatprep.subr.bf16.mxu0 0
  %500 = vmatpush1.bf16.msra.mxu0 0
  %501 = vmatprep.subr.bf16.mxu0 0
  %502 = vmatpush1.bf16.msra.mxu0 0
  %503 = vmatprep.subr.bf16.mxu0 0
  %504 = vmatpush1.bf16.msra.mxu0 0
  %505 = vmatprep.subr.bf16.mxu0 0
  %506 = vmatpush1.bf16.msra.mxu0 0
  %507 = vmatprep.subr.bf16.mxu0 0
  %508 = vmatpush1.bf16.msra.mxu0 0
  %509 = vmatprep.subr.bf16.mxu0 0
  %510 = vmatpush1.bf16.msra.mxu0 0
  %511 = vmatprep.subr.bf16.mxu0 0
  %512 = vmatpush1.bf16.msra.mxu0 0
  %513 = vmatprep.subr.bf16.mxu0 0
  %514 = vmatpush1.bf16.msra.mxu0 0
  %515 = vmatprep.subr.bf16.mxu0 0
  %516 = vmatpush1.bf16.msra.mxu0 0
  %517 = vmatprep.subr.bf16.mxu0 0
  %518 = vmatpush1.bf16.msra.mxu0 0
  %519 = vmatprep.subr.bf16.mxu0 0
  %520 = vmatpush1.bf16.msra.mxu0 0
  %521 = vmatprep.subr.bf16.mxu0 0
  %522 = vmatpush1.bf16.msra.mxu0 0
  %523 = vmatprep.subr.bf16.mxu0 0
  %524 = vmatpush1.bf16.msra.mxu0 0
  %525 = vmatprep.mubr.bf16.mxu0 0
  %526 = vmatmul.mubr.bf16.gmra.mrb[0].mxu0 %v473
  %v527 = vpop.f32.mrb[0].mxu0
  %v528 = vadd.f32 %v458, %v527
  %v529 = vpop.f32.mrb[0].mxu0
  %v530 = vpop.f32.mrb[0].mxu0
  %v531 = vadd.f32 %v458, %v530
  %v532 = vpop.f32.mrb[0].mxu0
  %533 = vmatprep.mubr.bf16.mxu0 0
  %534 = vmatmul.mubr.bf16.gmra.mrb[0].mxu0 %v476
  %v535 = vpop.f32.mrb[0].mxu0
  %v536 = vadd.f32 %v458, %v535
  %v537 = vpop.f32.mrb[0].mxu0
  %v538 = vpop.f32.mrb[0].mxu0
  %v539 = vadd.f32 %v458, %v538
  %v540 = vpop.f32.mrb[0].mxu0
  %541 = vmatprep.mubr.bf16.mxu0 0
  %542 = vmatmul.mubr.bf16.gmra.mrb[0].mxu0 %v479
  %v543 = vpop.f32.mrb[0].mxu0
  %v544 = vadd.f32 %v458, %v543
  %v545 = vpop.f32.mrb[0].mxu0
  %v546 = vpop.f32.mrb[0].mxu0
  %v547 = vadd.f32 %v458, %v546
  %v548 = vpop.f32.mrb[0].mxu0
  %549 = vmatprep.mubr.bf16.mxu0 0
  %550 = vmatmul.mubr.bf16.gmra.mrb[0].mxu0 %v482
  %v551 = vpop.f32.mrb[0].mxu0
  %v552 = vadd.f32 %v458, %v551
  %v553 = vpop.f32.mrb[0].mxu0
  %v554 = vpop.f32.mrb[0].mxu0
  %v555 = vadd.f32 %v458, %v554
  %v556 = vpop.f32.mrb[0].mxu0
  %557 = vmatprep.mubr.bf16.mxu0 0
  %558 = vmatmul.mubr.bf16.gmra.mrb[0].mxu0 %v485
  %v559 = vpop.f32.mrb[0].mxu0
  %v560 = vadd.f32 %v458, %v559
  %v561 = vpop.f32.mrb[0].mxu0
  %v562 = vpop.f32.mrb[0].mxu0
  %v563 = vadd.f32 %v458, %v562
  %v564 = vpop.f32.mrb[0].mxu0
  %565 = vmatprep.mubr.bf16.mxu0 0
  %566 = vmatmul.mubr.bf16.gmra.mrb[0].mxu0 %v488
  %v567 = vpop.f32.mrb[0].mxu0
  %v568 = vadd.f32 %v458, %v567
  %v569 = vpop.f32.mrb[0].mxu0
  %v570 = vpop.f32.mrb[0].mxu0
  %v571 = vadd.f32 %v458, %v570
  %v572 = vpop.f32.mrb[0].mxu0
  %573 = vmatprep.mubr.bf16.mxu0 0
  %574 = vmatmul.mubr.bf16.gmra.mrb[0].mxu0 %v491
  %v575 = vpop.f32.mrb[0].mxu0
  %v576 = vadd.f32 %v458, %v575
  %v577 = vpop.f32.mrb[0].mxu0
  %v578 = vpop.f32.mrb[0].mxu0
  %v579 = vadd.f32 %v458, %v578
  %v580 = vpop.f32.mrb[0].mxu0
  %581 = vdwg.mxu0
  %v582 = vpack.c.bf16 %v531, %v528
  %v583 = vpack.c.bf16 %v539, %v536
  %v584 = vpack.c.bf16 %v547, %v544
  %v585 = vpack.c.bf16 %v555, %v552
  %v586 = vpack.c.bf16 %v563, %v560
  %v587 = vpack.c.bf16 %v571, %v568
  %v588 = vpack.c.bf16 %v579, %v576
  %v589 = vld [vmem:[%s9] sm:$0xf]
  %v590 = vld [vmem:[%s9 + $0x4] sm:$0xf]
  %v591 = vld [vmem:[%s9 + $0x8] sm:$0xf]
  %v592 = vld [vmem:[%s9 + $0xc] sm:$0xf]
  %v597 = vunpack.c.l.b16 %v589
  %v598 = vunpack.c.l.b16 %v590
  %v599 = vunpack.c.l.b16 %v591
  %v600 = vunpack.c.l.b16 %v592
  %v601 = vpack.c.b16 %v598, %v597
  %v602 = vpack.c.b16 %v600, %v599
  %v606 = vsel %vm139, %v582, 0
  %v609 = vsel %vm139, %v583, 0
  %v612 = vsel %vm139, %v584, 0
  %v615 = vsel %vm139, %v585, 0
  %v618 = vsel %vm139, %v586, 0
  %v621 = vsel %vm139, %v587, 0
  %v624 = vsel %vm139, %v588, 0
  %626 = vmatprep.subr.bf16.mxu0 0
  %627 = vmatpush1.bf16.msra.mxu0 %v601
  %628 = vmatprep.subr.bf16.mxu0 0
  %629 = vmatpush1.bf16.msra.mxu0 %v602
  %630 = vmatprep.subr.bf16.mxu0 0
  %631 = vmatpush1.bf16.msra.mxu0 0
  %632 = vmatprep.subr.bf16.mxu0 0
  %633 = vmatpush1.bf16.msra.mxu0 0
  %634 = vmatprep.subr.bf16.mxu0 0
  %635 = vmatpush1.bf16.msra.mxu0 0
  %636 = vmatprep.subr.bf16.mxu0 0
  %637 = vmatpush1.bf16.msra.mxu0 0
  %638 = vmatprep.subr.bf16.mxu0 0
  %639 = vmatpush1.bf16.msra.mxu0 0
  %640 = vmatprep.subr.bf16.mxu0 0
  %641 = vmatpush1.bf16.msra.mxu0 0
  %642 = vmatprep.subr.bf16.mxu0 0
  %643 = vmatpush1.bf16.msra.mxu0 0
  %644 = vmatprep.subr.bf16.mxu0 0
  %645 = vmatpush1.bf16.msra.mxu0 0
  %646 = vmatprep.subr.bf16.mxu0 0
  %647 = vmatpush1.bf16.msra.mxu0 0
  %648 = vmatprep.subr.bf16.mxu0 0
  %649 = vmatpush1.bf16.msra.mxu0 0
  %650 = vmatprep.subr.bf16.mxu0 0
  %651 = vmatpush1.bf16.msra.mxu0 0
  %652 = vmatprep.subr.bf16.mxu0 0
  %653 = vmatpush1.bf16.msra.mxu0 0
  %654 = vmatprep.subr.bf16.mxu0 0
  %655 = vmatpush1.bf16.msra.mxu0 0
  %656 = vmatprep.subr.bf16.mxu0 0
  %657 = vmatpush1.bf16.msra.mxu0 0
  %658 = vmatprep.mubr.bf16.mxu0 0
  %659 = vmatmul.mubr.bf16.gmra.mrb[0].mxu0 %v606
  %v660 = vpop.f32.mrb[0].mxu0
  %v661 = vadd.f32 0.0, %v660
  %v662 = vpop.f32.mrb[0].mxu0
  %v663 = vpop.f32.mrb[0].mxu0
  %v664 = vadd.f32 0.0, %v663
  %v665 = vpop.f32.mrb[0].mxu0
  %666 = vmatprep.mubr.bf16.mxu0 0
  %667 = vmatmul.mubr.bf16.gmra.mrb[0].mxu0 %v609
  %v668 = vpop.f32.mrb[0].mxu0
  %v669 = vadd.f32 0.0, %v668
  %v670 = vpop.f32.mrb[0].mxu0
  %v671 = vpop.f32.mrb[0].mxu0
  %v672 = vadd.f32 0.0, %v671
  %v673 = vpop.f32.mrb[0].mxu0
  %674 = vmatprep.mubr.bf16.mxu0 0
  %675 = vmatmul.mubr.bf16.gmra.mrb[0].mxu0 %v612
  %v676 = vpop.f32.mrb[0].mxu0
  %v677 = vadd.f32 0.0, %v676
  %v678 = vpop.f32.mrb[0].mxu0
  %v679 = vpop.f32.mrb[0].mxu0
  %v680 = vadd.f32 0.0, %v679
  %v681 = vpop.f32.mrb[0].mxu0
  %682 = vmatprep.mubr.bf16.mxu0 0
  %683 = vmatmul.mubr.bf16.gmra.mrb[0].mxu0 %v615
  %v684 = vpop.f32.mrb[0].mxu0
  %v685 = vadd.f32 0.0, %v684
  %v686 = vpop.f32.mrb[0].mxu0
  %v687 = vpop.f32.mrb[0].mxu0
  %v688 = vadd.f32 0.0, %v687
  %v689 = vpop.f32.mrb[0].mxu0
  %690 = vmatprep.mubr.bf16.mxu0 0
  %691 = vmatmul.mubr.bf16.gmra.mrb[0].mxu0 %v618
  %v692 = vpop.f32.mrb[0].mxu0
  %v693 = vadd.f32 0.0, %v692
  %v694 = vpop.f32.mrb[0].mxu0
  %v695 = vpop.f32.mrb[0].mxu0
  %v696 = vadd.f32 0.0, %v695
  %v697 = vpop.f32.mrb[0].mxu0
  %698 = vmatprep.mubr.bf16.mxu0 0
  %699 = vmatmul.mubr.bf16.gmra.mrb[0].mxu0 %v621
  %v700 = vpop.f32.mrb[0].mxu0
  %v701 = vadd.f32 0.0, %v700
  %v702 = vpop.f32.mrb[0].mxu0
  %v703 = vpop.f32.mrb[0].mxu0
  %v704 = vadd.f32 0.0, %v703
  %v705 = vpop.f32.mrb[0].mxu0
  %706 = vmatprep.mubr.bf16.mxu0 0
  %707 = vmatmul.mubr.bf16.gmra.mrb[0].mxu0 %v624
  %v708 = vpop.f32.mrb[0].mxu0
  %v709 = vadd.f32 0.0, %v708
  %v710 = vpop.f32.mrb[0].mxu0
  %v711 = vpop.f32.mrb[0].mxu0
  %v712 = vadd.f32 0.0, %v711
  %v713 = vpop.f32.mrb[0].mxu0
  %714 = vdwg.mxu0
  %v715 = vld [vmem:[%s2] sm:$0xf]
  %v716 = vld [vmem:[%s2 + $0x4] sm:$0xf]
  %v717 = vld [vmem:[%s10] sm:$0xf]
  %v718 = vld [vmem:[%s10 + $0x4] sm:$0xf]
  %v719 = vld [vmem:[%s10 + $0x8] sm:$0xf]
  %v720 = vld [vmem:[%s10 + $0xc] sm:$0xf]
  %v723 = vunpack.c.l.b16 %v715
  %v724 = vunpack.c.l.b16 %v716
  %v725 = vpack.c.b16 %v724, %v723
  %v730 = vunpack.c.l.b16 %v717
  %v731 = vunpack.c.l.b16 %v718
  %v732 = vunpack.c.l.b16 %v719
  %v733 = vunpack.c.l.b16 %v720
  %v734 = vpack.c.b16 %v731, %v730
  %v735 = vpack.c.b16 %v733, %v732
  %v739 = vsel %vm139, %v725, 0
  %741 = vmatprep.subr.bf16.mxu0 0
  %742 = vmatpush1.bf16.msra.mxu0 %v734
  %743 = vmatprep.subr.bf16.mxu0 0
  %744 = vmatpush1.bf16.msra.mxu0 %v735
  %745 = vmatprep.subr.bf16.mxu0 0
  %746 = vmatpush1.bf16.msra.mxu0 0
  %747 = vmatprep.subr.bf16.mxu0 0
  %748 = vmatpush1.bf16.msra.mxu0 0
  %749 = vmatprep.subr.bf16.mxu0 0
  %750 = vmatpush1.bf16.msra.mxu0 0
  %751 = vmatprep.subr.bf16.mxu0 0
  %752 = vmatpush1.bf16.msra.mxu0 0
  %753 = vmatprep.subr.bf16.mxu0 0
  %754 = vmatpush1.bf16.msra.mxu0 0
  %755 = vmatprep.subr.bf16.mxu0 0
  %756 = vmatpush1.bf16.msra.mxu0 0
  %757 = vmatprep.subr.bf16.mxu0 0
  %758 = vmatpush1.bf16.msra.mxu0 0
  %759 = vmatprep.subr.bf16.mxu0 0
  %760 = vmatpush1.bf16.msra.mxu0 0
  %761 = vmatprep.subr.bf16.mxu0 0
  %762 = vmatpush1.bf16.msra.mxu0 0
  %763 = vmatprep.subr.bf16.mxu0 0
  %764 = vmatpush1.bf16.msra.mxu0 0
  %765 = vmatprep.subr.bf16.mxu0 0
  %766 = vmatpush1.bf16.msra.mxu0 0
  %767 = vmatprep.subr.bf16.mxu0 0
  %768 = vmatpush1.bf16.msra.mxu0 0
  %769 = vmatprep.subr.bf16.mxu0 0
  %770 = vmatpush1.bf16.msra.mxu0 0
  %771 = vmatprep.subr.bf16.mxu0 0
  %772 = vmatpush1.bf16.msra.mxu0 0
  %773 = vmatprep.mubr.bf16.mxu0 0
  %774 = vmatmul.mubr.bf16.gmra.mrb[0].mxu0 %v739
  %v775 = vpop.f32.mrb[0].mxu0
  %v776 = vadd.f32 0.0, %v775
  %v777 = vpop.f32.mrb[0].mxu0
  %v778 = vpop.f32.mrb[0].mxu0
  %v779 = vadd.f32 0.0, %v778
  %v780 = vpop.f32.mrb[0].mxu0
  %781 = vdwg.mxu0
  %v782 = vld [vmem:[%s3] sm:$0xff]
  %v783 = vld [vmem:[%s3 + $0x8] sm:$0xff]
  %v784 = vld [vmem:[%s11] sm:$0x1]
  %v786 = vlaneseq
  %v787 = vshrl.u32 %v786, 7
  %v788 = vsub.s32 0, %v787
  %v789 = vrot.slane %v784, %v788
  %v791 = vld [vmem:[%s12] sm:$0x1]
  %v793 = vlaneseq
  %v794 = vshrl.u32 %v793, 7
  %v795 = vsub.s32 0, %v794
  %v796 = vrot.slane %v791, %v795
  %v798 = vld [vmem:[#allocation2] sm:$0x1]
  %v800 = vlaneseq
  %v801 = vshrl.u32 %v800, 7
  %v802 = vsub.s32 0, %v801
  %v803 = vrot.slane %v798, %v802
  %806 = vset.pattern.permute.xlu0 0
  %807 = vperm.xlu0 %806, %v782
  %v808 = vpop.permute.xlu0 %807
  %811 = vset.pattern.permute.xlu0 0
  %812 = vperm.xlu0 %811, %v783
  %v813 = vpop.permute.xlu0 %812
  %v815 = vmul.f32 %v808, %v776
  %v816 = vmul.f32 %v813, %v779
  %v817 = vadd.f32 %v661, %v815
  %v818 = vadd.f32 %v664, %v816
  %v819 = vadd.f32 %v817, %v789
  %v820 = vadd.f32 %v818, %v789
  %v821 = vmax.f32 %v819, 0.0
  %v822 = vmax.f32 %v820, 0.0
  %v823 = vmul.f32 %v821, %v796
  %v824 = vmul.f32 %v822, %v796
  %v825 = vsel %vm139, %v823, 0.0
  %826 = vadd.xlane.f32.xlu0 %v825
  %v827 = vpop.xlane.xlu0 %826
  %v828 = vsel %vm139, %v824, 0.0
  %829 = vadd.xlane.f32.xlu0 %v828
  %v830 = vpop.xlane.xlu0 %829
  %v831 = vadd.f32 %v827, %v803
  %v832 = vadd.f32 %v830, %v803
  %vm833 = vcmp.gt.f32.partialorder %v782, 0.0
  %vm834 = vcmp.gt.f32.partialorder %v783, 0.0
  %v835 = vsel %vm833, %v831, -1e+30
  %v836 = vsel %vm834, %v832, -1e+30
  %v837 = vmax.f32 %v835, -1e+30
  %v838 = vmax.f32 %v836, -1e+30
  %v839 = vsub.f32 -1e+30, %v837
  %v840 = vsub.f32 -1e+30, %v838
  %v841 = vmul.f32 %v839, 1.442695
  %v842 = vpow.pop %v841
  %v843 = vmul.f32 %v840, 1.442695
  %v844 = vpow.pop %v843
  %v845 = vsub.f32 %v835, %v837
  %v846 = vsub.f32 %v836, %v838
  %v847 = vmul.f32 %v845, 1.442695
  %v848 = vpow.pop %v847
  %v849 = vmul.f32 %v846, 1.442695
  %v850 = vpow.pop %v849
  %v851 = vmul.f32 %v848, %v782
  %v852 = vmul.f32 %v850, %v783
  %v853 = vmul.f32 %v842, 0.0
  %v854 = vmul.f32 %v844, 0.0
  %v855 = vadd.f32 %v853, %v851
  %v856 = vadd.f32 %v854, %v852
  %858 = vset.pattern.permute.xlu0 0
  %859 = vperm.xlu0 %858, %v842
  %v860 = vpop.permute.xlu0 %859
  %863 = vset.pattern.permute.xlu0 0
  %864 = vperm.xlu0 %863, %v844
  %v865 = vpop.permute.xlu0 %864
  %v867 = vmul.f32 %v860, 0.0
  %v868 = vmul.f32 %v865, 0.0
  %870 = vset.pattern.permute.xlu0 0
  %871 = vperm.xlu0 %870, %v851
  %v872 = vpop.permute.xlu0 %871
  %875 = vset.pattern.permute.xlu0 0
  %876 = vperm.xlu0 %875, %v852
  %v877 = vpop.permute.xlu0 %876
  %v879 = vmul.f32 %v872, %v528
  %v880 = vmul.f32 %v877, %v531
  %v881 = vadd.f32 %v867, %v879
  %v882 = vadd.f32 %v868, %v880
  %883 = vset.pattern.permute.xlu0 1
  %884 = vperm.xlu0 %883, %v782
  %v885 = vpop.permute.xlu0 %884
  %887 = vset.pattern.permute.xlu0 1
  %888 = vperm.xlu0 %887, %v783
  %v889 = vpop.permute.xlu0 %888
  %v891 = vmul.f32 %v885, %v776
  %v892 = vmul.f32 %v889, %v779
  %v893 = vadd.f32 %v669, %v891
  %v894 = vadd.f32 %v672, %v892
  %v895 = vadd.f32 %v893, %v789
  %v896 = vadd.f32 %v894, %v789
  %v897 = vmax.f32 %v895, 0.0
  %v898 = vmax.f32 %v896, 0.0
  %v899 = vmul.f32 %v897, %v796
  %v900 = vmul.f32 %v898, %v796
  %v901 = vsel %vm139, %v899, 0.0
  %902 = vadd.xlane.f32.xlu0 %v901
  %v903 = vpop.xlane.xlu0 %902
  %v904 = vsel %vm139, %v900, 0.0
  %905 = vadd.xlane.f32.xlu0 %v904
  %v906 = vpop.xlane.xlu0 %905
  %v907 = vadd.f32 %v903, %v803
  %v908 = vadd.f32 %v906, %v803
  %911 = vrot.lane.b32.xlu0 %v907, 1
  %v912 = vpop.permute.xlu0 %911
  %913 = vrot.lane.b32.xlu0 %v908, 1
  %v914 = vpop.permute.xlu0 %913
  %v917 = vsel %vm833, %v912, -1e+30
  %v918 = vsel %vm834, %v914, -1e+30
  %921 = vrot.lane.b32.xlu0 %v917, 127
  %v922 = vpop.permute.xlu0 %921
  %923 = vrot.lane.b32.xlu0 %v918, 127
  %v924 = vpop.permute.xlu0 %923
  %v927 = vmax.f32 %v837, %v922
  %v928 = vmax.f32 %v838, %v924
  %v929 = vsub.f32 %v837, %v927
  %v930 = vsub.f32 %v838, %v928
  %v931 = vmul.f32 %v929, 1.442695
  %v932 = vpow.pop %v931
  %v933 = vmul.f32 %v930, 1.442695
  %v934 = vpow.pop %v933
  %937 = vrot.lane.b32.xlu0 %v927, 1
  %v938 = vpop.permute.xlu0 %937
  %939 = vrot.lane.b32.xlu0 %v928, 1
  %v940 = vpop.permute.xlu0 %939
  %v943 = vsub.f32 %v917, %v938
  %v944 = vsub.f32 %v918, %v940
  %v945 = vmul.f32 %v943, 1.442695
  %v946 = vpow.pop %v945
  %v947 = vmul.f32 %v944, 1.442695
  %v948 = vpow.pop %v947
  %v949 = vmul.f32 %v946, %v782
  %v950 = vmul.f32 %v948, %v783
  %v951 = vmul.f32 %v855, %v932
  %v952 = vmul.f32 %v856, %v934
  %955 = vrot.lane.b32.xlu0 %v949, 127
  %v956 = vpop.permute.xlu0 %955
  %957 = vrot.lane.b32.xlu0 %v950, 127
  %v958 = vpop.permute.xlu0 %957
  %v961 = vadd.f32 %v951, %v956
  %v962 = vadd.f32 %v952, %v958
  %964 = vset.pattern.permute.xlu0 0
  %965 = vperm.xlu0 %964, %v932
  %v966 = vpop.permute.xlu0 %965
  %969 = vset.pattern.permute.xlu0 0
  %970 = vperm.xlu0 %969, %v934
  %v971 = vpop.permute.xlu0 %970
  %v973 = vmul.f32 %v881, %v966
  %v974 = vmul.f32 %v882, %v971
  %975 = vset.pattern.permute.xlu0 1
  %976 = vperm.xlu0 %975, %v949
  %v977 = vpop.permute.xlu0 %976
  %979 = vset.pattern.permute.xlu0 1
  %980 = vperm.xlu0 %979, %v950
  %v981 = vpop.permute.xlu0 %980
  %v983 = vmul.f32 %v977, %v536
  %v984 = vmul.f32 %v981, %v539
  %v985 = vadd.f32 %v973, %v983
  %v986 = vadd.f32 %v974, %v984
  %987 = vset.pattern.permute.xlu0 2
  %988 = vperm.xlu0 %987, %v782
  %v989 = vpop.permute.xlu0 %988
  %991 = vset.pattern.permute.xlu0 2
  %992 = vperm.xlu0 %991, %v783
  %v993 = vpop.permute.xlu0 %992
  %v995 = vmul.f32 %v989, %v776
  %v996 = vmul.f32 %v993, %v779
  %v997 = vadd.f32 %v677, %v995
  %v998 = vadd.f32 %v680, %v996
  %v999 = vadd.f32 %v997, %v789
  %v1000 = vadd.f32 %v998, %v789
  %v1001 = vmax.f32 %v999, 0.0
  %v1002 = vmax.f32 %v1000, 0.0
  %v1003 = vmul.f32 %v1001, %v796
  %v1004 = vmul.f32 %v1002, %v796
  %v1005 = vsel %vm139, %v1003, 0.0
  %1006 = vadd.xlane.f32.xlu0 %v1005
  %v1007 = vpop.xlane.xlu0 %1006
  %v1008 = vsel %vm139, %v1004, 0.0
  %1009 = vadd.xlane.f32.xlu0 %v1008
  %v1010 = vpop.xlane.xlu0 %1009
  %v1011 = vadd.f32 %v1007, %v803
  %v1012 = vadd.f32 %v1010, %v803
  %1015 = vrot.lane.b32.xlu0 %v1011, 2
  %v1016 = vpop.permute.xlu0 %1015
  %1017 = vrot.lane.b32.xlu0 %v1012, 2
  %v1018 = vpop.permute.xlu0 %1017
  %v1021 = vsel %vm833, %v1016, -1e+30
  %v1022 = vsel %vm834, %v1018, -1e+30
  %1025 = vrot.lane.b32.xlu0 %v1021, 126
  %v1026 = vpop.permute.xlu0 %1025
  %1027 = vrot.lane.b32.xlu0 %v1022, 126
  %v1028 = vpop.permute.xlu0 %1027
  %v1031 = vmax.f32 %v927, %v1026
  %v1032 = vmax.f32 %v928, %v1028
  %v1033 = vsub.f32 %v927, %v1031
  %v1034 = vsub.f32 %v928, %v1032
  %v1035 = vmul.f32 %v1033, 1.442695
  %v1036 = vpow.pop %v1035
  %v1037 = vmul.f32 %v1034, 1.442695
  %v1038 = vpow.pop %v1037
  %1041 = vrot.lane.b32.xlu0 %v1031, 2
  %v1042 = vpop.permute.xlu0 %1041
  %1043 = vrot.lane.b32.xlu0 %v1032, 2
  %v1044 = vpop.permute.xlu0 %1043
  %v1047 = vsub.f32 %v1021, %v1042
  %v1048 = vsub.f32 %v1022, %v1044
  %v1049 = vmul.f32 %v1047, 1.442695
  %v1050 = vpow.pop %v1049
  %v1051 = vmul.f32 %v1048, 1.442695
  %v1052 = vpow.pop %v1051
  %v1053 = vmul.f32 %v1050, %v782
  %v1054 = vmul.f32 %v1052, %v783
  %v1055 = vmul.f32 %v961, %v1036
  %v1056 = vmul.f32 %v962, %v1038
  %1059 = vrot.lane.b32.xlu0 %v1053, 126
  %v1060 = vpop.permute.xlu0 %1059
  %1061 = vrot.lane.b32.xlu0 %v1054, 126
  %v1062 = vpop.permute.xlu0 %1061
  %v1065 = vadd.f32 %v1055, %v1060
  %v1066 = vadd.f32 %v1056, %v1062
  %1068 = vset.pattern.permute.xlu0 0
  %1069 = vperm.xlu0 %1068, %v1036
  %v1070 = vpop.permute.xlu0 %1069
  %1073 = vset.pattern.permute.xlu0 0
  %1074 = vperm.xlu0 %1073, %v1038
  %v1075 = vpop.permute.xlu0 %1074
  %v1077 = vmul.f32 %v985, %v1070
  %v1078 = vmul.f32 %v986, %v1075
  %1079 = vset.pattern.permute.xlu0 2
  %1080 = vperm.xlu0 %1079, %v1053
  %v1081 = vpop.permute.xlu0 %1080
  %1083 = vset.pattern.permute.xlu0 2
  %1084 = vperm.xlu0 %1083, %v1054
  %v1085 = vpop.permute.xlu0 %1084
  %v1087 = vmul.f32 %v1081, %v544
  %v1088 = vmul.f32 %v1085, %v547
  %v1089 = vadd.f32 %v1077, %v1087
  %v1090 = vadd.f32 %v1078, %v1088
  %1091 = vset.pattern.permute.xlu0 3
  %1092 = vperm.xlu0 %1091, %v782
  %v1093 = vpop.permute.xlu0 %1092
  %1095 = vset.pattern.permute.xlu0 3
  %1096 = vperm.xlu0 %1095, %v783
  %v1097 = vpop.permute.xlu0 %1096
  %v1099 = vmul.f32 %v1093, %v776
  %v1100 = vmul.f32 %v1097, %v779
  %v1101 = vadd.f32 %v685, %v1099
  %v1102 = vadd.f32 %v688, %v1100
  %v1103 = vadd.f32 %v1101, %v789
  %v1104 = vadd.f32 %v1102, %v789
  %v1105 = vmax.f32 %v1103, 0.0
  %v1106 = vmax.f32 %v1104, 0.0
  %v1107 = vmul.f32 %v1105, %v796
  %v1108 = vmul.f32 %v1106, %v796
  %v1109 = vsel %vm139, %v1107, 0.0
  %1110 = vadd.xlane.f32.xlu0 %v1109
  %v1111 = vpop.xlane.xlu0 %1110
  %v1112 = vsel %vm139, %v1108, 0.0
  %1113 = vadd.xlane.f32.xlu0 %v1112
  %v1114 = vpop.xlane.xlu0 %1113
  %v1115 = vadd.f32 %v1111, %v803
  %v1116 = vadd.f32 %v1114, %v803
  %1119 = vrot.lane.b32.xlu0 %v1115, 3
  %v1120 = vpop.permute.xlu0 %1119
  %1121 = vrot.lane.b32.xlu0 %v1116, 3
  %v1122 = vpop.permute.xlu0 %1121
  %v1125 = vsel %vm833, %v1120, -1e+30
  %v1126 = vsel %vm834, %v1122, -1e+30
  %1129 = vrot.lane.b32.xlu0 %v1125, 125
  %v1130 = vpop.permute.xlu0 %1129
  %1131 = vrot.lane.b32.xlu0 %v1126, 125
  %v1132 = vpop.permute.xlu0 %1131
  %v1135 = vmax.f32 %v1031, %v1130
  %v1136 = vmax.f32 %v1032, %v1132
  %v1137 = vsub.f32 %v1031, %v1135
  %v1138 = vsub.f32 %v1032, %v1136
  %v1139 = vmul.f32 %v1137, 1.442695
  %v1140 = vpow.pop %v1139
  %v1141 = vmul.f32 %v1138, 1.442695
  %v1142 = vpow.pop %v1141
  %1145 = vrot.lane.b32.xlu0 %v1135, 3
  %v1146 = vpop.permute.xlu0 %1145
  %1147 = vrot.lane.b32.xlu0 %v1136, 3
  %v1148 = vpop.permute.xlu0 %1147
  %v1151 = vsub.f32 %v1125, %v1146
  %v1152 = vsub.f32 %v1126, %v1148
  %v1153 = vmul.f32 %v1151, 1.442695
  %v1154 = vpow.pop %v1153
  %v1155 = vmul.f32 %v1152, 1.442695
  %v1156 = vpow.pop %v1155
  %v1157 = vmul.f32 %v1154, %v782
  %v1158 = vmul.f32 %v1156, %v783
  %v1159 = vmul.f32 %v1065, %v1140
  %v1160 = vmul.f32 %v1066, %v1142
  %1163 = vrot.lane.b32.xlu0 %v1157, 125
  %v1164 = vpop.permute.xlu0 %1163
  %1165 = vrot.lane.b32.xlu0 %v1158, 125
  %v1166 = vpop.permute.xlu0 %1165
  %v1169 = vadd.f32 %v1159, %v1164
  %v1170 = vadd.f32 %v1160, %v1166
  %1172 = vset.pattern.permute.xlu0 0
  %1173 = vperm.xlu0 %1172, %v1140
  %v1174 = vpop.permute.xlu0 %1173
  %1177 = vset.pattern.permute.xlu0 0
  %1178 = vperm.xlu0 %1177, %v1142
  %v1179 = vpop.permute.xlu0 %1178
  %v1181 = vmul.f32 %v1089, %v1174
  %v1182 = vmul.f32 %v1090, %v1179
  %1183 = vset.pattern.permute.xlu0 3
  %1184 = vperm.xlu0 %1183, %v1157
  %v1185 = vpop.permute.xlu0 %1184
  %1187 = vset.pattern.permute.xlu0 3
  %1188 = vperm.xlu0 %1187, %v1158
  %v1189 = vpop.permute.xlu0 %1188
  %v1191 = vmul.f32 %v1185, %v552
  %v1192 = vmul.f32 %v1189, %v555
  %v1193 = vadd.f32 %v1181, %v1191
  %v1194 = vadd.f32 %v1182, %v1192
  %1195 = vset.pattern.permute.xlu0 4
  %1196 = vperm.xlu0 %1195, %v782
  %v1197 = vpop.permute.xlu0 %1196
  %1199 = vset.pattern.permute.xlu0 4
  %1200 = vperm.xlu0 %1199, %v783
  %v1201 = vpop.permute.xlu0 %1200
  %v1203 = vmul.f32 %v1197, %v776
  %v1204 = vmul.f32 %v1201, %v779
  %v1205 = vadd.f32 %v693, %v1203
  %v1206 = vadd.f32 %v696, %v1204
  %v1207 = vadd.f32 %v1205, %v789
  %v1208 = vadd.f32 %v1206, %v789
  %v1209 = vmax.f32 %v1207, 0.0
  %v1210 = vmax.f32 %v1208, 0.0
  %v1211 = vmul.f32 %v1209, %v796
  %v1212 = vmul.f32 %v1210, %v796
  %v1213 = vsel %vm139, %v1211, 0.0
  %1214 = vadd.xlane.f32.xlu0 %v1213
  %v1215 = vpop.xlane.xlu0 %1214
  %v1216 = vsel %vm139, %v1212, 0.0
  %1217 = vadd.xlane.f32.xlu0 %v1216
  %v1218 = vpop.xlane.xlu0 %1217
  %v1219 = vadd.f32 %v1215, %v803
  %v1220 = vadd.f32 %v1218, %v803
  %1223 = vrot.lane.b32.xlu0 %v1219, 4
  %v1224 = vpop.permute.xlu0 %1223
  %1225 = vrot.lane.b32.xlu0 %v1220, 4
  %v1226 = vpop.permute.xlu0 %1225
  %v1229 = vsel %vm833, %v1224, -1e+30
  %v1230 = vsel %vm834, %v1226, -1e+30
  %1233 = vrot.lane.b32.xlu0 %v1229, 124
  %v1234 = vpop.permute.xlu0 %1233
  %1235 = vrot.lane.b32.xlu0 %v1230, 124
  %v1236 = vpop.permute.xlu0 %1235
  %v1239 = vmax.f32 %v1135, %v1234
  %v1240 = vmax.f32 %v1136, %v1236
  %v1241 = vsub.f32 %v1135, %v1239
  %v1242 = vsub.f32 %v1136, %v1240
  %v1243 = vmul.f32 %v1241, 1.442695
  %v1244 = vpow.pop %v1243
  %v1245 = vmul.f32 %v1242, 1.442695
  %v1246 = vpow.pop %v1245
  %1249 = vrot.lane.b32.xlu0 %v1239, 4
  %v1250 = vpop.permute.xlu0 %1249
  %1251 = vrot.lane.b32.xlu0 %v1240, 4
  %v1252 = vpop.permute.xlu0 %1251
  %v1255 = vsub.f32 %v1229, %v1250
  %v1256 = vsub.f32 %v1230, %v1252
  %v1257 = vmul.f32 %v1255, 1.442695
  %v1258 = vpow.pop %v1257
  %v1259 = vmul.f32 %v1256, 1.442695
  %v1260 = vpow.pop %v1259
  %v1261 = vmul.f32 %v1258, %v782
  %v1262 = vmul.f32 %v1260, %v783
  %v1263 = vmul.f32 %v1169, %v1244
  %v1264 = vmul.f32 %v1170, %v1246
  %1267 = vrot.lane.b32.xlu0 %v1261, 124
  %v1268 = vpop.permute.xlu0 %1267
  %1269 = vrot.lane.b32.xlu0 %v1262, 124
  %v1270 = vpop.permute.xlu0 %1269
  %v1273 = vadd.f32 %v1263, %v1268
  %v1274 = vadd.f32 %v1264, %v1270
  %1276 = vset.pattern.permute.xlu0 0
  %1277 = vperm.xlu0 %1276, %v1244
  %v1278 = vpop.permute.xlu0 %1277
  %1281 = vset.pattern.permute.xlu0 0
  %1282 = vperm.xlu0 %1281, %v1246
  %v1283 = vpop.permute.xlu0 %1282
  %v1285 = vmul.f32 %v1193, %v1278
  %v1286 = vmul.f32 %v1194, %v1283
  %1287 = vset.pattern.permute.xlu0 4
  %1288 = vperm.xlu0 %1287, %v1261
  %v1289 = vpop.permute.xlu0 %1288
  %1291 = vset.pattern.permute.xlu0 4
  %1292 = vperm.xlu0 %1291, %v1262
  %v1293 = vpop.permute.xlu0 %1292
  %v1295 = vmul.f32 %v1289, %v560
  %v1296 = vmul.f32 %v1293, %v563
  %v1297 = vadd.f32 %v1285, %v1295
  %v1298 = vadd.f32 %v1286, %v1296
  %1299 = vset.pattern.permute.xlu0 5
  %1300 = vperm.xlu0 %1299, %v782
  %v1301 = vpop.permute.xlu0 %1300
  %1303 = vset.pattern.permute.xlu0 5
  %1304 = vperm.xlu0 %1303, %v783
  %v1305 = vpop.permute.xlu0 %1304
  %v1307 = vmul.f32 %v1301, %v776
  %v1308 = vmul.f32 %v1305, %v779
  %v1309 = vadd.f32 %v701, %v1307
  %v1310 = vadd.f32 %v704, %v1308
  %v1311 = vadd.f32 %v1309, %v789
  %v1312 = vadd.f32 %v1310, %v789
  %v1313 = vmax.f32 %v1311, 0.0
  %v1314 = vmax.f32 %v1312, 0.0
  %v1315 = vmul.f32 %v1313, %v796
  %v1316 = vmul.f32 %v1314, %v796
  %v1317 = vsel %vm139, %v1315, 0.0
  %1318 = vadd.xlane.f32.xlu0 %v1317
  %v1319 = vpop.xlane.xlu0 %1318
  %v1320 = vsel %vm139, %v1316, 0.0
  %1321 = vadd.xlane.f32.xlu0 %v1320
  %v1322 = vpop.xlane.xlu0 %1321
  %v1323 = vadd.f32 %v1319, %v803
  %v1324 = vadd.f32 %v1322, %v803
  %1327 = vrot.lane.b32.xlu0 %v1323, 5
  %v1328 = vpop.permute.xlu0 %1327
  %1329 = vrot.lane.b32.xlu0 %v1324, 5
  %v1330 = vpop.permute.xlu0 %1329
  %v1333 = vsel %vm833, %v1328, -1e+30
  %v1334 = vsel %vm834, %v1330, -1e+30
  %1337 = vrot.lane.b32.xlu0 %v1333, 123
  %v1338 = vpop.permute.xlu0 %1337
  %1339 = vrot.lane.b32.xlu0 %v1334, 123
  %v1340 = vpop.permute.xlu0 %1339
  %v1343 = vmax.f32 %v1239, %v1338
  %v1344 = vmax.f32 %v1240, %v1340
  %v1345 = vsub.f32 %v1239, %v1343
  %v1346 = vsub.f32 %v1240, %v1344
  %v1347 = vmul.f32 %v1345, 1.442695
  %v1348 = vpow.pop %v1347
  %v1349 = vmul.f32 %v1346, 1.442695
  %v1350 = vpow.pop %v1349
  %1353 = vrot.lane.b32.xlu0 %v1343, 5
  %v1354 = vpop.permute.xlu0 %1353
  %1355 = vrot.lane.b32.xlu0 %v1344, 5
  %v1356 = vpop.permute.xlu0 %1355
  %v1359 = vsub.f32 %v1333, %v1354
  %v1360 = vsub.f32 %v1334, %v1356
  %v1361 = vmul.f32 %v1359, 1.442695
  %v1362 = vpow.pop %v1361
  %v1363 = vmul.f32 %v1360, 1.442695
  %v1364 = vpow.pop %v1363
  %v1365 = vmul.f32 %v1362, %v782
  %v1366 = vmul.f32 %v1364, %v783
  %v1367 = vmul.f32 %v1273, %v1348
  %v1368 = vmul.f32 %v1274, %v1350
  %1371 = vrot.lane.b32.xlu0 %v1365, 123
  %v1372 = vpop.permute.xlu0 %1371
  %1373 = vrot.lane.b32.xlu0 %v1366, 123
  %v1374 = vpop.permute.xlu0 %1373
  %v1377 = vadd.f32 %v1367, %v1372
  %v1378 = vadd.f32 %v1368, %v1374
  %1380 = vset.pattern.permute.xlu0 0
  %1381 = vperm.xlu0 %1380, %v1348
  %v1382 = vpop.permute.xlu0 %1381
  %1385 = vset.pattern.permute.xlu0 0
  %1386 = vperm.xlu0 %1385, %v1350
  %v1387 = vpop.permute.xlu0 %1386
  %v1389 = vmul.f32 %v1297, %v1382
  %v1390 = vmul.f32 %v1298, %v1387
  %1391 = vset.pattern.permute.xlu0 5
  %1392 = vperm.xlu0 %1391, %v1365
  %v1393 = vpop.permute.xlu0 %1392
  %1395 = vset.pattern.permute.xlu0 5
  %1396 = vperm.xlu0 %1395, %v1366
  %v1397 = vpop.permute.xlu0 %1396
  %v1399 = vmul.f32 %v1393, %v568
  %v1400 = vmul.f32 %v1397, %v571
  %v1401 = vadd.f32 %v1389, %v1399
  %v1402 = vadd.f32 %v1390, %v1400
  %1403 = vset.pattern.permute.xlu0 6
  %1404 = vperm.xlu0 %1403, %v782
  %v1405 = vpop.permute.xlu0 %1404
  %1407 = vset.pattern.permute.xlu0 6
  %1408 = vperm.xlu0 %1407, %v783
  %v1409 = vpop.permute.xlu0 %1408
  %v1411 = vmul.f32 %v1405, %v776
  %v1412 = vmul.f32 %v1409, %v779
  %v1413 = vadd.f32 %v709, %v1411
  %v1414 = vadd.f32 %v712, %v1412
  %v1415 = vadd.f32 %v1413, %v789
  %v1416 = vadd.f32 %v1414, %v789
  %v1417 = vmax.f32 %v1415, 0.0
  %v1418 = vmax.f32 %v1416, 0.0
  %v1419 = vmul.f32 %v1417, %v796
  %v1420 = vmul.f32 %v1418, %v796
  %v1421 = vsel %vm139, %v1419, 0.0
  %1422 = vadd.xlane.f32.xlu0 %v1421
  %v1423 = vpop.xlane.xlu0 %1422
  %v1424 = vsel %vm139, %v1420, 0.0
  %1425 = vadd.xlane.f32.xlu0 %v1424
  %v1426 = vpop.xlane.xlu0 %1425
  %v1427 = vadd.f32 %v1423, %v803
  %v1428 = vadd.f32 %v1426, %v803
  %1431 = vrot.lane.b32.xlu0 %v1427, 6
  %v1432 = vpop.permute.xlu0 %1431
  %1433 = vrot.lane.b32.xlu0 %v1428, 6
  %v1434 = vpop.permute.xlu0 %1433
  %v1437 = vsel %vm833, %v1432, -1e+30
  %v1438 = vsel %vm834, %v1434, -1e+30
  %1441 = vrot.lane.b32.xlu0 %v1437, 122
  %v1442 = vpop.permute.xlu0 %1441
  %1443 = vrot.lane.b32.xlu0 %v1438, 122
  %v1444 = vpop.permute.xlu0 %1443
  %v1447 = vmax.f32 %v1343, %v1442
  %v1448 = vmax.f32 %v1344, %v1444
  %v1449 = vsub.f32 %v1343, %v1447
  %v1450 = vsub.f32 %v1344, %v1448
  %v1451 = vmul.f32 %v1449, 1.442695
  %v1452 = vpow.pop %v1451
  %v1453 = vmul.f32 %v1450, 1.442695
  %v1454 = vpow.pop %v1453
  %1457 = vrot.lane.b32.xlu0 %v1447, 6
  %v1458 = vpop.permute.xlu0 %1457
  %1459 = vrot.lane.b32.xlu0 %v1448, 6
  %v1460 = vpop.permute.xlu0 %1459
  %v1463 = vsub.f32 %v1437, %v1458
  %v1464 = vsub.f32 %v1438, %v1460
  %v1465 = vmul.f32 %v1463, 1.442695
  %v1466 = vpow.pop %v1465
  %v1467 = vmul.f32 %v1464, 1.442695
  %v1468 = vpow.pop %v1467
  %v1469 = vmul.f32 %v1466, %v782
  %v1470 = vmul.f32 %v1468, %v783
  %v1471 = vmul.f32 %v1377, %v1452
  %v1472 = vmul.f32 %v1378, %v1454
  %1475 = vrot.lane.b32.xlu0 %v1469, 122
  %v1476 = vpop.permute.xlu0 %1475
  %1477 = vrot.lane.b32.xlu0 %v1470, 122
  %v1478 = vpop.permute.xlu0 %1477
  %v1481 = vadd.f32 %v1471, %v1476
  %v1482 = vadd.f32 %v1472, %v1478
  %1484 = vset.pattern.permute.xlu0 0
  %1485 = vperm.xlu0 %1484, %v1452
  %v1486 = vpop.permute.xlu0 %1485
  %1489 = vset.pattern.permute.xlu0 0
  %1490 = vperm.xlu0 %1489, %v1454
  %v1491 = vpop.permute.xlu0 %1490
  %v1493 = vmul.f32 %v1401, %v1486
  %v1494 = vmul.f32 %v1402, %v1491
  %1495 = vset.pattern.permute.xlu0 6
  %1496 = vperm.xlu0 %1495, %v1469
  %v1497 = vpop.permute.xlu0 %1496
  %1499 = vset.pattern.permute.xlu0 6
  %1500 = vperm.xlu0 %1499, %v1470
  %v1501 = vpop.permute.xlu0 %1500
  %v1503 = vmul.f32 %v1497, %v576
  %v1504 = vmul.f32 %v1501, %v579
  %v1505 = vadd.f32 %v1493, %v1503
  %v1506 = vadd.f32 %v1494, %v1504
  %v1507 = vadd.f32 %v1481, 1e-10
  %v1508 = vadd.f32 %v1482, 1e-10
  %v1509 = vrcp.pop %v1507
  %v1510 = vrcp.pop %v1508
  %1512 = vset.pattern.permute.xlu0 0
  %1513 = vperm.xlu0 %1512, %v1509
  %v1514 = vpop.permute.xlu0 %1513
  %1517 = vset.pattern.permute.xlu0 0
  %1518 = vperm.xlu0 %1517, %v1510
  %v1519 = vpop.permute.xlu0 %1518
  %v1521 = vmul.f32 %v1505, %v1514
  %v1522 = vmul.f32 %v1506, %v1519
  %v1523 = vpack.c.bf16 %v1522, %v1521
  %v1524 = vld [vmem:[%s14] sm:$0xf]
  %v1525 = vld [vmem:[%s14 + $0x4] sm:$0xf]
  %v1526 = vld [vmem:[%s14 + $0x8] sm:$0xf]
  %v1527 = vld [vmem:[%s14 + $0xc] sm:$0xf]
  %v1528 = vld [vmem:[%s15] sm:$0x1]
  %v1530 = vlaneseq
  %v1531 = vshrl.u32 %v1530, 7
  %v1532 = vsub.s32 0, %v1531
  %v1533 = vrot.slane %v1528, %v1532
  %v1539 = vunpack.c.l.b16 %v1524
  %v1540 = vunpack.c.l.b16 %v1525
  %v1541 = vunpack.c.l.b16 %v1526
  %v1542 = vunpack.c.l.b16 %v1527
  %v1543 = vpack.c.b16 %v1540, %v1539
  %v1544 = vpack.c.b16 %v1542, %v1541
  %v1548 = vsel %vm139, %v1523, 0
  %1550 = vmatprep.subr.bf16.mxu0 0
  %1551 = vmatpush1.bf16.msra.mxu0 %v1543
  %1552 = vmatprep.subr.bf16.mxu0 0
  %1553 = vmatpush1.bf16.msra.mxu0 %v1544
  %1554 = vmatprep.subr.bf16.mxu0 0
  %1555 = vmatpush1.bf16.msra.mxu0 0
  %1556 = vmatprep.subr.bf16.mxu0 0
  %1557 = vmatpush1.bf16.msra.mxu0 0
  %1558 = vmatprep.subr.bf16.mxu0 0
  %1559 = vmatpush1.bf16.msra.mxu0 0
  %1560 = vmatprep.subr.bf16.mxu0 0
  %1561 = vmatpush1.bf16.msra.mxu0 0
  %1562 = vmatprep.subr.bf16.mxu0 0
  %1563 = vmatpush1.bf16.msra.mxu0 0
  %1564 = vmatprep.subr.bf16.mxu0 0
  %1565 = vmatpush1.bf16.msra.mxu0 0
  %1566 = vmatprep.subr.bf16.mxu0 0
  %1567 = vmatpush1.bf16.msra.mxu0 0
  %1568 = vmatprep.subr.bf16.mxu0 0
  %1569 = vmatpush1.bf16.msra.mxu0 0
  %1570 = vmatprep.subr.bf16.mxu0 0
  %1571 = vmatpush1.bf16.msra.mxu0 0
  %1572 = vmatprep.subr.bf16.mxu0 0
  %1573 = vmatpush1.bf16.msra.mxu0 0
  %1574 = vmatprep.subr.bf16.mxu0 0
  %1575 = vmatpush1.bf16.msra.mxu0 0
  %1576 = vmatprep.subr.bf16.mxu0 0
  %1577 = vmatpush1.bf16.msra.mxu0 0
  %1578 = vmatprep.subr.bf16.mxu0 0
  %1579 = vmatpush1.bf16.msra.mxu0 0
  %1580 = vmatprep.subr.bf16.mxu0 0
  %1581 = vmatpush1.bf16.msra.mxu0 0
  %1582 = vmatprep.mubr.bf16.mxu0 0
  %1583 = vmatmul.mubr.bf16.gmra.mrb[0].mxu0 %v1548
  %v1584 = vpop.f32.mrb[0].mxu0
  %v1585 = vadd.f32 %v1533, %v1584
  %v1586 = vpop.f32.mrb[0].mxu0
  %v1587 = vpop.f32.mrb[0].mxu0
  %v1588 = vadd.f32 %v1533, %v1587
  %v1589 = vpop.f32.mrb[0].mxu0
  %1590 = vdwg.mxu0
  %v1591 = vmax.f32 %v1585, 0.0
  %v1592 = vmax.f32 %v1588, 0.0
  %v1593 = vpack.c.bf16 %v1592, %v1591
  %v1595 = vunpack.c.l.b16 %v1593
  %v1596 = vunpack.c.h.b16 %v1593
  %v1597 = vpack.c.b16 %v1595, %v1595
  %v1598 = vpack.c.b16 %v1596, %v1596
  %vm1601 = vcmask 257024
  %1602 = vst.msk [vmem:[%s16] sm:$0xf] %vm1601, %v1597
  %1603 = vst.msk [vmem:[%s16 + $0x4] sm:$0xf] %vm1601, %v1598
  // Predicated region
  $region66: #{gnn_forward.8} parent=0 // pred_check
    _
  $region67: #{gnn_forward.8} parent=0 // pred_check_branch
    %1605 = sbr.rel (0) target = $region69
  $region68: #{gnn_forward.8} parent=0 // pred_region
    _
  $region69: #{gnn_forward.8} parent=0 // pred_fallthru
    _
  // Predicated region
  $region70: #{gnn_forward.8} parent=0 // pred_check
    _
  $region71: #{gnn_forward.8} parent=0 // pred_check_branch
    %1607 = sbr.rel (0) target = $region73
  $region72: #{gnn_forward.8} parent=0 // pred_region
    _
  $region73: #{gnn_forward.8} parent=0 // pred_fallthru
    _

</llo_original>
